<compile_context>
chip_gen: v7x
topology: tpu7x:2x2x1
jax: 0.10.0
libtpu: 0.0.40
codegen_flags: <defaults>
</compile_context>

<pallas_src>
import jax
import jax.numpy as jnp
from jax.experimental import pallas as pl
from jax.experimental.pallas import tpu as pltpu


# ----------------------------------------------------------------------------
# Kernel
# ----------------------------------------------------------------------------

def usad_kernel(x_ref, w_ref, b_ref, o_ref):
    """x_ref: (TB, D) f32; w_ref: (9, D, D); b_ref: (9, D) f32; o_ref: (TB, 3*D) f32."""
    d = x_ref.shape[1]
    x = x_ref[...]                               # f32 activations on the VPU

    def linear(h, layer):
        w = w_ref[layer]                         # (D, D), static index: free
        b = b_ref[layer:layer + 1, :]            # (1, D), f32
        y = jnp.dot(h.astype(w.dtype), w, preferred_element_type=jnp.float32)
        return y + b

    def encoder(h):
        for layer in (0, 1, 2):
            h = jax.nn.relu(linear(h, layer))
        return h

    def decoder(h, base):
        h = jax.nn.relu(linear(h, base))
        h = jax.nn.relu(linear(h, base + 1))
        return jax.nn.sigmoid(linear(h, base + 2))

    # Ordered to keep at most two activations live at once and to store each
    # result as soon as it is produced (shorter live ranges, early writeback).
    z = encoder(x)                               # (TB, D)

    outs1 = decoder(z, 3)                        # decoder_1(z)
    o_ref[:, 0:d] = outs1.astype(o_ref.dtype)

    outs2 = decoder(z, 6)                        # decoder_2(z); z dead after this
    o_ref[:, d:2 * d] = outs2.astype(o_ref.dtype)

    z2 = encoder(outs1)                          # outs1 dead after this
    outs2_t = decoder(z2, 6)                     # decoder_2(encoder(outs1))
    o_ref[:, 2 * d:3 * d] = outs2_t.astype(o_ref.dtype)


# ----------------------------------------------------------------------------
# Parameter construction / packing (wrapper side)
# ----------------------------------------------------------------------------

def init_linear_params(key, in_dim, out_dim):
    """Deterministic PyTorch-like init: U(-1/sqrt(in), 1/sqrt(in)); W stored (in, out)."""
    kw, kb = jax.random.split(key)
    bound = 1.0 / jnp.sqrt(jnp.float32(in_dim))
    w = jax.random.uniform(kw, (in_dim, out_dim), jnp.float32, -bound, bound)
    b = jax.random.uniform(kb, (1, out_dim), jnp.float32, -bound, bound)
    return w, b


def make_usad_params(key, input_length, hidden_size):
    enc_dims = [(input_length, input_length // 2),
                (input_length // 2, input_length // 4),
                (input_length // 4, hidden_size)]
    dec_dims = [(hidden_size, input_length // 4),
                (input_length // 4, input_length // 2),
                (input_length // 2, input_length)]
    keys = jax.random.split(key, 9)
    enc = [init_linear_params(keys[i], *enc_dims[i]) for i in range(3)]
    dec1 = [init_linear_params(keys[3 + i], *dec_dims[i]) for i in range(3)]
    dec2 = [init_linear_params(keys[6 + i], *dec_dims[i]) for i in range(3)]
    return enc, dec1, dec2


def _round_up(n, m):
    return ((n + m - 1) // m) * m


def pack_params(enc, dec1, dec2, d_pad, param_dtype):
    """Pack 9 (W, b) pairs into one lane-dense weight slab + one bias slab."""
    layers = list(enc) + list(dec1) + list(dec2)
    w_slab = jnp.zeros((9, d_pad, d_pad), jnp.float32)
    b_slab = jnp.zeros((9, d_pad), jnp.float32)
    for i, (w, b) in enumerate(layers):
        di, do = w.shape
        w_slab = w_slab.at[i, :di, :do].set(w)
        b_slab = b_slab.at[i, :do].set(b.reshape(-1))
    return w_slab.astype(param_dtype), b_slab


# ----------------------------------------------------------------------------
# Host wrapper
# ----------------------------------------------------------------------------

def usad_forward(x, enc, dec1, dec2, *, tile_b=512, param_dtype=jnp.bfloat16,
                 vmem_limit_bytes=None):
    """x: (batch, input_length) f32 -> (outs1, outs2, outs2_t), each (batch, input_length)."""
    batch, feat = x.shape
    widths = [feat] + [w.shape[1] for (w, _) in list(enc) + list(dec1) + list(dec2)]
    d_pad = _round_up(max(widths), 128)
    # TODO(synk): per-layer rectangular padding (out_dim->128 lanes, in_dim->8/16
    # sublanes) would cut weight VMEM/DMA ~10x for input_length >> 128; at the
    # sizes used here d_pad is already the 128-lane minimum, so it is moot.

    # Keep >= 2 grid steps whenever the batch allows it (v7x: shard across both
    # TensorCores via "parallel"); tile rows stay a multiple of 8 (f32 sublanes).
    tile_b = max(8, min(tile_b, _round_up(pl.cdiv(batch, 2), 8)))
    b_pad = _round_up(batch, tile_b)
    grid = (b_pad // tile_b,)

    w_slab, b_slab = pack_params(enc, dec1, dec2, d_pad, param_dtype)
    x_pad = jnp.zeros((b_pad, d_pad), jnp.float32).at[:batch, :feat].set(x)

    cp_kwargs = dict(dimension_semantics=("parallel",))
    if vmem_limit_bytes is not None:
        cp_kwargs["vmem_limit_bytes"] = vmem_limit_bytes

    vmem = pltpu.MemorySpace.VMEM
    out = pl.pallas_call(
        usad_kernel,
        out_shape=jax.ShapeDtypeStruct((b_pad, 3 * d_pad), jnp.float32),
        grid=grid,
        in_specs=[
            pl.BlockSpec((tile_b, d_pad), lambda i: (i, 0)),   # row-tiled input
            pl.BlockSpec(memory_space=vmem),                   # weight slab: 1 DMA, VMEM-resident
            pl.BlockSpec(memory_space=vmem),                   # bias slab:   1 DMA, VMEM-resident
        ],
        out_specs=pl.BlockSpec((tile_b, 3 * d_pad), lambda i: (i, 0)),
        compiler_params=pltpu.CompilerParams(**cp_kwargs),
    )(x_pad, w_slab, b_slab)

    outs1 = out[:batch, 0:feat]
    outs2 = out[:batch, d_pad:d_pad + feat]
    outs2_t = out[:batch, 2 * d_pad:2 * d_pad + feat]
    return outs1, outs2, outs2_t


# ----------------------------------------------------------------------------
# Plain-JAX reference (mirrors the PyTorch forward)
# ----------------------------------------------------------------------------

def usad_reference(x, enc, dec1, dec2):
    def run(h, layers, acts):
        for (w, b), act in zip(layers, acts):
            h = act(h @ w + b)
        return h

    relu3 = [jax.nn.relu] * 3
    dec_acts = [jax.nn.relu, jax.nn.relu, jax.nn.sigmoid]
    z = run(x, enc, relu3)
    o1 = run(z, dec1, dec_acts)
    o2 = run(z, dec2, dec_acts)
    o2t = run(run(o1, enc, relu3), dec2, dec_acts)
    return o1, o2, o2t


if __name__ == "__main__":
    input_length = 64     # feat not a multiple of 128 (guards the padding invariant)
    hidden_size = 8       # hidden << feat
    batch = 1024          # many sliding windows stacked -> tile_b=512, grid=(2,)

    key = jax.random.PRNGKey(0)
    k_x, k_p = jax.random.split(key)
    x = jax.random.normal(k_x, (batch, input_length), jnp.float32)
    enc, dec1, dec2 = make_usad_params(k_p, input_length, hidden_size)

    # f32 path: exact module semantics.
    o1, o2, o2t = usad_forward(x, enc, dec1, dec2, param_dtype=jnp.float32)
    jax.block_until_ready((o1, o2, o2t))

    r1, r2, r2t = usad_reference(x, enc, dec1, dec2)
    assert jnp.allclose(o1, r1, atol=1e-5, rtol=1e-5)
    assert jnp.allclose(o2, r2, atol=1e-5, rtol=1e-5)
    assert jnp.allclose(o2t, r2t, atol=1e-5, rtol=1e-5)

    # Default bf16-weight / f32-accumulate path (MXU-native on all generations).
    b1, b2, b2t = usad_forward(x, enc, dec1, dec2)
    jax.block_until_ready((b1, b2, b2t))
    assert jnp.max(jnp.abs(b1 - r1)) < 5e-2
    assert jnp.max(jnp.abs(b2 - r2)) < 5e-2
    assert jnp.max(jnp.abs(b2t - r2t)) < 5e-2

    print("KERNEL_OK")
</pallas_src>

<mosaic_0001>
module attributes {stable_mosaic.version = 11 : i64} {
  func.func @usad_kernel(%arg0: i32, %arg1: memref<512x128xf32, #tpu.memory_space<vmem>>, %arg2: memref<9x128x128xf32, #tpu.memory_space<vmem>>, %arg3: memref<9x128xf32, #tpu.memory_space<vmem>>, %arg4: memref<512x384xf32, #tpu.memory_space<vmem>>) attributes {dimension_semantics = [#tpu.dimension_semantics<parallel>], iteration_bounds = array<i64: 2>, scalar_prefetch = 0 : i64, scratch_operands = 0 : i64, tpu.core_type = #tpu.core_type<tc>, window_params = [{transform_indices = @transform_0, window_bounds = array<i64: 512, 128>}, {pipeline_mode = #tpu.pipeline_mode<synchronous>, transform_indices = @transform_1, window_bounds = array<i64: 9, 128, 128>}, {pipeline_mode = #tpu.pipeline_mode<synchronous>, transform_indices = @transform_2, window_bounds = array<i64: 9, 128>}, {transform_indices = @transform_3, window_bounds = array<i64: 512, 384>}]} {
    %c0 = arith.constant 0 : index
    %c0_0 = arith.constant 0 : index
    %0 = vector.load %arg1[%c0, %c0_0] : memref<512x128xf32, #tpu.memory_space<vmem>>, vector<512x128xf32>
    %c0_1 = arith.constant 0 : index
    %c0_2 = arith.constant 0 : index
    %c0_3 = arith.constant 0 : index
    %1 = vector.load %arg2[%c0_1, %c0_2, %c0_3] : memref<9x128x128xf32, #tpu.memory_space<vmem>>, vector<1x128x128xf32>
    %2 = vector.shape_cast %1 : vector<1x128x128xf32> to vector<128x128xf32>
    %c0_4 = arith.constant 0 : index
    %c0_5 = arith.constant 0 : index
    %3 = vector.load %arg3[%c0_4, %c0_5] : memref<9x128xf32, #tpu.memory_space<vmem>>, vector<1x128xf32>
    %cst = arith.constant dense<0.000000e+00> : vector<512x128xf32>
    %4 = tpu.matmul %0, %2, %cst {dimension_numbers = #tpu.dot_dimension_numbers<[1], [0], [0], [1], [0, 0, 1, 1], [], []>} : vector<512x128xf32>, vector<128x128xf32>, vector<512x128xf32> -> vector<512x128xf32>
    %5 = vector.broadcast %3 : vector<1x128xf32> to vector<512x128xf32>
    %6 = arith.addf %4, %5 : vector<512x128xf32>
    %cst_6 = arith.constant 0.000000e+00 : f32
    %7 = vector.broadcast %cst_6 : f32 to vector<512x128xf32>
    %8 = arith.maximumf %6, %7 : vector<512x128xf32>
    %c1 = arith.constant 1 : index
    %c0_7 = arith.constant 0 : index
    %c0_8 = arith.constant 0 : index
    %9 = vector.load %arg2[%c1, %c0_7, %c0_8] : memref<9x128x128xf32, #tpu.memory_space<vmem>>, vector<1x128x128xf32>
    %10 = vector.shape_cast %9 : vector<1x128x128xf32> to vector<128x128xf32>
    %c1_9 = arith.constant 1 : index
    %c0_10 = arith.constant 0 : index
    %11 = vector.load %arg3[%c1_9, %c0_10] : memref<9x128xf32, #tpu.memory_space<vmem>>, vector<1x128xf32>
    %cst_11 = arith.constant dense<0.000000e+00> : vector<512x128xf32>
    %12 = tpu.matmul %8, %10, %cst_11 {dimension_numbers = #tpu.dot_dimension_numbers<[1], [0], [0], [1], [0, 0, 1, 1], [], []>} : vector<512x128xf32>, vector<128x128xf32>, vector<512x128xf32> -> vector<512x128xf32>
    %13 = vector.broadcast %11 : vector<1x128xf32> to vector<512x128xf32>
    %14 = arith.addf %12, %13 : vector<512x128xf32>
    %cst_12 = arith.constant 0.000000e+00 : f32
    %15 = vector.broadcast %cst_12 : f32 to vector<512x128xf32>
    %16 = arith.maximumf %14, %15 : vector<512x128xf32>
    %c2 = arith.constant 2 : index
    %c0_13 = arith.constant 0 : index
    %c0_14 = arith.constant 0 : index
    %17 = vector.load %arg2[%c2, %c0_13, %c0_14] : memref<9x128x128xf32, #tpu.memory_space<vmem>>, vector<1x128x128xf32>
    %18 = vector.shape_cast %17 : vector<1x128x128xf32> to vector<128x128xf32>
    %c2_15 = arith.constant 2 : index
    %c0_16 = arith.constant 0 : index
    %19 = vector.load %arg3[%c2_15, %c0_16] : memref<9x128xf32, #tpu.memory_space<vmem>>, vector<1x128xf32>
    %cst_17 = arith.constant dense<0.000000e+00> : vector<512x128xf32>
    %20 = tpu.matmul %16, %18, %cst_17 {dimension_numbers = #tpu.dot_dimension_numbers<[1], [0], [0], [1], [0, 0, 1, 1], [], []>} : vector<512x128xf32>, vector<128x128xf32>, vector<512x128xf32> -> vector<512x128xf32>
    %21 = vector.broadcast %19 : vector<1x128xf32> to vector<512x128xf32>
    %22 = arith.addf %20, %21 : vector<512x128xf32>
    %cst_18 = arith.constant 0.000000e+00 : f32
    %23 = vector.broadcast %cst_18 : f32 to vector<512x128xf32>
    %24 = arith.maximumf %22, %23 : vector<512x128xf32>
    %c3 = arith.constant 3 : index
    %c0_19 = arith.constant 0 : index
    %c0_20 = arith.constant 0 : index
    %25 = vector.load %arg2[%c3, %c0_19, %c0_20] : memref<9x128x128xf32, #tpu.memory_space<vmem>>, vector<1x128x128xf32>
    %26 = vector.shape_cast %25 : vector<1x128x128xf32> to vector<128x128xf32>
    %c3_21 = arith.constant 3 : index
    %c0_22 = arith.constant 0 : index
    %27 = vector.load %arg3[%c3_21, %c0_22] : memref<9x128xf32, #tpu.memory_space<vmem>>, vector<1x128xf32>
    %cst_23 = arith.constant dense<0.000000e+00> : vector<512x128xf32>
    %28 = tpu.matmul %24, %26, %cst_23 {dimension_numbers = #tpu.dot_dimension_numbers<[1], [0], [0], [1], [0, 0, 1, 1], [], []>} : vector<512x128xf32>, vector<128x128xf32>, vector<512x128xf32> -> vector<512x128xf32>
    %29 = vector.broadcast %27 : vector<1x128xf32> to vector<512x128xf32>
    %30 = arith.addf %28, %29 : vector<512x128xf32>
    %cst_24 = arith.constant 0.000000e+00 : f32
    %31 = vector.broadcast %cst_24 : f32 to vector<512x128xf32>
    %32 = arith.maximumf %30, %31 : vector<512x128xf32>
    %c4 = arith.constant 4 : index
    %c0_25 = arith.constant 0 : index
    %c0_26 = arith.constant 0 : index
    %33 = vector.load %arg2[%c4, %c0_25, %c0_26] : memref<9x128x128xf32, #tpu.memory_space<vmem>>, vector<1x128x128xf32>
    %34 = vector.shape_cast %33 : vector<1x128x128xf32> to vector<128x128xf32>
    %c4_27 = arith.constant 4 : index
    %c0_28 = arith.constant 0 : index
    %35 = vector.load %arg3[%c4_27, %c0_28] : memref<9x128xf32, #tpu.memory_space<vmem>>, vector<1x128xf32>
    %cst_29 = arith.constant dense<0.000000e+00> : vector<512x128xf32>
    %36 = tpu.matmul %32, %34, %cst_29 {dimension_numbers = #tpu.dot_dimension_numbers<[1], [0], [0], [1], [0, 0, 1, 1], [], []>} : vector<512x128xf32>, vector<128x128xf32>, vector<512x128xf32> -> vector<512x128xf32>
    %37 = vector.broadcast %35 : vector<1x128xf32> to vector<512x128xf32>
    %38 = arith.addf %36, %37 : vector<512x128xf32>
    %cst_30 = arith.constant 0.000000e+00 : f32
    %39 = vector.broadcast %cst_30 : f32 to vector<512x128xf32>
    %40 = arith.maximumf %38, %39 : vector<512x128xf32>
    %c5 = arith.constant 5 : index
    %c0_31 = arith.constant 0 : index
    %c0_32 = arith.constant 0 : index
    %41 = vector.load %arg2[%c5, %c0_31, %c0_32] : memref<9x128x128xf32, #tpu.memory_space<vmem>>, vector<1x128x128xf32>
    %42 = vector.shape_cast %41 : vector<1x128x128xf32> to vector<128x128xf32>
    %c5_33 = arith.constant 5 : index
    %c0_34 = arith.constant 0 : index
    %43 = vector.load %arg3[%c5_33, %c0_34] : memref<9x128xf32, #tpu.memory_space<vmem>>, vector<1x128xf32>
    %cst_35 = arith.constant dense<0.000000e+00> : vector<512x128xf32>
    %44 = tpu.matmul %40, %42, %cst_35 {dimension_numbers = #tpu.dot_dimension_numbers<[1], [0], [0], [1], [0, 0, 1, 1], [], []>} : vector<512x128xf32>, vector<128x128xf32>, vector<512x128xf32> -> vector<512x128xf32>
    %45 = vector.broadcast %43 : vector<1x128xf32> to vector<512x128xf32>
    %46 = arith.addf %44, %45 : vector<512x128xf32>
    %47 = arith.negf %46 : vector<512x128xf32>
    %48 = math.exp %47 : vector<512x128xf32>
    %cst_36 = arith.constant 1.000000e+00 : f32
    %49 = vector.broadcast %cst_36 : f32 to vector<512x128xf32>
    %50 = arith.addf %49, %48 : vector<512x128xf32>
    %51 = arith.divf %49, %50 : vector<512x128xf32>
    %c0_37 = arith.constant 0 : index
    %c0_38 = arith.constant 0 : index
    %52 = vector.load %arg4[%c0_37, %c0_38] : memref<512x384xf32, #tpu.memory_space<vmem>>, vector<512x128xf32>
    tpu.vector_store %arg4[%c0_37, %c0_38], %51 {strides = array<i32>} : memref<512x384xf32, #tpu.memory_space<vmem>>, vector<512x128xf32>,
    %c6 = arith.constant 6 : index
    %c0_39 = arith.constant 0 : index
    %c0_40 = arith.constant 0 : index
    %53 = vector.load %arg2[%c6, %c0_39, %c0_40] : memref<9x128x128xf32, #tpu.memory_space<vmem>>, vector<1x128x128xf32>
    %54 = vector.shape_cast %53 : vector<1x128x128xf32> to vector<128x128xf32>
    %c6_41 = arith.constant 6 : index
    %c0_42 = arith.constant 0 : index
    %55 = vector.load %arg3[%c6_41, %c0_42] : memref<9x128xf32, #tpu.memory_space<vmem>>, vector<1x128xf32>
    %cst_43 = arith.constant dense<0.000000e+00> : vector<512x128xf32>
    %56 = tpu.matmul %24, %54, %cst_43 {dimension_numbers = #tpu.dot_dimension_numbers<[1], [0], [0], [1], [0, 0, 1, 1], [], []>} : vector<512x128xf32>, vector<128x128xf32>, vector<512x128xf32> -> vector<512x128xf32>
    %57 = vector.broadcast %55 : vector<1x128xf32> to vector<512x128xf32>
    %58 = arith.addf %56, %57 : vector<512x128xf32>
    %cst_44 = arith.constant 0.000000e+00 : f32
    %59 = vector.broadcast %cst_44 : f32 to vector<512x128xf32>
    %60 = arith.maximumf %58, %59 : vector<512x128xf32>
    %c7 = arith.constant 7 : index
    %c0_45 = arith.constant 0 : index
    %c0_46 = arith.constant 0 : index
    %61 = vector.load %arg2[%c7, %c0_45, %c0_46] : memref<9x128x128xf32, #tpu.memory_space<vmem>>, vector<1x128x128xf32>
    %62 = vector.shape_cast %61 : vector<1x128x128xf32> to vector<128x128xf32>
    %c7_47 = arith.constant 7 : index
    %c0_48 = arith.constant 0 : index
    %63 = vector.load %arg3[%c7_47, %c0_48] : memref<9x128xf32, #tpu.memory_space<vmem>>, vector<1x128xf32>
    %cst_49 = arith.constant dense<0.000000e+00> : vector<512x128xf32>
    %64 = tpu.matmul %60, %62, %cst_49 {dimension_numbers = #tpu.dot_dimension_numbers<[1], [0], [0], [1], [0, 0, 1, 1], [], []>} : vector<512x128xf32>, vector<128x128xf32>, vector<512x128xf32> -> vector<512x128xf32>
    %65 = vector.broadcast %63 : vector<1x128xf32> to vector<512x128xf32>
    %66 = arith.addf %64, %65 : vector<512x128xf32>
    %cst_50 = arith.constant 0.000000e+00 : f32
    %67 = vector.broadcast %cst_50 : f32 to vector<512x128xf32>
    %68 = arith.maximumf %66, %67 : vector<512x128xf32>
    %c8 = arith.constant 8 : index
    %c0_51 = arith.constant 0 : index
    %c0_52 = arith.constant 0 : index
    %69 = vector.load %arg2[%c8, %c0_51, %c0_52] : memref<9x128x128xf32, #tpu.memory_space<vmem>>, vector<1x128x128xf32>
    %70 = vector.shape_cast %69 : vector<1x128x128xf32> to vector<128x128xf32>
    %c8_53 = arith.constant 8 : index
    %c0_54 = arith.constant 0 : index
    %71 = vector.load %arg3[%c8_53, %c0_54] : memref<9x128xf32, #tpu.memory_space<vmem>>, vector<1x128xf32>
    %cst_55 = arith.constant dense<0.000000e+00> : vector<512x128xf32>
    %72 = tpu.matmul %68, %70, %cst_55 {dimension_numbers = #tpu.dot_dimension_numbers<[1], [0], [0], [1], [0, 0, 1, 1], [], []>} : vector<512x128xf32>, vector<128x128xf32>, vector<512x128xf32> -> vector<512x128xf32>
    %73 = vector.broadcast %71 : vector<1x128xf32> to vector<512x128xf32>
    %74 = arith.addf %72, %73 : vector<512x128xf32>
    %75 = arith.negf %74 : vector<512x128xf32>
    %76 = math.exp %75 : vector<512x128xf32>
    %cst_56 = arith.constant 1.000000e+00 : f32
    %77 = vector.broadcast %cst_56 : f32 to vector<512x128xf32>
    %78 = arith.addf %77, %76 : vector<512x128xf32>
    %79 = arith.divf %77, %78 : vector<512x128xf32>
    %c0_57 = arith.constant 0 : index
    %c128 = arith.constant 128 : index
    %80 = vector.load %arg4[%c0_57, %c128] : memref<512x384xf32, #tpu.memory_space<vmem>>, vector<512x128xf32>
    tpu.vector_store %arg4[%c0_57, %c128], %79 {strides = array<i32>} : memref<512x384xf32, #tpu.memory_space<vmem>>, vector<512x128xf32>,
    %c0_58 = arith.constant 0 : index
    %c0_59 = arith.constant 0 : index
    %c0_60 = arith.constant 0 : index
    %81 = vector.load %arg2[%c0_58, %c0_59, %c0_60] : memref<9x128x128xf32, #tpu.memory_space<vmem>>, vector<1x128x128xf32>
    %82 = vector.shape_cast %81 : vector<1x128x128xf32> to vector<128x128xf32>
    %c0_61 = arith.constant 0 : index
    %c0_62 = arith.constant 0 : index
    %83 = vector.load %arg3[%c0_61, %c0_62] : memref<9x128xf32, #tpu.memory_space<vmem>>, vector<1x128xf32>
    %cst_63 = arith.constant dense<0.000000e+00> : vector<512x128xf32>
    %84 = tpu.matmul %51, %82, %cst_63 {dimension_numbers = #tpu.dot_dimension_numbers<[1], [0], [0], [1], [0, 0, 1, 1], [], []>} : vector<512x128xf32>, vector<128x128xf32>, vector<512x128xf32> -> vector<512x128xf32>
    %85 = vector.broadcast %83 : vector<1x128xf32> to vector<512x128xf32>
    %86 = arith.addf %84, %85 : vector<512x128xf32>
    %cst_64 = arith.constant 0.000000e+00 : f32
    %87 = vector.broadcast %cst_64 : f32 to vector<512x128xf32>
    %88 = arith.maximumf %86, %87 : vector<512x128xf32>
    %c1_65 = arith.constant 1 : index
    %c0_66 = arith.constant 0 : index
    %c0_67 = arith.constant 0 : index
    %89 = vector.load %arg2[%c1_65, %c0_66, %c0_67] : memref<9x128x128xf32, #tpu.memory_space<vmem>>, vector<1x128x128xf32>
    %90 = vector.shape_cast %89 : vector<1x128x128xf32> to vector<128x128xf32>
    %c1_68 = arith.constant 1 : index
    %c0_69 = arith.constant 0 : index
    %91 = vector.load %arg3[%c1_68, %c0_69] : memref<9x128xf32, #tpu.memory_space<vmem>>, vector<1x128xf32>
    %cst_70 = arith.constant dense<0.000000e+00> : vector<512x128xf32>
    %92 = tpu.matmul %88, %90, %cst_70 {dimension_numbers = #tpu.dot_dimension_numbers<[1], [0], [0], [1], [0, 0, 1, 1], [], []>} : vector<512x128xf32>, vector<128x128xf32>, vector<512x128xf32> -> vector<512x128xf32>
    %93 = vector.broadcast %91 : vector<1x128xf32> to vector<512x128xf32>
    %94 = arith.addf %92, %93 : vector<512x128xf32>
    %cst_71 = arith.constant 0.000000e+00 : f32
    %95 = vector.broadcast %cst_71 : f32 to vector<512x128xf32>
    %96 = arith.maximumf %94, %95 : vector<512x128xf32>
    %c2_72 = arith.constant 2 : index
    %c0_73 = arith.constant 0 : index
    %c0_74 = arith.constant 0 : index
    %97 = vector.load %arg2[%c2_72, %c0_73, %c0_74] : memref<9x128x128xf32, #tpu.memory_space<vmem>>, vector<1x128x128xf32>
    %98 = vector.shape_cast %97 : vector<1x128x128xf32> to vector<128x128xf32>
    %c2_75 = arith.constant 2 : index
    %c0_76 = arith.constant 0 : index
    %99 = vector.load %arg3[%c2_75, %c0_76] : memref<9x128xf32, #tpu.memory_space<vmem>>, vector<1x128xf32>
    %cst_77 = arith.constant dense<0.000000e+00> : vector<512x128xf32>
    %100 = tpu.matmul %96, %98, %cst_77 {dimension_numbers = #tpu.dot_dimension_numbers<[1], [0], [0], [1], [0, 0, 1, 1], [], []>} : vector<512x128xf32>, vector<128x128xf32>, vector<512x128xf32> -> vector<512x128xf32>
    %101 = vector.broadcast %99 : vector<1x128xf32> to vector<512x128xf32>
    %102 = arith.addf %100, %101 : vector<512x128xf32>
    %cst_78 = arith.constant 0.000000e+00 : f32
    %103 = vector.broadcast %cst_78 : f32 to vector<512x128xf32>
    %104 = arith.maximumf %102, %103 : vector<512x128xf32>
    %c6_79 = arith.constant 6 : index
    %c0_80 = arith.constant 0 : index
    %c0_81 = arith.constant 0 : index
    %105 = vector.load %arg2[%c6_79, %c0_80, %c0_81] : memref<9x128x128xf32, #tpu.memory_space<vmem>>, vector<1x128x128xf32>
    %106 = vector.shape_cast %105 : vector<1x128x128xf32> to vector<128x128xf32>
    %c6_82 = arith.constant 6 : index
    %c0_83 = arith.constant 0 : index
    %107 = vector.load %arg3[%c6_82, %c0_83] : memref<9x128xf32, #tpu.memory_space<vmem>>, vector<1x128xf32>
    %cst_84 = arith.constant dense<0.000000e+00> : vector<512x128xf32>
    %108 = tpu.matmul %104, %106, %cst_84 {dimension_numbers = #tpu.dot_dimension_numbers<[1], [0], [0], [1], [0, 0, 1, 1], [], []>} : vector<512x128xf32>, vector<128x128xf32>, vector<512x128xf32> -> vector<512x128xf32>
    %109 = vector.broadcast %107 : vector<1x128xf32> to vector<512x128xf32>
    %110 = arith.addf %108, %109 : vector<512x128xf32>
    %cst_85 = arith.constant 0.000000e+00 : f32
    %111 = vector.broadcast %cst_85 : f32 to vector<512x128xf32>
    %112 = arith.maximumf %110, %111 : vector<512x128xf32>
    %c7_86 = arith.constant 7 : index
    %c0_87 = arith.constant 0 : index
    %c0_88 = arith.constant 0 : index
    %113 = vector.load %arg2[%c7_86, %c0_87, %c0_88] : memref<9x128x128xf32, #tpu.memory_space<vmem>>, vector<1x128x128xf32>
    %114 = vector.shape_cast %113 : vector<1x128x128xf32> to vector<128x128xf32>
    %c7_89 = arith.constant 7 : index
    %c0_90 = arith.constant 0 : index
    %115 = vector.load %arg3[%c7_89, %c0_90] : memref<9x128xf32, #tpu.memory_space<vmem>>, vector<1x128xf32>
    %cst_91 = arith.constant dense<0.000000e+00> : vector<512x128xf32>
    %116 = tpu.matmul %112, %114, %cst_91 {dimension_numbers = #tpu.dot_dimension_numbers<[1], [0], [0], [1], [0, 0, 1, 1], [], []>} : vector<512x128xf32>, vector<128x128xf32>, vector<512x128xf32> -> vector<512x128xf32>
    %117 = vector.broadcast %115 : vector<1x128xf32> to vector<512x128xf32>
    %118 = arith.addf %116, %117 : vector<512x128xf32>
    %cst_92 = arith.constant 0.000000e+00 : f32
    %119 = vector.broadcast %cst_92 : f32 to vector<512x128xf32>
    %120 = arith.maximumf %118, %119 : vector<512x128xf32>
    %c8_93 = arith.constant 8 : index
    %c0_94 = arith.constant 0 : index
    %c0_95 = arith.constant 0 : index
    %121 = vector.load %arg2[%c8_93, %c0_94, %c0_95] : memref<9x128x128xf32, #tpu.memory_space<vmem>>, vector<1x128x128xf32>
    %122 = vector.shape_cast %121 : vector<1x128x128xf32> to vector<128x128xf32>
    %c8_96 = arith.constant 8 : index
    %c0_97 = arith.constant 0 : index
    %123 = vector.load %arg3[%c8_96, %c0_97] : memref<9x128xf32, #tpu.memory_space<vmem>>, vector<1x128xf32>
    %cst_98 = arith.constant dense<0.000000e+00> : vector<512x128xf32>
    %124 = tpu.matmul %120, %122, %cst_98 {dimension_numbers = #tpu.dot_dimension_numbers<[1], [0], [0], [1], [0, 0, 1, 1], [], []>} : vector<512x128xf32>, vector<128x128xf32>, vector<512x128xf32> -> vector<512x128xf32>
    %125 = vector.broadcast %123 : vector<1x128xf32> to vector<512x128xf32>
    %126 = arith.addf %124, %125 : vector<512x128xf32>
    %127 = arith.negf %126 : vector<512x128xf32>
    %128 = math.exp %127 : vector<512x128xf32>
    %cst_99 = arith.constant 1.000000e+00 : f32
    %129 = vector.broadcast %cst_99 : f32 to vector<512x128xf32>
    %130 = arith.addf %129, %128 : vector<512x128xf32>
    %131 = arith.divf %129, %130 : vector<512x128xf32>
    %c0_100 = arith.constant 0 : index
    %c256 = arith.constant 256 : index
    %132 = vector.load %arg4[%c0_100, %c256] : memref<512x384xf32, #tpu.memory_space<vmem>>, vector<512x128xf32>
    tpu.vector_store %arg4[%c0_100, %c256], %131 {strides = array<i32>} : memref<512x384xf32, #tpu.memory_space<vmem>>, vector<512x128xf32>,
    return
  }
  func.func @transform_0(%arg0: i32) -> (i32, i32) {
    %c0_i32 = arith.constant 0 : i32
    %c0_i32_0 = arith.constant 0 : i32
    return %arg0, %c0_i32 : i32, i32
  }
  func.func @transform_1(%arg0: i32) -> (i32, i32, i32) {
    %c0_i32 = arith.constant 0 : i32
    %c0_i32_0 = arith.constant 0 : i32
    %c0_i32_1 = arith.constant 0 : i32
    %c0_i32_2 = arith.constant 0 : i32
    return %c0_i32, %c0_i32_0, %c0_i32_1 : i32, i32, i32
  }
  func.func @transform_2(%arg0: i32) -> (i32, i32) {
    %c0_i32 = arith.constant 0 : i32
    %c0_i32_0 = arith.constant 0 : i32
    %c0_i32_1 = arith.constant 0 : i32
    return %c0_i32, %c0_i32_0 : i32, i32
  }
  func.func @transform_3(%arg0: i32) -> (i32, i32) {
    %c0_i32 = arith.constant 0 : i32
    %c0_i32_0 = arith.constant 0 : i32
    return %arg0, %c0_i32 : i32, i32
  }
}

</mosaic_0001>

<llo_original>
// kernel: tpu_custom_call.1
$region0: #{tpu_custom_call.1}
  #allocation0 [shape = 'u32[]', space=smem, size = 0x4, offset = 0x4, fixed_abs, tag = 'smem constant byte address 0x4 - core index']
  #allocation1 [shape = 'u32[144,128]{1,0:T(1,128)}', space=vmem, size = 0x12000, scoped, tag = 'internal scratch']
  %s0 = inlined_call_operand.hbm [shape: f32[1024,128], index: 0, kind: input, shape index: {}]
  %s1 = inlined_call_operand.hbm [shape: f32[9,128,128], index: 1, kind: input, shape index: {}]
  %s2 = inlined_call_operand.hbm [shape: f32[9,128], index: 2, kind: input, shape index: {}]
  %s3 = inlined_call_operand.hbm [shape: f32[1024,384], index: 3, kind: output, shape index: {}]
  %s4 = sld [smem:[#allocation0]]
  $region57: #{tpu_custom_call.1} parent=0
    _
  %s6 = ssub.s32 1, %s4
  %s7 = scalar_select 0, %s6, %s4
  $region1: #{tpu_custom_call.1} parent=0
    #allocation2 [shape = 'u8[524288]{0}', space=vmem, size = 0x80000, scoped, tag = 'input window, operand 0']
    #allocation3 [shape = 's32[2]{0}', space=sflag, size = 0x8, scoped, tag = 'scoped memory for tpu_custom_call.1']
    #allocation4 [shape = 's32[2]{0}', space=sflag, size = 0x8, scoped, tag = 'scoped memory for tpu_custom_call.1']
    #allocation5 [shape = 'u8[589824]{0}', space=vmem, size = 0x90000, scoped, tag = 'input window, operand 1, single buffered']
    #allocation6 [shape = 's32[1]{0}', space=sflag, size = 0x4, scoped, tag = 'scoped memory for tpu_custom_call.1']
    #allocation7 [shape = 'u8[8192]{0}', space=vmem, size = 0x2000, scoped, tag = 'input window, operand 2, single buffered']
    #allocation8 [shape = 'u8[1572864]{0}', space=vmem, size = 0x180000, scoped, tag = 'output window, operand 0']
    %8 = vsyncpa [#allocation3], 0
    %s9 = scalar_lea.sflag [#allocation3], 1
    %10 = vsyncpa %s9, 0
    %11 = vsyncpa [#allocation6], 0
    %12 = vsyncpa [#allocation4], 0
    %s13 = scalar_lea.sflag [#allocation4], 1
    %14 = vsyncpa %s13, 0
    loop: start=0, step=1, limit=4
    $region2: #{tpu_custom_call.1} parent=1 // loop_pre_header
      _
    $region3: #{tpu_custom_call.1} parent=1 // loop_header
      %s16 = sphi 0, %s20
      %p17 = scmp.ge.s32.totalorder %s16, 4
      %s26 = sphi 0, %s28
      %s29 = sphi 0, %s26
      %s30 = sphi 0, %s29
      %s46 = sphi 0, %s30
      %s50 = sphi 0, %s50
      %s52 = sphi 0, %s50
      %s53 = sphi 0, %s52
      %s67 = sphi 0, %s53
      %s71 = sphi 0, %s71
      %s73 = sphi 0, %s71
      %s74 = sphi 0, %s73
      %s88 = sphi 0, %s74
      %s94 = sphi 0, %s96
      %s97 = sphi 0, %s94
      %s98 = sphi 0, %s97
      %s114 = sphi 0, %s98
    $region4: #{tpu_custom_call.1} parent=1 // loop_header_branch
      %19 = sbr.rel (%p17) target = $region8
    $region5: #{tpu_custom_call.1} parent=1 // loop_body
      %s21 = ssub.s32 %s16, 1
      %s22 = ssub.s32 %s16, 2
      %s23 = sadd.s32 %s16, 1
      %s24 = ssub.s32 %s16, %s23
      %p25 = scmp.eq.s32.totalorder %s24, 0
      %s27 = sadd.s32 %s26, 1
      %s28 = scalar_select %p25, %s26, %s27
      %p31 = pneg %p25
      %p32 = scmp.eq.s32.totalorder %s16, 1
      %p33 = por %p31, %p32
      %p34 = scmp.ne.s32.totalorder %s26, %s29
      %p35 = scmp.eq.s32.totalorder %s16, 0
      %p36 = por %p34, %p35
      %p37 = scmp.ne.s32.totalorder %s26, %s29
      %p38 = scmp.eq.s32.totalorder %s21, 1
      %p39 = por %p37, %p38
      %p40 = scmp.ne.s32.totalorder %s29, %s30
      %p41 = scmp.eq.s32.totalorder %s21, 0
      %p42 = por %p40, %p41
      %p43 = scmp.ne.s32.totalorder %s29, %s30
      %p44 = scmp.eq.s32.totalorder %s22, 1
      %p45 = por %p43, %p44
      %p47 = scmp.ne.s32.totalorder %s30, %s46
      %p48 = scmp.eq.s32.totalorder %s22, 0
      %p49 = por %p47, %p48
      %s51 = sadd.s32 %s50, 1
      %p54 = scmp.eq.s32.totalorder %s16, 1
      %p55 = scmp.ne.s32.totalorder %s50, %s52
      %p56 = scmp.eq.s32.totalorder %s16, 0
      %p57 = por %p55, %p56
      %p58 = scmp.ne.s32.totalorder %s50, %s52
      %p59 = scmp.eq.s32.totalorder %s21, 1
      %p60 = por %p58, %p59
      %p61 = scmp.ne.s32.totalorder %s52, %s53
      %p62 = scmp.eq.s32.totalorder %s21, 0
      %p63 = por %p61, %p62
      %p64 = scmp.ne.s32.totalorder %s52, %s53
      %p65 = scmp.eq.s32.totalorder %s22, 1
      %p66 = por %p64, %p65
      %p68 = scmp.ne.s32.totalorder %s53, %s67
      %p69 = scmp.eq.s32.totalorder %s22, 0
      %p70 = por %p68, %p69
      %s72 = sadd.s32 %s71, 1
      %p75 = scmp.eq.s32.totalorder %s16, 1
      %p76 = scmp.ne.s32.totalorder %s71, %s73
      %p77 = scmp.eq.s32.totalorder %s16, 0
      %p78 = por %p76, %p77
      %p79 = scmp.ne.s32.totalorder %s71, %s73
      %p80 = scmp.eq.s32.totalorder %s21, 1
      %p81 = por %p79, %p80
      %p82 = scmp.ne.s32.totalorder %s73, %s74
      %p83 = scmp.eq.s32.totalorder %s21, 0
      %p84 = por %p82, %p83
      %p85 = scmp.ne.s32.totalorder %s73, %s74
      %p86 = scmp.eq.s32.totalorder %s22, 1
      %p87 = por %p85, %p86
      %p89 = scmp.ne.s32.totalorder %s74, %s88
      %p90 = scmp.eq.s32.totalorder %s22, 0
      %p91 = por %p89, %p90
      %s92 = ssub.s32 %s16, %s23
      %p93 = scmp.eq.s32.totalorder %s92, 0
      %s95 = sadd.s32 %s94, 1
      %s96 = scalar_select %p93, %s94, %s95
      %p99 = pneg %p93
      %p100 = scmp.eq.s32.totalorder %s16, 1
      %p101 = por %p99, %p100
      %p102 = scmp.ne.s32.totalorder %s94, %s97
      %p103 = scmp.eq.s32.totalorder %s16, 0
      %p104 = por %p102, %p103
      %p105 = scmp.ne.s32.totalorder %s94, %s97
      %p106 = scmp.eq.s32.totalorder %s21, 1
      %p107 = por %p105, %p106
      %p108 = scmp.ne.s32.totalorder %s97, %s98
      %p109 = scmp.eq.s32.totalorder %s21, 0
      %p110 = por %p108, %p109
      %p111 = scmp.ne.s32.totalorder %s97, %s98
      %p112 = scmp.eq.s32.totalorder %s22, 1
      %p113 = por %p111, %p112
      %p115 = scmp.ne.s32.totalorder %s98, %s114
      %p116 = scmp.eq.s32.totalorder %s22, 0
      %p117 = por %p115, %p116
      %p118 = scmp.le.s32.totalorder 1, %s16
      %p119 = scmp.lt.s32.totalorder %s16, 3
      %p120 = pnand %p118, %p119
      %p121 = pneg %p120
      // Predicated region
      $region9: #{tpu_custom_call.1} parent=5 // pred_check
        _
      $region10: #{tpu_custom_call.1} parent=5 // pred_check_branch
        %123 = sbr.rel (%p120) target = $region12
      $region11: #{tpu_custom_call.1} parent=5 // pred_region
        %s124 = ssub.s32 %s16, 1
        // Predicated region
        $region13: #{tpu_custom_call.1} parent=11 // pred_check
          %p125 = pneg %p63
        $region14: #{tpu_custom_call.1} parent=11 // pred_check_branch
          %127 = sbr.rel (%p125) target = $region16
        $region15: #{tpu_custom_call.1} parent=11 // pred_region
          %s129 = ssub.s32 18432, 18432
          %130 = vsyncadd [#allocation6], %s129
          %s131 = sshll.u32 [#allocation5], 4
          %s132 = int_to_ptr.vmem [resolvable:$true] %s131
          %137 = dma.hbm_to_vmem [thread:$0]  %s1, 18432, %s132, [#allocation6], 128, 128, 8
        $region16: #{tpu_custom_call.1} parent=11 // pred_fallthru
          _
        // Predicated region
        $region17: #{tpu_custom_call.1} parent=11 // pred_check
          %p138 = pneg %p84
        $region18: #{tpu_custom_call.1} parent=11 // pred_check_branch
          %140 = sbr.rel (%p138) target = $region20
        $region19: #{tpu_custom_call.1} parent=11 // pred_region
          %s142 = ssub.s32 256, 256
          %143 = vsyncadd [#allocation6], %s142
          %s144 = sshll.u32 [#allocation7], 4
          %s145 = int_to_ptr.vmem [resolvable:$true] %s144
          %150 = dma.hbm_to_vmem [thread:$0]  %s2, 256, %s145, [#allocation6], 128, 128, 8
        $region20: #{tpu_custom_call.1} parent=11 // pred_fallthru
          _
      $region12: #{tpu_custom_call.1} parent=5 // pred_fallthru
        _
      %p151 = scmp.lt.s32.totalorder %s16, 2
      // Predicated region
      $region21: #{tpu_custom_call.1} parent=5 // pred_check
        %p152 = pneg %p151
      $region22: #{tpu_custom_call.1} parent=5 // pred_check_branch
        %154 = sbr.rel (%p152) target = $region24
      $region23: #{tpu_custom_call.1} parent=5 // pred_region
        // Predicated region
        $region25: #{tpu_custom_call.1} parent=23 // pred_check
          %p155 = pneg %p36
        $region26: #{tpu_custom_call.1} parent=23 // pred_check_branch
          %157 = sbr.rel (%p155) target = $region28
        $region27: #{tpu_custom_call.1} parent=23 // pred_region
          %s158 = sand.u32 %s26, 1
          %s159 = scalar_lea.sflag [#allocation3], %s158
          %s160 = sand.u32 %s26, 1
          %s161 = smul.addr %s160, 512
          %s162 = scalar_lea.vmem [#allocation2], %s161
          %s163 = smul.u32 64, %s16
          %s165 = ssub.s32 8192, 8192
          %166 = vsyncadd %s159, %s165
          %s167 = smul.addr %s163, 128
          %s168 = scalar_lea.hbm %s0, %s167
          %s169 = sshll.u32 %s162, 4
          %s170 = int_to_ptr.vmem [resolvable:$true] %s169
          %175 = dma.hbm_to_vmem [thread:$0]  %s168, 8192, %s170, %s159, 128, 128, 8
        $region28: #{tpu_custom_call.1} parent=23 // pred_fallthru
          _
      $region24: #{tpu_custom_call.1} parent=5 // pred_fallthru
        _
      %p176 = scmp.le.s32.totalorder 1, %s16
      %p177 = scmp.lt.s32.totalorder %s16, 3
      %p178 = pnand %p176, %p177
      %p179 = pneg %p178
      // Predicated region
      $region29: #{tpu_custom_call.1} parent=5 // pred_check
        _
      $region30: #{tpu_custom_call.1} parent=5 // pred_check_branch
        %181 = sbr.rel (%p178) target = $region32
      $region31: #{tpu_custom_call.1} parent=5 // pred_region
        %s182 = ssub.s32 %s16, 1
        %s183 = sand.u32 %s29, 1
        %s184 = scalar_lea.sflag [#allocation3], %s183
        %s185 = sand.u32 %s29, 1
        %s186 = smul.addr %s185, 512
        %s187 = scalar_lea.vmem [#allocation2], %s186
        // Predicated region
        $region33: #{tpu_custom_call.1} parent=31 // pred_check
          %p188 = pneg %p42
        $region34: #{tpu_custom_call.1} parent=31 // pred_check_branch
          %190 = sbr.rel (%p188) target = $region36
        $region35: #{tpu_custom_call.1} parent=31 // pred_region
          %191 = dma.done %s184, 8192
        $region36: #{tpu_custom_call.1} parent=31 // pred_fallthru
          _
        // Predicated region
        $region37: #{tpu_custom_call.1} parent=31 // pred_check
          %p192 = pneg %p63
        $region38: #{tpu_custom_call.1} parent=31 // pred_check_branch
          %194 = sbr.rel (%p192) target = $region40
        $region39: #{tpu_custom_call.1} parent=31 // pred_region
          %195 = dma.done [#allocation6], 18432
        $region40: #{tpu_custom_call.1} parent=31 // pred_fallthru
          _
        // Predicated region
        $region41: #{tpu_custom_call.1} parent=31 // pred_check
          %p196 = pneg %p84
        $region42: #{tpu_custom_call.1} parent=31 // pred_check_branch
          %198 = sbr.rel (%p196) target = $region44
        $region43: #{tpu_custom_call.1} parent=31 // pred_region
          %199 = dma.done [#allocation6], 256
        $region44: #{tpu_custom_call.1} parent=31 // pred_fallthru
          _
        %s200 = sand.u32 %s29, 1
        %s201 = scalar_lea.sflag [#allocation3], %s200
        %s202 = sand.u32 %s29, 1
        %s203 = smul.addr %s202, 512
        %s204 = scalar_lea.vmem [#allocation2], %s203
        %p205 = pneg %p42
        %p206 = pneg %p39
        %p207 = pneg %p63
        %p208 = pneg %p60
        %p209 = pneg %p84
        %p210 = pneg %p81
        %p211 = pneg %p110
        %p212 = pneg %p107
        %s213 = sand.u32 %s97, 1
        %s214 = scalar_lea.sflag [#allocation4], %s213
        %s215 = sand.u32 %s97, 1
        %s216 = smul.addr %s215, 1536
        %s217 = scalar_lea.vmem [#allocation8], %s216
        %s218 = smul.u32 64, %s21
        %s219 = smul.u32 64, %s21
        %v220 = vld [vmem:[%s187] sm:$0xff]
        %v221 = vld [vmem:[%s187 + $0x8] sm:$0xff]
        %v222 = vld [vmem:[%s187 + $0x10] sm:$0xff]
        %v223 = vld [vmem:[%s187 + $0x18] sm:$0xff]
        %v224 = vld [vmem:[%s187 + $0x20] sm:$0xff]
        %v225 = vld [vmem:[%s187 + $0x28] sm:$0xff]
        %v226 = vld [vmem:[%s187 + $0x30] sm:$0xff]
        %v227 = vld [vmem:[%s187 + $0x38] sm:$0xff]
        %v228 = vld [vmem:[%s187 + $0x40] sm:$0xff]
        %v229 = vld [vmem:[%s187 + $0x48] sm:$0xff]
        %v230 = vld [vmem:[%s187 + $0x50] sm:$0xff]
        %v231 = vld [vmem:[%s187 + $0x58] sm:$0xff]
        %v232 = vld [vmem:[%s187 + $0x60] sm:$0xff]
        %v233 = vld [vmem:[%s187 + $0x68] sm:$0xff]
        %v234 = vld [vmem:[%s187 + $0x70] sm:$0xff]
        %v235 = vld [vmem:[%s187 + $0x78] sm:$0xff]
        %v236 = vld [vmem:[%s187 + $0x80] sm:$0xff]
        %v237 = vld [vmem:[%s187 + $0x88] sm:$0xff]
        %v238 = vld [vmem:[%s187 + $0x90] sm:$0xff]
        %v239 = vld [vmem:[%s187 + $0x98] sm:$0xff]
        %v240 = vld [vmem:[%s187 + $0xa0] sm:$0xff]
        %v241 = vld [vmem:[%s187 + $0xa8] sm:$0xff]
        %v242 = vld [vmem:[%s187 + $0xb0] sm:$0xff]
        %v243 = vld [vmem:[%s187 + $0xb8] sm:$0xff]
        %v244 = vld [vmem:[%s187 + $0xc0] sm:$0xff]
        %v245 = vld [vmem:[%s187 + $0xc8] sm:$0xff]
        %v246 = vld [vmem:[%s187 + $0xd0] sm:$0xff]
        %v247 = vld [vmem:[%s187 + $0xd8] sm:$0xff]
        %v248 = vld [vmem:[%s187 + $0xe0] sm:$0xff]
        %v249 = vld [vmem:[%s187 + $0xe8] sm:$0xff]
        %v250 = vld [vmem:[%s187 + $0xf0] sm:$0xff]
        %v251 = vld [vmem:[%s187 + $0xf8] sm:$0xff]
        %v252 = vld [vmem:[%s187 + $0x100] sm:$0xff]
        %v253 = vld [vmem:[%s187 + $0x108] sm:$0xff]
        %v254 = vld [vmem:[%s187 + $0x110] sm:$0xff]
        %v255 = vld [vmem:[%s187 + $0x118] sm:$0xff]
        %v256 = vld [vmem:[%s187 + $0x120] sm:$0xff]
        %v257 = vld [vmem:[%s187 + $0x128] sm:$0xff]
        %v258 = vld [vmem:[%s187 + $0x130] sm:$0xff]
        %v259 = vld [vmem:[%s187 + $0x138] sm:$0xff]
        %v260 = vld [vmem:[%s187 + $0x140] sm:$0xff]
        %v261 = vld [vmem:[%s187 + $0x148] sm:$0xff]
        %v262 = vld [vmem:[%s187 + $0x150] sm:$0xff]
        %v263 = vld [vmem:[%s187 + $0x158] sm:$0xff]
        %v264 = vld [vmem:[%s187 + $0x160] sm:$0xff]
        %v265 = vld [vmem:[%s187 + $0x168] sm:$0xff]
        %v266 = vld [vmem:[%s187 + $0x170] sm:$0xff]
        %v267 = vld [vmem:[%s187 + $0x178] sm:$0xff]
        %v268 = vld [vmem:[%s187 + $0x180] sm:$0xff]
        %v269 = vld [vmem:[%s187 + $0x188] sm:$0xff]
        %v270 = vld [vmem:[%s187 + $0x190] sm:$0xff]
        %v271 = vld [vmem:[%s187 + $0x198] sm:$0xff]
        %v272 = vld [vmem:[%s187 + $0x1a0] sm:$0xff]
        %v273 = vld [vmem:[%s187 + $0x1a8] sm:$0xff]
        %v274 = vld [vmem:[%s187 + $0x1b0] sm:$0xff]
        %v275 = vld [vmem:[%s187 + $0x1b8] sm:$0xff]
        %v276 = vld [vmem:[%s187 + $0x1c0] sm:$0xff]
        %v277 = vld [vmem:[%s187 + $0x1c8] sm:$0xff]
        %v278 = vld [vmem:[%s187 + $0x1d0] sm:$0xff]
        %v279 = vld [vmem:[%s187 + $0x1d8] sm:$0xff]
        %v280 = vld [vmem:[%s187 + $0x1e0] sm:$0xff]
        %v281 = vld [vmem:[%s187 + $0x1e8] sm:$0xff]
        %v282 = vld [vmem:[%s187 + $0x1f0] sm:$0xff]
        %v283 = vld [vmem:[%s187 + $0x1f8] sm:$0xff]
        %v284 = vld [vmem:[#allocation5] sm:$0xff]
        %v285 = vld [vmem:[#allocation5 + $0x8] sm:$0xff]
        %v286 = vld [vmem:[#allocation5 + $0x10] sm:$0xff]
        %v287 = vld [vmem:[#allocation5 + $0x18] sm:$0xff]
        %v288 = vld [vmem:[#allocation5 + $0x20] sm:$0xff]
        %v289 = vld [vmem:[#allocation5 + $0x28] sm:$0xff]
        %v290 = vld [vmem:[#allocation5 + $0x30] sm:$0xff]
        %v291 = vld [vmem:[#allocation5 + $0x38] sm:$0xff]
        %v292 = vld [vmem:[#allocation5 + $0x40] sm:$0xff]
        %v293 = vld [vmem:[#allocation5 + $0x48] sm:$0xff]
        %v294 = vld [vmem:[#allocation5 + $0x50] sm:$0xff]
        %v295 = vld [vmem:[#allocation5 + $0x58] sm:$0xff]
        %v296 = vld [vmem:[#allocation5 + $0x60] sm:$0xff]
        %v297 = vld [vmem:[#allocation5 + $0x68] sm:$0xff]
        %v298 = vld [vmem:[#allocation5 + $0x70] sm:$0xff]
        %v299 = vld [vmem:[#allocation5 + $0x78] sm:$0xff]
        %v300 = vld [vmem:[#allocation7] sm:$0x1]
        %v301 = vlaneseq
        %v302 = vshrl.u32 %v301, 7
        %v303 = vsub.s32 0, %v302
        %v304 = vrot.slane %v300, %v303
        %305 = vmatprep.subr.mxu0 0.0
        %306 = vmatpush1.msra.mxu0 %v284
        %307 = vmatprep.subr.mxu0 0.0
        %308 = vmatpush1.msra.mxu0 %v285
        %309 = vmatprep.subr.mxu0 0.0
        %310 = vmatpush1.msra.mxu0 %v286
        %311 = vmatprep.subr.mxu0 0.0
        %312 = vmatpush1.msra.mxu0 %v287
        %313 = vmatprep.subr.mxu0 0.0
        %314 = vmatpush1.msra.mxu0 %v288
        %315 = vmatprep.subr.mxu0 0.0
        %316 = vmatpush1.msra.mxu0 %v289
        %317 = vmatprep.subr.mxu0 0.0
        %318 = vmatpush1.msra.mxu0 %v290
        %319 = vmatprep.subr.mxu0 0.0
        %320 = vmatpush1.msra.mxu0 %v291
        %321 = vmatprep.subr.mxu0 0.0
        %322 = vmatpush1.msra.mxu0 %v292
        %323 = vmatprep.subr.mxu0 0.0
        %324 = vmatpush1.msra.mxu0 %v293
        %325 = vmatprep.subr.mxu0 0.0
        %326 = vmatpush1.msra.mxu0 %v294
        %327 = vmatprep.subr.mxu0 0.0
        %328 = vmatpush1.msra.mxu0 %v295
        %329 = vmatprep.subr.mxu0 0.0
        %330 = vmatpush1.msra.mxu0 %v296
        %331 = vmatprep.subr.mxu0 0.0
        %332 = vmatpush1.msra.mxu0 %v297
        %333 = vmatprep.subr.mxu0 0.0
        %334 = vmatpush1.msra.mxu0 %v298
        %335 = vmatprep.subr.mxu0 0.0
        %336 = vmatpush1.msra.mxu0 %v299
        %337 = vmatprep.subr.mxu0 0.0
        %338 = vmatpush1.msra.mxu0 0.0
        %339 = vmatprep.subr.mxu0 0.0
        %340 = vmatpush1.msra.mxu0 0.0
        %341 = vmatprep.subr.mxu0 0.0
        %342 = vmatpush1.msra.mxu0 0.0
        %343 = vmatprep.subr.mxu0 0.0
        %344 = vmatpush1.msra.mxu0 0.0
        %345 = vmatprep.subr.mxu0 0.0
        %346 = vmatpush1.msra.mxu0 0.0
        %347 = vmatprep.subr.mxu0 0.0
        %348 = vmatpush1.msra.mxu0 0.0
        %349 = vmatprep.subr.mxu0 0.0
        %350 = vmatpush1.msra.mxu0 0.0
        %351 = vmatprep.subr.mxu0 0.0
        %352 = vmatpush1.msra.mxu0 0.0
        %353 = vmatprep.subr.mxu0 0.0
        %354 = vmatpush1.msra.mxu0 0.0
        %355 = vmatprep.subr.mxu0 0.0
        %356 = vmatpush1.msra.mxu0 0.0
        %357 = vmatprep.subr.mxu0 0.0
        %358 = vmatpush1.msra.mxu0 0.0
        %359 = vmatprep.subr.mxu0 0.0
        %360 = vmatpush1.msra.mxu0 0.0
        %361 = vmatprep.subr.mxu0 0.0
        %362 = vmatpush1.msra.mxu0 0.0
        %363 = vmatprep.subr.mxu0 0.0
        %364 = vmatpush1.msra.mxu0 0.0
        %365 = vmatprep.subr.mxu0 0.0
        %366 = vmatpush1.msra.mxu0 0.0
        %367 = vmatprep.subr.mxu0 0.0
        %368 = vmatpush1.msra.mxu0 0.0
        %369 = vmatprep.mubr.f32.mxu0 0.0
        %370 = vmatmul.mubr.f32.gmra.mrb[0].mxu0 %v220
        %v371 = vpop.f32.mrb[0].mxu0
        %v372 = vadd.f32 %v304, %v371
        %v373 = vpop.f32.mrb[0].mxu0
        %374 = vmatprep.mubr.f32.mxu0 0.0
        %375 = vmatmul.mubr.f32.gmra.mrb[0].mxu0 %v221
        %v376 = vpop.f32.mrb[0].mxu0
        %v377 = vadd.f32 %v304, %v376
        %v378 = vpop.f32.mrb[0].mxu0
        %379 = vmatprep.mubr.f32.mxu0 0.0
        %380 = vmatmul.mubr.f32.gmra.mrb[0].mxu0 %v222
        %v381 = vpop.f32.mrb[0].mxu0
        %v382 = vadd.f32 %v304, %v381
        %v383 = vpop.f32.mrb[0].mxu0
        %384 = vmatprep.mubr.f32.mxu0 0.0
        %385 = vmatmul.mubr.f32.gmra.mrb[0].mxu0 %v223
        %v386 = vpop.f32.mrb[0].mxu0
        %v387 = vadd.f32 %v304, %v386
        %v388 = vpop.f32.mrb[0].mxu0
        %389 = vmatprep.mubr.f32.mxu0 0.0
        %390 = vmatmul.mubr.f32.gmra.mrb[0].mxu0 %v224
        %v391 = vpop.f32.mrb[0].mxu0
        %v392 = vadd.f32 %v304, %v391
        %v393 = vpop.f32.mrb[0].mxu0
        %394 = vmatprep.mubr.f32.mxu0 0.0
        %395 = vmatmul.mubr.f32.gmra.mrb[0].mxu0 %v225
        %v396 = vpop.f32.mrb[0].mxu0
        %v397 = vadd.f32 %v304, %v396
        %v398 = vpop.f32.mrb[0].mxu0
        %399 = vmatprep.mubr.f32.mxu0 0.0
        %400 = vmatmul.mubr.f32.gmra.mrb[0].mxu0 %v226
        %v401 = vpop.f32.mrb[0].mxu0
        %v402 = vadd.f32 %v304, %v401
        %v403 = vpop.f32.mrb[0].mxu0
        %404 = vmatprep.mubr.f32.mxu0 0.0
        %405 = vmatmul.mubr.f32.gmra.mrb[0].mxu0 %v227
        %v406 = vpop.f32.mrb[0].mxu0
        %v407 = vadd.f32 %v304, %v406
        %v408 = vpop.f32.mrb[0].mxu0
        %409 = vmatprep.mubr.f32.mxu0 0.0
        %410 = vmatmul.mubr.f32.gmra.mrb[0].mxu0 %v228
        %v411 = vpop.f32.mrb[0].mxu0
        %v412 = vadd.f32 %v304, %v411
        %v413 = vpop.f32.mrb[0].mxu0
        %414 = vmatprep.mubr.f32.mxu0 0.0
        %415 = vmatmul.mubr.f32.gmra.mrb[0].mxu0 %v229
        %v416 = vpop.f32.mrb[0].mxu0
        %v417 = vadd.f32 %v304, %v416
        %v418 = vpop.f32.mrb[0].mxu0
        %419 = vmatprep.mubr.f32.mxu0 0.0
        %420 = vmatmul.mubr.f32.gmra.mrb[0].mxu0 %v230
        %v421 = vpop.f32.mrb[0].mxu0
        %v422 = vadd.f32 %v304, %v421
        %v423 = vpop.f32.mrb[0].mxu0
        %424 = vmatprep.mubr.f32.mxu0 0.0
        %425 = vmatmul.mubr.f32.gmra.mrb[0].mxu0 %v231
        %v426 = vpop.f32.mrb[0].mxu0
        %v427 = vadd.f32 %v304, %v426
        %v428 = vpop.f32.mrb[0].mxu0
        %429 = vmatprep.mubr.f32.mxu0 0.0
        %430 = vmatmul.mubr.f32.gmra.mrb[0].mxu0 %v232
        %v431 = vpop.f32.mrb[0].mxu0
        %v432 = vadd.f32 %v304, %v431
        %v433 = vpop.f32.mrb[0].mxu0
        %434 = vmatprep.mubr.f32.mxu0 0.0
        %435 = vmatmul.mubr.f32.gmra.mrb[0].mxu0 %v233
        %v436 = vpop.f32.mrb[0].mxu0
        %v437 = vadd.f32 %v304, %v436
        %v438 = vpop.f32.mrb[0].mxu0
        %439 = vmatprep.mubr.f32.mxu0 0.0
        %440 = vmatmul.mubr.f32.gmra.mrb[0].mxu0 %v234
        %v441 = vpop.f32.mrb[0].mxu0
        %v442 = vadd.f32 %v304, %v441
        %v443 = vpop.f32.mrb[0].mxu0
        %444 = vmatprep.mubr.f32.mxu0 0.0
        %445 = vmatmul.mubr.f32.gmra.mrb[0].mxu0 %v235
        %v446 = vpop.f32.mrb[0].mxu0
        %v447 = vadd.f32 %v304, %v446
        %v448 = vpop.f32.mrb[0].mxu0
        %449 = vmatprep.mubr.f32.mxu0 0.0
        %450 = vmatmul.mubr.f32.gmra.mrb[0].mxu0 %v236
        %v451 = vpop.f32.mrb[0].mxu0
        %v452 = vadd.f32 %v304, %v451
        %v453 = vpop.f32.mrb[0].mxu0
        %454 = vmatprep.mubr.f32.mxu0 0.0
        %455 = vmatmul.mubr.f32.gmra.mrb[0].mxu0 %v237
        %v456 = vpop.f32.mrb[0].mxu0
        %v457 = vadd.f32 %v304, %v456
        %v458 = vpop.f32.mrb[0].mxu0
        %459 = vmatprep.mubr.f32.mxu0 0.0
        %460 = vmatmul.mubr.f32.gmra.mrb[0].mxu0 %v238
        %v461 = vpop.f32.mrb[0].mxu0
        %v462 = vadd.f32 %v304, %v461
        %v463 = vpop.f32.mrb[0].mxu0
        %464 = vmatprep.mubr.f32.mxu0 0.0
        %465 = vmatmul.mubr.f32.gmra.mrb[0].mxu0 %v239
        %v466 = vpop.f32.mrb[0].mxu0
        %v467 = vadd.f32 %v304, %v466
        %v468 = vpop.f32.mrb[0].mxu0
        %469 = vmatprep.mubr.f32.mxu0 0.0
        %470 = vmatmul.mubr.f32.gmra.mrb[0].mxu0 %v240
        %v471 = vpop.f32.mrb[0].mxu0
        %v472 = vadd.f32 %v304, %v471
        %v473 = vpop.f32.mrb[0].mxu0
        %474 = vmatprep.mubr.f32.mxu0 0.0
        %475 = vmatmul.mubr.f32.gmra.mrb[0].mxu0 %v241
        %v476 = vpop.f32.mrb[0].mxu0
        %v477 = vadd.f32 %v304, %v476
        %v478 = vpop.f32.mrb[0].mxu0
        %479 = vmatprep.mubr.f32.mxu0 0.0
        %480 = vmatmul.mubr.f32.gmra.mrb[0].mxu0 %v242
        %v481 = vpop.f32.mrb[0].mxu0
        %v482 = vadd.f32 %v304, %v481
        %v483 = vpop.f32.mrb[0].mxu0
        %484 = vmatprep.mubr.f32.mxu0 0.0
        %485 = vmatmul.mubr.f32.gmra.mrb[0].mxu0 %v243
        %v486 = vpop.f32.mrb[0].mxu0
        %v487 = vadd.f32 %v304, %v486
        %v488 = vpop.f32.mrb[0].mxu0
        %489 = vmatprep.mubr.f32.mxu0 0.0
        %490 = vmatmul.mubr.f32.gmra.mrb[0].mxu0 %v244
        %v491 = vpop.f32.mrb[0].mxu0
        %v492 = vadd.f32 %v304, %v491
        %v493 = vpop.f32.mrb[0].mxu0
        %494 = vmatprep.mubr.f32.mxu0 0.0
        %495 = vmatmul.mubr.f32.gmra.mrb[0].mxu0 %v245
        %v496 = vpop.f32.mrb[0].mxu0
        %v497 = vadd.f32 %v304, %v496
        %v498 = vpop.f32.mrb[0].mxu0
        %499 = vmatprep.mubr.f32.mxu0 0.0
        %500 = vmatmul.mubr.f32.gmra.mrb[0].mxu0 %v246
        %v501 = vpop.f32.mrb[0].mxu0
        %v502 = vadd.f32 %v304, %v501
        %v503 = vpop.f32.mrb[0].mxu0
        %504 = vmatprep.mubr.f32.mxu0 0.0
        %505 = vmatmul.mubr.f32.gmra.mrb[0].mxu0 %v247
        %v506 = vpop.f32.mrb[0].mxu0
        %v507 = vadd.f32 %v304, %v506
        %v508 = vpop.f32.mrb[0].mxu0
        %509 = vmatprep.mubr.f32.mxu0 0.0
        %510 = vmatmul.mubr.f32.gmra.mrb[0].mxu0 %v248
        %v511 = vpop.f32.mrb[0].mxu0
        %v512 = vadd.f32 %v304, %v511
        %v513 = vpop.f32.mrb[0].mxu0
        %514 = vmatprep.mubr.f32.mxu0 0.0
        %515 = vmatmul.mubr.f32.gmra.mrb[0].mxu0 %v249
        %v516 = vpop.f32.mrb[0].mxu0
        %v517 = vadd.f32 %v304, %v516
        %v518 = vpop.f32.mrb[0].mxu0
        %519 = vmatprep.mubr.f32.mxu0 0.0
        %520 = vmatmul.mubr.f32.gmra.mrb[0].mxu0 %v250
        %v521 = vpop.f32.mrb[0].mxu0
        %v522 = vadd.f32 %v304, %v521
        %v523 = vpop.f32.mrb[0].mxu0
        %524 = vmatprep.mubr.f32.mxu0 0.0
        %525 = vmatmul.mubr.f32.gmra.mrb[0].mxu0 %v251
        %v526 = vpop.f32.mrb[0].mxu0
        %v527 = vadd.f32 %v304, %v526
        %v528 = vpop.f32.mrb[0].mxu0
        %529 = vmatprep.mubr.f32.mxu0 0.0
        %530 = vmatmul.mubr.f32.gmra.mrb[0].mxu0 %v252
        %v531 = vpop.f32.mrb[0].mxu0
        %v532 = vadd.f32 %v304, %v531
        %v533 = vpop.f32.mrb[0].mxu0
        %534 = vmatprep.mubr.f32.mxu0 0.0
        %535 = vmatmul.mubr.f32.gmra.mrb[0].mxu0 %v253
        %v536 = vpop.f32.mrb[0].mxu0
        %v537 = vadd.f32 %v304, %v536
        %v538 = vpop.f32.mrb[0].mxu0
        %539 = vmatprep.mubr.f32.mxu0 0.0
        %540 = vmatmul.mubr.f32.gmra.mrb[0].mxu0 %v254
        %v541 = vpop.f32.mrb[0].mxu0
        %v542 = vadd.f32 %v304, %v541
        %v543 = vpop.f32.mrb[0].mxu0
        %544 = vmatprep.mubr.f32.mxu0 0.0
        %545 = vmatmul.mubr.f32.gmra.mrb[0].mxu0 %v255
        %v546 = vpop.f32.mrb[0].mxu0
        %v547 = vadd.f32 %v304, %v546
        %v548 = vpop.f32.mrb[0].mxu0
        %549 = vmatprep.mubr.f32.mxu0 0.0
        %550 = vmatmul.mubr.f32.gmra.mrb[0].mxu0 %v256
        %v551 = vpop.f32.mrb[0].mxu0
        %v552 = vadd.f32 %v304, %v551
        %v553 = vpop.f32.mrb[0].mxu0
        %554 = vmatprep.mubr.f32.mxu0 0.0
        %555 = vmatmul.mubr.f32.gmra.mrb[0].mxu0 %v257
        %v556 = vpop.f32.mrb[0].mxu0
        %v557 = vadd.f32 %v304, %v556
        %v558 = vpop.f32.mrb[0].mxu0
        %559 = vmatprep.mubr.f32.mxu0 0.0
        %560 = vmatmul.mubr.f32.gmra.mrb[0].mxu0 %v258
        %v561 = vpop.f32.mrb[0].mxu0
        %v562 = vadd.f32 %v304, %v561
        %v563 = vpop.f32.mrb[0].mxu0
        %564 = vmatprep.mubr.f32.mxu0 0.0
        %565 = vmatmul.mubr.f32.gmra.mrb[0].mxu0 %v259
        %v566 = vpop.f32.mrb[0].mxu0
        %v567 = vadd.f32 %v304, %v566
        %v568 = vpop.f32.mrb[0].mxu0
        %569 = vmatprep.mubr.f32.mxu0 0.0
        %570 = vmatmul.mubr.f32.gmra.mrb[0].mxu0 %v260
        %v571 = vpop.f32.mrb[0].mxu0
        %v572 = vadd.f32 %v304, %v571
        %v573 = vpop.f32.mrb[0].mxu0
        %574 = vmatprep.mubr.f32.mxu0 0.0
        %575 = vmatmul.mubr.f32.gmra.mrb[0].mxu0 %v261
        %v576 = vpop.f32.mrb[0].mxu0
        %v577 = vadd.f32 %v304, %v576
        %v578 = vpop.f32.mrb[0].mxu0
        %579 = vmatprep.mubr.f32.mxu0 0.0
        %580 = vmatmul.mubr.f32.gmra.mrb[0].mxu0 %v262
        %v581 = vpop.f32.mrb[0].mxu0
        %v582 = vadd.f32 %v304, %v581
        %v583 = vpop.f32.mrb[0].mxu0
        %584 = vmatprep.mubr.f32.mxu0 0.0
        %585 = vmatmul.mubr.f32.gmra.mrb[0].mxu0 %v263
        %v586 = vpop.f32.mrb[0].mxu0
        %v587 = vadd.f32 %v304, %v586
        %v588 = vpop.f32.mrb[0].mxu0
        %589 = vmatprep.mubr.f32.mxu0 0.0
        %590 = vmatmul.mubr.f32.gmra.mrb[0].mxu0 %v264
        %v591 = vpop.f32.mrb[0].mxu0
        %v592 = vadd.f32 %v304, %v591
        %v593 = vpop.f32.mrb[0].mxu0
        %594 = vmatprep.mubr.f32.mxu0 0.0
        %595 = vmatmul.mubr.f32.gmra.mrb[0].mxu0 %v265
        %v596 = vpop.f32.mrb[0].mxu0
        %v597 = vadd.f32 %v304, %v596
        %v598 = vpop.f32.mrb[0].mxu0
        %599 = vmatprep.mubr.f32.mxu0 0.0
        %600 = vmatmul.mubr.f32.gmra.mrb[0].mxu0 %v266
        %v601 = vpop.f32.mrb[0].mxu0
        %v602 = vadd.f32 %v304, %v601
        %v603 = vpop.f32.mrb[0].mxu0
        %604 = vmatprep.mubr.f32.mxu0 0.0
        %605 = vmatmul.mubr.f32.gmra.mrb[0].mxu0 %v267
        %v606 = vpop.f32.mrb[0].mxu0
        %v607 = vadd.f32 %v304, %v606
        %v608 = vpop.f32.mrb[0].mxu0
        %609 = vmatprep.mubr.f32.mxu0 0.0
        %610 = vmatmul.mubr.f32.gmra.mrb[0].mxu0 %v268
        %v611 = vpop.f32.mrb[0].mxu0
        %v612 = vadd.f32 %v304, %v611
        %v613 = vpop.f32.mrb[0].mxu0
        %614 = vmatprep.mubr.f32.mxu0 0.0
        %615 = vmatmul.mubr.f32.gmra.mrb[0].mxu0 %v269
        %v616 = vpop.f32.mrb[0].mxu0
        %v617 = vadd.f32 %v304, %v616
        %v618 = vpop.f32.mrb[0].mxu0
        %619 = vmatprep.mubr.f32.mxu0 0.0
        %620 = vmatmul.mubr.f32.gmra.mrb[0].mxu0 %v270
        %v621 = vpop.f32.mrb[0].mxu0
        %v622 = vadd.f32 %v304, %v621
        %v623 = vpop.f32.mrb[0].mxu0
        %624 = vmatprep.mubr.f32.mxu0 0.0
        %625 = vmatmul.mubr.f32.gmra.mrb[0].mxu0 %v271
        %v626 = vpop.f32.mrb[0].mxu0
        %v627 = vadd.f32 %v304, %v626
        %v628 = vpop.f32.mrb[0].mxu0
        %629 = vmatprep.mubr.f32.mxu0 0.0
        %630 = vmatmul.mubr.f32.gmra.mrb[0].mxu0 %v272
        %v631 = vpop.f32.mrb[0].mxu0
        %v632 = vadd.f32 %v304, %v631
        %v633 = vpop.f32.mrb[0].mxu0
        %634 = vmatprep.mubr.f32.mxu0 0.0
        %635 = vmatmul.mubr.f32.gmra.mrb[0].mxu0 %v273
        %v636 = vpop.f32.mrb[0].mxu0
        %v637 = vadd.f32 %v304, %v636
        %v638 = vpop.f32.mrb[0].mxu0
        %639 = vmatprep.mubr.f32.mxu0 0.0
        %640 = vmatmul.mubr.f32.gmra.mrb[0].mxu0 %v274
        %v641 = vpop.f32.mrb[0].mxu0
        %v642 = vadd.f32 %v304, %v641
        %v643 = vpop.f32.mrb[0].mxu0
        %644 = vmatprep.mubr.f32.mxu0 0.0
        %645 = vmatmul.mubr.f32.gmra.mrb[0].mxu0 %v275
        %v646 = vpop.f32.mrb[0].mxu0
        %v647 = vadd.f32 %v304, %v646
        %v648 = vpop.f32.mrb[0].mxu0
        %649 = vmatprep.mubr.f32.mxu0 0.0
        %650 = vmatmul.mubr.f32.gmra.mrb[0].mxu0 %v276
        %v651 = vpop.f32.mrb[0].mxu0
        %v652 = vadd.f32 %v304, %v651
        %v653 = vpop.f32.mrb[0].mxu0
        %654 = vmatprep.mubr.f32.mxu0 0.0
        %655 = vmatmul.mubr.f32.gmra.mrb[0].mxu0 %v277
        %v656 = vpop.f32.mrb[0].mxu0
        %v657 = vadd.f32 %v304, %v656
        %v658 = vpop.f32.mrb[0].mxu0
        %659 = vmatprep.mubr.f32.mxu0 0.0
        %660 = vmatmul.mubr.f32.gmra.mrb[0].mxu0 %v278
        %v661 = vpop.f32.mrb[0].mxu0
        %v662 = vadd.f32 %v304, %v661
        %v663 = vpop.f32.mrb[0].mxu0
        %664 = vmatprep.mubr.f32.mxu0 0.0
        %665 = vmatmul.mubr.f32.gmra.mrb[0].mxu0 %v279
        %v666 = vpop.f32.mrb[0].mxu0
        %v667 = vadd.f32 %v304, %v666
        %v668 = vpop.f32.mrb[0].mxu0
        %669 = vmatprep.mubr.f32.mxu0 0.0
        %670 = vmatmul.mubr.f32.gmra.mrb[0].mxu0 %v280
        %v671 = vpop.f32.mrb[0].mxu0
        %v672 = vadd.f32 %v304, %v671
        %v673 = vpop.f32.mrb[0].mxu0
        %674 = vmatprep.mubr.f32.mxu0 0.0
        %675 = vmatmul.mubr.f32.gmra.mrb[0].mxu0 %v281
        %v676 = vpop.f32.mrb[0].mxu0
        %v677 = vadd.f32 %v304, %v676
        %v678 = vpop.f32.mrb[0].mxu0
        %679 = vmatprep.mubr.f32.mxu0 0.0
        %680 = vmatmul.mubr.f32.gmra.mrb[0].mxu0 %v282
        %v681 = vpop.f32.mrb[0].mxu0
        %v682 = vadd.f32 %v304, %v681
        %v683 = vpop.f32.mrb[0].mxu0
        %684 = vmatprep.mubr.f32.mxu0 0.0
        %685 = vmatmul.mubr.f32.gmra.mrb[0].mxu0 %v283
        %v686 = vpop.f32.mrb[0].mxu0
        %v687 = vadd.f32 %v304, %v686
        %v688 = vpop.f32.mrb[0].mxu0
        %689 = vdwg.mxu0
        %v690 = vmax.f32 %v372, 0.0
        %v691 = vmax.f32 %v377, 0.0
        %v692 = vmax.f32 %v382, 0.0
        %v693 = vmax.f32 %v387, 0.0
        %v694 = vmax.f32 %v392, 0.0
        %v695 = vmax.f32 %v397, 0.0
        %v696 = vmax.f32 %v402, 0.0
        %v697 = vmax.f32 %v407, 0.0
        %v698 = vmax.f32 %v412, 0.0
        %v699 = vmax.f32 %v417, 0.0
        %v700 = vmax.f32 %v422, 0.0
        %v701 = vmax.f32 %v427, 0.0
        %v702 = vmax.f32 %v432, 0.0
        %v703 = vmax.f32 %v437, 0.0
        %v704 = vmax.f32 %v442, 0.0
        %v705 = vmax.f32 %v447, 0.0
        %v706 = vmax.f32 %v452, 0.0
        %v707 = vmax.f32 %v457, 0.0
        %v708 = vmax.f32 %v462, 0.0
        %v709 = vmax.f32 %v467, 0.0
        %v710 = vmax.f32 %v472, 0.0
        %v711 = vmax.f32 %v477, 0.0
        %v712 = vmax.f32 %v482, 0.0
        %v713 = vmax.f32 %v487, 0.0
        %v714 = vmax.f32 %v492, 0.0
        %v715 = vmax.f32 %v497, 0.0
        %v716 = vmax.f32 %v502, 0.0
        %v717 = vmax.f32 %v507, 0.0
        %v718 = vmax.f32 %v512, 0.0
        %v719 = vmax.f32 %v517, 0.0
        %v720 = vmax.f32 %v522, 0.0
        %v721 = vmax.f32 %v527, 0.0
        %v722 = vmax.f32 %v532, 0.0
        %v723 = vmax.f32 %v537, 0.0
        %v724 = vmax.f32 %v542, 0.0
        %v725 = vmax.f32 %v547, 0.0
        %v726 = vmax.f32 %v552, 0.0
        %v727 = vmax.f32 %v557, 0.0
        %v728 = vmax.f32 %v562, 0.0
        %v729 = vmax.f32 %v567, 0.0
        %v730 = vmax.f32 %v572, 0.0
        %v731 = vmax.f32 %v577, 0.0
        %v732 = vmax.f32 %v582, 0.0
        %v733 = vmax.f32 %v587, 0.0
        %v734 = vmax.f32 %v592, 0.0
        %v735 = vmax.f32 %v597, 0.0
        %v736 = vmax.f32 %v602, 0.0
        %v737 = vmax.f32 %v607, 0.0
        %v738 = vmax.f32 %v612, 0.0
        %v739 = vmax.f32 %v617, 0.0
        %v740 = vmax.f32 %v622, 0.0
        %v741 = vmax.f32 %v627, 0.0
        %v742 = vmax.f32 %v632, 0.0
        %v743 = vmax.f32 %v637, 0.0
        %v744 = vmax.f32 %v642, 0.0
        %v745 = vmax.f32 %v647, 0.0
        %v746 = vmax.f32 %v652, 0.0
        %v747 = vmax.f32 %v657, 0.0
        %v748 = vmax.f32 %v662, 0.0
        %v749 = vmax.f32 %v667, 0.0
        %v750 = vmax.f32 %v672, 0.0
        %v751 = vmax.f32 %v677, 0.0
        %v752 = vmax.f32 %v682, 0.0
        %v753 = vmax.f32 %v687, 0.0
        %s754 = scalar_lea.vmem [#allocation5], 128
        %v755 = vld [vmem:[%s754] sm:$0xff]
        %v756 = vld [vmem:[%s754 + $0x8] sm:$0xff]
        %v757 = vld [vmem:[%s754 + $0x10] sm:$0xff]
        %v758 = vld [vmem:[%s754 + $0x18] sm:$0xff]
        %v759 = vld [vmem:[%s754 + $0x20] sm:$0xff]
        %v760 = vld [vmem:[%s754 + $0x28] sm:$0xff]
        %v761 = vld [vmem:[%s754 + $0x30] sm:$0xff]
        %v762 = vld [vmem:[%s754 + $0x38] sm:$0xff]
        %v763 = vld [vmem:[%s754 + $0x40] sm:$0xff]
        %v764 = vld [vmem:[%s754 + $0x48] sm:$0xff]
        %v765 = vld [vmem:[%s754 + $0x50] sm:$0xff]
        %v766 = vld [vmem:[%s754 + $0x58] sm:$0xff]
        %v767 = vld [vmem:[%s754 + $0x60] sm:$0xff]
        %v768 = vld [vmem:[%s754 + $0x68] sm:$0xff]
        %v769 = vld [vmem:[%s754 + $0x70] sm:$0xff]
        %v770 = vld [vmem:[%s754 + $0x78] sm:$0xff]
        %v771 = vld [vmem:[#allocation7 + $0x1] sm:$0x1]
        %v772 = vlaneseq
        %v773 = vshrl.u32 %v772, 7
        %v774 = vsub.s32 0, %v773
        %v775 = vrot.slane %v771, %v774
        %776 = vmatprep.subr.mxu0 0.0
        %777 = vmatpush1.msra.mxu0 %v755
        %778 = vmatprep.subr.mxu0 0.0
        %779 = vmatpush1.msra.mxu0 %v756
        %780 = vmatprep.subr.mxu0 0.0
        %781 = vmatpush1.msra.mxu0 %v757
        %782 = vmatprep.subr.mxu0 0.0
        %783 = vmatpush1.msra.mxu0 %v758
        %784 = vmatprep.subr.mxu0 0.0
        %785 = vmatpush1.msra.mxu0 %v759
        %786 = vmatprep.subr.mxu0 0.0
        %787 = vmatpush1.msra.mxu0 %v760
        %788 = vmatprep.subr.mxu0 0.0
        %789 = vmatpush1.msra.mxu0 %v761
        %790 = vmatprep.subr.mxu0 0.0
        %791 = vmatpush1.msra.mxu0 %v762
        %792 = vmatprep.subr.mxu0 0.0
        %793 = vmatpush1.msra.mxu0 %v763
        %794 = vmatprep.subr.mxu0 0.0
        %795 = vmatpush1.msra.mxu0 %v764
        %796 = vmatprep.subr.mxu0 0.0
        %797 = vmatpush1.msra.mxu0 %v765
        %798 = vmatprep.subr.mxu0 0.0
        %799 = vmatpush1.msra.mxu0 %v766
        %800 = vmatprep.subr.mxu0 0.0
        %801 = vmatpush1.msra.mxu0 %v767
        %802 = vmatprep.subr.mxu0 0.0
        %803 = vmatpush1.msra.mxu0 %v768
        %804 = vmatprep.subr.mxu0 0.0
        %805 = vmatpush1.msra.mxu0 %v769
        %806 = vmatprep.subr.mxu0 0.0
        %807 = vmatpush1.msra.mxu0 %v770
        %808 = vmatprep.subr.mxu0 0.0
        %809 = vmatpush1.msra.mxu0 0.0
        %810 = vmatprep.subr.mxu0 0.0
        %811 = vmatpush1.msra.mxu0 0.0
        %812 = vmatprep.subr.mxu0 0.0
        %813 = vmatpush1.msra.mxu0 0.0
        %814 = vmatprep.subr.mxu0 0.0
        %815 = vmatpush1.msra.mxu0 0.0
        %816 = vmatprep.subr.mxu0 0.0
        %817 = vmatpush1.msra.mxu0 0.0
        %818 = vmatprep.subr.mxu0 0.0
        %819 = vmatpush1.msra.mxu0 0.0
        %820 = vmatprep.subr.mxu0 0.0
        %821 = vmatpush1.msra.mxu0 0.0
        %822 = vmatprep.subr.mxu0 0.0
        %823 = vmatpush1.msra.mxu0 0.0
        %824 = vmatprep.subr.mxu0 0.0
        %825 = vmatpush1.msra.mxu0 0.0
        %826 = vmatprep.subr.mxu0 0.0
        %827 = vmatpush1.msra.mxu0 0.0
        %828 = vmatprep.subr.mxu0 0.0
        %829 = vmatpush1.msra.mxu0 0.0
        %830 = vmatprep.subr.mxu0 0.0
        %831 = vmatpush1.msra.mxu0 0.0
        %832 = vmatprep.subr.mxu0 0.0
        %833 = vmatpush1.msra.mxu0 0.0
        %834 = vmatprep.subr.mxu0 0.0
        %835 = vmatpush1.msra.mxu0 0.0
        %836 = vmatprep.subr.mxu0 0.0
        %837 = vmatpush1.msra.mxu0 0.0
        %838 = vmatprep.subr.mxu0 0.0
        %839 = vmatpush1.msra.mxu0 0.0
        %840 = vmatprep.mubr.f32.mxu0 0.0
        %841 = vmatmul.mubr.f32.gmra.mrb[0].mxu0 %v690
        %v842 = vpop.f32.mrb[0].mxu0
        %v843 = vadd.f32 %v775, %v842
        %v844 = vpop.f32.mrb[0].mxu0
        %845 = vmatprep.mubr.f32.mxu0 0.0
        %846 = vmatmul.mubr.f32.gmra.mrb[0].mxu0 %v691
        %v847 = vpop.f32.mrb[0].mxu0
        %v848 = vadd.f32 %v775, %v847
        %v849 = vpop.f32.mrb[0].mxu0
        %850 = vmatprep.mubr.f32.mxu0 0.0
        %851 = vmatmul.mubr.f32.gmra.mrb[0].mxu0 %v692
        %v852 = vpop.f32.mrb[0].mxu0
        %v853 = vadd.f32 %v775, %v852
        %v854 = vpop.f32.mrb[0].mxu0
        %855 = vmatprep.mubr.f32.mxu0 0.0
        %856 = vmatmul.mubr.f32.gmra.mrb[0].mxu0 %v693
        %v857 = vpop.f32.mrb[0].mxu0
        %v858 = vadd.f32 %v775, %v857
        %v859 = vpop.f32.mrb[0].mxu0
        %860 = vmatprep.mubr.f32.mxu0 0.0
        %861 = vmatmul.mubr.f32.gmra.mrb[0].mxu0 %v694
        %v862 = vpop.f32.mrb[0].mxu0
        %v863 = vadd.f32 %v775, %v862
        %v864 = vpop.f32.mrb[0].mxu0
        %865 = vmatprep.mubr.f32.mxu0 0.0
        %866 = vmatmul.mubr.f32.gmra.mrb[0].mxu0 %v695
        %v867 = vpop.f32.mrb[0].mxu0
        %v868 = vadd.f32 %v775, %v867
        %v869 = vpop.f32.mrb[0].mxu0
        %870 = vmatprep.mubr.f32.mxu0 0.0
        %871 = vmatmul.mubr.f32.gmra.mrb[0].mxu0 %v696
        %v872 = vpop.f32.mrb[0].mxu0
        %v873 = vadd.f32 %v775, %v872
        %v874 = vpop.f32.mrb[0].mxu0
        %875 = vmatprep.mubr.f32.mxu0 0.0
        %876 = vmatmul.mubr.f32.gmra.mrb[0].mxu0 %v697
        %v877 = vpop.f32.mrb[0].mxu0
        %v878 = vadd.f32 %v775, %v877
        %v879 = vpop.f32.mrb[0].mxu0
        %880 = vmatprep.mubr.f32.mxu0 0.0
        %881 = vmatmul.mubr.f32.gmra.mrb[0].mxu0 %v698
        %v882 = vpop.f32.mrb[0].mxu0
        %v883 = vadd.f32 %v775, %v882
        %v884 = vpop.f32.mrb[0].mxu0
        %885 = vmatprep.mubr.f32.mxu0 0.0
        %886 = vmatmul.mubr.f32.gmra.mrb[0].mxu0 %v699
        %v887 = vpop.f32.mrb[0].mxu0
        %v888 = vadd.f32 %v775, %v887
        %v889 = vpop.f32.mrb[0].mxu0
        %890 = vmatprep.mubr.f32.mxu0 0.0
        %891 = vmatmul.mubr.f32.gmra.mrb[0].mxu0 %v700
        %v892 = vpop.f32.mrb[0].mxu0
        %v893 = vadd.f32 %v775, %v892
        %v894 = vpop.f32.mrb[0].mxu0
        %895 = vmatprep.mubr.f32.mxu0 0.0
        %896 = vmatmul.mubr.f32.gmra.mrb[0].mxu0 %v701
        %v897 = vpop.f32.mrb[0].mxu0
        %v898 = vadd.f32 %v775, %v897
        %v899 = vpop.f32.mrb[0].mxu0
        %900 = vmatprep.mubr.f32.mxu0 0.0
        %901 = vmatmul.mubr.f32.gmra.mrb[0].mxu0 %v702
        %v902 = vpop.f32.mrb[0].mxu0
        %v903 = vadd.f32 %v775, %v902
        %v904 = vpop.f32.mrb[0].mxu0
        %905 = vmatprep.mubr.f32.mxu0 0.0
        %906 = vmatmul.mubr.f32.gmra.mrb[0].mxu0 %v703
        %v907 = vpop.f32.mrb[0].mxu0
        %v908 = vadd.f32 %v775, %v907
        %v909 = vpop.f32.mrb[0].mxu0
        %910 = vmatprep.mubr.f32.mxu0 0.0
        %911 = vmatmul.mubr.f32.gmra.mrb[0].mxu0 %v704
        %v912 = vpop.f32.mrb[0].mxu0
        %v913 = vadd.f32 %v775, %v912
        %v914 = vpop.f32.mrb[0].mxu0
        %915 = vmatprep.mubr.f32.mxu0 0.0
        %916 = vmatmul.mubr.f32.gmra.mrb[0].mxu0 %v705
        %v917 = vpop.f32.mrb[0].mxu0
        %v918 = vadd.f32 %v775, %v917
        %v919 = vpop.f32.mrb[0].mxu0
        %920 = vmatprep.mubr.f32.mxu0 0.0
        %921 = vmatmul.mubr.f32.gmra.mrb[0].mxu0 %v706
        %v922 = vpop.f32.mrb[0].mxu0
        %v923 = vadd.f32 %v775, %v922
        %v924 = vpop.f32.mrb[0].mxu0
        %925 = vmatprep.mubr.f32.mxu0 0.0
        %926 = vmatmul.mubr.f32.gmra.mrb[0].mxu0 %v707
        %v927 = vpop.f32.mrb[0].mxu0
        %v928 = vadd.f32 %v775, %v927
        %v929 = vpop.f32.mrb[0].mxu0
        %930 = vmatprep.mubr.f32.mxu0 0.0
        %931 = vmatmul.mubr.f32.gmra.mrb[0].mxu0 %v708
        %v932 = vpop.f32.mrb[0].mxu0
        %v933 = vadd.f32 %v775, %v932
        %v934 = vpop.f32.mrb[0].mxu0
        %935 = vmatprep.mubr.f32.mxu0 0.0
        %936 = vmatmul.mubr.f32.gmra.mrb[0].mxu0 %v709
        %v937 = vpop.f32.mrb[0].mxu0
        %v938 = vadd.f32 %v775, %v937
        %v939 = vpop.f32.mrb[0].mxu0
        %940 = vmatprep.mubr.f32.mxu0 0.0
        %941 = vmatmul.mubr.f32.gmra.mrb[0].mxu0 %v710
        %v942 = vpop.f32.mrb[0].mxu0
        %v943 = vadd.f32 %v775, %v942
        %v944 = vpop.f32.mrb[0].mxu0
        %945 = vmatprep.mubr.f32.mxu0 0.0
        %946 = vmatmul.mubr.f32.gmra.mrb[0].mxu0 %v711
        %v947 = vpop.f32.mrb[0].mxu0
        %v948 = vadd.f32 %v775, %v947
        %v949 = vpop.f32.mrb[0].mxu0
        %950 = vmatprep.mubr.f32.mxu0 0.0
        %951 = vmatmul.mubr.f32.gmra.mrb[0].mxu0 %v712
        %v952 = vpop.f32.mrb[0].mxu0
        %v953 = vadd.f32 %v775, %v952
        %v954 = vpop.f32.mrb[0].mxu0
        %955 = vmatprep.mubr.f32.mxu0 0.0
        %956 = vmatmul.mubr.f32.gmra.mrb[0].mxu0 %v713
        %v957 = vpop.f32.mrb[0].mxu0
        %v958 = vadd.f32 %v775, %v957
        %v959 = vpop.f32.mrb[0].mxu0
        %960 = vmatprep.mubr.f32.mxu0 0.0
        %961 = vmatmul.mubr.f32.gmra.mrb[0].mxu0 %v714
        %v962 = vpop.f32.mrb[0].mxu0
        %v963 = vadd.f32 %v775, %v962
        %v964 = vpop.f32.mrb[0].mxu0
        %965 = vmatprep.mubr.f32.mxu0 0.0
        %966 = vmatmul.mubr.f32.gmra.mrb[0].mxu0 %v715
        %v967 = vpop.f32.mrb[0].mxu0
        %v968 = vadd.f32 %v775, %v967
        %v969 = vpop.f32.mrb[0].mxu0
        %970 = vmatprep.mubr.f32.mxu0 0.0
        %971 = vmatmul.mubr.f32.gmra.mrb[0].mxu0 %v716
        %v972 = vpop.f32.mrb[0].mxu0
        %v973 = vadd.f32 %v775, %v972
        %v974 = vpop.f32.mrb[0].mxu0
        %975 = vmatprep.mubr.f32.mxu0 0.0
        %976 = vmatmul.mubr.f32.gmra.mrb[0].mxu0 %v717
        %v977 = vpop.f32.mrb[0].mxu0
        %v978 = vadd.f32 %v775, %v977
        %v979 = vpop.f32.mrb[0].mxu0
        %980 = vmatprep.mubr.f32.mxu0 0.0
        %981 = vmatmul.mubr.f32.gmra.mrb[0].mxu0 %v718
        %v982 = vpop.f32.mrb[0].mxu0
        %v983 = vadd.f32 %v775, %v982
        %v984 = vpop.f32.mrb[0].mxu0
        %985 = vmatprep.mubr.f32.mxu0 0.0
        %986 = vmatmul.mubr.f32.gmra.mrb[0].mxu0 %v719
        %v987 = vpop.f32.mrb[0].mxu0
        %v988 = vadd.f32 %v775, %v987
        %v989 = vpop.f32.mrb[0].mxu0
        %990 = vmatprep.mubr.f32.mxu0 0.0
        %991 = vmatmul.mubr.f32.gmra.mrb[0].mxu0 %v720
        %v992 = vpop.f32.mrb[0].mxu0
        %v993 = vadd.f32 %v775, %v992
        %v994 = vpop.f32.mrb[0].mxu0
        %995 = vmatprep.mubr.f32.mxu0 0.0
        %996 = vmatmul.mubr.f32.gmra.mrb[0].mxu0 %v721
        %v997 = vpop.f32.mrb[0].mxu0
        %v998 = vadd.f32 %v775, %v997
        %v999 = vpop.f32.mrb[0].mxu0
        %1000 = vmatprep.mubr.f32.mxu0 0.0
        %1001 = vmatmul.mubr.f32.gmra.mrb[0].mxu0 %v722
        %v1002 = vpop.f32.mrb[0].mxu0
        %v1003 = vadd.f32 %v775, %v1002
        %v1004 = vpop.f32.mrb[0].mxu0
        %1005 = vmatprep.mubr.f32.mxu0 0.0
        %1006 = vmatmul.mubr.f32.gmra.mrb[0].mxu0 %v723
        %v1007 = vpop.f32.mrb[0].mxu0
        %v1008 = vadd.f32 %v775, %v1007
        %v1009 = vpop.f32.mrb[0].mxu0
        %1010 = vmatprep.mubr.f32.mxu0 0.0
        %1011 = vmatmul.mubr.f32.gmra.mrb[0].mxu0 %v724
        %v1012 = vpop.f32.mrb[0].mxu0
        %v1013 = vadd.f32 %v775, %v1012
        %v1014 = vpop.f32.mrb[0].mxu0
        %1015 = vmatprep.mubr.f32.mxu0 0.0
        %1016 = vmatmul.mubr.f32.gmra.mrb[0].mxu0 %v725
        %v1017 = vpop.f32.mrb[0].mxu0
        %v1018 = vadd.f32 %v775, %v1017
        %v1019 = vpop.f32.mrb[0].mxu0
        %1020 = vmatprep.mubr.f32.mxu0 0.0
        %1021 = vmatmul.mubr.f32.gmra.mrb[0].mxu0 %v726
        %v1022 = vpop.f32.mrb[0].mxu0
        %v1023 = vadd.f32 %v775, %v1022
        %v1024 = vpop.f32.mrb[0].mxu0
        %1025 = vmatprep.mubr.f32.mxu0 0.0
        %1026 = vmatmul.mubr.f32.gmra.mrb[0].mxu0 %v727
        %v1027 = vpop.f32.mrb[0].mxu0
        %v1028 = vadd.f32 %v775, %v1027
        %v1029 = vpop.f32.mrb[0].mxu0
        %1030 = vmatprep.mubr.f32.mxu0 0.0
        %1031 = vmatmul.mubr.f32.gmra.mrb[0].mxu0 %v728
        %v1032 = vpop.f32.mrb[0].mxu0
        %v1033 = vadd.f32 %v775, %v1032
        %v1034 = vpop.f32.mrb[0].mxu0
        %1035 = vmatprep.mubr.f32.mxu0 0.0
        %1036 = vmatmul.mubr.f32.gmra.mrb[0].mxu0 %v729
        %v1037 = vpop.f32.mrb[0].mxu0
        %v1038 = vadd.f32 %v775, %v1037
        %v1039 = vpop.f32.mrb[0].mxu0
        %1040 = vmatprep.mubr.f32.mxu0 0.0
        %1041 = vmatmul.mubr.f32.gmra.mrb[0].mxu0 %v730
        %v1042 = vpop.f32.mrb[0].mxu0
        %v1043 = vadd.f32 %v775, %v1042
        %v1044 = vpop.f32.mrb[0].mxu0
        %1045 = vmatprep.mubr.f32.mxu0 0.0
        %1046 = vmatmul.mubr.f32.gmra.mrb[0].mxu0 %v731
        %v1047 = vpop.f32.mrb[0].mxu0
        %v1048 = vadd.f32 %v775, %v1047
        %v1049 = vpop.f32.mrb[0].mxu0
        %1050 = vmatprep.mubr.f32.mxu0 0.0
        %1051 = vmatmul.mubr.f32.gmra.mrb[0].mxu0 %v732
        %v1052 = vpop.f32.mrb[0].mxu0
        %v1053 = vadd.f32 %v775, %v1052
        %v1054 = vpop.f32.mrb[0].mxu0
        %1055 = vmatprep.mubr.f32.mxu0 0.0
        %1056 = vmatmul.mubr.f32.gmra.mrb[0].mxu0 %v733
        %v1057 = vpop.f32.mrb[0].mxu0
        %v1058 = vadd.f32 %v775, %v1057
        %v1059 = vpop.f32.mrb[0].mxu0
        %1060 = vmatprep.mubr.f32.mxu0 0.0
        %1061 = vmatmul.mubr.f32.gmra.mrb[0].mxu0 %v734
        %v1062 = vpop.f32.mrb[0].mxu0
        %v1063 = vadd.f32 %v775, %v1062
        %v1064 = vpop.f32.mrb[0].mxu0
        %1065 = vmatprep.mubr.f32.mxu0 0.0
        %1066 = vmatmul.mubr.f32.gmra.mrb[0].mxu0 %v735
        %v1067 = vpop.f32.mrb[0].mxu0
        %v1068 = vadd.f32 %v775, %v1067
        %v1069 = vpop.f32.mrb[0].mxu0
        %1070 = vmatprep.mubr.f32.mxu0 0.0
        %1071 = vmatmul.mubr.f32.gmra.mrb[0].mxu0 %v736
        %v1072 = vpop.f32.mrb[0].mxu0
        %v1073 = vadd.f32 %v775, %v1072
        %v1074 = vpop.f32.mrb[0].mxu0
        %1075 = vmatprep.mubr.f32.mxu0 0.0
        %1076 = vmatmul.mubr.f32.gmra.mrb[0].mxu0 %v737
        %v1077 = vpop.f32.mrb[0].mxu0
        %v1078 = vadd.f32 %v775, %v1077
        %v1079 = vpop.f32.mrb[0].mxu0
        %1080 = vmatprep.mubr.f32.mxu0 0.0
        %1081 = vmatmul.mubr.f32.gmra.mrb[0].mxu0 %v738
        %v1082 = vpop.f32.mrb[0].mxu0
        %v1083 = vadd.f32 %v775, %v1082
        %v1084 = vpop.f32.mrb[0].mxu0
        %1085 = vmatprep.mubr.f32.mxu0 0.0
        %1086 = vmatmul.mubr.f32.gmra.mrb[0].mxu0 %v739
        %v1087 = vpop.f32.mrb[0].mxu0
        %v1088 = vadd.f32 %v775, %v1087
        %v1089 = vpop.f32.mrb[0].mxu0
        %1090 = vmatprep.mubr.f32.mxu0 0.0
        %1091 = vmatmul.mubr.f32.gmra.mrb[0].mxu0 %v740
        %v1092 = vpop.f32.mrb[0].mxu0
        %v1093 = vadd.f32 %v775, %v1092
        %v1094 = vpop.f32.mrb[0].mxu0
        %1095 = vmatprep.mubr.f32.mxu0 0.0
        %1096 = vmatmul.mubr.f32.gmra.mrb[0].mxu0 %v741
        %v1097 = vpop.f32.mrb[0].mxu0
        %v1098 = vadd.f32 %v775, %v1097
        %v1099 = vpop.f32.mrb[0].mxu0
        %1100 = vmatprep.mubr.f32.mxu0 0.0
        %1101 = vmatmul.mubr.f32.gmra.mrb[0].mxu0 %v742
        %v1102 = vpop.f32.mrb[0].mxu0
        %v1103 = vadd.f32 %v775, %v1102
        %v1104 = vpop.f32.mrb[0].mxu0
        %1105 = vmatprep.mubr.f32.mxu0 0.0
        %1106 = vmatmul.mubr.f32.gmra.mrb[0].mxu0 %v743
        %v1107 = vpop.f32.mrb[0].mxu0
        %v1108 = vadd.f32 %v775, %v1107
        %v1109 = vpop.f32.mrb[0].mxu0
        %1110 = vmatprep.mubr.f32.mxu0 0.0
        %1111 = vmatmul.mubr.f32.gmra.mrb[0].mxu0 %v744
        %v1112 = vpop.f32.mrb[0].mxu0
        %v1113 = vadd.f32 %v775, %v1112
        %v1114 = vpop.f32.mrb[0].mxu0
        %1115 = vmatprep.mubr.f32.mxu0 0.0
        %1116 = vmatmul.mubr.f32.gmra.mrb[0].mxu0 %v745
        %v1117 = vpop.f32.mrb[0].mxu0
        %v1118 = vadd.f32 %v775, %v1117
        %v1119 = vpop.f32.mrb[0].mxu0
        %1120 = vmatprep.mubr.f32.mxu0 0.0
        %1121 = vmatmul.mubr.f32.gmra.mrb[0].mxu0 %v746
        %v1122 = vpop.f32.mrb[0].mxu0
        %v1123 = vadd.f32 %v775, %v1122
        %v1124 = vpop.f32.mrb[0].mxu0
        %1125 = vmatprep.mubr.f32.mxu0 0.0
        %1126 = vmatmul.mubr.f32.gmra.mrb[0].mxu0 %v747
        %v1127 = vpop.f32.mrb[0].mxu0
        %v1128 = vadd.f32 %v775, %v1127
        %v1129 = vpop.f32.mrb[0].mxu0
        %1130 = vmatprep.mubr.f32.mxu0 0.0
        %1131 = vmatmul.mubr.f32.gmra.mrb[0].mxu0 %v748
        %v1132 = vpop.f32.mrb[0].mxu0
        %v1133 = vadd.f32 %v775, %v1132
        %v1134 = vpop.f32.mrb[0].mxu0
        %1135 = vmatprep.mubr.f32.mxu0 0.0
        %1136 = vmatmul.mubr.f32.gmra.mrb[0].mxu0 %v749
        %v1137 = vpop.f32.mrb[0].mxu0
        %v1138 = vadd.f32 %v775, %v1137
        %v1139 = vpop.f32.mrb[0].mxu0
        %1140 = vmatprep.mubr.f32.mxu0 0.0
        %1141 = vmatmul.mubr.f32.gmra.mrb[0].mxu0 %v750
        %v1142 = vpop.f32.mrb[0].mxu0
        %v1143 = vadd.f32 %v775, %v1142
        %v1144 = vpop.f32.mrb[0].mxu0
        %1145 = vmatprep.mubr.f32.mxu0 0.0
        %1146 = vmatmul.mubr.f32.gmra.mrb[0].mxu0 %v751
        %v1147 = vpop.f32.mrb[0].mxu0
        %v1148 = vadd.f32 %v775, %v1147
        %v1149 = vpop.f32.mrb[0].mxu0
        %1150 = vmatprep.mubr.f32.mxu0 0.0
        %1151 = vmatmul.mubr.f32.gmra.mrb[0].mxu0 %v752
        %v1152 = vpop.f32.mrb[0].mxu0
        %v1153 = vadd.f32 %v775, %v1152
        %v1154 = vpop.f32.mrb[0].mxu0
        %1155 = vmatprep.mubr.f32.mxu0 0.0
        %1156 = vmatmul.mubr.f32.gmra.mrb[0].mxu0 %v753
        %v1157 = vpop.f32.mrb[0].mxu0
        %v1158 = vadd.f32 %v775, %v1157
        %v1159 = vpop.f32.mrb[0].mxu0
        %1160 = vdwg.mxu0
        %v1161 = vmax.f32 %v843, 0.0
        %v1162 = vmax.f32 %v848, 0.0
        %v1163 = vmax.f32 %v853, 0.0
        %v1164 = vmax.f32 %v858, 0.0
        %v1165 = vmax.f32 %v863, 0.0
        %v1166 = vmax.f32 %v868, 0.0
        %v1167 = vmax.f32 %v873, 0.0
        %v1168 = vmax.f32 %v878, 0.0
        %v1169 = vmax.f32 %v883, 0.0
        %v1170 = vmax.f32 %v888, 0.0
        %v1171 = vmax.f32 %v893, 0.0
        %v1172 = vmax.f32 %v898, 0.0
        %v1173 = vmax.f32 %v903, 0.0
        %v1174 = vmax.f32 %v908, 0.0
        %v1175 = vmax.f32 %v913, 0.0
        %v1176 = vmax.f32 %v918, 0.0
        %v1177 = vmax.f32 %v923, 0.0
        %v1178 = vmax.f32 %v928, 0.0
        %v1179 = vmax.f32 %v933, 0.0
        %v1180 = vmax.f32 %v938, 0.0
        %v1181 = vmax.f32 %v943, 0.0
        %v1182 = vmax.f32 %v948, 0.0
        %v1183 = vmax.f32 %v953, 0.0
        %v1184 = vmax.f32 %v958, 0.0
        %v1185 = vmax.f32 %v963, 0.0
        %v1186 = vmax.f32 %v968, 0.0
        %v1187 = vmax.f32 %v973, 0.0
        %v1188 = vmax.f32 %v978, 0.0
        %v1189 = vmax.f32 %v983, 0.0
        %v1190 = vmax.f32 %v988, 0.0
        %v1191 = vmax.f32 %v993, 0.0
        %v1192 = vmax.f32 %v998, 0.0
        %v1193 = vmax.f32 %v1003, 0.0
        %v1194 = vmax.f32 %v1008, 0.0
        %v1195 = vmax.f32 %v1013, 0.0
        %v1196 = vmax.f32 %v1018, 0.0
        %v1197 = vmax.f32 %v1023, 0.0
        %v1198 = vmax.f32 %v1028, 0.0
        %v1199 = vmax.f32 %v1033, 0.0
        %v1200 = vmax.f32 %v1038, 0.0
        %v1201 = vmax.f32 %v1043, 0.0
        %v1202 = vmax.f32 %v1048, 0.0
        %v1203 = vmax.f32 %v1053, 0.0
        %v1204 = vmax.f32 %v1058, 0.0
        %v1205 = vmax.f32 %v1063, 0.0
        %v1206 = vmax.f32 %v1068, 0.0
        %v1207 = vmax.f32 %v1073, 0.0
        %v1208 = vmax.f32 %v1078, 0.0
        %v1209 = vmax.f32 %v1083, 0.0
        %v1210 = vmax.f32 %v1088, 0.0
        %v1211 = vmax.f32 %v1093, 0.0
        %v1212 = vmax.f32 %v1098, 0.0
        %v1213 = vmax.f32 %v1103, 0.0
        %v1214 = vmax.f32 %v1108, 0.0
        %v1215 = vmax.f32 %v1113, 0.0
        %v1216 = vmax.f32 %v1118, 0.0
        %v1217 = vmax.f32 %v1123, 0.0
        %v1218 = vmax.f32 %v1128, 0.0
        %v1219 = vmax.f32 %v1133, 0.0
        %v1220 = vmax.f32 %v1138, 0.0
        %v1221 = vmax.f32 %v1143, 0.0
        %v1222 = vmax.f32 %v1148, 0.0
        %v1223 = vmax.f32 %v1153, 0.0
        %v1224 = vmax.f32 %v1158, 0.0
        %s1225 = scalar_lea.vmem [#allocation5], 256
        %v1226 = vld [vmem:[%s1225] sm:$0xff]
        %v1227 = vld [vmem:[%s1225 + $0x8] sm:$0xff]
        %v1228 = vld [vmem:[%s1225 + $0x10] sm:$0xff]
        %v1229 = vld [vmem:[%s1225 + $0x18] sm:$0xff]
        %v1230 = vld [vmem:[%s1225 + $0x20] sm:$0xff]
        %v1231 = vld [vmem:[%s1225 + $0x28] sm:$0xff]
        %v1232 = vld [vmem:[%s1225 + $0x30] sm:$0xff]
        %v1233 = vld [vmem:[%s1225 + $0x38] sm:$0xff]
        %v1234 = vld [vmem:[%s1225 + $0x40] sm:$0xff]
        %v1235 = vld [vmem:[%s1225 + $0x48] sm:$0xff]
        %v1236 = vld [vmem:[%s1225 + $0x50] sm:$0xff]
        %v1237 = vld [vmem:[%s1225 + $0x58] sm:$0xff]
        %v1238 = vld [vmem:[%s1225 + $0x60] sm:$0xff]
        %v1239 = vld [vmem:[%s1225 + $0x68] sm:$0xff]
        %v1240 = vld [vmem:[%s1225 + $0x70] sm:$0xff]
        %v1241 = vld [vmem:[%s1225 + $0x78] sm:$0xff]
        %v1242 = vld [vmem:[#allocation7 + $0x2] sm:$0x1]
        %v1243 = vlaneseq
        %v1244 = vshrl.u32 %v1243, 7
        %v1245 = vsub.s32 0, %v1244
        %v1246 = vrot.slane %v1242, %v1245
        %1247 = vmatprep.subr.mxu0 0.0
        %1248 = vmatpush1.msra.mxu0 %v1226
        %1249 = vmatprep.subr.mxu0 0.0
        %1250 = vmatpush1.msra.mxu0 %v1227
        %1251 = vmatprep.subr.mxu0 0.0
        %1252 = vmatpush1.msra.mxu0 %v1228
        %1253 = vmatprep.subr.mxu0 0.0
        %1254 = vmatpush1.msra.mxu0 %v1229
        %1255 = vmatprep.subr.mxu0 0.0
        %1256 = vmatpush1.msra.mxu0 %v1230
        %1257 = vmatprep.subr.mxu0 0.0
        %1258 = vmatpush1.msra.mxu0 %v1231
        %1259 = vmatprep.subr.mxu0 0.0
        %1260 = vmatpush1.msra.mxu0 %v1232
        %1261 = vmatprep.subr.mxu0 0.0
        %1262 = vmatpush1.msra.mxu0 %v1233
        %1263 = vmatprep.subr.mxu0 0.0
        %1264 = vmatpush1.msra.mxu0 %v1234
        %1265 = vmatprep.subr.mxu0 0.0
        %1266 = vmatpush1.msra.mxu0 %v1235
        %1267 = vmatprep.subr.mxu0 0.0
        %1268 = vmatpush1.msra.mxu0 %v1236
        %1269 = vmatprep.subr.mxu0 0.0
        %1270 = vmatpush1.msra.mxu0 %v1237
        %1271 = vmatprep.subr.mxu0 0.0
        %1272 = vmatpush1.msra.mxu0 %v1238
        %1273 = vmatprep.subr.mxu0 0.0
        %1274 = vmatpush1.msra.mxu0 %v1239
        %1275 = vmatprep.subr.mxu0 0.0
        %1276 = vmatpush1.msra.mxu0 %v1240
        %1277 = vmatprep.subr.mxu0 0.0
        %1278 = vmatpush1.msra.mxu0 %v1241
        %1279 = vmatprep.subr.mxu0 0.0
        %1280 = vmatpush1.msra.mxu0 0.0
        %1281 = vmatprep.subr.mxu0 0.0
        %1282 = vmatpush1.msra.mxu0 0.0
        %1283 = vmatprep.subr.mxu0 0.0
        %1284 = vmatpush1.msra.mxu0 0.0
        %1285 = vmatprep.subr.mxu0 0.0
        %1286 = vmatpush1.msra.mxu0 0.0
        %1287 = vmatprep.subr.mxu0 0.0
        %1288 = vmatpush1.msra.mxu0 0.0
        %1289 = vmatprep.subr.mxu0 0.0
        %1290 = vmatpush1.msra.mxu0 0.0
        %1291 = vmatprep.subr.mxu0 0.0
        %1292 = vmatpush1.msra.mxu0 0.0
        %1293 = vmatprep.subr.mxu0 0.0
        %1294 = vmatpush1.msra.mxu0 0.0
        %1295 = vmatprep.subr.mxu0 0.0
        %1296 = vmatpush1.msra.mxu0 0.0
        %1297 = vmatprep.subr.mxu0 0.0
        %1298 = vmatpush1.msra.mxu0 0.0
        %1299 = vmatprep.subr.mxu0 0.0
        %1300 = vmatpush1.msra.mxu0 0.0
        %1301 = vmatprep.subr.mxu0 0.0
        %1302 = vmatpush1.msra.mxu0 0.0
        %1303 = vmatprep.subr.mxu0 0.0
        %1304 = vmatpush1.msra.mxu0 0.0
        %1305 = vmatprep.subr.mxu0 0.0
        %1306 = vmatpush1.msra.mxu0 0.0
        %1307 = vmatprep.subr.mxu0 0.0
        %1308 = vmatpush1.msra.mxu0 0.0
        %1309 = vmatprep.subr.mxu0 0.0
        %1310 = vmatpush1.msra.mxu0 0.0
        %1311 = vmatprep.mubr.f32.mxu0 0.0
        %1312 = vmatmul.mubr.f32.gmra.mrb[0].mxu0 %v1161
        %v1313 = vpop.f32.mrb[0].mxu0
        %v1314 = vadd.f32 %v1246, %v1313
        %v1315 = vpop.f32.mrb[0].mxu0
        %1316 = vmatprep.mubr.f32.mxu0 0.0
        %1317 = vmatmul.mubr.f32.gmra.mrb[0].mxu0 %v1162
        %v1318 = vpop.f32.mrb[0].mxu0
        %v1319 = vadd.f32 %v1246, %v1318
        %v1320 = vpop.f32.mrb[0].mxu0
        %1321 = vmatprep.mubr.f32.mxu0 0.0
        %1322 = vmatmul.mubr.f32.gmra.mrb[0].mxu0 %v1163
        %v1323 = vpop.f32.mrb[0].mxu0
        %v1324 = vadd.f32 %v1246, %v1323
        %v1325 = vpop.f32.mrb[0].mxu0
        %1326 = vmatprep.mubr.f32.mxu0 0.0
        %1327 = vmatmul.mubr.f32.gmra.mrb[0].mxu0 %v1164
        %v1328 = vpop.f32.mrb[0].mxu0
        %v1329 = vadd.f32 %v1246, %v1328
        %v1330 = vpop.f32.mrb[0].mxu0
        %1331 = vmatprep.mubr.f32.mxu0 0.0
        %1332 = vmatmul.mubr.f32.gmra.mrb[0].mxu0 %v1165
        %v1333 = vpop.f32.mrb[0].mxu0
        %v1334 = vadd.f32 %v1246, %v1333
        %v1335 = vpop.f32.mrb[0].mxu0
        %1336 = vmatprep.mubr.f32.mxu0 0.0
        %1337 = vmatmul.mubr.f32.gmra.mrb[0].mxu0 %v1166
        %v1338 = vpop.f32.mrb[0].mxu0
        %v1339 = vadd.f32 %v1246, %v1338
        %v1340 = vpop.f32.mrb[0].mxu0
        %1341 = vmatprep.mubr.f32.mxu0 0.0
        %1342 = vmatmul.mubr.f32.gmra.mrb[0].mxu0 %v1167
        %v1343 = vpop.f32.mrb[0].mxu0
        %v1344 = vadd.f32 %v1246, %v1343
        %v1345 = vpop.f32.mrb[0].mxu0
        %1346 = vmatprep.mubr.f32.mxu0 0.0
        %1347 = vmatmul.mubr.f32.gmra.mrb[0].mxu0 %v1168
        %v1348 = vpop.f32.mrb[0].mxu0
        %v1349 = vadd.f32 %v1246, %v1348
        %v1350 = vpop.f32.mrb[0].mxu0
        %1351 = vmatprep.mubr.f32.mxu0 0.0
        %1352 = vmatmul.mubr.f32.gmra.mrb[0].mxu0 %v1169
        %v1353 = vpop.f32.mrb[0].mxu0
        %v1354 = vadd.f32 %v1246, %v1353
        %v1355 = vpop.f32.mrb[0].mxu0
        %1356 = vmatprep.mubr.f32.mxu0 0.0
        %1357 = vmatmul.mubr.f32.gmra.mrb[0].mxu0 %v1170
        %v1358 = vpop.f32.mrb[0].mxu0
        %v1359 = vadd.f32 %v1246, %v1358
        %v1360 = vpop.f32.mrb[0].mxu0
        %1361 = vmatprep.mubr.f32.mxu0 0.0
        %1362 = vmatmul.mubr.f32.gmra.mrb[0].mxu0 %v1171
        %v1363 = vpop.f32.mrb[0].mxu0
        %v1364 = vadd.f32 %v1246, %v1363
        %v1365 = vpop.f32.mrb[0].mxu0
        %1366 = vmatprep.mubr.f32.mxu0 0.0
        %1367 = vmatmul.mubr.f32.gmra.mrb[0].mxu0 %v1172
        %v1368 = vpop.f32.mrb[0].mxu0
        %v1369 = vadd.f32 %v1246, %v1368
        %v1370 = vpop.f32.mrb[0].mxu0
        %1371 = vmatprep.mubr.f32.mxu0 0.0
        %1372 = vmatmul.mubr.f32.gmra.mrb[0].mxu0 %v1173
        %v1373 = vpop.f32.mrb[0].mxu0
        %v1374 = vadd.f32 %v1246, %v1373
        %v1375 = vpop.f32.mrb[0].mxu0
        %1376 = vmatprep.mubr.f32.mxu0 0.0
        %1377 = vmatmul.mubr.f32.gmra.mrb[0].mxu0 %v1174
        %v1378 = vpop.f32.mrb[0].mxu0
        %v1379 = vadd.f32 %v1246, %v1378
        %v1380 = vpop.f32.mrb[0].mxu0
        %1381 = vmatprep.mubr.f32.mxu0 0.0
        %1382 = vmatmul.mubr.f32.gmra.mrb[0].mxu0 %v1175
        %v1383 = vpop.f32.mrb[0].mxu0
        %v1384 = vadd.f32 %v1246, %v1383
        %v1385 = vpop.f32.mrb[0].mxu0
        %1386 = vmatprep.mubr.f32.mxu0 0.0
        %1387 = vmatmul.mubr.f32.gmra.mrb[0].mxu0 %v1176
        %v1388 = vpop.f32.mrb[0].mxu0
        %v1389 = vadd.f32 %v1246, %v1388
        %v1390 = vpop.f32.mrb[0].mxu0
        %1391 = vmatprep.mubr.f32.mxu0 0.0
        %1392 = vmatmul.mubr.f32.gmra.mrb[0].mxu0 %v1177
        %v1393 = vpop.f32.mrb[0].mxu0
        %v1394 = vadd.f32 %v1246, %v1393
        %v1395 = vpop.f32.mrb[0].mxu0
        %1396 = vmatprep.mubr.f32.mxu0 0.0
        %1397 = vmatmul.mubr.f32.gmra.mrb[0].mxu0 %v1178
        %v1398 = vpop.f32.mrb[0].mxu0
        %v1399 = vadd.f32 %v1246, %v1398
        %v1400 = vpop.f32.mrb[0].mxu0
        %1401 = vmatprep.mubr.f32.mxu0 0.0
        %1402 = vmatmul.mubr.f32.gmra.mrb[0].mxu0 %v1179
        %v1403 = vpop.f32.mrb[0].mxu0
        %v1404 = vadd.f32 %v1246, %v1403
        %v1405 = vpop.f32.mrb[0].mxu0
        %1406 = vmatprep.mubr.f32.mxu0 0.0
        %1407 = vmatmul.mubr.f32.gmra.mrb[0].mxu0 %v1180
        %v1408 = vpop.f32.mrb[0].mxu0
        %v1409 = vadd.f32 %v1246, %v1408
        %v1410 = vpop.f32.mrb[0].mxu0
        %1411 = vmatprep.mubr.f32.mxu0 0.0
        %1412 = vmatmul.mubr.f32.gmra.mrb[0].mxu0 %v1181
        %v1413 = vpop.f32.mrb[0].mxu0
        %v1414 = vadd.f32 %v1246, %v1413
        %v1415 = vpop.f32.mrb[0].mxu0
        %1416 = vmatprep.mubr.f32.mxu0 0.0
        %1417 = vmatmul.mubr.f32.gmra.mrb[0].mxu0 %v1182
        %v1418 = vpop.f32.mrb[0].mxu0
        %v1419 = vadd.f32 %v1246, %v1418
        %v1420 = vpop.f32.mrb[0].mxu0
        %1421 = vmatprep.mubr.f32.mxu0 0.0
        %1422 = vmatmul.mubr.f32.gmra.mrb[0].mxu0 %v1183
        %v1423 = vpop.f32.mrb[0].mxu0
        %v1424 = vadd.f32 %v1246, %v1423
        %v1425 = vpop.f32.mrb[0].mxu0
        %1426 = vmatprep.mubr.f32.mxu0 0.0
        %1427 = vmatmul.mubr.f32.gmra.mrb[0].mxu0 %v1184
        %v1428 = vpop.f32.mrb[0].mxu0
        %v1429 = vadd.f32 %v1246, %v1428
        %v1430 = vpop.f32.mrb[0].mxu0
        %1431 = vmatprep.mubr.f32.mxu0 0.0
        %1432 = vmatmul.mubr.f32.gmra.mrb[0].mxu0 %v1185
        %v1433 = vpop.f32.mrb[0].mxu0
        %v1434 = vadd.f32 %v1246, %v1433
        %v1435 = vpop.f32.mrb[0].mxu0
        %1436 = vmatprep.mubr.f32.mxu0 0.0
        %1437 = vmatmul.mubr.f32.gmra.mrb[0].mxu0 %v1186
        %v1438 = vpop.f32.mrb[0].mxu0
        %v1439 = vadd.f32 %v1246, %v1438
        %v1440 = vpop.f32.mrb[0].mxu0
        %1441 = vmatprep.mubr.f32.mxu0 0.0
        %1442 = vmatmul.mubr.f32.gmra.mrb[0].mxu0 %v1187
        %v1443 = vpop.f32.mrb[0].mxu0
        %v1444 = vadd.f32 %v1246, %v1443
        %v1445 = vpop.f32.mrb[0].mxu0
        %1446 = vmatprep.mubr.f32.mxu0 0.0
        %1447 = vmatmul.mubr.f32.gmra.mrb[0].mxu0 %v1188
        %v1448 = vpop.f32.mrb[0].mxu0
        %v1449 = vadd.f32 %v1246, %v1448
        %v1450 = vpop.f32.mrb[0].mxu0
        %1451 = vmatprep.mubr.f32.mxu0 0.0
        %1452 = vmatmul.mubr.f32.gmra.mrb[0].mxu0 %v1189
        %v1453 = vpop.f32.mrb[0].mxu0
        %v1454 = vadd.f32 %v1246, %v1453
        %v1455 = vpop.f32.mrb[0].mxu0
        %1456 = vmatprep.mubr.f32.mxu0 0.0
        %1457 = vmatmul.mubr.f32.gmra.mrb[0].mxu0 %v1190
        %v1458 = vpop.f32.mrb[0].mxu0
        %v1459 = vadd.f32 %v1246, %v1458
        %v1460 = vpop.f32.mrb[0].mxu0
        %1461 = vmatprep.mubr.f32.mxu0 0.0
        %1462 = vmatmul.mubr.f32.gmra.mrb[0].mxu0 %v1191
        %v1463 = vpop.f32.mrb[0].mxu0
        %v1464 = vadd.f32 %v1246, %v1463
        %v1465 = vpop.f32.mrb[0].mxu0
        %1466 = vmatprep.mubr.f32.mxu0 0.0
        %1467 = vmatmul.mubr.f32.gmra.mrb[0].mxu0 %v1192
        %v1468 = vpop.f32.mrb[0].mxu0
        %v1469 = vadd.f32 %v1246, %v1468
        %v1470 = vpop.f32.mrb[0].mxu0
        %1471 = vmatprep.mubr.f32.mxu0 0.0
        %1472 = vmatmul.mubr.f32.gmra.mrb[0].mxu0 %v1193
        %v1473 = vpop.f32.mrb[0].mxu0
        %v1474 = vadd.f32 %v1246, %v1473
        %v1475 = vpop.f32.mrb[0].mxu0
        %1476 = vmatprep.mubr.f32.mxu0 0.0
        %1477 = vmatmul.mubr.f32.gmra.mrb[0].mxu0 %v1194
        %v1478 = vpop.f32.mrb[0].mxu0
        %v1479 = vadd.f32 %v1246, %v1478
        %v1480 = vpop.f32.mrb[0].mxu0
        %1481 = vmatprep.mubr.f32.mxu0 0.0
        %1482 = vmatmul.mubr.f32.gmra.mrb[0].mxu0 %v1195
        %v1483 = vpop.f32.mrb[0].mxu0
        %v1484 = vadd.f32 %v1246, %v1483
        %v1485 = vpop.f32.mrb[0].mxu0
        %1486 = vmatprep.mubr.f32.mxu0 0.0
        %1487 = vmatmul.mubr.f32.gmra.mrb[0].mxu0 %v1196
        %v1488 = vpop.f32.mrb[0].mxu0
        %v1489 = vadd.f32 %v1246, %v1488
        %v1490 = vpop.f32.mrb[0].mxu0
        %1491 = vmatprep.mubr.f32.mxu0 0.0
        %1492 = vmatmul.mubr.f32.gmra.mrb[0].mxu0 %v1197
        %v1493 = vpop.f32.mrb[0].mxu0
        %v1494 = vadd.f32 %v1246, %v1493
        %v1495 = vpop.f32.mrb[0].mxu0
        %1496 = vmatprep.mubr.f32.mxu0 0.0
        %1497 = vmatmul.mubr.f32.gmra.mrb[0].mxu0 %v1198
        %v1498 = vpop.f32.mrb[0].mxu0
        %v1499 = vadd.f32 %v1246, %v1498
        %v1500 = vpop.f32.mrb[0].mxu0
        %1501 = vmatprep.mubr.f32.mxu0 0.0
        %1502 = vmatmul.mubr.f32.gmra.mrb[0].mxu0 %v1199
        %v1503 = vpop.f32.mrb[0].mxu0
        %v1504 = vadd.f32 %v1246, %v1503
        %v1505 = vpop.f32.mrb[0].mxu0
        %1506 = vmatprep.mubr.f32.mxu0 0.0
        %1507 = vmatmul.mubr.f32.gmra.mrb[0].mxu0 %v1200
        %v1508 = vpop.f32.mrb[0].mxu0
        %v1509 = vadd.f32 %v1246, %v1508
        %v1510 = vpop.f32.mrb[0].mxu0
        %1511 = vmatprep.mubr.f32.mxu0 0.0
        %1512 = vmatmul.mubr.f32.gmra.mrb[0].mxu0 %v1201
        %v1513 = vpop.f32.mrb[0].mxu0
        %v1514 = vadd.f32 %v1246, %v1513
        %v1515 = vpop.f32.mrb[0].mxu0
        %1516 = vmatprep.mubr.f32.mxu0 0.0
        %1517 = vmatmul.mubr.f32.gmra.mrb[0].mxu0 %v1202
        %v1518 = vpop.f32.mrb[0].mxu0
        %v1519 = vadd.f32 %v1246, %v1518
        %v1520 = vpop.f32.mrb[0].mxu0
        %1521 = vmatprep.mubr.f32.mxu0 0.0
        %1522 = vmatmul.mubr.f32.gmra.mrb[0].mxu0 %v1203
        %v1523 = vpop.f32.mrb[0].mxu0
        %v1524 = vadd.f32 %v1246, %v1523
        %v1525 = vpop.f32.mrb[0].mxu0
        %1526 = vmatprep.mubr.f32.mxu0 0.0
        %1527 = vmatmul.mubr.f32.gmra.mrb[0].mxu0 %v1204
        %v1528 = vpop.f32.mrb[0].mxu0
        %v1529 = vadd.f32 %v1246, %v1528
        %v1530 = vpop.f32.mrb[0].mxu0
        %1531 = vmatprep.mubr.f32.mxu0 0.0
        %1532 = vmatmul.mubr.f32.gmra.mrb[0].mxu0 %v1205
        %v1533 = vpop.f32.mrb[0].mxu0
        %v1534 = vadd.f32 %v1246, %v1533
        %v1535 = vpop.f32.mrb[0].mxu0
        %1536 = vmatprep.mubr.f32.mxu0 0.0
        %1537 = vmatmul.mubr.f32.gmra.mrb[0].mxu0 %v1206
        %v1538 = vpop.f32.mrb[0].mxu0
        %v1539 = vadd.f32 %v1246, %v1538
        %v1540 = vpop.f32.mrb[0].mxu0
        %1541 = vmatprep.mubr.f32.mxu0 0.0
        %1542 = vmatmul.mubr.f32.gmra.mrb[0].mxu0 %v1207
        %v1543 = vpop.f32.mrb[0].mxu0
        %v1544 = vadd.f32 %v1246, %v1543
        %v1545 = vpop.f32.mrb[0].mxu0
        %1546 = vmatprep.mubr.f32.mxu0 0.0
        %1547 = vmatmul.mubr.f32.gmra.mrb[0].mxu0 %v1208
        %v1548 = vpop.f32.mrb[0].mxu0
        %v1549 = vadd.f32 %v1246, %v1548
        %v1550 = vpop.f32.mrb[0].mxu0
        %1551 = vmatprep.mubr.f32.mxu0 0.0
        %1552 = vmatmul.mubr.f32.gmra.mrb[0].mxu0 %v1209
        %v1553 = vpop.f32.mrb[0].mxu0
        %v1554 = vadd.f32 %v1246, %v1553
        %v1555 = vpop.f32.mrb[0].mxu0
        %1556 = vmatprep.mubr.f32.mxu0 0.0
        %1557 = vmatmul.mubr.f32.gmra.mrb[0].mxu0 %v1210
        %v1558 = vpop.f32.mrb[0].mxu0
        %v1559 = vadd.f32 %v1246, %v1558
        %v1560 = vpop.f32.mrb[0].mxu0
        %1561 = vmatprep.mubr.f32.mxu0 0.0
        %1562 = vmatmul.mubr.f32.gmra.mrb[0].mxu0 %v1211
        %v1563 = vpop.f32.mrb[0].mxu0
        %v1564 = vadd.f32 %v1246, %v1563
        %v1565 = vpop.f32.mrb[0].mxu0
        %1566 = vmatprep.mubr.f32.mxu0 0.0
        %1567 = vmatmul.mubr.f32.gmra.mrb[0].mxu0 %v1212
        %v1568 = vpop.f32.mrb[0].mxu0
        %v1569 = vadd.f32 %v1246, %v1568
        %v1570 = vpop.f32.mrb[0].mxu0
        %1571 = vmatprep.mubr.f32.mxu0 0.0
        %1572 = vmatmul.mubr.f32.gmra.mrb[0].mxu0 %v1213
        %v1573 = vpop.f32.mrb[0].mxu0
        %v1574 = vadd.f32 %v1246, %v1573
        %v1575 = vpop.f32.mrb[0].mxu0
        %1576 = vmatprep.mubr.f32.mxu0 0.0
        %1577 = vmatmul.mubr.f32.gmra.mrb[0].mxu0 %v1214
        %v1578 = vpop.f32.mrb[0].mxu0
        %v1579 = vadd.f32 %v1246, %v1578
        %v1580 = vpop.f32.mrb[0].mxu0
        %1581 = vmatprep.mubr.f32.mxu0 0.0
        %1582 = vmatmul.mubr.f32.gmra.mrb[0].mxu0 %v1215
        %v1583 = vpop.f32.mrb[0].mxu0
        %v1584 = vadd.f32 %v1246, %v1583
        %v1585 = vpop.f32.mrb[0].mxu0
        %1586 = vmatprep.mubr.f32.mxu0 0.0
        %1587 = vmatmul.mubr.f32.gmra.mrb[0].mxu0 %v1216
        %v1588 = vpop.f32.mrb[0].mxu0
        %v1589 = vadd.f32 %v1246, %v1588
        %v1590 = vpop.f32.mrb[0].mxu0
        %1591 = vmatprep.mubr.f32.mxu0 0.0
        %1592 = vmatmul.mubr.f32.gmra.mrb[0].mxu0 %v1217
        %v1593 = vpop.f32.mrb[0].mxu0
        %v1594 = vadd.f32 %v1246, %v1593
        %v1595 = vpop.f32.mrb[0].mxu0
        %1596 = vmatprep.mubr.f32.mxu0 0.0
        %1597 = vmatmul.mubr.f32.gmra.mrb[0].mxu0 %v1218
        %v1598 = vpop.f32.mrb[0].mxu0
        %v1599 = vadd.f32 %v1246, %v1598
        %v1600 = vpop.f32.mrb[0].mxu0
        %1601 = vmatprep.mubr.f32.mxu0 0.0
        %1602 = vmatmul.mubr.f32.gmra.mrb[0].mxu0 %v1219
        %v1603 = vpop.f32.mrb[0].mxu0
        %v1604 = vadd.f32 %v1246, %v1603
        %v1605 = vpop.f32.mrb[0].mxu0
        %1606 = vmatprep.mubr.f32.mxu0 0.0
        %1607 = vmatmul.mubr.f32.gmra.mrb[0].mxu0 %v1220
        %v1608 = vpop.f32.mrb[0].mxu0
        %v1609 = vadd.f32 %v1246, %v1608
        %v1610 = vpop.f32.mrb[0].mxu0
        %1611 = vmatprep.mubr.f32.mxu0 0.0
        %1612 = vmatmul.mubr.f32.gmra.mrb[0].mxu0 %v1221
        %v1613 = vpop.f32.mrb[0].mxu0
        %v1614 = vadd.f32 %v1246, %v1613
        %v1615 = vpop.f32.mrb[0].mxu0
        %1616 = vmatprep.mubr.f32.mxu0 0.0
        %1617 = vmatmul.mubr.f32.gmra.mrb[0].mxu0 %v1222
        %v1618 = vpop.f32.mrb[0].mxu0
        %v1619 = vadd.f32 %v1246, %v1618
        %v1620 = vpop.f32.mrb[0].mxu0
        %1621 = vmatprep.mubr.f32.mxu0 0.0
        %1622 = vmatmul.mubr.f32.gmra.mrb[0].mxu0 %v1223
        %v1623 = vpop.f32.mrb[0].mxu0
        %v1624 = vadd.f32 %v1246, %v1623
        %v1625 = vpop.f32.mrb[0].mxu0
        %1626 = vmatprep.mubr.f32.mxu0 0.0
        %1627 = vmatmul.mubr.f32.gmra.mrb[0].mxu0 %v1224
        %v1628 = vpop.f32.mrb[0].mxu0
        %v1629 = vadd.f32 %v1246, %v1628
        %v1630 = vpop.f32.mrb[0].mxu0
        %1631 = vdwg.mxu0
        %v1632 = vmax.f32 %v1314, 0.0
        %v1633 = vmax.f32 %v1319, 0.0
        %v1634 = vmax.f32 %v1324, 0.0
        %v1635 = vmax.f32 %v1329, 0.0
        %v1636 = vmax.f32 %v1334, 0.0
        %v1637 = vmax.f32 %v1339, 0.0
        %v1638 = vmax.f32 %v1344, 0.0
        %v1639 = vmax.f32 %v1349, 0.0
        %v1640 = vmax.f32 %v1354, 0.0
        %v1641 = vmax.f32 %v1359, 0.0
        %v1642 = vmax.f32 %v1364, 0.0
        %v1643 = vmax.f32 %v1369, 0.0
        %v1644 = vmax.f32 %v1374, 0.0
        %v1645 = vmax.f32 %v1379, 0.0
        %v1646 = vmax.f32 %v1384, 0.0
        %v1647 = vmax.f32 %v1389, 0.0
        %v1648 = vmax.f32 %v1394, 0.0
        %v1649 = vmax.f32 %v1399, 0.0
        %v1650 = vmax.f32 %v1404, 0.0
        %v1651 = vmax.f32 %v1409, 0.0
        %v1652 = vmax.f32 %v1414, 0.0
        %v1653 = vmax.f32 %v1419, 0.0
        %v1654 = vmax.f32 %v1424, 0.0
        %v1655 = vmax.f32 %v1429, 0.0
        %v1656 = vmax.f32 %v1434, 0.0
        %v1657 = vmax.f32 %v1439, 0.0
        %v1658 = vmax.f32 %v1444, 0.0
        %v1659 = vmax.f32 %v1449, 0.0
        %v1660 = vmax.f32 %v1454, 0.0
        %v1661 = vmax.f32 %v1459, 0.0
        %v1662 = vmax.f32 %v1464, 0.0
        %v1663 = vmax.f32 %v1469, 0.0
        %v1664 = vmax.f32 %v1474, 0.0
        %v1665 = vmax.f32 %v1479, 0.0
        %v1666 = vmax.f32 %v1484, 0.0
        %v1667 = vmax.f32 %v1489, 0.0
        %v1668 = vmax.f32 %v1494, 0.0
        %v1669 = vmax.f32 %v1499, 0.0
        %v1670 = vmax.f32 %v1504, 0.0
        %v1671 = vmax.f32 %v1509, 0.0
        %v1672 = vmax.f32 %v1514, 0.0
        %v1673 = vmax.f32 %v1519, 0.0
        %v1674 = vmax.f32 %v1524, 0.0
        %v1675 = vmax.f32 %v1529, 0.0
        %v1676 = vmax.f32 %v1534, 0.0
        %v1677 = vmax.f32 %v1539, 0.0
        %v1678 = vmax.f32 %v1544, 0.0
        %v1679 = vmax.f32 %v1549, 0.0
        %v1680 = vmax.f32 %v1554, 0.0
        %v1681 = vmax.f32 %v1559, 0.0
        %v1682 = vmax.f32 %v1564, 0.0
        %v1683 = vmax.f32 %v1569, 0.0
        %v1684 = vmax.f32 %v1574, 0.0
        %v1685 = vmax.f32 %v1579, 0.0
        %v1686 = vmax.f32 %v1584, 0.0
        %v1687 = vmax.f32 %v1589, 0.0
        %v1688 = vmax.f32 %v1594, 0.0
        %v1689 = vmax.f32 %v1599, 0.0
        %v1690 = vmax.f32 %v1604, 0.0
        %v1691 = vmax.f32 %v1609, 0.0
        %v1692 = vmax.f32 %v1614, 0.0
        %v1693 = vmax.f32 %v1619, 0.0
        %v1694 = vmax.f32 %v1624, 0.0
        %v1695 = vmax.f32 %v1629, 0.0
        %s1696 = scalar_lea.vmem [#allocation5], 384
        %v1697 = vld [vmem:[%s1696] sm:$0xff]
        %v1698 = vld [vmem:[%s1696 + $0x8] sm:$0xff]
        %v1699 = vld [vmem:[%s1696 + $0x10] sm:$0xff]
        %v1700 = vld [vmem:[%s1696 + $0x18] sm:$0xff]
        %v1701 = vld [vmem:[%s1696 + $0x20] sm:$0xff]
        %v1702 = vld [vmem:[%s1696 + $0x28] sm:$0xff]
        %v1703 = vld [vmem:[%s1696 + $0x30] sm:$0xff]
        %v1704 = vld [vmem:[%s1696 + $0x38] sm:$0xff]
        %v1705 = vld [vmem:[%s1696 + $0x40] sm:$0xff]
        %v1706 = vld [vmem:[%s1696 + $0x48] sm:$0xff]
        %v1707 = vld [vmem:[%s1696 + $0x50] sm:$0xff]
        %v1708 = vld [vmem:[%s1696 + $0x58] sm:$0xff]
        %v1709 = vld [vmem:[%s1696 + $0x60] sm:$0xff]
        %v1710 = vld [vmem:[%s1696 + $0x68] sm:$0xff]
        %v1711 = vld [vmem:[%s1696 + $0x70] sm:$0xff]
        %v1712 = vld [vmem:[%s1696 + $0x78] sm:$0xff]
        %v1713 = vld [vmem:[#allocation7 + $0x3] sm:$0x1]
        %v1714 = vlaneseq
        %v1715 = vshrl.u32 %v1714, 7
        %v1716 = vsub.s32 0, %v1715
        %v1717 = vrot.slane %v1713, %v1716
        %1718 = vmatprep.subr.mxu0 0.0
        %1719 = vmatpush1.msra.mxu0 %v1697
        %1720 = vmatprep.subr.mxu0 0.0
        %1721 = vmatpush1.msra.mxu0 %v1698
        %1722 = vmatprep.subr.mxu0 0.0
        %1723 = vmatpush1.msra.mxu0 %v1699
        %1724 = vmatprep.subr.mxu0 0.0
        %1725 = vmatpush1.msra.mxu0 %v1700
        %1726 = vmatprep.subr.mxu0 0.0
        %1727 = vmatpush1.msra.mxu0 %v1701
        %1728 = vmatprep.subr.mxu0 0.0
        %1729 = vmatpush1.msra.mxu0 %v1702
        %1730 = vmatprep.subr.mxu0 0.0
        %1731 = vmatpush1.msra.mxu0 %v1703
        %1732 = vmatprep.subr.mxu0 0.0
        %1733 = vmatpush1.msra.mxu0 %v1704
        %1734 = vmatprep.subr.mxu0 0.0
        %1735 = vmatpush1.msra.mxu0 %v1705
        %1736 = vmatprep.subr.mxu0 0.0
        %1737 = vmatpush1.msra.mxu0 %v1706
        %1738 = vmatprep.subr.mxu0 0.0
        %1739 = vmatpush1.msra.mxu0 %v1707
        %1740 = vmatprep.subr.mxu0 0.0
        %1741 = vmatpush1.msra.mxu0 %v1708
        %1742 = vmatprep.subr.mxu0 0.0
        %1743 = vmatpush1.msra.mxu0 %v1709
        %1744 = vmatprep.subr.mxu0 0.0
        %1745 = vmatpush1.msra.mxu0 %v1710
        %1746 = vmatprep.subr.mxu0 0.0
        %1747 = vmatpush1.msra.mxu0 %v1711
        %1748 = vmatprep.subr.mxu0 0.0
        %1749 = vmatpush1.msra.mxu0 %v1712
        %1750 = vmatprep.subr.mxu0 0.0
        %1751 = vmatpush1.msra.mxu0 0.0
        %1752 = vmatprep.subr.mxu0 0.0
        %1753 = vmatpush1.msra.mxu0 0.0
        %1754 = vmatprep.subr.mxu0 0.0
        %1755 = vmatpush1.msra.mxu0 0.0
        %1756 = vmatprep.subr.mxu0 0.0
        %1757 = vmatpush1.msra.mxu0 0.0
        %1758 = vmatprep.subr.mxu0 0.0
        %1759 = vmatpush1.msra.mxu0 0.0
        %1760 = vmatprep.subr.mxu0 0.0
        %1761 = vmatpush1.msra.mxu0 0.0
        %1762 = vmatprep.subr.mxu0 0.0
        %1763 = vmatpush1.msra.mxu0 0.0
        %1764 = vmatprep.subr.mxu0 0.0
        %1765 = vmatpush1.msra.mxu0 0.0
        %1766 = vmatprep.subr.mxu0 0.0
        %1767 = vmatpush1.msra.mxu0 0.0
        %1768 = vmatprep.subr.mxu0 0.0
        %1769 = vmatpush1.msra.mxu0 0.0
        %1770 = vmatprep.subr.mxu0 0.0
        %1771 = vmatpush1.msra.mxu0 0.0
        %1772 = vmatprep.subr.mxu0 0.0
        %1773 = vmatpush1.msra.mxu0 0.0
        %1774 = vmatprep.subr.mxu0 0.0
        %1775 = vmatpush1.msra.mxu0 0.0
        %1776 = vmatprep.subr.mxu0 0.0
        %1777 = vmatpush1.msra.mxu0 0.0
        %1778 = vmatprep.subr.mxu0 0.0
        %1779 = vmatpush1.msra.mxu0 0.0
        %1780 = vmatprep.subr.mxu0 0.0
        %1781 = vmatpush1.msra.mxu0 0.0
        %1782 = vmatprep.mubr.f32.mxu0 0.0
        %1783 = vmatmul.mubr.f32.gmra.mrb[0].mxu0 %v1632
        %v1784 = vpop.f32.mrb[0].mxu0
        %v1785 = vadd.f32 %v1717, %v1784
        %v1786 = vpop.f32.mrb[0].mxu0
        %1787 = vmatprep.mubr.f32.mxu0 0.0
        %1788 = vmatmul.mubr.f32.gmra.mrb[0].mxu0 %v1633
        %v1789 = vpop.f32.mrb[0].mxu0
        %v1790 = vadd.f32 %v1717, %v1789
        %v1791 = vpop.f32.mrb[0].mxu0
        %1792 = vmatprep.mubr.f32.mxu0 0.0
        %1793 = vmatmul.mubr.f32.gmra.mrb[0].mxu0 %v1634
        %v1794 = vpop.f32.mrb[0].mxu0
        %v1795 = vadd.f32 %v1717, %v1794
        %v1796 = vpop.f32.mrb[0].mxu0
        %1797 = vmatprep.mubr.f32.mxu0 0.0
        %1798 = vmatmul.mubr.f32.gmra.mrb[0].mxu0 %v1635
        %v1799 = vpop.f32.mrb[0].mxu0
        %v1800 = vadd.f32 %v1717, %v1799
        %v1801 = vpop.f32.mrb[0].mxu0
        %1802 = vmatprep.mubr.f32.mxu0 0.0
        %1803 = vmatmul.mubr.f32.gmra.mrb[0].mxu0 %v1636
        %v1804 = vpop.f32.mrb[0].mxu0
        %v1805 = vadd.f32 %v1717, %v1804
        %v1806 = vpop.f32.mrb[0].mxu0
        %1807 = vmatprep.mubr.f32.mxu0 0.0
        %1808 = vmatmul.mubr.f32.gmra.mrb[0].mxu0 %v1637
        %v1809 = vpop.f32.mrb[0].mxu0
        %v1810 = vadd.f32 %v1717, %v1809
        %v1811 = vpop.f32.mrb[0].mxu0
        %1812 = vmatprep.mubr.f32.mxu0 0.0
        %1813 = vmatmul.mubr.f32.gmra.mrb[0].mxu0 %v1638
        %v1814 = vpop.f32.mrb[0].mxu0
        %v1815 = vadd.f32 %v1717, %v1814
        %v1816 = vpop.f32.mrb[0].mxu0
        %1817 = vmatprep.mubr.f32.mxu0 0.0
        %1818 = vmatmul.mubr.f32.gmra.mrb[0].mxu0 %v1639
        %v1819 = vpop.f32.mrb[0].mxu0
        %v1820 = vadd.f32 %v1717, %v1819
        %v1821 = vpop.f32.mrb[0].mxu0
        %1822 = vmatprep.mubr.f32.mxu0 0.0
        %1823 = vmatmul.mubr.f32.gmra.mrb[0].mxu0 %v1640
        %v1824 = vpop.f32.mrb[0].mxu0
        %v1825 = vadd.f32 %v1717, %v1824
        %v1826 = vpop.f32.mrb[0].mxu0
        %1827 = vmatprep.mubr.f32.mxu0 0.0
        %1828 = vmatmul.mubr.f32.gmra.mrb[0].mxu0 %v1641
        %v1829 = vpop.f32.mrb[0].mxu0
        %v1830 = vadd.f32 %v1717, %v1829
        %v1831 = vpop.f32.mrb[0].mxu0
        %1832 = vmatprep.mubr.f32.mxu0 0.0
        %1833 = vmatmul.mubr.f32.gmra.mrb[0].mxu0 %v1642
        %v1834 = vpop.f32.mrb[0].mxu0
        %v1835 = vadd.f32 %v1717, %v1834
        %v1836 = vpop.f32.mrb[0].mxu0
        %1837 = vmatprep.mubr.f32.mxu0 0.0
        %1838 = vmatmul.mubr.f32.gmra.mrb[0].mxu0 %v1643
        %v1839 = vpop.f32.mrb[0].mxu0
        %v1840 = vadd.f32 %v1717, %v1839
        %v1841 = vpop.f32.mrb[0].mxu0
        %1842 = vmatprep.mubr.f32.mxu0 0.0
        %1843 = vmatmul.mubr.f32.gmra.mrb[0].mxu0 %v1644
        %v1844 = vpop.f32.mrb[0].mxu0
        %v1845 = vadd.f32 %v1717, %v1844
        %v1846 = vpop.f32.mrb[0].mxu0
        %1847 = vmatprep.mubr.f32.mxu0 0.0
        %1848 = vmatmul.mubr.f32.gmra.mrb[0].mxu0 %v1645
        %v1849 = vpop.f32.mrb[0].mxu0
        %v1850 = vadd.f32 %v1717, %v1849
        %v1851 = vpop.f32.mrb[0].mxu0
        %1852 = vmatprep.mubr.f32.mxu0 0.0
        %1853 = vmatmul.mubr.f32.gmra.mrb[0].mxu0 %v1646
        %v1854 = vpop.f32.mrb[0].mxu0
        %v1855 = vadd.f32 %v1717, %v1854
        %v1856 = vpop.f32.mrb[0].mxu0
        %1857 = vmatprep.mubr.f32.mxu0 0.0
        %1858 = vmatmul.mubr.f32.gmra.mrb[0].mxu0 %v1647
        %v1859 = vpop.f32.mrb[0].mxu0
        %v1860 = vadd.f32 %v1717, %v1859
        %v1861 = vpop.f32.mrb[0].mxu0
        %1862 = vmatprep.mubr.f32.mxu0 0.0
        %1863 = vmatmul.mubr.f32.gmra.mrb[0].mxu0 %v1648
        %v1864 = vpop.f32.mrb[0].mxu0
        %v1865 = vadd.f32 %v1717, %v1864
        %v1866 = vpop.f32.mrb[0].mxu0
        %1867 = vmatprep.mubr.f32.mxu0 0.0
        %1868 = vmatmul.mubr.f32.gmra.mrb[0].mxu0 %v1649
        %v1869 = vpop.f32.mrb[0].mxu0
        %v1870 = vadd.f32 %v1717, %v1869
        %v1871 = vpop.f32.mrb[0].mxu0
        %1872 = vmatprep.mubr.f32.mxu0 0.0
        %1873 = vmatmul.mubr.f32.gmra.mrb[0].mxu0 %v1650
        %v1874 = vpop.f32.mrb[0].mxu0
        %v1875 = vadd.f32 %v1717, %v1874
        %v1876 = vpop.f32.mrb[0].mxu0
        %1877 = vmatprep.mubr.f32.mxu0 0.0
        %1878 = vmatmul.mubr.f32.gmra.mrb[0].mxu0 %v1651
        %v1879 = vpop.f32.mrb[0].mxu0
        %v1880 = vadd.f32 %v1717, %v1879
        %v1881 = vpop.f32.mrb[0].mxu0
        %1882 = vmatprep.mubr.f32.mxu0 0.0
        %1883 = vmatmul.mubr.f32.gmra.mrb[0].mxu0 %v1652
        %v1884 = vpop.f32.mrb[0].mxu0
        %v1885 = vadd.f32 %v1717, %v1884
        %v1886 = vpop.f32.mrb[0].mxu0
        %1887 = vmatprep.mubr.f32.mxu0 0.0
        %1888 = vmatmul.mubr.f32.gmra.mrb[0].mxu0 %v1653
        %v1889 = vpop.f32.mrb[0].mxu0
        %v1890 = vadd.f32 %v1717, %v1889
        %v1891 = vpop.f32.mrb[0].mxu0
        %1892 = vmatprep.mubr.f32.mxu0 0.0
        %1893 = vmatmul.mubr.f32.gmra.mrb[0].mxu0 %v1654
        %v1894 = vpop.f32.mrb[0].mxu0
        %v1895 = vadd.f32 %v1717, %v1894
        %v1896 = vpop.f32.mrb[0].mxu0
        %1897 = vmatprep.mubr.f32.mxu0 0.0
        %1898 = vmatmul.mubr.f32.gmra.mrb[0].mxu0 %v1655
        %v1899 = vpop.f32.mrb[0].mxu0
        %v1900 = vadd.f32 %v1717, %v1899
        %v1901 = vpop.f32.mrb[0].mxu0
        %1902 = vmatprep.mubr.f32.mxu0 0.0
        %1903 = vmatmul.mubr.f32.gmra.mrb[0].mxu0 %v1656
        %v1904 = vpop.f32.mrb[0].mxu0
        %v1905 = vadd.f32 %v1717, %v1904
        %v1906 = vpop.f32.mrb[0].mxu0
        %1907 = vmatprep.mubr.f32.mxu0 0.0
        %1908 = vmatmul.mubr.f32.gmra.mrb[0].mxu0 %v1657
        %v1909 = vpop.f32.mrb[0].mxu0
        %v1910 = vadd.f32 %v1717, %v1909
        %v1911 = vpop.f32.mrb[0].mxu0
        %1912 = vmatprep.mubr.f32.mxu0 0.0
        %1913 = vmatmul.mubr.f32.gmra.mrb[0].mxu0 %v1658
        %v1914 = vpop.f32.mrb[0].mxu0
        %v1915 = vadd.f32 %v1717, %v1914
        %v1916 = vpop.f32.mrb[0].mxu0
        %1917 = vmatprep.mubr.f32.mxu0 0.0
        %1918 = vmatmul.mubr.f32.gmra.mrb[0].mxu0 %v1659
        %v1919 = vpop.f32.mrb[0].mxu0
        %v1920 = vadd.f32 %v1717, %v1919
        %v1921 = vpop.f32.mrb[0].mxu0
        %1922 = vmatprep.mubr.f32.mxu0 0.0
        %1923 = vmatmul.mubr.f32.gmra.mrb[0].mxu0 %v1660
        %v1924 = vpop.f32.mrb[0].mxu0
        %v1925 = vadd.f32 %v1717, %v1924
        %v1926 = vpop.f32.mrb[0].mxu0
        %1927 = vmatprep.mubr.f32.mxu0 0.0
        %1928 = vmatmul.mubr.f32.gmra.mrb[0].mxu0 %v1661
        %v1929 = vpop.f32.mrb[0].mxu0
        %v1930 = vadd.f32 %v1717, %v1929
        %v1931 = vpop.f32.mrb[0].mxu0
        %1932 = vmatprep.mubr.f32.mxu0 0.0
        %1933 = vmatmul.mubr.f32.gmra.mrb[0].mxu0 %v1662
        %v1934 = vpop.f32.mrb[0].mxu0
        %v1935 = vadd.f32 %v1717, %v1934
        %v1936 = vpop.f32.mrb[0].mxu0
        %1937 = vmatprep.mubr.f32.mxu0 0.0
        %1938 = vmatmul.mubr.f32.gmra.mrb[0].mxu0 %v1663
        %v1939 = vpop.f32.mrb[0].mxu0
        %v1940 = vadd.f32 %v1717, %v1939
        %v1941 = vpop.f32.mrb[0].mxu0
        %1942 = vmatprep.mubr.f32.mxu0 0.0
        %1943 = vmatmul.mubr.f32.gmra.mrb[0].mxu0 %v1664
        %v1944 = vpop.f32.mrb[0].mxu0
        %v1945 = vadd.f32 %v1717, %v1944
        %v1946 = vpop.f32.mrb[0].mxu0
        %1947 = vmatprep.mubr.f32.mxu0 0.0
        %1948 = vmatmul.mubr.f32.gmra.mrb[0].mxu0 %v1665
        %v1949 = vpop.f32.mrb[0].mxu0
        %v1950 = vadd.f32 %v1717, %v1949
        %v1951 = vpop.f32.mrb[0].mxu0
        %1952 = vmatprep.mubr.f32.mxu0 0.0
        %1953 = vmatmul.mubr.f32.gmra.mrb[0].mxu0 %v1666
        %v1954 = vpop.f32.mrb[0].mxu0
        %v1955 = vadd.f32 %v1717, %v1954
        %v1956 = vpop.f32.mrb[0].mxu0
        %1957 = vmatprep.mubr.f32.mxu0 0.0
        %1958 = vmatmul.mubr.f32.gmra.mrb[0].mxu0 %v1667
        %v1959 = vpop.f32.mrb[0].mxu0
        %v1960 = vadd.f32 %v1717, %v1959
        %v1961 = vpop.f32.mrb[0].mxu0
        %1962 = vmatprep.mubr.f32.mxu0 0.0
        %1963 = vmatmul.mubr.f32.gmra.mrb[0].mxu0 %v1668
        %v1964 = vpop.f32.mrb[0].mxu0
        %v1965 = vadd.f32 %v1717, %v1964
        %v1966 = vpop.f32.mrb[0].mxu0
        %1967 = vmatprep.mubr.f32.mxu0 0.0
        %1968 = vmatmul.mubr.f32.gmra.mrb[0].mxu0 %v1669
        %v1969 = vpop.f32.mrb[0].mxu0
        %v1970 = vadd.f32 %v1717, %v1969
        %v1971 = vpop.f32.mrb[0].mxu0
        %1972 = vmatprep.mubr.f32.mxu0 0.0
        %1973 = vmatmul.mubr.f32.gmra.mrb[0].mxu0 %v1670
        %v1974 = vpop.f32.mrb[0].mxu0
        %v1975 = vadd.f32 %v1717, %v1974
        %v1976 = vpop.f32.mrb[0].mxu0
        %1977 = vmatprep.mubr.f32.mxu0 0.0
        %1978 = vmatmul.mubr.f32.gmra.mrb[0].mxu0 %v1671
        %v1979 = vpop.f32.mrb[0].mxu0
        %v1980 = vadd.f32 %v1717, %v1979
        %v1981 = vpop.f32.mrb[0].mxu0
        %1982 = vmatprep.mubr.f32.mxu0 0.0
        %1983 = vmatmul.mubr.f32.gmra.mrb[0].mxu0 %v1672
        %v1984 = vpop.f32.mrb[0].mxu0
        %v1985 = vadd.f32 %v1717, %v1984
        %v1986 = vpop.f32.mrb[0].mxu0
        %1987 = vmatprep.mubr.f32.mxu0 0.0
        %1988 = vmatmul.mubr.f32.gmra.mrb[0].mxu0 %v1673
        %v1989 = vpop.f32.mrb[0].mxu0
        %v1990 = vadd.f32 %v1717, %v1989
        %v1991 = vpop.f32.mrb[0].mxu0
        %1992 = vmatprep.mubr.f32.mxu0 0.0
        %1993 = vmatmul.mubr.f32.gmra.mrb[0].mxu0 %v1674
        %v1994 = vpop.f32.mrb[0].mxu0
        %v1995 = vadd.f32 %v1717, %v1994
        %v1996 = vpop.f32.mrb[0].mxu0
        %1997 = vmatprep.mubr.f32.mxu0 0.0
        %1998 = vmatmul.mubr.f32.gmra.mrb[0].mxu0 %v1675
        %v1999 = vpop.f32.mrb[0].mxu0
        %v2000 = vadd.f32 %v1717, %v1999
        %v2001 = vpop.f32.mrb[0].mxu0
        %2002 = vmatprep.mubr.f32.mxu0 0.0
        %2003 = vmatmul.mubr.f32.gmra.mrb[0].mxu0 %v1676
        %v2004 = vpop.f32.mrb[0].mxu0
        %v2005 = vadd.f32 %v1717, %v2004
        %v2006 = vpop.f32.mrb[0].mxu0
        %2007 = vmatprep.mubr.f32.mxu0 0.0
        %2008 = vmatmul.mubr.f32.gmra.mrb[0].mxu0 %v1677
        %v2009 = vpop.f32.mrb[0].mxu0
        %v2010 = vadd.f32 %v1717, %v2009
        %v2011 = vpop.f32.mrb[0].mxu0
        %2012 = vmatprep.mubr.f32.mxu0 0.0
        %2013 = vmatmul.mubr.f32.gmra.mrb[0].mxu0 %v1678
        %v2014 = vpop.f32.mrb[0].mxu0
        %v2015 = vadd.f32 %v1717, %v2014
        %v2016 = vpop.f32.mrb[0].mxu0
        %2017 = vmatprep.mubr.f32.mxu0 0.0
        %2018 = vmatmul.mubr.f32.gmra.mrb[0].mxu0 %v1679
        %v2019 = vpop.f32.mrb[0].mxu0
        %v2020 = vadd.f32 %v1717, %v2019
        %v2021 = vpop.f32.mrb[0].mxu0
        %2022 = vmatprep.mubr.f32.mxu0 0.0
        %2023 = vmatmul.mubr.f32.gmra.mrb[0].mxu0 %v1680
        %v2024 = vpop.f32.mrb[0].mxu0
        %v2025 = vadd.f32 %v1717, %v2024
        %v2026 = vpop.f32.mrb[0].mxu0
        %2027 = vmatprep.mubr.f32.mxu0 0.0
        %2028 = vmatmul.mubr.f32.gmra.mrb[0].mxu0 %v1681
        %v2029 = vpop.f32.mrb[0].mxu0
        %v2030 = vadd.f32 %v1717, %v2029
        %v2031 = vpop.f32.mrb[0].mxu0
        %2032 = vmatprep.mubr.f32.mxu0 0.0
        %2033 = vmatmul.mubr.f32.gmra.mrb[0].mxu0 %v1682
        %v2034 = vpop.f32.mrb[0].mxu0
        %v2035 = vadd.f32 %v1717, %v2034
        %v2036 = vpop.f32.mrb[0].mxu0
        %2037 = vmatprep.mubr.f32.mxu0 0.0
        %2038 = vmatmul.mubr.f32.gmra.mrb[0].mxu0 %v1683
        %v2039 = vpop.f32.mrb[0].mxu0
        %v2040 = vadd.f32 %v1717, %v2039
        %v2041 = vpop.f32.mrb[0].mxu0
        %2042 = vmatprep.mubr.f32.mxu0 0.0
        %2043 = vmatmul.mubr.f32.gmra.mrb[0].mxu0 %v1684
        %v2044 = vpop.f32.mrb[0].mxu0
        %v2045 = vadd.f32 %v1717, %v2044
        %v2046 = vpop.f32.mrb[0].mxu0
        %2047 = vmatprep.mubr.f32.mxu0 0.0
        %2048 = vmatmul.mubr.f32.gmra.mrb[0].mxu0 %v1685
        %v2049 = vpop.f32.mrb[0].mxu0
        %v2050 = vadd.f32 %v1717, %v2049
        %v2051 = vpop.f32.mrb[0].mxu0
        %2052 = vmatprep.mubr.f32.mxu0 0.0
        %2053 = vmatmul.mubr.f32.gmra.mrb[0].mxu0 %v1686
        %v2054 = vpop.f32.mrb[0].mxu0
        %v2055 = vadd.f32 %v1717, %v2054
        %v2056 = vpop.f32.mrb[0].mxu0
        %2057 = vmatprep.mubr.f32.mxu0 0.0
        %2058 = vmatmul.mubr.f32.gmra.mrb[0].mxu0 %v1687
        %v2059 = vpop.f32.mrb[0].mxu0
        %v2060 = vadd.f32 %v1717, %v2059
        %v2061 = vpop.f32.mrb[0].mxu0
        %2062 = vmatprep.mubr.f32.mxu0 0.0
        %2063 = vmatmul.mubr.f32.gmra.mrb[0].mxu0 %v1688
        %v2064 = vpop.f32.mrb[0].mxu0
        %v2065 = vadd.f32 %v1717, %v2064
        %v2066 = vpop.f32.mrb[0].mxu0
        %2067 = vmatprep.mubr.f32.mxu0 0.0
        %2068 = vmatmul.mubr.f32.gmra.mrb[0].mxu0 %v1689
        %v2069 = vpop.f32.mrb[0].mxu0
        %v2070 = vadd.f32 %v1717, %v2069
        %v2071 = vpop.f32.mrb[0].mxu0
        %2072 = vmatprep.mubr.f32.mxu0 0.0
        %2073 = vmatmul.mubr.f32.gmra.mrb[0].mxu0 %v1690
        %v2074 = vpop.f32.mrb[0].mxu0
        %v2075 = vadd.f32 %v1717, %v2074
        %v2076 = vpop.f32.mrb[0].mxu0
        %2077 = vmatprep.mubr.f32.mxu0 0.0
        %2078 = vmatmul.mubr.f32.gmra.mrb[0].mxu0 %v1691
        %v2079 = vpop.f32.mrb[0].mxu0
        %v2080 = vadd.f32 %v1717, %v2079
        %v2081 = vpop.f32.mrb[0].mxu0
        %2082 = vmatprep.mubr.f32.mxu0 0.0
        %2083 = vmatmul.mubr.f32.gmra.mrb[0].mxu0 %v1692
        %v2084 = vpop.f32.mrb[0].mxu0
        %v2085 = vadd.f32 %v1717, %v2084
        %v2086 = vpop.f32.mrb[0].mxu0
        %2087 = vmatprep.mubr.f32.mxu0 0.0
        %2088 = vmatmul.mubr.f32.gmra.mrb[0].mxu0 %v1693
        %v2089 = vpop.f32.mrb[0].mxu0
        %v2090 = vadd.f32 %v1717, %v2089
        %v2091 = vpop.f32.mrb[0].mxu0
        %2092 = vmatprep.mubr.f32.mxu0 0.0
        %2093 = vmatmul.mubr.f32.gmra.mrb[0].mxu0 %v1694
        %v2094 = vpop.f32.mrb[0].mxu0
        %v2095 = vadd.f32 %v1717, %v2094
        %v2096 = vpop.f32.mrb[0].mxu0
        %2097 = vmatprep.mubr.f32.mxu0 0.0
        %2098 = vmatmul.mubr.f32.gmra.mrb[0].mxu0 %v1695
        %v2099 = vpop.f32.mrb[0].mxu0
        %v2100 = vadd.f32 %v1717, %v2099
        %v2101 = vpop.f32.mrb[0].mxu0
        %2102 = vdwg.mxu0
        %v2103 = vmax.f32 %v1785, 0.0
        %v2104 = vmax.f32 %v1790, 0.0
        %v2105 = vmax.f32 %v1795, 0.0
        %v2106 = vmax.f32 %v1800, 0.0
        %v2107 = vmax.f32 %v1805, 0.0
        %v2108 = vmax.f32 %v1810, 0.0
        %v2109 = vmax.f32 %v1815, 0.0
        %v2110 = vmax.f32 %v1820, 0.0
        %v2111 = vmax.f32 %v1825, 0.0
        %v2112 = vmax.f32 %v1830, 0.0
        %v2113 = vmax.f32 %v1835, 0.0
        %v2114 = vmax.f32 %v1840, 0.0
        %v2115 = vmax.f32 %v1845, 0.0
        %v2116 = vmax.f32 %v1850, 0.0
        %v2117 = vmax.f32 %v1855, 0.0
        %v2118 = vmax.f32 %v1860, 0.0
        %v2119 = vmax.f32 %v1865, 0.0
        %v2120 = vmax.f32 %v1870, 0.0
        %v2121 = vmax.f32 %v1875, 0.0
        %v2122 = vmax.f32 %v1880, 0.0
        %v2123 = vmax.f32 %v1885, 0.0
        %v2124 = vmax.f32 %v1890, 0.0
        %v2125 = vmax.f32 %v1895, 0.0
        %v2126 = vmax.f32 %v1900, 0.0
        %v2127 = vmax.f32 %v1905, 0.0
        %v2128 = vmax.f32 %v1910, 0.0
        %v2129 = vmax.f32 %v1915, 0.0
        %v2130 = vmax.f32 %v1920, 0.0
        %v2131 = vmax.f32 %v1925, 0.0
        %v2132 = vmax.f32 %v1930, 0.0
        %v2133 = vmax.f32 %v1935, 0.0
        %v2134 = vmax.f32 %v1940, 0.0
        %v2135 = vmax.f32 %v1945, 0.0
        %v2136 = vmax.f32 %v1950, 0.0
        %v2137 = vmax.f32 %v1955, 0.0
        %v2138 = vmax.f32 %v1960, 0.0
        %v2139 = vmax.f32 %v1965, 0.0
        %v2140 = vmax.f32 %v1970, 0.0
        %v2141 = vmax.f32 %v1975, 0.0
        %v2142 = vmax.f32 %v1980, 0.0
        %v2143 = vmax.f32 %v1985, 0.0
        %v2144 = vmax.f32 %v1990, 0.0
        %v2145 = vmax.f32 %v1995, 0.0
        %v2146 = vmax.f32 %v2000, 0.0
        %v2147 = vmax.f32 %v2005, 0.0
        %v2148 = vmax.f32 %v2010, 0.0
        %v2149 = vmax.f32 %v2015, 0.0
        %v2150 = vmax.f32 %v2020, 0.0
        %v2151 = vmax.f32 %v2025, 0.0
        %v2152 = vmax.f32 %v2030, 0.0
        %v2153 = vmax.f32 %v2035, 0.0
        %v2154 = vmax.f32 %v2040, 0.0
        %v2155 = vmax.f32 %v2045, 0.0
        %v2156 = vmax.f32 %v2050, 0.0
        %v2157 = vmax.f32 %v2055, 0.0
        %v2158 = vmax.f32 %v2060, 0.0
        %v2159 = vmax.f32 %v2065, 0.0
        %v2160 = vmax.f32 %v2070, 0.0
        %v2161 = vmax.f32 %v2075, 0.0
        %v2162 = vmax.f32 %v2080, 0.0
        %v2163 = vmax.f32 %v2085, 0.0
        %v2164 = vmax.f32 %v2090, 0.0
        %v2165 = vmax.f32 %v2095, 0.0
        %v2166 = vmax.f32 %v2100, 0.0
        %s2167 = scalar_lea.vmem [#allocation5], 512
        %v2168 = vld [vmem:[%s2167] sm:$0xff]
        %v2169 = vld [vmem:[%s2167 + $0x8] sm:$0xff]
        %v2170 = vld [vmem:[%s2167 + $0x10] sm:$0xff]
        %v2171 = vld [vmem:[%s2167 + $0x18] sm:$0xff]
        %v2172 = vld [vmem:[%s2167 + $0x20] sm:$0xff]
        %v2173 = vld [vmem:[%s2167 + $0x28] sm:$0xff]
        %v2174 = vld [vmem:[%s2167 + $0x30] sm:$0xff]
        %v2175 = vld [vmem:[%s2167 + $0x38] sm:$0xff]
        %v2176 = vld [vmem:[%s2167 + $0x40] sm:$0xff]
        %v2177 = vld [vmem:[%s2167 + $0x48] sm:$0xff]
        %v2178 = vld [vmem:[%s2167 + $0x50] sm:$0xff]
        %v2179 = vld [vmem:[%s2167 + $0x58] sm:$0xff]
        %v2180 = vld [vmem:[%s2167 + $0x60] sm:$0xff]
        %v2181 = vld [vmem:[%s2167 + $0x68] sm:$0xff]
        %v2182 = vld [vmem:[%s2167 + $0x70] sm:$0xff]
        %v2183 = vld [vmem:[%s2167 + $0x78] sm:$0xff]
        %v2184 = vld [vmem:[#allocation7 + $0x4] sm:$0x1]
        %v2185 = vlaneseq
        %v2186 = vshrl.u32 %v2185, 7
        %v2187 = vsub.s32 0, %v2186
        %v2188 = vrot.slane %v2184, %v2187
        %2189 = vmatprep.subr.mxu0 0.0
        %2190 = vmatpush1.msra.mxu0 %v2168
        %2191 = vmatprep.subr.mxu0 0.0
        %2192 = vmatpush1.msra.mxu0 %v2169
        %2193 = vmatprep.subr.mxu0 0.0
        %2194 = vmatpush1.msra.mxu0 %v2170
        %2195 = vmatprep.subr.mxu0 0.0
        %2196 = vmatpush1.msra.mxu0 %v2171
        %2197 = vmatprep.subr.mxu0 0.0
        %2198 = vmatpush1.msra.mxu0 %v2172
        %2199 = vmatprep.subr.mxu0 0.0
        %2200 = vmatpush1.msra.mxu0 %v2173
        %2201 = vmatprep.subr.mxu0 0.0
        %2202 = vmatpush1.msra.mxu0 %v2174
        %2203 = vmatprep.subr.mxu0 0.0
        %2204 = vmatpush1.msra.mxu0 %v2175
        %2205 = vmatprep.subr.mxu0 0.0
        %2206 = vmatpush1.msra.mxu0 %v2176
        %2207 = vmatprep.subr.mxu0 0.0
        %2208 = vmatpush1.msra.mxu0 %v2177
        %2209 = vmatprep.subr.mxu0 0.0
        %2210 = vmatpush1.msra.mxu0 %v2178
        %2211 = vmatprep.subr.mxu0 0.0
        %2212 = vmatpush1.msra.mxu0 %v2179
        %2213 = vmatprep.subr.mxu0 0.0
        %2214 = vmatpush1.msra.mxu0 %v2180
        %2215 = vmatprep.subr.mxu0 0.0
        %2216 = vmatpush1.msra.mxu0 %v2181
        %2217 = vmatprep.subr.mxu0 0.0
        %2218 = vmatpush1.msra.mxu0 %v2182
        %2219 = vmatprep.subr.mxu0 0.0
        %2220 = vmatpush1.msra.mxu0 %v2183
        %2221 = vmatprep.subr.mxu0 0.0
        %2222 = vmatpush1.msra.mxu0 0.0
        %2223 = vmatprep.subr.mxu0 0.0
        %2224 = vmatpush1.msra.mxu0 0.0
        %2225 = vmatprep.subr.mxu0 0.0
        %2226 = vmatpush1.msra.mxu0 0.0
        %2227 = vmatprep.subr.mxu0 0.0
        %2228 = vmatpush1.msra.mxu0 0.0
        %2229 = vmatprep.subr.mxu0 0.0
        %2230 = vmatpush1.msra.mxu0 0.0
        %2231 = vmatprep.subr.mxu0 0.0
        %2232 = vmatpush1.msra.mxu0 0.0
        %2233 = vmatprep.subr.mxu0 0.0
        %2234 = vmatpush1.msra.mxu0 0.0
        %2235 = vmatprep.subr.mxu0 0.0
        %2236 = vmatpush1.msra.mxu0 0.0
        %2237 = vmatprep.subr.mxu0 0.0
        %2238 = vmatpush1.msra.mxu0 0.0
        %2239 = vmatprep.subr.mxu0 0.0
        %2240 = vmatpush1.msra.mxu0 0.0
        %2241 = vmatprep.subr.mxu0 0.0
        %2242 = vmatpush1.msra.mxu0 0.0
        %2243 = vmatprep.subr.mxu0 0.0
        %2244 = vmatpush1.msra.mxu0 0.0
        %2245 = vmatprep.subr.mxu0 0.0
        %2246 = vmatpush1.msra.mxu0 0.0
        %2247 = vmatprep.subr.mxu0 0.0
        %2248 = vmatpush1.msra.mxu0 0.0
        %2249 = vmatprep.subr.mxu0 0.0
        %2250 = vmatpush1.msra.mxu0 0.0
        %2251 = vmatprep.subr.mxu0 0.0
        %2252 = vmatpush1.msra.mxu0 0.0
        %2253 = vmatprep.mubr.f32.mxu0 0.0
        %2254 = vmatmul.mubr.f32.gmra.mrb[0].mxu0 %v2103
        %v2255 = vpop.f32.mrb[0].mxu0
        %v2256 = vadd.f32 %v2188, %v2255
        %v2257 = vpop.f32.mrb[0].mxu0
        %2258 = vmatprep.mubr.f32.mxu0 0.0
        %2259 = vmatmul.mubr.f32.gmra.mrb[0].mxu0 %v2104
        %v2260 = vpop.f32.mrb[0].mxu0
        %v2261 = vadd.f32 %v2188, %v2260
        %v2262 = vpop.f32.mrb[0].mxu0
        %2263 = vmatprep.mubr.f32.mxu0 0.0
        %2264 = vmatmul.mubr.f32.gmra.mrb[0].mxu0 %v2105
        %v2265 = vpop.f32.mrb[0].mxu0
        %v2266 = vadd.f32 %v2188, %v2265
        %v2267 = vpop.f32.mrb[0].mxu0
        %2268 = vmatprep.mubr.f32.mxu0 0.0
        %2269 = vmatmul.mubr.f32.gmra.mrb[0].mxu0 %v2106
        %v2270 = vpop.f32.mrb[0].mxu0
        %v2271 = vadd.f32 %v2188, %v2270
        %v2272 = vpop.f32.mrb[0].mxu0
        %2273 = vmatprep.mubr.f32.mxu0 0.0
        %2274 = vmatmul.mubr.f32.gmra.mrb[0].mxu0 %v2107
        %v2275 = vpop.f32.mrb[0].mxu0
        %v2276 = vadd.f32 %v2188, %v2275
        %v2277 = vpop.f32.mrb[0].mxu0
        %2278 = vmatprep.mubr.f32.mxu0 0.0
        %2279 = vmatmul.mubr.f32.gmra.mrb[0].mxu0 %v2108
        %v2280 = vpop.f32.mrb[0].mxu0
        %v2281 = vadd.f32 %v2188, %v2280
        %v2282 = vpop.f32.mrb[0].mxu0
        %2283 = vmatprep.mubr.f32.mxu0 0.0
        %2284 = vmatmul.mubr.f32.gmra.mrb[0].mxu0 %v2109
        %v2285 = vpop.f32.mrb[0].mxu0
        %v2286 = vadd.f32 %v2188, %v2285
        %v2287 = vpop.f32.mrb[0].mxu0
        %2288 = vmatprep.mubr.f32.mxu0 0.0
        %2289 = vmatmul.mubr.f32.gmra.mrb[0].mxu0 %v2110
        %v2290 = vpop.f32.mrb[0].mxu0
        %v2291 = vadd.f32 %v2188, %v2290
        %v2292 = vpop.f32.mrb[0].mxu0
        %2293 = vmatprep.mubr.f32.mxu0 0.0
        %2294 = vmatmul.mubr.f32.gmra.mrb[0].mxu0 %v2111
        %v2295 = vpop.f32.mrb[0].mxu0
        %v2296 = vadd.f32 %v2188, %v2295
        %v2297 = vpop.f32.mrb[0].mxu0
        %2298 = vmatprep.mubr.f32.mxu0 0.0
        %2299 = vmatmul.mubr.f32.gmra.mrb[0].mxu0 %v2112
        %v2300 = vpop.f32.mrb[0].mxu0
        %v2301 = vadd.f32 %v2188, %v2300
        %v2302 = vpop.f32.mrb[0].mxu0
        %2303 = vmatprep.mubr.f32.mxu0 0.0
        %2304 = vmatmul.mubr.f32.gmra.mrb[0].mxu0 %v2113
        %v2305 = vpop.f32.mrb[0].mxu0
        %v2306 = vadd.f32 %v2188, %v2305
        %v2307 = vpop.f32.mrb[0].mxu0
        %2308 = vmatprep.mubr.f32.mxu0 0.0
        %2309 = vmatmul.mubr.f32.gmra.mrb[0].mxu0 %v2114
        %v2310 = vpop.f32.mrb[0].mxu0
        %v2311 = vadd.f32 %v2188, %v2310
        %v2312 = vpop.f32.mrb[0].mxu0
        %2313 = vmatprep.mubr.f32.mxu0 0.0
        %2314 = vmatmul.mubr.f32.gmra.mrb[0].mxu0 %v2115
        %v2315 = vpop.f32.mrb[0].mxu0
        %v2316 = vadd.f32 %v2188, %v2315
        %v2317 = vpop.f32.mrb[0].mxu0
        %2318 = vmatprep.mubr.f32.mxu0 0.0
        %2319 = vmatmul.mubr.f32.gmra.mrb[0].mxu0 %v2116
        %v2320 = vpop.f32.mrb[0].mxu0
        %v2321 = vadd.f32 %v2188, %v2320
        %v2322 = vpop.f32.mrb[0].mxu0
        %2323 = vmatprep.mubr.f32.mxu0 0.0
        %2324 = vmatmul.mubr.f32.gmra.mrb[0].mxu0 %v2117
        %v2325 = vpop.f32.mrb[0].mxu0
        %v2326 = vadd.f32 %v2188, %v2325
        %v2327 = vpop.f32.mrb[0].mxu0
        %2328 = vmatprep.mubr.f32.mxu0 0.0
        %2329 = vmatmul.mubr.f32.gmra.mrb[0].mxu0 %v2118
        %v2330 = vpop.f32.mrb[0].mxu0
        %v2331 = vadd.f32 %v2188, %v2330
        %v2332 = vpop.f32.mrb[0].mxu0
        %2333 = vmatprep.mubr.f32.mxu0 0.0
        %2334 = vmatmul.mubr.f32.gmra.mrb[0].mxu0 %v2119
        %v2335 = vpop.f32.mrb[0].mxu0
        %v2336 = vadd.f32 %v2188, %v2335
        %v2337 = vpop.f32.mrb[0].mxu0
        %2338 = vmatprep.mubr.f32.mxu0 0.0
        %2339 = vmatmul.mubr.f32.gmra.mrb[0].mxu0 %v2120
        %v2340 = vpop.f32.mrb[0].mxu0
        %v2341 = vadd.f32 %v2188, %v2340
        %v2342 = vpop.f32.mrb[0].mxu0
        %2343 = vmatprep.mubr.f32.mxu0 0.0
        %2344 = vmatmul.mubr.f32.gmra.mrb[0].mxu0 %v2121
        %v2345 = vpop.f32.mrb[0].mxu0
        %v2346 = vadd.f32 %v2188, %v2345
        %v2347 = vpop.f32.mrb[0].mxu0
        %2348 = vmatprep.mubr.f32.mxu0 0.0
        %2349 = vmatmul.mubr.f32.gmra.mrb[0].mxu0 %v2122
        %v2350 = vpop.f32.mrb[0].mxu0
        %v2351 = vadd.f32 %v2188, %v2350
        %v2352 = vpop.f32.mrb[0].mxu0
        %2353 = vmatprep.mubr.f32.mxu0 0.0
        %2354 = vmatmul.mubr.f32.gmra.mrb[0].mxu0 %v2123
        %v2355 = vpop.f32.mrb[0].mxu0
        %v2356 = vadd.f32 %v2188, %v2355
        %v2357 = vpop.f32.mrb[0].mxu0
        %2358 = vmatprep.mubr.f32.mxu0 0.0
        %2359 = vmatmul.mubr.f32.gmra.mrb[0].mxu0 %v2124
        %v2360 = vpop.f32.mrb[0].mxu0
        %v2361 = vadd.f32 %v2188, %v2360
        %v2362 = vpop.f32.mrb[0].mxu0
        %2363 = vmatprep.mubr.f32.mxu0 0.0
        %2364 = vmatmul.mubr.f32.gmra.mrb[0].mxu0 %v2125
        %v2365 = vpop.f32.mrb[0].mxu0
        %v2366 = vadd.f32 %v2188, %v2365
        %v2367 = vpop.f32.mrb[0].mxu0
        %2368 = vmatprep.mubr.f32.mxu0 0.0
        %2369 = vmatmul.mubr.f32.gmra.mrb[0].mxu0 %v2126
        %v2370 = vpop.f32.mrb[0].mxu0
        %v2371 = vadd.f32 %v2188, %v2370
        %v2372 = vpop.f32.mrb[0].mxu0
        %2373 = vmatprep.mubr.f32.mxu0 0.0
        %2374 = vmatmul.mubr.f32.gmra.mrb[0].mxu0 %v2127
        %v2375 = vpop.f32.mrb[0].mxu0
        %v2376 = vadd.f32 %v2188, %v2375
        %v2377 = vpop.f32.mrb[0].mxu0
        %2378 = vmatprep.mubr.f32.mxu0 0.0
        %2379 = vmatmul.mubr.f32.gmra.mrb[0].mxu0 %v2128
        %v2380 = vpop.f32.mrb[0].mxu0
        %v2381 = vadd.f32 %v2188, %v2380
        %v2382 = vpop.f32.mrb[0].mxu0
        %2383 = vmatprep.mubr.f32.mxu0 0.0
        %2384 = vmatmul.mubr.f32.gmra.mrb[0].mxu0 %v2129
        %v2385 = vpop.f32.mrb[0].mxu0
        %v2386 = vadd.f32 %v2188, %v2385
        %v2387 = vpop.f32.mrb[0].mxu0
        %2388 = vmatprep.mubr.f32.mxu0 0.0
        %2389 = vmatmul.mubr.f32.gmra.mrb[0].mxu0 %v2130
        %v2390 = vpop.f32.mrb[0].mxu0
        %v2391 = vadd.f32 %v2188, %v2390
        %v2392 = vpop.f32.mrb[0].mxu0
        %2393 = vmatprep.mubr.f32.mxu0 0.0
        %2394 = vmatmul.mubr.f32.gmra.mrb[0].mxu0 %v2131
        %v2395 = vpop.f32.mrb[0].mxu0
        %v2396 = vadd.f32 %v2188, %v2395
        %v2397 = vpop.f32.mrb[0].mxu0
        %2398 = vmatprep.mubr.f32.mxu0 0.0
        %2399 = vmatmul.mubr.f32.gmra.mrb[0].mxu0 %v2132
        %v2400 = vpop.f32.mrb[0].mxu0
        %v2401 = vadd.f32 %v2188, %v2400
        %v2402 = vpop.f32.mrb[0].mxu0
        %2403 = vmatprep.mubr.f32.mxu0 0.0
        %2404 = vmatmul.mubr.f32.gmra.mrb[0].mxu0 %v2133
        %v2405 = vpop.f32.mrb[0].mxu0
        %v2406 = vadd.f32 %v2188, %v2405
        %v2407 = vpop.f32.mrb[0].mxu0
        %2408 = vmatprep.mubr.f32.mxu0 0.0
        %2409 = vmatmul.mubr.f32.gmra.mrb[0].mxu0 %v2134
        %v2410 = vpop.f32.mrb[0].mxu0
        %v2411 = vadd.f32 %v2188, %v2410
        %v2412 = vpop.f32.mrb[0].mxu0
        %2413 = vmatprep.mubr.f32.mxu0 0.0
        %2414 = vmatmul.mubr.f32.gmra.mrb[0].mxu0 %v2135
        %v2415 = vpop.f32.mrb[0].mxu0
        %v2416 = vadd.f32 %v2188, %v2415
        %v2417 = vpop.f32.mrb[0].mxu0
        %2418 = vmatprep.mubr.f32.mxu0 0.0
        %2419 = vmatmul.mubr.f32.gmra.mrb[0].mxu0 %v2136
        %v2420 = vpop.f32.mrb[0].mxu0
        %v2421 = vadd.f32 %v2188, %v2420
        %v2422 = vpop.f32.mrb[0].mxu0
        %2423 = vmatprep.mubr.f32.mxu0 0.0
        %2424 = vmatmul.mubr.f32.gmra.mrb[0].mxu0 %v2137
        %v2425 = vpop.f32.mrb[0].mxu0
        %v2426 = vadd.f32 %v2188, %v2425
        %v2427 = vpop.f32.mrb[0].mxu0
        %2428 = vmatprep.mubr.f32.mxu0 0.0
        %2429 = vmatmul.mubr.f32.gmra.mrb[0].mxu0 %v2138
        %v2430 = vpop.f32.mrb[0].mxu0
        %v2431 = vadd.f32 %v2188, %v2430
        %v2432 = vpop.f32.mrb[0].mxu0
        %2433 = vmatprep.mubr.f32.mxu0 0.0
        %2434 = vmatmul.mubr.f32.gmra.mrb[0].mxu0 %v2139
        %v2435 = vpop.f32.mrb[0].mxu0
        %v2436 = vadd.f32 %v2188, %v2435
        %v2437 = vpop.f32.mrb[0].mxu0
        %2438 = vmatprep.mubr.f32.mxu0 0.0
        %2439 = vmatmul.mubr.f32.gmra.mrb[0].mxu0 %v2140
        %v2440 = vpop.f32.mrb[0].mxu0
        %v2441 = vadd.f32 %v2188, %v2440
        %v2442 = vpop.f32.mrb[0].mxu0
        %2443 = vmatprep.mubr.f32.mxu0 0.0
        %2444 = vmatmul.mubr.f32.gmra.mrb[0].mxu0 %v2141
        %v2445 = vpop.f32.mrb[0].mxu0
        %v2446 = vadd.f32 %v2188, %v2445
        %v2447 = vpop.f32.mrb[0].mxu0
        %2448 = vmatprep.mubr.f32.mxu0 0.0
        %2449 = vmatmul.mubr.f32.gmra.mrb[0].mxu0 %v2142
        %v2450 = vpop.f32.mrb[0].mxu0
        %v2451 = vadd.f32 %v2188, %v2450
        %v2452 = vpop.f32.mrb[0].mxu0
        %2453 = vmatprep.mubr.f32.mxu0 0.0
        %2454 = vmatmul.mubr.f32.gmra.mrb[0].mxu0 %v2143
        %v2455 = vpop.f32.mrb[0].mxu0
        %v2456 = vadd.f32 %v2188, %v2455
        %v2457 = vpop.f32.mrb[0].mxu0
        %2458 = vmatprep.mubr.f32.mxu0 0.0
        %2459 = vmatmul.mubr.f32.gmra.mrb[0].mxu0 %v2144
        %v2460 = vpop.f32.mrb[0].mxu0
        %v2461 = vadd.f32 %v2188, %v2460
        %v2462 = vpop.f32.mrb[0].mxu0
        %2463 = vmatprep.mubr.f32.mxu0 0.0
        %2464 = vmatmul.mubr.f32.gmra.mrb[0].mxu0 %v2145
        %v2465 = vpop.f32.mrb[0].mxu0
        %v2466 = vadd.f32 %v2188, %v2465
        %v2467 = vpop.f32.mrb[0].mxu0
        %2468 = vmatprep.mubr.f32.mxu0 0.0
        %2469 = vmatmul.mubr.f32.gmra.mrb[0].mxu0 %v2146
        %v2470 = vpop.f32.mrb[0].mxu0
        %v2471 = vadd.f32 %v2188, %v2470
        %v2472 = vpop.f32.mrb[0].mxu0
        %2473 = vmatprep.mubr.f32.mxu0 0.0
        %2474 = vmatmul.mubr.f32.gmra.mrb[0].mxu0 %v2147
        %v2475 = vpop.f32.mrb[0].mxu0
        %v2476 = vadd.f32 %v2188, %v2475
        %v2477 = vpop.f32.mrb[0].mxu0
        %2478 = vmatprep.mubr.f32.mxu0 0.0
        %2479 = vmatmul.mubr.f32.gmra.mrb[0].mxu0 %v2148
        %v2480 = vpop.f32.mrb[0].mxu0
        %v2481 = vadd.f32 %v2188, %v2480
        %v2482 = vpop.f32.mrb[0].mxu0
        %2483 = vmatprep.mubr.f32.mxu0 0.0
        %2484 = vmatmul.mubr.f32.gmra.mrb[0].mxu0 %v2149
        %v2485 = vpop.f32.mrb[0].mxu0
        %v2486 = vadd.f32 %v2188, %v2485
        %v2487 = vpop.f32.mrb[0].mxu0
        %2488 = vmatprep.mubr.f32.mxu0 0.0
        %2489 = vmatmul.mubr.f32.gmra.mrb[0].mxu0 %v2150
        %v2490 = vpop.f32.mrb[0].mxu0
        %v2491 = vadd.f32 %v2188, %v2490
        %v2492 = vpop.f32.mrb[0].mxu0
        %2493 = vmatprep.mubr.f32.mxu0 0.0
        %2494 = vmatmul.mubr.f32.gmra.mrb[0].mxu0 %v2151
        %v2495 = vpop.f32.mrb[0].mxu0
        %v2496 = vadd.f32 %v2188, %v2495
        %v2497 = vpop.f32.mrb[0].mxu0
        %2498 = vmatprep.mubr.f32.mxu0 0.0
        %2499 = vmatmul.mubr.f32.gmra.mrb[0].mxu0 %v2152
        %v2500 = vpop.f32.mrb[0].mxu0
        %v2501 = vadd.f32 %v2188, %v2500
        %v2502 = vpop.f32.mrb[0].mxu0
        %2503 = vmatprep.mubr.f32.mxu0 0.0
        %2504 = vmatmul.mubr.f32.gmra.mrb[0].mxu0 %v2153
        %v2505 = vpop.f32.mrb[0].mxu0
        %v2506 = vadd.f32 %v2188, %v2505
        %v2507 = vpop.f32.mrb[0].mxu0
        %2508 = vmatprep.mubr.f32.mxu0 0.0
        %2509 = vmatmul.mubr.f32.gmra.mrb[0].mxu0 %v2154
        %v2510 = vpop.f32.mrb[0].mxu0
        %v2511 = vadd.f32 %v2188, %v2510
        %v2512 = vpop.f32.mrb[0].mxu0
        %2513 = vmatprep.mubr.f32.mxu0 0.0
        %2514 = vmatmul.mubr.f32.gmra.mrb[0].mxu0 %v2155
        %v2515 = vpop.f32.mrb[0].mxu0
        %v2516 = vadd.f32 %v2188, %v2515
        %v2517 = vpop.f32.mrb[0].mxu0
        %2518 = vmatprep.mubr.f32.mxu0 0.0
        %2519 = vmatmul.mubr.f32.gmra.mrb[0].mxu0 %v2156
        %v2520 = vpop.f32.mrb[0].mxu0
        %v2521 = vadd.f32 %v2188, %v2520
        %v2522 = vpop.f32.mrb[0].mxu0
        %2523 = vmatprep.mubr.f32.mxu0 0.0
        %2524 = vmatmul.mubr.f32.gmra.mrb[0].mxu0 %v2157
        %v2525 = vpop.f32.mrb[0].mxu0
        %v2526 = vadd.f32 %v2188, %v2525
        %v2527 = vpop.f32.mrb[0].mxu0
        %2528 = vmatprep.mubr.f32.mxu0 0.0
        %2529 = vmatmul.mubr.f32.gmra.mrb[0].mxu0 %v2158
        %v2530 = vpop.f32.mrb[0].mxu0
        %v2531 = vadd.f32 %v2188, %v2530
        %v2532 = vpop.f32.mrb[0].mxu0
        %2533 = vmatprep.mubr.f32.mxu0 0.0
        %2534 = vmatmul.mubr.f32.gmra.mrb[0].mxu0 %v2159
        %v2535 = vpop.f32.mrb[0].mxu0
        %v2536 = vadd.f32 %v2188, %v2535
        %v2537 = vpop.f32.mrb[0].mxu0
        %2538 = vmatprep.mubr.f32.mxu0 0.0
        %2539 = vmatmul.mubr.f32.gmra.mrb[0].mxu0 %v2160
        %v2540 = vpop.f32.mrb[0].mxu0
        %v2541 = vadd.f32 %v2188, %v2540
        %v2542 = vpop.f32.mrb[0].mxu0
        %2543 = vmatprep.mubr.f32.mxu0 0.0
        %2544 = vmatmul.mubr.f32.gmra.mrb[0].mxu0 %v2161
        %v2545 = vpop.f32.mrb[0].mxu0
        %v2546 = vadd.f32 %v2188, %v2545
        %v2547 = vpop.f32.mrb[0].mxu0
        %2548 = vmatprep.mubr.f32.mxu0 0.0
        %2549 = vmatmul.mubr.f32.gmra.mrb[0].mxu0 %v2162
        %v2550 = vpop.f32.mrb[0].mxu0
        %v2551 = vadd.f32 %v2188, %v2550
        %v2552 = vpop.f32.mrb[0].mxu0
        %2553 = vmatprep.mubr.f32.mxu0 0.0
        %2554 = vmatmul.mubr.f32.gmra.mrb[0].mxu0 %v2163
        %v2555 = vpop.f32.mrb[0].mxu0
        %v2556 = vadd.f32 %v2188, %v2555
        %v2557 = vpop.f32.mrb[0].mxu0
        %2558 = vmatprep.mubr.f32.mxu0 0.0
        %2559 = vmatmul.mubr.f32.gmra.mrb[0].mxu0 %v2164
        %v2560 = vpop.f32.mrb[0].mxu0
        %v2561 = vadd.f32 %v2188, %v2560
        %v2562 = vpop.f32.mrb[0].mxu0
        %2563 = vmatprep.mubr.f32.mxu0 0.0
        %2564 = vmatmul.mubr.f32.gmra.mrb[0].mxu0 %v2165
        %v2565 = vpop.f32.mrb[0].mxu0
        %v2566 = vadd.f32 %v2188, %v2565
        %v2567 = vpop.f32.mrb[0].mxu0
        %2568 = vmatprep.mubr.f32.mxu0 0.0
        %2569 = vmatmul.mubr.f32.gmra.mrb[0].mxu0 %v2166
        %v2570 = vpop.f32.mrb[0].mxu0
        %v2571 = vadd.f32 %v2188, %v2570
        %v2572 = vpop.f32.mrb[0].mxu0
        %2573 = vdwg.mxu0
        %v2574 = vmax.f32 %v2256, 0.0
        %v2575 = vmax.f32 %v2261, 0.0
        %v2576 = vmax.f32 %v2266, 0.0
        %v2577 = vmax.f32 %v2271, 0.0
        %v2578 = vmax.f32 %v2276, 0.0
        %v2579 = vmax.f32 %v2281, 0.0
        %v2580 = vmax.f32 %v2286, 0.0
        %v2581 = vmax.f32 %v2291, 0.0
        %v2582 = vmax.f32 %v2296, 0.0
        %v2583 = vmax.f32 %v2301, 0.0
        %v2584 = vmax.f32 %v2306, 0.0
        %v2585 = vmax.f32 %v2311, 0.0
        %v2586 = vmax.f32 %v2316, 0.0
        %v2587 = vmax.f32 %v2321, 0.0
        %v2588 = vmax.f32 %v2326, 0.0
        %v2589 = vmax.f32 %v2331, 0.0
        %v2590 = vmax.f32 %v2336, 0.0
        %v2591 = vmax.f32 %v2341, 0.0
        %v2592 = vmax.f32 %v2346, 0.0
        %v2593 = vmax.f32 %v2351, 0.0
        %v2594 = vmax.f32 %v2356, 0.0
        %v2595 = vmax.f32 %v2361, 0.0
        %v2596 = vmax.f32 %v2366, 0.0
        %v2597 = vmax.f32 %v2371, 0.0
        %v2598 = vmax.f32 %v2376, 0.0
        %v2599 = vmax.f32 %v2381, 0.0
        %v2600 = vmax.f32 %v2386, 0.0
        %v2601 = vmax.f32 %v2391, 0.0
        %v2602 = vmax.f32 %v2396, 0.0
        %v2603 = vmax.f32 %v2401, 0.0
        %v2604 = vmax.f32 %v2406, 0.0
        %v2605 = vmax.f32 %v2411, 0.0
        %v2606 = vmax.f32 %v2416, 0.0
        %v2607 = vmax.f32 %v2421, 0.0
        %v2608 = vmax.f32 %v2426, 0.0
        %v2609 = vmax.f32 %v2431, 0.0
        %v2610 = vmax.f32 %v2436, 0.0
        %v2611 = vmax.f32 %v2441, 0.0
        %v2612 = vmax.f32 %v2446, 0.0
        %v2613 = vmax.f32 %v2451, 0.0
        %v2614 = vmax.f32 %v2456, 0.0
        %v2615 = vmax.f32 %v2461, 0.0
        %v2616 = vmax.f32 %v2466, 0.0
        %v2617 = vmax.f32 %v2471, 0.0
        %v2618 = vmax.f32 %v2476, 0.0
        %v2619 = vmax.f32 %v2481, 0.0
        %v2620 = vmax.f32 %v2486, 0.0
        %v2621 = vmax.f32 %v2491, 0.0
        %v2622 = vmax.f32 %v2496, 0.0
        %v2623 = vmax.f32 %v2501, 0.0
        %v2624 = vmax.f32 %v2506, 0.0
        %v2625 = vmax.f32 %v2511, 0.0
        %v2626 = vmax.f32 %v2516, 0.0
        %v2627 = vmax.f32 %v2521, 0.0
        %v2628 = vmax.f32 %v2526, 0.0
        %v2629 = vmax.f32 %v2531, 0.0
        %v2630 = vmax.f32 %v2536, 0.0
        %v2631 = vmax.f32 %v2541, 0.0
        %v2632 = vmax.f32 %v2546, 0.0
        %v2633 = vmax.f32 %v2551, 0.0
        %v2634 = vmax.f32 %v2556, 0.0
        %v2635 = vmax.f32 %v2561, 0.0
        %v2636 = vmax.f32 %v2566, 0.0
        %v2637 = vmax.f32 %v2571, 0.0
        %s2638 = scalar_lea.vmem [#allocation5], 640
        %v2639 = vld [vmem:[%s2638] sm:$0xff]
        %v2640 = vld [vmem:[%s2638 + $0x8] sm:$0xff]
        %v2641 = vld [vmem:[%s2638 + $0x10] sm:$0xff]
        %v2642 = vld [vmem:[%s2638 + $0x18] sm:$0xff]
        %v2643 = vld [vmem:[%s2638 + $0x20] sm:$0xff]
        %v2644 = vld [vmem:[%s2638 + $0x28] sm:$0xff]
        %v2645 = vld [vmem:[%s2638 + $0x30] sm:$0xff]
        %v2646 = vld [vmem:[%s2638 + $0x38] sm:$0xff]
        %v2647 = vld [vmem:[%s2638 + $0x40] sm:$0xff]
        %v2648 = vld [vmem:[%s2638 + $0x48] sm:$0xff]
        %v2649 = vld [vmem:[%s2638 + $0x50] sm:$0xff]
        %v2650 = vld [vmem:[%s2638 + $0x58] sm:$0xff]
        %v2651 = vld [vmem:[%s2638 + $0x60] sm:$0xff]
        %v2652 = vld [vmem:[%s2638 + $0x68] sm:$0xff]
        %v2653 = vld [vmem:[%s2638 + $0x70] sm:$0xff]
        %v2654 = vld [vmem:[%s2638 + $0x78] sm:$0xff]
        %v2655 = vld [vmem:[#allocation7 + $0x5] sm:$0x1]
        %v2656 = vlaneseq
        %v2657 = vshrl.u32 %v2656, 7
        %v2658 = vsub.s32 0, %v2657
        %v2659 = vrot.slane %v2655, %v2658
        %2660 = vmatprep.subr.mxu0 0.0
        %2661 = vmatpush1.msra.mxu0 %v2639
        %2662 = vmatprep.subr.mxu0 0.0
        %2663 = vmatpush1.msra.mxu0 %v2640
        %2664 = vmatprep.subr.mxu0 0.0
        %2665 = vmatpush1.msra.mxu0 %v2641
        %2666 = vmatprep.subr.mxu0 0.0
        %2667 = vmatpush1.msra.mxu0 %v2642
        %2668 = vmatprep.subr.mxu0 0.0
        %2669 = vmatpush1.msra.mxu0 %v2643
        %2670 = vmatprep.subr.mxu0 0.0
        %2671 = vmatpush1.msra.mxu0 %v2644
        %2672 = vmatprep.subr.mxu0 0.0
        %2673 = vmatpush1.msra.mxu0 %v2645
        %2674 = vmatprep.subr.mxu0 0.0
        %2675 = vmatpush1.msra.mxu0 %v2646
        %2676 = vmatprep.subr.mxu0 0.0
        %2677 = vmatpush1.msra.mxu0 %v2647
        %2678 = vmatprep.subr.mxu0 0.0
        %2679 = vmatpush1.msra.mxu0 %v2648
        %2680 = vmatprep.subr.mxu0 0.0
        %2681 = vmatpush1.msra.mxu0 %v2649
        %2682 = vmatprep.subr.mxu0 0.0
        %2683 = vmatpush1.msra.mxu0 %v2650
        %2684 = vmatprep.subr.mxu0 0.0
        %2685 = vmatpush1.msra.mxu0 %v2651
        %2686 = vmatprep.subr.mxu0 0.0
        %2687 = vmatpush1.msra.mxu0 %v2652
        %2688 = vmatprep.subr.mxu0 0.0
        %2689 = vmatpush1.msra.mxu0 %v2653
        %2690 = vmatprep.subr.mxu0 0.0
        %2691 = vmatpush1.msra.mxu0 %v2654
        %2692 = vmatprep.subr.mxu0 0.0
        %2693 = vmatpush1.msra.mxu0 0.0
        %2694 = vmatprep.subr.mxu0 0.0
        %2695 = vmatpush1.msra.mxu0 0.0
        %2696 = vmatprep.subr.mxu0 0.0
        %2697 = vmatpush1.msra.mxu0 0.0
        %2698 = vmatprep.subr.mxu0 0.0
        %2699 = vmatpush1.msra.mxu0 0.0
        %2700 = vmatprep.subr.mxu0 0.0
        %2701 = vmatpush1.msra.mxu0 0.0
        %2702 = vmatprep.subr.mxu0 0.0
        %2703 = vmatpush1.msra.mxu0 0.0
        %2704 = vmatprep.subr.mxu0 0.0
        %2705 = vmatpush1.msra.mxu0 0.0
        %2706 = vmatprep.subr.mxu0 0.0
        %2707 = vmatpush1.msra.mxu0 0.0
        %2708 = vmatprep.subr.mxu0 0.0
        %2709 = vmatpush1.msra.mxu0 0.0
        %2710 = vmatprep.subr.mxu0 0.0
        %2711 = vmatpush1.msra.mxu0 0.0
        %2712 = vmatprep.subr.mxu0 0.0
        %2713 = vmatpush1.msra.mxu0 0.0
        %2714 = vmatprep.subr.mxu0 0.0
        %2715 = vmatpush1.msra.mxu0 0.0
        %2716 = vmatprep.subr.mxu0 0.0
        %2717 = vmatpush1.msra.mxu0 0.0
        %2718 = vmatprep.subr.mxu0 0.0
        %2719 = vmatpush1.msra.mxu0 0.0
        %2720 = vmatprep.subr.mxu0 0.0
        %2721 = vmatpush1.msra.mxu0 0.0
        %2722 = vmatprep.subr.mxu0 0.0
        %2723 = vmatpush1.msra.mxu0 0.0
        %2724 = vmatprep.mubr.f32.mxu0 0.0
        %2725 = vmatmul.mubr.f32.gmra.mrb[0].mxu0 %v2574
        %v2726 = vpop.f32.mrb[0].mxu0
        %v2727 = vadd.f32 %v2659, %v2726
        %v2728 = vpop.f32.mrb[0].mxu0
        %2729 = vmatprep.mubr.f32.mxu0 0.0
        %2730 = vmatmul.mubr.f32.gmra.mrb[0].mxu0 %v2575
        %v2731 = vpop.f32.mrb[0].mxu0
        %v2732 = vadd.f32 %v2659, %v2731
        %v2733 = vpop.f32.mrb[0].mxu0
        %2734 = vmatprep.mubr.f32.mxu0 0.0
        %2735 = vmatmul.mubr.f32.gmra.mrb[0].mxu0 %v2576
        %v2736 = vpop.f32.mrb[0].mxu0
        %v2737 = vadd.f32 %v2659, %v2736
        %v2738 = vpop.f32.mrb[0].mxu0
        %2739 = vmatprep.mubr.f32.mxu0 0.0
        %2740 = vmatmul.mubr.f32.gmra.mrb[0].mxu0 %v2577
        %v2741 = vpop.f32.mrb[0].mxu0
        %v2742 = vadd.f32 %v2659, %v2741
        %v2743 = vpop.f32.mrb[0].mxu0
        %2744 = vmatprep.mubr.f32.mxu0 0.0
        %2745 = vmatmul.mubr.f32.gmra.mrb[0].mxu0 %v2578
        %v2746 = vpop.f32.mrb[0].mxu0
        %v2747 = vadd.f32 %v2659, %v2746
        %v2748 = vpop.f32.mrb[0].mxu0
        %2749 = vmatprep.mubr.f32.mxu0 0.0
        %2750 = vmatmul.mubr.f32.gmra.mrb[0].mxu0 %v2579
        %v2751 = vpop.f32.mrb[0].mxu0
        %v2752 = vadd.f32 %v2659, %v2751
        %v2753 = vpop.f32.mrb[0].mxu0
        %2754 = vmatprep.mubr.f32.mxu0 0.0
        %2755 = vmatmul.mubr.f32.gmra.mrb[0].mxu0 %v2580
        %v2756 = vpop.f32.mrb[0].mxu0
        %v2757 = vadd.f32 %v2659, %v2756
        %v2758 = vpop.f32.mrb[0].mxu0
        %2759 = vmatprep.mubr.f32.mxu0 0.0
        %2760 = vmatmul.mubr.f32.gmra.mrb[0].mxu0 %v2581
        %v2761 = vpop.f32.mrb[0].mxu0
        %v2762 = vadd.f32 %v2659, %v2761
        %v2763 = vpop.f32.mrb[0].mxu0
        %2764 = vmatprep.mubr.f32.mxu0 0.0
        %2765 = vmatmul.mubr.f32.gmra.mrb[0].mxu0 %v2582
        %v2766 = vpop.f32.mrb[0].mxu0
        %v2767 = vadd.f32 %v2659, %v2766
        %v2768 = vpop.f32.mrb[0].mxu0
        %2769 = vmatprep.mubr.f32.mxu0 0.0
        %2770 = vmatmul.mubr.f32.gmra.mrb[0].mxu0 %v2583
        %v2771 = vpop.f32.mrb[0].mxu0
        %v2772 = vadd.f32 %v2659, %v2771
        %v2773 = vpop.f32.mrb[0].mxu0
        %2774 = vmatprep.mubr.f32.mxu0 0.0
        %2775 = vmatmul.mubr.f32.gmra.mrb[0].mxu0 %v2584
        %v2776 = vpop.f32.mrb[0].mxu0
        %v2777 = vadd.f32 %v2659, %v2776
        %v2778 = vpop.f32.mrb[0].mxu0
        %2779 = vmatprep.mubr.f32.mxu0 0.0
        %2780 = vmatmul.mubr.f32.gmra.mrb[0].mxu0 %v2585
        %v2781 = vpop.f32.mrb[0].mxu0
        %v2782 = vadd.f32 %v2659, %v2781
        %v2783 = vpop.f32.mrb[0].mxu0
        %2784 = vmatprep.mubr.f32.mxu0 0.0
        %2785 = vmatmul.mubr.f32.gmra.mrb[0].mxu0 %v2586
        %v2786 = vpop.f32.mrb[0].mxu0
        %v2787 = vadd.f32 %v2659, %v2786
        %v2788 = vpop.f32.mrb[0].mxu0
        %2789 = vmatprep.mubr.f32.mxu0 0.0
        %2790 = vmatmul.mubr.f32.gmra.mrb[0].mxu0 %v2587
        %v2791 = vpop.f32.mrb[0].mxu0
        %v2792 = vadd.f32 %v2659, %v2791
        %v2793 = vpop.f32.mrb[0].mxu0
        %2794 = vmatprep.mubr.f32.mxu0 0.0
        %2795 = vmatmul.mubr.f32.gmra.mrb[0].mxu0 %v2588
        %v2796 = vpop.f32.mrb[0].mxu0
        %v2797 = vadd.f32 %v2659, %v2796
        %v2798 = vpop.f32.mrb[0].mxu0
        %2799 = vmatprep.mubr.f32.mxu0 0.0
        %2800 = vmatmul.mubr.f32.gmra.mrb[0].mxu0 %v2589
        %v2801 = vpop.f32.mrb[0].mxu0
        %v2802 = vadd.f32 %v2659, %v2801
        %v2803 = vpop.f32.mrb[0].mxu0
        %2804 = vmatprep.mubr.f32.mxu0 0.0
        %2805 = vmatmul.mubr.f32.gmra.mrb[0].mxu0 %v2590
        %v2806 = vpop.f32.mrb[0].mxu0
        %v2807 = vadd.f32 %v2659, %v2806
        %v2808 = vpop.f32.mrb[0].mxu0
        %2809 = vmatprep.mubr.f32.mxu0 0.0
        %2810 = vmatmul.mubr.f32.gmra.mrb[0].mxu0 %v2591
        %v2811 = vpop.f32.mrb[0].mxu0
        %v2812 = vadd.f32 %v2659, %v2811
        %v2813 = vpop.f32.mrb[0].mxu0
        %2814 = vmatprep.mubr.f32.mxu0 0.0
        %2815 = vmatmul.mubr.f32.gmra.mrb[0].mxu0 %v2592
        %v2816 = vpop.f32.mrb[0].mxu0
        %v2817 = vadd.f32 %v2659, %v2816
        %v2818 = vpop.f32.mrb[0].mxu0
        %2819 = vmatprep.mubr.f32.mxu0 0.0
        %2820 = vmatmul.mubr.f32.gmra.mrb[0].mxu0 %v2593
        %v2821 = vpop.f32.mrb[0].mxu0
        %v2822 = vadd.f32 %v2659, %v2821
        %v2823 = vpop.f32.mrb[0].mxu0
        %2824 = vmatprep.mubr.f32.mxu0 0.0
        %2825 = vmatmul.mubr.f32.gmra.mrb[0].mxu0 %v2594
        %v2826 = vpop.f32.mrb[0].mxu0
        %v2827 = vadd.f32 %v2659, %v2826
        %v2828 = vpop.f32.mrb[0].mxu0
        %2829 = vmatprep.mubr.f32.mxu0 0.0
        %2830 = vmatmul.mubr.f32.gmra.mrb[0].mxu0 %v2595
        %v2831 = vpop.f32.mrb[0].mxu0
        %v2832 = vadd.f32 %v2659, %v2831
        %v2833 = vpop.f32.mrb[0].mxu0
        %2834 = vmatprep.mubr.f32.mxu0 0.0
        %2835 = vmatmul.mubr.f32.gmra.mrb[0].mxu0 %v2596
        %v2836 = vpop.f32.mrb[0].mxu0
        %v2837 = vadd.f32 %v2659, %v2836
        %v2838 = vpop.f32.mrb[0].mxu0
        %2839 = vmatprep.mubr.f32.mxu0 0.0
        %2840 = vmatmul.mubr.f32.gmra.mrb[0].mxu0 %v2597
        %v2841 = vpop.f32.mrb[0].mxu0
        %v2842 = vadd.f32 %v2659, %v2841
        %v2843 = vpop.f32.mrb[0].mxu0
        %2844 = vmatprep.mubr.f32.mxu0 0.0
        %2845 = vmatmul.mubr.f32.gmra.mrb[0].mxu0 %v2598
        %v2846 = vpop.f32.mrb[0].mxu0
        %v2847 = vadd.f32 %v2659, %v2846
        %v2848 = vpop.f32.mrb[0].mxu0
        %2849 = vmatprep.mubr.f32.mxu0 0.0
        %2850 = vmatmul.mubr.f32.gmra.mrb[0].mxu0 %v2599
        %v2851 = vpop.f32.mrb[0].mxu0
        %v2852 = vadd.f32 %v2659, %v2851
        %v2853 = vpop.f32.mrb[0].mxu0
        %2854 = vmatprep.mubr.f32.mxu0 0.0
        %2855 = vmatmul.mubr.f32.gmra.mrb[0].mxu0 %v2600
        %v2856 = vpop.f32.mrb[0].mxu0
        %v2857 = vadd.f32 %v2659, %v2856
        %v2858 = vpop.f32.mrb[0].mxu0
        %2859 = vmatprep.mubr.f32.mxu0 0.0
        %2860 = vmatmul.mubr.f32.gmra.mrb[0].mxu0 %v2601
        %v2861 = vpop.f32.mrb[0].mxu0
        %v2862 = vadd.f32 %v2659, %v2861
        %v2863 = vpop.f32.mrb[0].mxu0
        %2864 = vmatprep.mubr.f32.mxu0 0.0
        %2865 = vmatmul.mubr.f32.gmra.mrb[0].mxu0 %v2602
        %v2866 = vpop.f32.mrb[0].mxu0
        %v2867 = vadd.f32 %v2659, %v2866
        %v2868 = vpop.f32.mrb[0].mxu0
        %2869 = vmatprep.mubr.f32.mxu0 0.0
        %2870 = vmatmul.mubr.f32.gmra.mrb[0].mxu0 %v2603
        %v2871 = vpop.f32.mrb[0].mxu0
        %v2872 = vadd.f32 %v2659, %v2871
        %v2873 = vpop.f32.mrb[0].mxu0
        %2874 = vmatprep.mubr.f32.mxu0 0.0
        %2875 = vmatmul.mubr.f32.gmra.mrb[0].mxu0 %v2604
        %v2876 = vpop.f32.mrb[0].mxu0
        %v2877 = vadd.f32 %v2659, %v2876
        %v2878 = vpop.f32.mrb[0].mxu0
        %2879 = vmatprep.mubr.f32.mxu0 0.0
        %2880 = vmatmul.mubr.f32.gmra.mrb[0].mxu0 %v2605
        %v2881 = vpop.f32.mrb[0].mxu0
        %v2882 = vadd.f32 %v2659, %v2881
        %v2883 = vpop.f32.mrb[0].mxu0
        %2884 = vmatprep.mubr.f32.mxu0 0.0
        %2885 = vmatmul.mubr.f32.gmra.mrb[0].mxu0 %v2606
        %v2886 = vpop.f32.mrb[0].mxu0
        %v2887 = vadd.f32 %v2659, %v2886
        %v2888 = vpop.f32.mrb[0].mxu0
        %2889 = vmatprep.mubr.f32.mxu0 0.0
        %2890 = vmatmul.mubr.f32.gmra.mrb[0].mxu0 %v2607
        %v2891 = vpop.f32.mrb[0].mxu0
        %v2892 = vadd.f32 %v2659, %v2891
        %v2893 = vpop.f32.mrb[0].mxu0
        %2894 = vmatprep.mubr.f32.mxu0 0.0
        %2895 = vmatmul.mubr.f32.gmra.mrb[0].mxu0 %v2608
        %v2896 = vpop.f32.mrb[0].mxu0
        %v2897 = vadd.f32 %v2659, %v2896
        %v2898 = vpop.f32.mrb[0].mxu0
        %2899 = vmatprep.mubr.f32.mxu0 0.0
        %2900 = vmatmul.mubr.f32.gmra.mrb[0].mxu0 %v2609
        %v2901 = vpop.f32.mrb[0].mxu0
        %v2902 = vadd.f32 %v2659, %v2901
        %v2903 = vpop.f32.mrb[0].mxu0
        %2904 = vmatprep.mubr.f32.mxu0 0.0
        %2905 = vmatmul.mubr.f32.gmra.mrb[0].mxu0 %v2610
        %v2906 = vpop.f32.mrb[0].mxu0
        %v2907 = vadd.f32 %v2659, %v2906
        %v2908 = vpop.f32.mrb[0].mxu0
        %2909 = vmatprep.mubr.f32.mxu0 0.0
        %2910 = vmatmul.mubr.f32.gmra.mrb[0].mxu0 %v2611
        %v2911 = vpop.f32.mrb[0].mxu0
        %v2912 = vadd.f32 %v2659, %v2911
        %v2913 = vpop.f32.mrb[0].mxu0
        %2914 = vmatprep.mubr.f32.mxu0 0.0
        %2915 = vmatmul.mubr.f32.gmra.mrb[0].mxu0 %v2612
        %v2916 = vpop.f32.mrb[0].mxu0
        %v2917 = vadd.f32 %v2659, %v2916
        %v2918 = vpop.f32.mrb[0].mxu0
        %2919 = vmatprep.mubr.f32.mxu0 0.0
        %2920 = vmatmul.mubr.f32.gmra.mrb[0].mxu0 %v2613
        %v2921 = vpop.f32.mrb[0].mxu0
        %v2922 = vadd.f32 %v2659, %v2921
        %v2923 = vpop.f32.mrb[0].mxu0
        %2924 = vmatprep.mubr.f32.mxu0 0.0
        %2925 = vmatmul.mubr.f32.gmra.mrb[0].mxu0 %v2614
        %v2926 = vpop.f32.mrb[0].mxu0
        %v2927 = vadd.f32 %v2659, %v2926
        %v2928 = vpop.f32.mrb[0].mxu0
        %2929 = vmatprep.mubr.f32.mxu0 0.0
        %2930 = vmatmul.mubr.f32.gmra.mrb[0].mxu0 %v2615
        %v2931 = vpop.f32.mrb[0].mxu0
        %v2932 = vadd.f32 %v2659, %v2931
        %v2933 = vpop.f32.mrb[0].mxu0
        %2934 = vmatprep.mubr.f32.mxu0 0.0
        %2935 = vmatmul.mubr.f32.gmra.mrb[0].mxu0 %v2616
        %v2936 = vpop.f32.mrb[0].mxu0
        %v2937 = vadd.f32 %v2659, %v2936
        %v2938 = vpop.f32.mrb[0].mxu0
        %2939 = vmatprep.mubr.f32.mxu0 0.0
        %2940 = vmatmul.mubr.f32.gmra.mrb[0].mxu0 %v2617
        %v2941 = vpop.f32.mrb[0].mxu0
        %v2942 = vadd.f32 %v2659, %v2941
        %v2943 = vpop.f32.mrb[0].mxu0
        %2944 = vmatprep.mubr.f32.mxu0 0.0
        %2945 = vmatmul.mubr.f32.gmra.mrb[0].mxu0 %v2618
        %v2946 = vpop.f32.mrb[0].mxu0
        %v2947 = vadd.f32 %v2659, %v2946
        %v2948 = vpop.f32.mrb[0].mxu0
        %2949 = vmatprep.mubr.f32.mxu0 0.0
        %2950 = vmatmul.mubr.f32.gmra.mrb[0].mxu0 %v2619
        %v2951 = vpop.f32.mrb[0].mxu0
        %v2952 = vadd.f32 %v2659, %v2951
        %v2953 = vpop.f32.mrb[0].mxu0
        %2954 = vmatprep.mubr.f32.mxu0 0.0
        %2955 = vmatmul.mubr.f32.gmra.mrb[0].mxu0 %v2620
        %v2956 = vpop.f32.mrb[0].mxu0
        %v2957 = vadd.f32 %v2659, %v2956
        %v2958 = vpop.f32.mrb[0].mxu0
        %2959 = vmatprep.mubr.f32.mxu0 0.0
        %2960 = vmatmul.mubr.f32.gmra.mrb[0].mxu0 %v2621
        %v2961 = vpop.f32.mrb[0].mxu0
        %v2962 = vadd.f32 %v2659, %v2961
        %v2963 = vpop.f32.mrb[0].mxu0
        %2964 = vmatprep.mubr.f32.mxu0 0.0
        %2965 = vmatmul.mubr.f32.gmra.mrb[0].mxu0 %v2622
        %v2966 = vpop.f32.mrb[0].mxu0
        %v2967 = vadd.f32 %v2659, %v2966
        %v2968 = vpop.f32.mrb[0].mxu0
        %2969 = vmatprep.mubr.f32.mxu0 0.0
        %2970 = vmatmul.mubr.f32.gmra.mrb[0].mxu0 %v2623
        %v2971 = vpop.f32.mrb[0].mxu0
        %v2972 = vadd.f32 %v2659, %v2971
        %v2973 = vpop.f32.mrb[0].mxu0
        %2974 = vmatprep.mubr.f32.mxu0 0.0
        %2975 = vmatmul.mubr.f32.gmra.mrb[0].mxu0 %v2624
        %v2976 = vpop.f32.mrb[0].mxu0
        %v2977 = vadd.f32 %v2659, %v2976
        %v2978 = vpop.f32.mrb[0].mxu0
        %2979 = vmatprep.mubr.f32.mxu0 0.0
        %2980 = vmatmul.mubr.f32.gmra.mrb[0].mxu0 %v2625
        %v2981 = vpop.f32.mrb[0].mxu0
        %v2982 = vadd.f32 %v2659, %v2981
        %v2983 = vpop.f32.mrb[0].mxu0
        %2984 = vmatprep.mubr.f32.mxu0 0.0
        %2985 = vmatmul.mubr.f32.gmra.mrb[0].mxu0 %v2626
        %v2986 = vpop.f32.mrb[0].mxu0
        %v2987 = vadd.f32 %v2659, %v2986
        %v2988 = vpop.f32.mrb[0].mxu0
        %2989 = vmatprep.mubr.f32.mxu0 0.0
        %2990 = vmatmul.mubr.f32.gmra.mrb[0].mxu0 %v2627
        %v2991 = vpop.f32.mrb[0].mxu0
        %v2992 = vadd.f32 %v2659, %v2991
        %v2993 = vpop.f32.mrb[0].mxu0
        %2994 = vmatprep.mubr.f32.mxu0 0.0
        %2995 = vmatmul.mubr.f32.gmra.mrb[0].mxu0 %v2628
        %v2996 = vpop.f32.mrb[0].mxu0
        %v2997 = vadd.f32 %v2659, %v2996
        %v2998 = vpop.f32.mrb[0].mxu0
        %2999 = vmatprep.mubr.f32.mxu0 0.0
        %3000 = vmatmul.mubr.f32.gmra.mrb[0].mxu0 %v2629
        %v3001 = vpop.f32.mrb[0].mxu0
        %v3002 = vadd.f32 %v2659, %v3001
        %v3003 = vpop.f32.mrb[0].mxu0
        %3004 = vmatprep.mubr.f32.mxu0 0.0
        %3005 = vmatmul.mubr.f32.gmra.mrb[0].mxu0 %v2630
        %v3006 = vpop.f32.mrb[0].mxu0
        %v3007 = vadd.f32 %v2659, %v3006
        %v3008 = vpop.f32.mrb[0].mxu0
        %3009 = vmatprep.mubr.f32.mxu0 0.0
        %3010 = vmatmul.mubr.f32.gmra.mrb[0].mxu0 %v2631
        %v3011 = vpop.f32.mrb[0].mxu0
        %v3012 = vadd.f32 %v2659, %v3011
        %v3013 = vpop.f32.mrb[0].mxu0
        %3014 = vmatprep.mubr.f32.mxu0 0.0
        %3015 = vmatmul.mubr.f32.gmra.mrb[0].mxu0 %v2632
        %v3016 = vpop.f32.mrb[0].mxu0
        %v3017 = vadd.f32 %v2659, %v3016
        %v3018 = vpop.f32.mrb[0].mxu0
        %3019 = vmatprep.mubr.f32.mxu0 0.0
        %3020 = vmatmul.mubr.f32.gmra.mrb[0].mxu0 %v2633
        %v3021 = vpop.f32.mrb[0].mxu0
        %v3022 = vadd.f32 %v2659, %v3021
        %v3023 = vpop.f32.mrb[0].mxu0
        %3024 = vmatprep.mubr.f32.mxu0 0.0
        %3025 = vmatmul.mubr.f32.gmra.mrb[0].mxu0 %v2634
        %v3026 = vpop.f32.mrb[0].mxu0
        %v3027 = vadd.f32 %v2659, %v3026
        %v3028 = vpop.f32.mrb[0].mxu0
        %3029 = vmatprep.mubr.f32.mxu0 0.0
        %3030 = vmatmul.mubr.f32.gmra.mrb[0].mxu0 %v2635
        %v3031 = vpop.f32.mrb[0].mxu0
        %v3032 = vadd.f32 %v2659, %v3031
        %v3033 = vpop.f32.mrb[0].mxu0
        %3034 = vmatprep.mubr.f32.mxu0 0.0
        %3035 = vmatmul.mubr.f32.gmra.mrb[0].mxu0 %v2636
        %v3036 = vpop.f32.mrb[0].mxu0
        %v3037 = vadd.f32 %v2659, %v3036
        %v3038 = vpop.f32.mrb[0].mxu0
        %3039 = vmatprep.mubr.f32.mxu0 0.0
        %3040 = vmatmul.mubr.f32.gmra.mrb[0].mxu0 %v2637
        %v3041 = vpop.f32.mrb[0].mxu0
        %v3042 = vadd.f32 %v2659, %v3041
        %v3043 = vpop.f32.mrb[0].mxu0
        %3044 = vdwg.mxu0
        %v3045 = vxor.u32 %v2727, 2147483648
        %v3046 = vxor.u32 %v2732, 2147483648
        %v3047 = vxor.u32 %v2737, 2147483648
        %v3048 = vxor.u32 %v2742, 2147483648
        %v3049 = vxor.u32 %v2747, 2147483648
        %v3050 = vxor.u32 %v2752, 2147483648
        %v3051 = vxor.u32 %v2757, 2147483648
        %v3052 = vxor.u32 %v2762, 2147483648
        %v3053 = vxor.u32 %v2767, 2147483648
        %v3054 = vxor.u32 %v2772, 2147483648
        %v3055 = vxor.u32 %v2777, 2147483648
        %v3056 = vxor.u32 %v2782, 2147483648
        %v3057 = vxor.u32 %v2787, 2147483648
        %v3058 = vxor.u32 %v2792, 2147483648
        %v3059 = vxor.u32 %v2797, 2147483648
        %v3060 = vxor.u32 %v2802, 2147483648
        %v3061 = vxor.u32 %v2807, 2147483648
        %v3062 = vxor.u32 %v2812, 2147483648
        %v3063 = vxor.u32 %v2817, 2147483648
        %v3064 = vxor.u32 %v2822, 2147483648
        %v3065 = vxor.u32 %v2827, 2147483648
        %v3066 = vxor.u32 %v2832, 2147483648
        %v3067 = vxor.u32 %v2837, 2147483648
        %v3068 = vxor.u32 %v2842, 2147483648
        %v3069 = vxor.u32 %v2847, 2147483648
        %v3070 = vxor.u32 %v2852, 2147483648
        %v3071 = vxor.u32 %v2857, 2147483648
        %v3072 = vxor.u32 %v2862, 2147483648
        %v3073 = vxor.u32 %v2867, 2147483648
        %v3074 = vxor.u32 %v2872, 2147483648
        %v3075 = vxor.u32 %v2877, 2147483648
        %v3076 = vxor.u32 %v2882, 2147483648
        %v3077 = vxor.u32 %v2887, 2147483648
        %v3078 = vxor.u32 %v2892, 2147483648
        %v3079 = vxor.u32 %v2897, 2147483648
        %v3080 = vxor.u32 %v2902, 2147483648
        %v3081 = vxor.u32 %v2907, 2147483648
        %v3082 = vxor.u32 %v2912, 2147483648
        %v3083 = vxor.u32 %v2917, 2147483648
        %v3084 = vxor.u32 %v2922, 2147483648
        %v3085 = vxor.u32 %v2927, 2147483648
        %v3086 = vxor.u32 %v2932, 2147483648
        %v3087 = vxor.u32 %v2937, 2147483648
        %v3088 = vxor.u32 %v2942, 2147483648
        %v3089 = vxor.u32 %v2947, 2147483648
        %v3090 = vxor.u32 %v2952, 2147483648
        %v3091 = vxor.u32 %v2957, 2147483648
        %v3092 = vxor.u32 %v2962, 2147483648
        %v3093 = vxor.u32 %v2967, 2147483648
        %v3094 = vxor.u32 %v2972, 2147483648
        %v3095 = vxor.u32 %v2977, 2147483648
        %v3096 = vxor.u32 %v2982, 2147483648
        %v3097 = vxor.u32 %v2987, 2147483648
        %v3098 = vxor.u32 %v2992, 2147483648
        %v3099 = vxor.u32 %v2997, 2147483648
        %v3100 = vxor.u32 %v3002, 2147483648
        %v3101 = vxor.u32 %v3007, 2147483648
        %v3102 = vxor.u32 %v3012, 2147483648
        %v3103 = vxor.u32 %v3017, 2147483648
        %v3104 = vxor.u32 %v3022, 2147483648
        %v3105 = vxor.u32 %v3027, 2147483648
        %v3106 = vxor.u32 %v3032, 2147483648
        %v3107 = vxor.u32 %v3037, 2147483648
        %v3108 = vxor.u32 %v3042, 2147483648
        %v3109 = vmul.f32 %v3045, 1.442695
        %v3110 = vpow.pop %v3109
        %v3111 = vmul.f32 %v3046, 1.442695
        %v3112 = vpow.pop %v3111
        %v3113 = vmul.f32 %v3047, 1.442695
        %v3114 = vpow.pop %v3113
        %v3115 = vmul.f32 %v3048, 1.442695
        %v3116 = vpow.pop %v3115
        %v3117 = vmul.f32 %v3049, 1.442695
        %v3118 = vpow.pop %v3117
        %v3119 = vmul.f32 %v3050, 1.442695
        %v3120 = vpow.pop %v3119
        %v3121 = vmul.f32 %v3051, 1.442695
        %v3122 = vpow.pop %v3121
        %v3123 = vmul.f32 %v3052, 1.442695
        %v3124 = vpow.pop %v3123
        %v3125 = vmul.f32 %v3053, 1.442695
        %v3126 = vpow.pop %v3125
        %v3127 = vmul.f32 %v3054, 1.442695
        %v3128 = vpow.pop %v3127
        %v3129 = vmul.f32 %v3055, 1.442695
        %v3130 = vpow.pop %v3129
        %v3131 = vmul.f32 %v3056, 1.442695
        %v3132 = vpow.pop %v3131
        %v3133 = vmul.f32 %v3057, 1.442695
        %v3134 = vpow.pop %v3133
        %v3135 = vmul.f32 %v3058, 1.442695
        %v3136 = vpow.pop %v3135
        %v3137 = vmul.f32 %v3059, 1.442695
        %v3138 = vpow.pop %v3137
        %v3139 = vmul.f32 %v3060, 1.442695
        %v3140 = vpow.pop %v3139
        %v3141 = vmul.f32 %v3061, 1.442695
        %v3142 = vpow.pop %v3141
        %v3143 = vmul.f32 %v3062, 1.442695
        %v3144 = vpow.pop %v3143
        %v3145 = vmul.f32 %v3063, 1.442695
        %v3146 = vpow.pop %v3145
        %v3147 = vmul.f32 %v3064, 1.442695
        %v3148 = vpow.pop %v3147
        %v3149 = vmul.f32 %v3065, 1.442695
        %v3150 = vpow.pop %v3149
        %v3151 = vmul.f32 %v3066, 1.442695
        %v3152 = vpow.pop %v3151
        %v3153 = vmul.f32 %v3067, 1.442695
        %v3154 = vpow.pop %v3153
        %v3155 = vmul.f32 %v3068, 1.442695
        %v3156 = vpow.pop %v3155
        %v3157 = vmul.f32 %v3069, 1.442695
        %v3158 = vpow.pop %v3157
        %v3159 = vmul.f32 %v3070, 1.442695
        %v3160 = vpow.pop %v3159
        %v3161 = vmul.f32 %v3071, 1.442695
        %v3162 = vpow.pop %v3161
        %v3163 = vmul.f32 %v3072, 1.442695
        %v3164 = vpow.pop %v3163
        %v3165 = vmul.f32 %v3073, 1.442695
        %v3166 = vpow.pop %v3165
        %v3167 = vmul.f32 %v3074, 1.442695
        %v3168 = vpow.pop %v3167
        %v3169 = vmul.f32 %v3075, 1.442695
        %v3170 = vpow.pop %v3169
        %v3171 = vmul.f32 %v3076, 1.442695
        %v3172 = vpow.pop %v3171
        %v3173 = vmul.f32 %v3077, 1.442695
        %v3174 = vpow.pop %v3173
        %v3175 = vmul.f32 %v3078, 1.442695
        %v3176 = vpow.pop %v3175
        %v3177 = vmul.f32 %v3079, 1.442695
        %v3178 = vpow.pop %v3177
        %v3179 = vmul.f32 %v3080, 1.442695
        %v3180 = vpow.pop %v3179
        %v3181 = vmul.f32 %v3081, 1.442695
        %v3182 = vpow.pop %v3181
        %v3183 = vmul.f32 %v3082, 1.442695
        %v3184 = vpow.pop %v3183
        %v3185 = vmul.f32 %v3083, 1.442695
        %v3186 = vpow.pop %v3185
        %v3187 = vmul.f32 %v3084, 1.442695
        %v3188 = vpow.pop %v3187
        %v3189 = vmul.f32 %v3085, 1.442695
        %v3190 = vpow.pop %v3189
        %v3191 = vmul.f32 %v3086, 1.442695
        %v3192 = vpow.pop %v3191
        %v3193 = vmul.f32 %v3087, 1.442695
        %v3194 = vpow.pop %v3193
        %v3195 = vmul.f32 %v3088, 1.442695
        %v3196 = vpow.pop %v3195
        %v3197 = vmul.f32 %v3089, 1.442695
        %v3198 = vpow.pop %v3197
        %v3199 = vmul.f32 %v3090, 1.442695
        %v3200 = vpow.pop %v3199
        %v3201 = vmul.f32 %v3091, 1.442695
        %v3202 = vpow.pop %v3201
        %v3203 = vmul.f32 %v3092, 1.442695
        %v3204 = vpow.pop %v3203
        %v3205 = vmul.f32 %v3093, 1.442695
        %v3206 = vpow.pop %v3205
        %v3207 = vmul.f32 %v3094, 1.442695
        %v3208 = vpow.pop %v3207
        %v3209 = vmul.f32 %v3095, 1.442695
        %v3210 = vpow.pop %v3209
        %v3211 = vmul.f32 %v3096, 1.442695
        %v3212 = vpow.pop %v3211
        %v3213 = vmul.f32 %v3097, 1.442695
        %v3214 = vpow.pop %v3213
        %v3215 = vmul.f32 %v3098, 1.442695
        %v3216 = vpow.pop %v3215
        %v3217 = vmul.f32 %v3099, 1.442695
        %v3218 = vpow.pop %v3217
        %v3219 = vmul.f32 %v3100, 1.442695
        %v3220 = vpow.pop %v3219
        %v3221 = vmul.f32 %v3101, 1.442695
        %v3222 = vpow.pop %v3221
        %v3223 = vmul.f32 %v3102, 1.442695
        %v3224 = vpow.pop %v3223
        %v3225 = vmul.f32 %v3103, 1.442695
        %v3226 = vpow.pop %v3225
        %v3227 = vmul.f32 %v3104, 1.442695
        %v3228 = vpow.pop %v3227
        %v3229 = vmul.f32 %v3105, 1.442695
        %v3230 = vpow.pop %v3229
        %v3231 = vmul.f32 %v3106, 1.442695
        %v3232 = vpow.pop %v3231
        %v3233 = vmul.f32 %v3107, 1.442695
        %v3234 = vpow.pop %v3233
        %v3235 = vmul.f32 %v3108, 1.442695
        %v3236 = vpow.pop %v3235
        %v3237 = vadd.f32 %v3110, 1.0
        %v3238 = vadd.f32 %v3112, 1.0
        %v3239 = vadd.f32 %v3114, 1.0
        %v3240 = vadd.f32 %v3116, 1.0
        %v3241 = vadd.f32 %v3118, 1.0
        %v3242 = vadd.f32 %v3120, 1.0
        %v3243 = vadd.f32 %v3122, 1.0
        %v3244 = vadd.f32 %v3124, 1.0
        %v3245 = vadd.f32 %v3126, 1.0
        %v3246 = vadd.f32 %v3128, 1.0
        %v3247 = vadd.f32 %v3130, 1.0
        %v3248 = vadd.f32 %v3132, 1.0
        %v3249 = vadd.f32 %v3134, 1.0
        %v3250 = vadd.f32 %v3136, 1.0
        %v3251 = vadd.f32 %v3138, 1.0
        %v3252 = vadd.f32 %v3140, 1.0
        %v3253 = vadd.f32 %v3142, 1.0
        %v3254 = vadd.f32 %v3144, 1.0
        %v3255 = vadd.f32 %v3146, 1.0
        %v3256 = vadd.f32 %v3148, 1.0
        %v3257 = vadd.f32 %v3150, 1.0
        %v3258 = vadd.f32 %v3152, 1.0
        %v3259 = vadd.f32 %v3154, 1.0
        %v3260 = vadd.f32 %v3156, 1.0
        %v3261 = vadd.f32 %v3158, 1.0
        %v3262 = vadd.f32 %v3160, 1.0
        %v3263 = vadd.f32 %v3162, 1.0
        %v3264 = vadd.f32 %v3164, 1.0
        %v3265 = vadd.f32 %v3166, 1.0
        %v3266 = vadd.f32 %v3168, 1.0
        %v3267 = vadd.f32 %v3170, 1.0
        %v3268 = vadd.f32 %v3172, 1.0
        %v3269 = vadd.f32 %v3174, 1.0
        %v3270 = vadd.f32 %v3176, 1.0
        %v3271 = vadd.f32 %v3178, 1.0
        %v3272 = vadd.f32 %v3180, 1.0
        %v3273 = vadd.f32 %v3182, 1.0
        %v3274 = vadd.f32 %v3184, 1.0
        %v3275 = vadd.f32 %v3186, 1.0
        %v3276 = vadd.f32 %v3188, 1.0
        %v3277 = vadd.f32 %v3190, 1.0
        %v3278 = vadd.f32 %v3192, 1.0
        %v3279 = vadd.f32 %v3194, 1.0
        %v3280 = vadd.f32 %v3196, 1.0
        %v3281 = vadd.f32 %v3198, 1.0
        %v3282 = vadd.f32 %v3200, 1.0
        %v3283 = vadd.f32 %v3202, 1.0
        %v3284 = vadd.f32 %v3204, 1.0
        %v3285 = vadd.f32 %v3206, 1.0
        %v3286 = vadd.f32 %v3208, 1.0
        %v3287 = vadd.f32 %v3210, 1.0
        %v3288 = vadd.f32 %v3212, 1.0
        %v3289 = vadd.f32 %v3214, 1.0
        %v3290 = vadd.f32 %v3216, 1.0
        %v3291 = vadd.f32 %v3218, 1.0
        %v3292 = vadd.f32 %v3220, 1.0
        %v3293 = vadd.f32 %v3222, 1.0
        %v3294 = vadd.f32 %v3224, 1.0
        %v3295 = vadd.f32 %v3226, 1.0
        %v3296 = vadd.f32 %v3228, 1.0
        %v3297 = vadd.f32 %v3230, 1.0
        %v3298 = vadd.f32 %v3232, 1.0
        %v3299 = vadd.f32 %v3234, 1.0
        %v3300 = vadd.f32 %v3236, 1.0
        %v3301 = vrcp.pop %v3237
        %v3302 = vmul.f32 1.0, %v3301
        %v3303 = vrcp.pop %v3238
        %v3304 = vmul.f32 1.0, %v3303
        %v3305 = vrcp.pop %v3239
        %v3306 = vmul.f32 1.0, %v3305
        %v3307 = vrcp.pop %v3240
        %v3308 = vmul.f32 1.0, %v3307
        %v3309 = vrcp.pop %v3241
        %v3310 = vmul.f32 1.0, %v3309
        %v3311 = vrcp.pop %v3242
        %v3312 = vmul.f32 1.0, %v3311
        %v3313 = vrcp.pop %v3243
        %v3314 = vmul.f32 1.0, %v3313
        %v3315 = vrcp.pop %v3244
        %v3316 = vmul.f32 1.0, %v3315
        %v3317 = vrcp.pop %v3245
        %v3318 = vmul.f32 1.0, %v3317
        %v3319 = vrcp.pop %v3246
        %v3320 = vmul.f32 1.0, %v3319
        %v3321 = vrcp.pop %v3247
        %v3322 = vmul.f32 1.0, %v3321
        %v3323 = vrcp.pop %v3248
        %v3324 = vmul.f32 1.0, %v3323
        %v3325 = vrcp.pop %v3249
        %v3326 = vmul.f32 1.0, %v3325
        %v3327 = vrcp.pop %v3250
        %v3328 = vmul.f32 1.0, %v3327
        %v3329 = vrcp.pop %v3251
        %v3330 = vmul.f32 1.0, %v3329
        %v3331 = vrcp.pop %v3252
        %v3332 = vmul.f32 1.0, %v3331
        %v3333 = vrcp.pop %v3253
        %v3334 = vmul.f32 1.0, %v3333
        %v3335 = vrcp.pop %v3254
        %v3336 = vmul.f32 1.0, %v3335
        %v3337 = vrcp.pop %v3255
        %v3338 = vmul.f32 1.0, %v3337
        %v3339 = vrcp.pop %v3256
        %v3340 = vmul.f32 1.0, %v3339
        %v3341 = vrcp.pop %v3257
        %v3342 = vmul.f32 1.0, %v3341
        %v3343 = vrcp.pop %v3258
        %v3344 = vmul.f32 1.0, %v3343
        %v3345 = vrcp.pop %v3259
        %v3346 = vmul.f32 1.0, %v3345
        %v3347 = vrcp.pop %v3260
        %v3348 = vmul.f32 1.0, %v3347
        %v3349 = vrcp.pop %v3261
        %v3350 = vmul.f32 1.0, %v3349
        %v3351 = vrcp.pop %v3262
        %v3352 = vmul.f32 1.0, %v3351
        %v3353 = vrcp.pop %v3263
        %v3354 = vmul.f32 1.0, %v3353
        %v3355 = vrcp.pop %v3264
        %v3356 = vmul.f32 1.0, %v3355
        %v3357 = vrcp.pop %v3265
        %v3358 = vmul.f32 1.0, %v3357
        %v3359 = vrcp.pop %v3266
        %v3360 = vmul.f32 1.0, %v3359
        %v3361 = vrcp.pop %v3267
        %v3362 = vmul.f32 1.0, %v3361
        %v3363 = vrcp.pop %v3268
        %v3364 = vmul.f32 1.0, %v3363
        %v3365 = vrcp.pop %v3269
        %v3366 = vmul.f32 1.0, %v3365
        %v3367 = vrcp.pop %v3270
        %v3368 = vmul.f32 1.0, %v3367
        %v3369 = vrcp.pop %v3271
        %v3370 = vmul.f32 1.0, %v3369
        %v3371 = vrcp.pop %v3272
        %v3372 = vmul.f32 1.0, %v3371
        %v3373 = vrcp.pop %v3273
        %v3374 = vmul.f32 1.0, %v3373
        %v3375 = vrcp.pop %v3274
        %v3376 = vmul.f32 1.0, %v3375
        %v3377 = vrcp.pop %v3275
        %v3378 = vmul.f32 1.0, %v3377
        %v3379 = vrcp.pop %v3276
        %v3380 = vmul.f32 1.0, %v3379
        %v3381 = vrcp.pop %v3277
        %v3382 = vmul.f32 1.0, %v3381
        %v3383 = vrcp.pop %v3278
        %v3384 = vmul.f32 1.0, %v3383
        %v3385 = vrcp.pop %v3279
        %v3386 = vmul.f32 1.0, %v3385
        %v3387 = vrcp.pop %v3280
        %v3388 = vmul.f32 1.0, %v3387
        %v3389 = vrcp.pop %v3281
        %v3390 = vmul.f32 1.0, %v3389
        %v3391 = vrcp.pop %v3282
        %v3392 = vmul.f32 1.0, %v3391
        %v3393 = vrcp.pop %v3283
        %v3394 = vmul.f32 1.0, %v3393
        %v3395 = vrcp.pop %v3284
        %v3396 = vmul.f32 1.0, %v3395
        %v3397 = vrcp.pop %v3285
        %v3398 = vmul.f32 1.0, %v3397
        %v3399 = vrcp.pop %v3286
        %v3400 = vmul.f32 1.0, %v3399
        %v3401 = vrcp.pop %v3287
        %v3402 = vmul.f32 1.0, %v3401
        %v3403 = vrcp.pop %v3288
        %v3404 = vmul.f32 1.0, %v3403
        %v3405 = vrcp.pop %v3289
        %v3406 = vmul.f32 1.0, %v3405
        %v3407 = vrcp.pop %v3290
        %v3408 = vmul.f32 1.0, %v3407
        %v3409 = vrcp.pop %v3291
        %v3410 = vmul.f32 1.0, %v3409
        %v3411 = vrcp.pop %v3292
        %v3412 = vmul.f32 1.0, %v3411
        %v3413 = vrcp.pop %v3293
        %v3414 = vmul.f32 1.0, %v3413
        %v3415 = vrcp.pop %v3294
        %v3416 = vmul.f32 1.0, %v3415
        %v3417 = vrcp.pop %v3295
        %v3418 = vmul.f32 1.0, %v3417
        %v3419 = vrcp.pop %v3296
        %v3420 = vmul.f32 1.0, %v3419
        %v3421 = vrcp.pop %v3297
        %v3422 = vmul.f32 1.0, %v3421
        %v3423 = vrcp.pop %v3298
        %v3424 = vmul.f32 1.0, %v3423
        %v3425 = vrcp.pop %v3299
        %v3426 = vmul.f32 1.0, %v3425
        %v3427 = vrcp.pop %v3300
        %v3428 = vmul.f32 1.0, %v3427
        %3429 = vst [vmem:[%s217] sm:$0xff] %v3302
        %3430 = vst [vmem:[%s217 + $0x18] sm:$0xff] %v3304
        %3431 = vst [vmem:[%s217 + $0x30] sm:$0xff] %v3306
        %3432 = vst [vmem:[%s217 + $0x48] sm:$0xff] %v3308
        %3433 = vst [vmem:[%s217 + $0x60] sm:$0xff] %v3310
        %3434 = vst [vmem:[%s217 + $0x78] sm:$0xff] %v3312
        %3435 = vst [vmem:[%s217 + $0x90] sm:$0xff] %v3314
        %3436 = vst [vmem:[%s217 + $0xa8] sm:$0xff] %v3316
        %3437 = vst [vmem:[%s217 + $0xc0] sm:$0xff] %v3318
        %3438 = vst [vmem:[%s217 + $0xd8] sm:$0xff] %v3320
        %3439 = vst [vmem:[%s217 + $0xf0] sm:$0xff] %v3322
        %3440 = vst [vmem:[%s217 + $0x108] sm:$0xff] %v3324
        %3441 = vst [vmem:[%s217 + $0x120] sm:$0xff] %v3326
        %3442 = vst [vmem:[%s217 + $0x138] sm:$0xff] %v3328
        %3443 = vst [vmem:[%s217 + $0x150] sm:$0xff] %v3330
        %3444 = vst [vmem:[%s217 + $0x168] sm:$0xff] %v3332
        %3445 = vst [vmem:[%s217 + $0x180] sm:$0xff] %v3334
        %3446 = vst [vmem:[%s217 + $0x198] sm:$0xff] %v3336
        %3447 = vst [vmem:[%s217 + $0x1b0] sm:$0xff] %v3338
        %3448 = vst [vmem:[%s217 + $0x1c8] sm:$0xff] %v3340
        %3449 = vst [vmem:[%s217 + $0x1e0] sm:$0xff] %v3342
        %3450 = vst [vmem:[%s217 + $0x1f8] sm:$0xff] %v3344
        %3451 = vst [vmem:[%s217 + $0x210] sm:$0xff] %v3346
        %3452 = vst [vmem:[%s217 + $0x228] sm:$0xff] %v3348
        %3453 = vst [vmem:[%s217 + $0x240] sm:$0xff] %v3350
        %3454 = vst [vmem:[%s217 + $0x258] sm:$0xff] %v3352
        %3455 = vst [vmem:[%s217 + $0x270] sm:$0xff] %v3354
        %3456 = vst [vmem:[%s217 + $0x288] sm:$0xff] %v3356
        %3457 = vst [vmem:[%s217 + $0x2a0] sm:$0xff] %v3358
        %3458 = vst [vmem:[%s217 + $0x2b8] sm:$0xff] %v3360
        %3459 = vst [vmem:[%s217 + $0x2d0] sm:$0xff] %v3362
        %3460 = vst [vmem:[%s217 + $0x2e8] sm:$0xff] %v3364
        %3461 = vst [vmem:[%s217 + $0x300] sm:$0xff] %v3366
        %3462 = vst [vmem:[%s217 + $0x318] sm:$0xff] %v3368
        %3463 = vst [vmem:[%s217 + $0x330] sm:$0xff] %v3370
        %3464 = vst [vmem:[%s217 + $0x348] sm:$0xff] %v3372
        %3465 = vst [vmem:[%s217 + $0x360] sm:$0xff] %v3374
        %3466 = vst [vmem:[%s217 + $0x378] sm:$0xff] %v3376
        %3467 = vst [vmem:[%s217 + $0x390] sm:$0xff] %v3378
        %3468 = vst [vmem:[%s217 + $0x3a8] sm:$0xff] %v3380
        %3469 = vst [vmem:[%s217 + $0x3c0] sm:$0xff] %v3382
        %3470 = vst [vmem:[%s217 + $0x3d8] sm:$0xff] %v3384
        %3471 = vst [vmem:[%s217 + $0x3f0] sm:$0xff] %v3386
        %3472 = vst [vmem:[%s217 + $0x408] sm:$0xff] %v3388
        %3473 = vst [vmem:[%s217 + $0x420] sm:$0xff] %v3390
        %3474 = vst [vmem:[%s217 + $0x438] sm:$0xff] %v3392
        %3475 = vst [vmem:[%s217 + $0x450] sm:$0xff] %v3394
        %3476 = vst [vmem:[%s217 + $0x468] sm:$0xff] %v3396
        %3477 = vst [vmem:[%s217 + $0x480] sm:$0xff] %v3398
        %3478 = vst [vmem:[%s217 + $0x498] sm:$0xff] %v3400
        %3479 = vst [vmem:[%s217 + $0x4b0] sm:$0xff] %v3402
        %3480 = vst [vmem:[%s217 + $0x4c8] sm:$0xff] %v3404
        %3481 = vst [vmem:[%s217 + $0x4e0] sm:$0xff] %v3406
        %3482 = vst [vmem:[%s217 + $0x4f8] sm:$0xff] %v3408
        %3483 = vst [vmem:[%s217 + $0x510] sm:$0xff] %v3410
        %3484 = vst [vmem:[%s217 + $0x528] sm:$0xff] %v3412
        %3485 = vst [vmem:[%s217 + $0x540] sm:$0xff] %v3414
        %3486 = vst [vmem:[%s217 + $0x558] sm:$0xff] %v3416
        %3487 = vst [vmem:[%s217 + $0x570] sm:$0xff] %v3418
        %3488 = vst [vmem:[%s217 + $0x588] sm:$0xff] %v3420
        %3489 = vst [vmem:[%s217 + $0x5a0] sm:$0xff] %v3422
        %3490 = vst [vmem:[%s217 + $0x5b8] sm:$0xff] %v3424
        %3491 = vst [vmem:[%s217 + $0x5d0] sm:$0xff] %v3426
        %3492 = vst [vmem:[%s217 + $0x5e8] sm:$0xff] %v3428
        %s3493 = scalar_lea.vmem [#allocation5], 768
        %v3494 = vld [vmem:[%s3493] sm:$0xff]
        %v3495 = vld [vmem:[%s3493 + $0x8] sm:$0xff]
        %v3496 = vld [vmem:[%s3493 + $0x10] sm:$0xff]
        %v3497 = vld [vmem:[%s3493 + $0x18] sm:$0xff]
        %v3498 = vld [vmem:[%s3493 + $0x20] sm:$0xff]
        %v3499 = vld [vmem:[%s3493 + $0x28] sm:$0xff]
        %v3500 = vld [vmem:[%s3493 + $0x30] sm:$0xff]
        %v3501 = vld [vmem:[%s3493 + $0x38] sm:$0xff]
        %v3502 = vld [vmem:[%s3493 + $0x40] sm:$0xff]
        %v3503 = vld [vmem:[%s3493 + $0x48] sm:$0xff]
        %v3504 = vld [vmem:[%s3493 + $0x50] sm:$0xff]
        %v3505 = vld [vmem:[%s3493 + $0x58] sm:$0xff]
        %v3506 = vld [vmem:[%s3493 + $0x60] sm:$0xff]
        %v3507 = vld [vmem:[%s3493 + $0x68] sm:$0xff]
        %v3508 = vld [vmem:[%s3493 + $0x70] sm:$0xff]
        %v3509 = vld [vmem:[%s3493 + $0x78] sm:$0xff]
        %v3510 = vld [vmem:[#allocation7 + $0x6] sm:$0x1]
        %v3511 = vlaneseq
        %v3512 = vshrl.u32 %v3511, 7
        %v3513 = vsub.s32 0, %v3512
        %v3514 = vrot.slane %v3510, %v3513
        %3515 = vmatprep.subr.mxu0 0.0
        %3516 = vmatpush1.msra.mxu0 %v3494
        %3517 = vmatprep.subr.mxu0 0.0
        %3518 = vmatpush1.msra.mxu0 %v3495
        %3519 = vmatprep.subr.mxu0 0.0
        %3520 = vmatpush1.msra.mxu0 %v3496
        %3521 = vmatprep.subr.mxu0 0.0
        %3522 = vmatpush1.msra.mxu0 %v3497
        %3523 = vmatprep.subr.mxu0 0.0
        %3524 = vmatpush1.msra.mxu0 %v3498
        %3525 = vmatprep.subr.mxu0 0.0
        %3526 = vmatpush1.msra.mxu0 %v3499
        %3527 = vmatprep.subr.mxu0 0.0
        %3528 = vmatpush1.msra.mxu0 %v3500
        %3529 = vmatprep.subr.mxu0 0.0
        %3530 = vmatpush1.msra.mxu0 %v3501
        %3531 = vmatprep.subr.mxu0 0.0
        %3532 = vmatpush1.msra.mxu0 %v3502
        %3533 = vmatprep.subr.mxu0 0.0
        %3534 = vmatpush1.msra.mxu0 %v3503
        %3535 = vmatprep.subr.mxu0 0.0
        %3536 = vmatpush1.msra.mxu0 %v3504
        %3537 = vmatprep.subr.mxu0 0.0
        %3538 = vmatpush1.msra.mxu0 %v3505
        %3539 = vmatprep.subr.mxu0 0.0
        %3540 = vmatpush1.msra.mxu0 %v3506
        %3541 = vmatprep.subr.mxu0 0.0
        %3542 = vmatpush1.msra.mxu0 %v3507
        %3543 = vmatprep.subr.mxu0 0.0
        %3544 = vmatpush1.msra.mxu0 %v3508
        %3545 = vmatprep.subr.mxu0 0.0
        %3546 = vmatpush1.msra.mxu0 %v3509
        %3547 = vmatprep.subr.mxu0 0.0
        %3548 = vmatpush1.msra.mxu0 0.0
        %3549 = vmatprep.subr.mxu0 0.0
        %3550 = vmatpush1.msra.mxu0 0.0
        %3551 = vmatprep.subr.mxu0 0.0
        %3552 = vmatpush1.msra.mxu0 0.0
        %3553 = vmatprep.subr.mxu0 0.0
        %3554 = vmatpush1.msra.mxu0 0.0
        %3555 = vmatprep.subr.mxu0 0.0
        %3556 = vmatpush1.msra.mxu0 0.0
        %3557 = vmatprep.subr.mxu0 0.0
        %3558 = vmatpush1.msra.mxu0 0.0
        %3559 = vmatprep.subr.mxu0 0.0
        %3560 = vmatpush1.msra.mxu0 0.0
        %3561 = vmatprep.subr.mxu0 0.0
        %3562 = vmatpush1.msra.mxu0 0.0
        %3563 = vmatprep.subr.mxu0 0.0
        %3564 = vmatpush1.msra.mxu0 0.0
        %3565 = vmatprep.subr.mxu0 0.0
        %3566 = vmatpush1.msra.mxu0 0.0
        %3567 = vmatprep.subr.mxu0 0.0
        %3568 = vmatpush1.msra.mxu0 0.0
        %3569 = vmatprep.subr.mxu0 0.0
        %3570 = vmatpush1.msra.mxu0 0.0
        %3571 = vmatprep.subr.mxu0 0.0
        %3572 = vmatpush1.msra.mxu0 0.0
        %3573 = vmatprep.subr.mxu0 0.0
        %3574 = vmatpush1.msra.mxu0 0.0
        %3575 = vmatprep.subr.mxu0 0.0
        %3576 = vmatpush1.msra.mxu0 0.0
        %3577 = vmatprep.subr.mxu0 0.0
        %3578 = vmatpush1.msra.mxu0 0.0
        %3579 = vmatprep.mubr.f32.mxu0 0.0
        %3580 = vmatmul.mubr.f32.gmra.mrb[0].mxu0 %v1632
        %v3581 = vpop.f32.mrb[0].mxu0
        %v3582 = vadd.f32 %v3514, %v3581
        %v3583 = vpop.f32.mrb[0].mxu0
        %3584 = vmatprep.mubr.f32.mxu0 0.0
        %3585 = vmatmul.mubr.f32.gmra.mrb[0].mxu0 %v1633
        %v3586 = vpop.f32.mrb[0].mxu0
        %v3587 = vadd.f32 %v3514, %v3586
        %v3588 = vpop.f32.mrb[0].mxu0
        %3589 = vmatprep.mubr.f32.mxu0 0.0
        %3590 = vmatmul.mubr.f32.gmra.mrb[0].mxu0 %v1634
        %v3591 = vpop.f32.mrb[0].mxu0
        %v3592 = vadd.f32 %v3514, %v3591
        %v3593 = vpop.f32.mrb[0].mxu0
        %3594 = vmatprep.mubr.f32.mxu0 0.0
        %3595 = vmatmul.mubr.f32.gmra.mrb[0].mxu0 %v1635
        %v3596 = vpop.f32.mrb[0].mxu0
        %v3597 = vadd.f32 %v3514, %v3596
        %v3598 = vpop.f32.mrb[0].mxu0
        %3599 = vmatprep.mubr.f32.mxu0 0.0
        %3600 = vmatmul.mubr.f32.gmra.mrb[0].mxu0 %v1636
        %v3601 = vpop.f32.mrb[0].mxu0
        %v3602 = vadd.f32 %v3514, %v3601
        %v3603 = vpop.f32.mrb[0].mxu0
        %3604 = vmatprep.mubr.f32.mxu0 0.0
        %3605 = vmatmul.mubr.f32.gmra.mrb[0].mxu0 %v1637
        %v3606 = vpop.f32.mrb[0].mxu0
        %v3607 = vadd.f32 %v3514, %v3606
        %v3608 = vpop.f32.mrb[0].mxu0
        %3609 = vmatprep.mubr.f32.mxu0 0.0
        %3610 = vmatmul.mubr.f32.gmra.mrb[0].mxu0 %v1638
        %v3611 = vpop.f32.mrb[0].mxu0
        %v3612 = vadd.f32 %v3514, %v3611
        %v3613 = vpop.f32.mrb[0].mxu0
        %3614 = vmatprep.mubr.f32.mxu0 0.0
        %3615 = vmatmul.mubr.f32.gmra.mrb[0].mxu0 %v1639
        %v3616 = vpop.f32.mrb[0].mxu0
        %v3617 = vadd.f32 %v3514, %v3616
        %v3618 = vpop.f32.mrb[0].mxu0
        %3619 = vmatprep.mubr.f32.mxu0 0.0
        %3620 = vmatmul.mubr.f32.gmra.mrb[0].mxu0 %v1640
        %v3621 = vpop.f32.mrb[0].mxu0
        %v3622 = vadd.f32 %v3514, %v3621
        %v3623 = vpop.f32.mrb[0].mxu0
        %3624 = vmatprep.mubr.f32.mxu0 0.0
        %3625 = vmatmul.mubr.f32.gmra.mrb[0].mxu0 %v1641
        %v3626 = vpop.f32.mrb[0].mxu0
        %v3627 = vadd.f32 %v3514, %v3626
        %v3628 = vpop.f32.mrb[0].mxu0
        %3629 = vmatprep.mubr.f32.mxu0 0.0
        %3630 = vmatmul.mubr.f32.gmra.mrb[0].mxu0 %v1642
        %v3631 = vpop.f32.mrb[0].mxu0
        %v3632 = vadd.f32 %v3514, %v3631
        %v3633 = vpop.f32.mrb[0].mxu0
        %3634 = vmatprep.mubr.f32.mxu0 0.0
        %3635 = vmatmul.mubr.f32.gmra.mrb[0].mxu0 %v1643
        %v3636 = vpop.f32.mrb[0].mxu0
        %v3637 = vadd.f32 %v3514, %v3636
        %v3638 = vpop.f32.mrb[0].mxu0
        %3639 = vmatprep.mubr.f32.mxu0 0.0
        %3640 = vmatmul.mubr.f32.gmra.mrb[0].mxu0 %v1644
        %v3641 = vpop.f32.mrb[0].mxu0
        %v3642 = vadd.f32 %v3514, %v3641
        %v3643 = vpop.f32.mrb[0].mxu0
        %3644 = vmatprep.mubr.f32.mxu0 0.0
        %3645 = vmatmul.mubr.f32.gmra.mrb[0].mxu0 %v1645
        %v3646 = vpop.f32.mrb[0].mxu0
        %v3647 = vadd.f32 %v3514, %v3646
        %v3648 = vpop.f32.mrb[0].mxu0
        %3649 = vmatprep.mubr.f32.mxu0 0.0
        %3650 = vmatmul.mubr.f32.gmra.mrb[0].mxu0 %v1646
        %v3651 = vpop.f32.mrb[0].mxu0
        %v3652 = vadd.f32 %v3514, %v3651
        %v3653 = vpop.f32.mrb[0].mxu0
        %3654 = vmatprep.mubr.f32.mxu0 0.0
        %3655 = vmatmul.mubr.f32.gmra.mrb[0].mxu0 %v1647
        %v3656 = vpop.f32.mrb[0].mxu0
        %v3657 = vadd.f32 %v3514, %v3656
        %v3658 = vpop.f32.mrb[0].mxu0
        %3659 = vmatprep.mubr.f32.mxu0 0.0
        %3660 = vmatmul.mubr.f32.gmra.mrb[0].mxu0 %v1648
        %v3661 = vpop.f32.mrb[0].mxu0
        %v3662 = vadd.f32 %v3514, %v3661
        %v3663 = vpop.f32.mrb[0].mxu0
        %3664 = vmatprep.mubr.f32.mxu0 0.0
        %3665 = vmatmul.mubr.f32.gmra.mrb[0].mxu0 %v1649
        %v3666 = vpop.f32.mrb[0].mxu0
        %v3667 = vadd.f32 %v3514, %v3666
        %v3668 = vpop.f32.mrb[0].mxu0
        %3669 = vmatprep.mubr.f32.mxu0 0.0
        %3670 = vmatmul.mubr.f32.gmra.mrb[0].mxu0 %v1650
        %v3671 = vpop.f32.mrb[0].mxu0
        %v3672 = vadd.f32 %v3514, %v3671
        %v3673 = vpop.f32.mrb[0].mxu0
        %3674 = vmatprep.mubr.f32.mxu0 0.0
        %3675 = vmatmul.mubr.f32.gmra.mrb[0].mxu0 %v1651
        %v3676 = vpop.f32.mrb[0].mxu0
        %v3677 = vadd.f32 %v3514, %v3676
        %v3678 = vpop.f32.mrb[0].mxu0
        %3679 = vmatprep.mubr.f32.mxu0 0.0
        %3680 = vmatmul.mubr.f32.gmra.mrb[0].mxu0 %v1652
        %v3681 = vpop.f32.mrb[0].mxu0
        %v3682 = vadd.f32 %v3514, %v3681
        %v3683 = vpop.f32.mrb[0].mxu0
        %3684 = vmatprep.mubr.f32.mxu0 0.0
        %3685 = vmatmul.mubr.f32.gmra.mrb[0].mxu0 %v1653
        %v3686 = vpop.f32.mrb[0].mxu0
        %v3687 = vadd.f32 %v3514, %v3686
        %v3688 = vpop.f32.mrb[0].mxu0
        %3689 = vmatprep.mubr.f32.mxu0 0.0
        %3690 = vmatmul.mubr.f32.gmra.mrb[0].mxu0 %v1654
        %v3691 = vpop.f32.mrb[0].mxu0
        %v3692 = vadd.f32 %v3514, %v3691
        %v3693 = vpop.f32.mrb[0].mxu0
        %3694 = vmatprep.mubr.f32.mxu0 0.0
        %3695 = vmatmul.mubr.f32.gmra.mrb[0].mxu0 %v1655
        %v3696 = vpop.f32.mrb[0].mxu0
        %v3697 = vadd.f32 %v3514, %v3696
        %v3698 = vpop.f32.mrb[0].mxu0
        %3699 = vmatprep.mubr.f32.mxu0 0.0
        %3700 = vmatmul.mubr.f32.gmra.mrb[0].mxu0 %v1656
        %v3701 = vpop.f32.mrb[0].mxu0
        %v3702 = vadd.f32 %v3514, %v3701
        %v3703 = vpop.f32.mrb[0].mxu0
        %3704 = vmatprep.mubr.f32.mxu0 0.0
        %3705 = vmatmul.mubr.f32.gmra.mrb[0].mxu0 %v1657
        %v3706 = vpop.f32.mrb[0].mxu0
        %v3707 = vadd.f32 %v3514, %v3706
        %v3708 = vpop.f32.mrb[0].mxu0
        %3709 = vmatprep.mubr.f32.mxu0 0.0
        %3710 = vmatmul.mubr.f32.gmra.mrb[0].mxu0 %v1658
        %v3711 = vpop.f32.mrb[0].mxu0
        %v3712 = vadd.f32 %v3514, %v3711
        %v3713 = vpop.f32.mrb[0].mxu0
        %3714 = vmatprep.mubr.f32.mxu0 0.0
        %3715 = vmatmul.mubr.f32.gmra.mrb[0].mxu0 %v1659
        %v3716 = vpop.f32.mrb[0].mxu0
        %v3717 = vadd.f32 %v3514, %v3716
        %v3718 = vpop.f32.mrb[0].mxu0
        %3719 = vmatprep.mubr.f32.mxu0 0.0
        %3720 = vmatmul.mubr.f32.gmra.mrb[0].mxu0 %v1660
        %v3721 = vpop.f32.mrb[0].mxu0
        %v3722 = vadd.f32 %v3514, %v3721
        %v3723 = vpop.f32.mrb[0].mxu0
        %3724 = vmatprep.mubr.f32.mxu0 0.0
        %3725 = vmatmul.mubr.f32.gmra.mrb[0].mxu0 %v1661
        %v3726 = vpop.f32.mrb[0].mxu0
        %v3727 = vadd.f32 %v3514, %v3726
        %v3728 = vpop.f32.mrb[0].mxu0
        %3729 = vmatprep.mubr.f32.mxu0 0.0
        %3730 = vmatmul.mubr.f32.gmra.mrb[0].mxu0 %v1662
        %v3731 = vpop.f32.mrb[0].mxu0
        %v3732 = vadd.f32 %v3514, %v3731
        %v3733 = vpop.f32.mrb[0].mxu0
        %3734 = vmatprep.mubr.f32.mxu0 0.0
        %3735 = vmatmul.mubr.f32.gmra.mrb[0].mxu0 %v1663
        %v3736 = vpop.f32.mrb[0].mxu0
        %v3737 = vadd.f32 %v3514, %v3736
        %v3738 = vpop.f32.mrb[0].mxu0
        %3739 = vmatprep.mubr.f32.mxu0 0.0
        %3740 = vmatmul.mubr.f32.gmra.mrb[0].mxu0 %v1664
        %v3741 = vpop.f32.mrb[0].mxu0
        %v3742 = vadd.f32 %v3514, %v3741
        %v3743 = vpop.f32.mrb[0].mxu0
        %3744 = vmatprep.mubr.f32.mxu0 0.0
        %3745 = vmatmul.mubr.f32.gmra.mrb[0].mxu0 %v1665
        %v3746 = vpop.f32.mrb[0].mxu0
        %v3747 = vadd.f32 %v3514, %v3746
        %v3748 = vpop.f32.mrb[0].mxu0
        %3749 = vmatprep.mubr.f32.mxu0 0.0
        %3750 = vmatmul.mubr.f32.gmra.mrb[0].mxu0 %v1666
        %v3751 = vpop.f32.mrb[0].mxu0
        %v3752 = vadd.f32 %v3514, %v3751
        %v3753 = vpop.f32.mrb[0].mxu0
        %3754 = vmatprep.mubr.f32.mxu0 0.0
        %3755 = vmatmul.mubr.f32.gmra.mrb[0].mxu0 %v1667
        %v3756 = vpop.f32.mrb[0].mxu0
        %v3757 = vadd.f32 %v3514, %v3756
        %v3758 = vpop.f32.mrb[0].mxu0
        %3759 = vmatprep.mubr.f32.mxu0 0.0
        %3760 = vmatmul.mubr.f32.gmra.mrb[0].mxu0 %v1668
        %v3761 = vpop.f32.mrb[0].mxu0
        %v3762 = vadd.f32 %v3514, %v3761
        %v3763 = vpop.f32.mrb[0].mxu0
        %3764 = vmatprep.mubr.f32.mxu0 0.0
        %3765 = vmatmul.mubr.f32.gmra.mrb[0].mxu0 %v1669
        %v3766 = vpop.f32.mrb[0].mxu0
        %v3767 = vadd.f32 %v3514, %v3766
        %v3768 = vpop.f32.mrb[0].mxu0
        %3769 = vmatprep.mubr.f32.mxu0 0.0
        %3770 = vmatmul.mubr.f32.gmra.mrb[0].mxu0 %v1670
        %v3771 = vpop.f32.mrb[0].mxu0
        %v3772 = vadd.f32 %v3514, %v3771
        %v3773 = vpop.f32.mrb[0].mxu0
        %3774 = vmatprep.mubr.f32.mxu0 0.0
        %3775 = vmatmul.mubr.f32.gmra.mrb[0].mxu0 %v1671
        %v3776 = vpop.f32.mrb[0].mxu0
        %v3777 = vadd.f32 %v3514, %v3776
        %v3778 = vpop.f32.mrb[0].mxu0
        %3779 = vmatprep.mubr.f32.mxu0 0.0
        %3780 = vmatmul.mubr.f32.gmra.mrb[0].mxu0 %v1672
        %v3781 = vpop.f32.mrb[0].mxu0
        %v3782 = vadd.f32 %v3514, %v3781
        %v3783 = vpop.f32.mrb[0].mxu0
        %3784 = vmatprep.mubr.f32.mxu0 0.0
        %3785 = vmatmul.mubr.f32.gmra.mrb[0].mxu0 %v1673
        %v3786 = vpop.f32.mrb[0].mxu0
        %v3787 = vadd.f32 %v3514, %v3786
        %v3788 = vpop.f32.mrb[0].mxu0
        %3789 = vmatprep.mubr.f32.mxu0 0.0
        %3790 = vmatmul.mubr.f32.gmra.mrb[0].mxu0 %v1674
        %v3791 = vpop.f32.mrb[0].mxu0
        %v3792 = vadd.f32 %v3514, %v3791
        %v3793 = vpop.f32.mrb[0].mxu0
        %3794 = vmatprep.mubr.f32.mxu0 0.0
        %3795 = vmatmul.mubr.f32.gmra.mrb[0].mxu0 %v1675
        %v3796 = vpop.f32.mrb[0].mxu0
        %v3797 = vadd.f32 %v3514, %v3796
        %v3798 = vpop.f32.mrb[0].mxu0
        %3799 = vmatprep.mubr.f32.mxu0 0.0
        %3800 = vmatmul.mubr.f32.gmra.mrb[0].mxu0 %v1676
        %v3801 = vpop.f32.mrb[0].mxu0
        %v3802 = vadd.f32 %v3514, %v3801
        %v3803 = vpop.f32.mrb[0].mxu0
        %3804 = vmatprep.mubr.f32.mxu0 0.0
        %3805 = vmatmul.mubr.f32.gmra.mrb[0].mxu0 %v1677
        %v3806 = vpop.f32.mrb[0].mxu0
        %v3807 = vadd.f32 %v3514, %v3806
        %v3808 = vpop.f32.mrb[0].mxu0
        %3809 = vmatprep.mubr.f32.mxu0 0.0
        %3810 = vmatmul.mubr.f32.gmra.mrb[0].mxu0 %v1678
        %v3811 = vpop.f32.mrb[0].mxu0
        %v3812 = vadd.f32 %v3514, %v3811
        %v3813 = vpop.f32.mrb[0].mxu0
        %3814 = vmatprep.mubr.f32.mxu0 0.0
        %3815 = vmatmul.mubr.f32.gmra.mrb[0].mxu0 %v1679
        %v3816 = vpop.f32.mrb[0].mxu0
        %v3817 = vadd.f32 %v3514, %v3816
        %v3818 = vpop.f32.mrb[0].mxu0
        %3819 = vmatprep.mubr.f32.mxu0 0.0
        %3820 = vmatmul.mubr.f32.gmra.mrb[0].mxu0 %v1680
        %v3821 = vpop.f32.mrb[0].mxu0
        %v3822 = vadd.f32 %v3514, %v3821
        %v3823 = vpop.f32.mrb[0].mxu0
        %3824 = vmatprep.mubr.f32.mxu0 0.0
        %3825 = vmatmul.mubr.f32.gmra.mrb[0].mxu0 %v1681
        %v3826 = vpop.f32.mrb[0].mxu0
        %v3827 = vadd.f32 %v3514, %v3826
        %v3828 = vpop.f32.mrb[0].mxu0
        %3829 = vmatprep.mubr.f32.mxu0 0.0
        %3830 = vmatmul.mubr.f32.gmra.mrb[0].mxu0 %v1682
        %v3831 = vpop.f32.mrb[0].mxu0
        %v3832 = vadd.f32 %v3514, %v3831
        %v3833 = vpop.f32.mrb[0].mxu0
        %3834 = vmatprep.mubr.f32.mxu0 0.0
        %3835 = vmatmul.mubr.f32.gmra.mrb[0].mxu0 %v1683
        %v3836 = vpop.f32.mrb[0].mxu0
        %v3837 = vadd.f32 %v3514, %v3836
        %v3838 = vpop.f32.mrb[0].mxu0
        %3839 = vmatprep.mubr.f32.mxu0 0.0
        %3840 = vmatmul.mubr.f32.gmra.mrb[0].mxu0 %v1684
        %v3841 = vpop.f32.mrb[0].mxu0
        %v3842 = vadd.f32 %v3514, %v3841
        %v3843 = vpop.f32.mrb[0].mxu0
        %3844 = vmatprep.mubr.f32.mxu0 0.0
        %3845 = vmatmul.mubr.f32.gmra.mrb[0].mxu0 %v1685
        %v3846 = vpop.f32.mrb[0].mxu0
        %v3847 = vadd.f32 %v3514, %v3846
        %v3848 = vpop.f32.mrb[0].mxu0
        %3849 = vmatprep.mubr.f32.mxu0 0.0
        %3850 = vmatmul.mubr.f32.gmra.mrb[0].mxu0 %v1686
        %v3851 = vpop.f32.mrb[0].mxu0
        %v3852 = vadd.f32 %v3514, %v3851
        %v3853 = vpop.f32.mrb[0].mxu0
        %3854 = vmatprep.mubr.f32.mxu0 0.0
        %3855 = vmatmul.mubr.f32.gmra.mrb[0].mxu0 %v1687
        %v3856 = vpop.f32.mrb[0].mxu0
        %v3857 = vadd.f32 %v3514, %v3856
        %v3858 = vpop.f32.mrb[0].mxu0
        %3859 = vmatprep.mubr.f32.mxu0 0.0
        %3860 = vmatmul.mubr.f32.gmra.mrb[0].mxu0 %v1688
        %v3861 = vpop.f32.mrb[0].mxu0
        %v3862 = vadd.f32 %v3514, %v3861
        %v3863 = vpop.f32.mrb[0].mxu0
        %3864 = vmatprep.mubr.f32.mxu0 0.0
        %3865 = vmatmul.mubr.f32.gmra.mrb[0].mxu0 %v1689
        %v3866 = vpop.f32.mrb[0].mxu0
        %v3867 = vadd.f32 %v3514, %v3866
        %v3868 = vpop.f32.mrb[0].mxu0
        %3869 = vmatprep.mubr.f32.mxu0 0.0
        %3870 = vmatmul.mubr.f32.gmra.mrb[0].mxu0 %v1690
        %v3871 = vpop.f32.mrb[0].mxu0
        %v3872 = vadd.f32 %v3514, %v3871
        %v3873 = vpop.f32.mrb[0].mxu0
        %3874 = vmatprep.mubr.f32.mxu0 0.0
        %3875 = vmatmul.mubr.f32.gmra.mrb[0].mxu0 %v1691
        %v3876 = vpop.f32.mrb[0].mxu0
        %v3877 = vadd.f32 %v3514, %v3876
        %v3878 = vpop.f32.mrb[0].mxu0
        %3879 = vmatprep.mubr.f32.mxu0 0.0
        %3880 = vmatmul.mubr.f32.gmra.mrb[0].mxu0 %v1692
        %v3881 = vpop.f32.mrb[0].mxu0
        %v3882 = vadd.f32 %v3514, %v3881
        %v3883 = vpop.f32.mrb[0].mxu0
        %3884 = vmatprep.mubr.f32.mxu0 0.0
        %3885 = vmatmul.mubr.f32.gmra.mrb[0].mxu0 %v1693
        %v3886 = vpop.f32.mrb[0].mxu0
        %v3887 = vadd.f32 %v3514, %v3886
        %v3888 = vpop.f32.mrb[0].mxu0
        %3889 = vmatprep.mubr.f32.mxu0 0.0
        %3890 = vmatmul.mubr.f32.gmra.mrb[0].mxu0 %v1694
        %v3891 = vpop.f32.mrb[0].mxu0
        %v3892 = vadd.f32 %v3514, %v3891
        %v3893 = vpop.f32.mrb[0].mxu0
        %3894 = vmatprep.mubr.f32.mxu0 0.0
        %3895 = vmatmul.mubr.f32.gmra.mrb[0].mxu0 %v1695
        %v3896 = vpop.f32.mrb[0].mxu0
        %v3897 = vadd.f32 %v3514, %v3896
        %v3898 = vpop.f32.mrb[0].mxu0
        %3899 = vdwg.mxu0
        %v3900 = vmax.f32 %v3582, 0.0
        %v3901 = vmax.f32 %v3587, 0.0
        %v3902 = vmax.f32 %v3592, 0.0
        %v3903 = vmax.f32 %v3597, 0.0
        %v3904 = vmax.f32 %v3602, 0.0
        %v3905 = vmax.f32 %v3607, 0.0
        %v3906 = vmax.f32 %v3612, 0.0
        %v3907 = vmax.f32 %v3617, 0.0
        %v3908 = vmax.f32 %v3622, 0.0
        %v3909 = vmax.f32 %v3627, 0.0
        %v3910 = vmax.f32 %v3632, 0.0
        %v3911 = vmax.f32 %v3637, 0.0
        %v3912 = vmax.f32 %v3642, 0.0
        %v3913 = vmax.f32 %v3647, 0.0
        %v3914 = vmax.f32 %v3652, 0.0
        %v3915 = vmax.f32 %v3657, 0.0
        %v3916 = vmax.f32 %v3662, 0.0
        %v3917 = vmax.f32 %v3667, 0.0
        %v3918 = vmax.f32 %v3672, 0.0
        %v3919 = vmax.f32 %v3677, 0.0
        %v3920 = vmax.f32 %v3682, 0.0
        %v3921 = vmax.f32 %v3687, 0.0
        %v3922 = vmax.f32 %v3692, 0.0
        %v3923 = vmax.f32 %v3697, 0.0
        %v3924 = vmax.f32 %v3702, 0.0
        %v3925 = vmax.f32 %v3707, 0.0
        %v3926 = vmax.f32 %v3712, 0.0
        %v3927 = vmax.f32 %v3717, 0.0
        %v3928 = vmax.f32 %v3722, 0.0
        %v3929 = vmax.f32 %v3727, 0.0
        %v3930 = vmax.f32 %v3732, 0.0
        %v3931 = vmax.f32 %v3737, 0.0
        %v3932 = vmax.f32 %v3742, 0.0
        %v3933 = vmax.f32 %v3747, 0.0
        %v3934 = vmax.f32 %v3752, 0.0
        %v3935 = vmax.f32 %v3757, 0.0
        %v3936 = vmax.f32 %v3762, 0.0
        %v3937 = vmax.f32 %v3767, 0.0
        %v3938 = vmax.f32 %v3772, 0.0
        %v3939 = vmax.f32 %v3777, 0.0
        %v3940 = vmax.f32 %v3782, 0.0
        %v3941 = vmax.f32 %v3787, 0.0
        %v3942 = vmax.f32 %v3792, 0.0
        %v3943 = vmax.f32 %v3797, 0.0
        %v3944 = vmax.f32 %v3802, 0.0
        %v3945 = vmax.f32 %v3807, 0.0
        %v3946 = vmax.f32 %v3812, 0.0
        %v3947 = vmax.f32 %v3817, 0.0
        %v3948 = vmax.f32 %v3822, 0.0
        %v3949 = vmax.f32 %v3827, 0.0
        %v3950 = vmax.f32 %v3832, 0.0
        %v3951 = vmax.f32 %v3837, 0.0
        %v3952 = vmax.f32 %v3842, 0.0
        %v3953 = vmax.f32 %v3847, 0.0
        %v3954 = vmax.f32 %v3852, 0.0
        %v3955 = vmax.f32 %v3857, 0.0
        %v3956 = vmax.f32 %v3862, 0.0
        %v3957 = vmax.f32 %v3867, 0.0
        %v3958 = vmax.f32 %v3872, 0.0
        %v3959 = vmax.f32 %v3877, 0.0
        %v3960 = vmax.f32 %v3882, 0.0
        %v3961 = vmax.f32 %v3887, 0.0
        %v3962 = vmax.f32 %v3892, 0.0
        %v3963 = vmax.f32 %v3897, 0.0
        %s3964 = scalar_lea.vmem [#allocation5], 896
        %v3965 = vld [vmem:[%s3964] sm:$0xff]
        %v3966 = vld [vmem:[%s3964 + $0x8] sm:$0xff]
        %v3967 = vld [vmem:[%s3964 + $0x10] sm:$0xff]
        %v3968 = vld [vmem:[%s3964 + $0x18] sm:$0xff]
        %v3969 = vld [vmem:[%s3964 + $0x20] sm:$0xff]
        %v3970 = vld [vmem:[%s3964 + $0x28] sm:$0xff]
        %v3971 = vld [vmem:[%s3964 + $0x30] sm:$0xff]
        %v3972 = vld [vmem:[%s3964 + $0x38] sm:$0xff]
        %v3973 = vld [vmem:[%s3964 + $0x40] sm:$0xff]
        %v3974 = vld [vmem:[%s3964 + $0x48] sm:$0xff]
        %v3975 = vld [vmem:[%s3964 + $0x50] sm:$0xff]
        %v3976 = vld [vmem:[%s3964 + $0x58] sm:$0xff]
        %v3977 = vld [vmem:[%s3964 + $0x60] sm:$0xff]
        %v3978 = vld [vmem:[%s3964 + $0x68] sm:$0xff]
        %v3979 = vld [vmem:[%s3964 + $0x70] sm:$0xff]
        %v3980 = vld [vmem:[%s3964 + $0x78] sm:$0xff]
        %v3981 = vld [vmem:[#allocation7 + $0x7] sm:$0x1]
        %v3982 = vlaneseq
        %v3983 = vshrl.u32 %v3982, 7
        %v3984 = vsub.s32 0, %v3983
        %v3985 = vrot.slane %v3981, %v3984
        %3986 = vmatprep.subr.mxu0 0.0
        %3987 = vmatpush1.msra.mxu0 %v3965
        %3988 = vmatprep.subr.mxu0 0.0
        %3989 = vmatpush1.msra.mxu0 %v3966
        %3990 = vmatprep.subr.mxu0 0.0
        %3991 = vmatpush1.msra.mxu0 %v3967
        %3992 = vmatprep.subr.mxu0 0.0
        %3993 = vmatpush1.msra.mxu0 %v3968
        %3994 = vmatprep.subr.mxu0 0.0
        %3995 = vmatpush1.msra.mxu0 %v3969
        %3996 = vmatprep.subr.mxu0 0.0
        %3997 = vmatpush1.msra.mxu0 %v3970
        %3998 = vmatprep.subr.mxu0 0.0
        %3999 = vmatpush1.msra.mxu0 %v3971
        %4000 = vmatprep.subr.mxu0 0.0
        %4001 = vmatpush1.msra.mxu0 %v3972
        %4002 = vmatprep.subr.mxu0 0.0
        %4003 = vmatpush1.msra.mxu0 %v3973
        %4004 = vmatprep.subr.mxu0 0.0
        %4005 = vmatpush1.msra.mxu0 %v3974
        %4006 = vmatprep.subr.mxu0 0.0
        %4007 = vmatpush1.msra.mxu0 %v3975
        %4008 = vmatprep.subr.mxu0 0.0
        %4009 = vmatpush1.msra.mxu0 %v3976
        %4010 = vmatprep.subr.mxu0 0.0
        %4011 = vmatpush1.msra.mxu0 %v3977
        %4012 = vmatprep.subr.mxu0 0.0
        %4013 = vmatpush1.msra.mxu0 %v3978
        %4014 = vmatprep.subr.mxu0 0.0
        %4015 = vmatpush1.msra.mxu0 %v3979
        %4016 = vmatprep.subr.mxu0 0.0
        %4017 = vmatpush1.msra.mxu0 %v3980
        %4018 = vmatprep.subr.mxu0 0.0
        %4019 = vmatpush1.msra.mxu0 0.0
        %4020 = vmatprep.subr.mxu0 0.0
        %4021 = vmatpush1.msra.mxu0 0.0
        %4022 = vmatprep.subr.mxu0 0.0
        %4023 = vmatpush1.msra.mxu0 0.0
        %4024 = vmatprep.subr.mxu0 0.0
        %4025 = vmatpush1.msra.mxu0 0.0
        %4026 = vmatprep.subr.mxu0 0.0
        %4027 = vmatpush1.msra.mxu0 0.0
        %4028 = vmatprep.subr.mxu0 0.0
        %4029 = vmatpush1.msra.mxu0 0.0
        %4030 = vmatprep.subr.mxu0 0.0
        %4031 = vmatpush1.msra.mxu0 0.0
        %4032 = vmatprep.subr.mxu0 0.0
        %4033 = vmatpush1.msra.mxu0 0.0
        %4034 = vmatprep.subr.mxu0 0.0
        %4035 = vmatpush1.msra.mxu0 0.0
        %4036 = vmatprep.subr.mxu0 0.0
        %4037 = vmatpush1.msra.mxu0 0.0
        %4038 = vmatprep.subr.mxu0 0.0
        %4039 = vmatpush1.msra.mxu0 0.0
        %4040 = vmatprep.subr.mxu0 0.0
        %4041 = vmatpush1.msra.mxu0 0.0
        %4042 = vmatprep.subr.mxu0 0.0
        %4043 = vmatpush1.msra.mxu0 0.0
        %4044 = vmatprep.subr.mxu0 0.0
        %4045 = vmatpush1.msra.mxu0 0.0
        %4046 = vmatprep.subr.mxu0 0.0
        %4047 = vmatpush1.msra.mxu0 0.0
        %4048 = vmatprep.subr.mxu0 0.0
        %4049 = vmatpush1.msra.mxu0 0.0
        %4050 = vmatprep.mubr.f32.mxu0 0.0
        %4051 = vmatmul.mubr.f32.gmra.mrb[0].mxu0 %v3900
        %v4052 = vpop.f32.mrb[0].mxu0
        %v4053 = vadd.f32 %v3985, %v4052
        %v4054 = vpop.f32.mrb[0].mxu0
        %4055 = vmatprep.mubr.f32.mxu0 0.0
        %4056 = vmatmul.mubr.f32.gmra.mrb[0].mxu0 %v3901
        %v4057 = vpop.f32.mrb[0].mxu0
        %v4058 = vadd.f32 %v3985, %v4057
        %v4059 = vpop.f32.mrb[0].mxu0
        %4060 = vmatprep.mubr.f32.mxu0 0.0
        %4061 = vmatmul.mubr.f32.gmra.mrb[0].mxu0 %v3902
        %v4062 = vpop.f32.mrb[0].mxu0
        %v4063 = vadd.f32 %v3985, %v4062
        %v4064 = vpop.f32.mrb[0].mxu0
        %4065 = vmatprep.mubr.f32.mxu0 0.0
        %4066 = vmatmul.mubr.f32.gmra.mrb[0].mxu0 %v3903
        %v4067 = vpop.f32.mrb[0].mxu0
        %v4068 = vadd.f32 %v3985, %v4067
        %v4069 = vpop.f32.mrb[0].mxu0
        %4070 = vmatprep.mubr.f32.mxu0 0.0
        %4071 = vmatmul.mubr.f32.gmra.mrb[0].mxu0 %v3904
        %v4072 = vpop.f32.mrb[0].mxu0
        %v4073 = vadd.f32 %v3985, %v4072
        %v4074 = vpop.f32.mrb[0].mxu0
        %4075 = vmatprep.mubr.f32.mxu0 0.0
        %4076 = vmatmul.mubr.f32.gmra.mrb[0].mxu0 %v3905
        %v4077 = vpop.f32.mrb[0].mxu0
        %v4078 = vadd.f32 %v3985, %v4077
        %v4079 = vpop.f32.mrb[0].mxu0
        %4080 = vmatprep.mubr.f32.mxu0 0.0
        %4081 = vmatmul.mubr.f32.gmra.mrb[0].mxu0 %v3906
        %v4082 = vpop.f32.mrb[0].mxu0
        %v4083 = vadd.f32 %v3985, %v4082
        %v4084 = vpop.f32.mrb[0].mxu0
        %4085 = vmatprep.mubr.f32.mxu0 0.0
        %4086 = vmatmul.mubr.f32.gmra.mrb[0].mxu0 %v3907
        %v4087 = vpop.f32.mrb[0].mxu0
        %v4088 = vadd.f32 %v3985, %v4087
        %v4089 = vpop.f32.mrb[0].mxu0
        %4090 = vmatprep.mubr.f32.mxu0 0.0
        %4091 = vmatmul.mubr.f32.gmra.mrb[0].mxu0 %v3908
        %v4092 = vpop.f32.mrb[0].mxu0
        %v4093 = vadd.f32 %v3985, %v4092
        %v4094 = vpop.f32.mrb[0].mxu0
        %4095 = vmatprep.mubr.f32.mxu0 0.0
        %4096 = vmatmul.mubr.f32.gmra.mrb[0].mxu0 %v3909
        %v4097 = vpop.f32.mrb[0].mxu0
        %v4098 = vadd.f32 %v3985, %v4097
        %v4099 = vpop.f32.mrb[0].mxu0
        %4100 = vmatprep.mubr.f32.mxu0 0.0
        %4101 = vmatmul.mubr.f32.gmra.mrb[0].mxu0 %v3910
        %v4102 = vpop.f32.mrb[0].mxu0
        %v4103 = vadd.f32 %v3985, %v4102
        %v4104 = vpop.f32.mrb[0].mxu0
        %4105 = vmatprep.mubr.f32.mxu0 0.0
        %4106 = vmatmul.mubr.f32.gmra.mrb[0].mxu0 %v3911
        %v4107 = vpop.f32.mrb[0].mxu0
        %v4108 = vadd.f32 %v3985, %v4107
        %v4109 = vpop.f32.mrb[0].mxu0
        %4110 = vmatprep.mubr.f32.mxu0 0.0
        %4111 = vmatmul.mubr.f32.gmra.mrb[0].mxu0 %v3912
        %v4112 = vpop.f32.mrb[0].mxu0
        %v4113 = vadd.f32 %v3985, %v4112
        %v4114 = vpop.f32.mrb[0].mxu0
        %4115 = vmatprep.mubr.f32.mxu0 0.0
        %4116 = vmatmul.mubr.f32.gmra.mrb[0].mxu0 %v3913
        %v4117 = vpop.f32.mrb[0].mxu0
        %v4118 = vadd.f32 %v3985, %v4117
        %v4119 = vpop.f32.mrb[0].mxu0
        %4120 = vmatprep.mubr.f32.mxu0 0.0
        %4121 = vmatmul.mubr.f32.gmra.mrb[0].mxu0 %v3914
        %v4122 = vpop.f32.mrb[0].mxu0
        %v4123 = vadd.f32 %v3985, %v4122
        %v4124 = vpop.f32.mrb[0].mxu0
        %4125 = vmatprep.mubr.f32.mxu0 0.0
        %4126 = vmatmul.mubr.f32.gmra.mrb[0].mxu0 %v3915
        %v4127 = vpop.f32.mrb[0].mxu0
        %v4128 = vadd.f32 %v3985, %v4127
        %v4129 = vpop.f32.mrb[0].mxu0
        %4130 = vmatprep.mubr.f32.mxu0 0.0
        %4131 = vmatmul.mubr.f32.gmra.mrb[0].mxu0 %v3916
        %v4132 = vpop.f32.mrb[0].mxu0
        %v4133 = vadd.f32 %v3985, %v4132
        %v4134 = vpop.f32.mrb[0].mxu0
        %4135 = vmatprep.mubr.f32.mxu0 0.0
        %4136 = vmatmul.mubr.f32.gmra.mrb[0].mxu0 %v3917
        %v4137 = vpop.f32.mrb[0].mxu0
        %v4138 = vadd.f32 %v3985, %v4137
        %v4139 = vpop.f32.mrb[0].mxu0
        %4140 = vmatprep.mubr.f32.mxu0 0.0
        %4141 = vmatmul.mubr.f32.gmra.mrb[0].mxu0 %v3918
        %v4142 = vpop.f32.mrb[0].mxu0
        %v4143 = vadd.f32 %v3985, %v4142
        %v4144 = vpop.f32.mrb[0].mxu0
        %4145 = vmatprep.mubr.f32.mxu0 0.0
        %4146 = vmatmul.mubr.f32.gmra.mrb[0].mxu0 %v3919
        %v4147 = vpop.f32.mrb[0].mxu0
        %v4148 = vadd.f32 %v3985, %v4147
        %v4149 = vpop.f32.mrb[0].mxu0
        %4150 = vmatprep.mubr.f32.mxu0 0.0
        %4151 = vmatmul.mubr.f32.gmra.mrb[0].mxu0 %v3920
        %v4152 = vpop.f32.mrb[0].mxu0
        %v4153 = vadd.f32 %v3985, %v4152
        %v4154 = vpop.f32.mrb[0].mxu0
        %4155 = vmatprep.mubr.f32.mxu0 0.0
        %4156 = vmatmul.mubr.f32.gmra.mrb[0].mxu0 %v3921
        %v4157 = vpop.f32.mrb[0].mxu0
        %v4158 = vadd.f32 %v3985, %v4157
        %v4159 = vpop.f32.mrb[0].mxu0
        %4160 = vmatprep.mubr.f32.mxu0 0.0
        %4161 = vmatmul.mubr.f32.gmra.mrb[0].mxu0 %v3922
        %v4162 = vpop.f32.mrb[0].mxu0
        %v4163 = vadd.f32 %v3985, %v4162
        %v4164 = vpop.f32.mrb[0].mxu0
        %4165 = vmatprep.mubr.f32.mxu0 0.0
        %4166 = vmatmul.mubr.f32.gmra.mrb[0].mxu0 %v3923
        %v4167 = vpop.f32.mrb[0].mxu0
        %v4168 = vadd.f32 %v3985, %v4167
        %v4169 = vpop.f32.mrb[0].mxu0
        %4170 = vmatprep.mubr.f32.mxu0 0.0
        %4171 = vmatmul.mubr.f32.gmra.mrb[0].mxu0 %v3924
        %v4172 = vpop.f32.mrb[0].mxu0
        %v4173 = vadd.f32 %v3985, %v4172
        %v4174 = vpop.f32.mrb[0].mxu0
        %4175 = vmatprep.mubr.f32.mxu0 0.0
        %4176 = vmatmul.mubr.f32.gmra.mrb[0].mxu0 %v3925
        %v4177 = vpop.f32.mrb[0].mxu0
        %v4178 = vadd.f32 %v3985, %v4177
        %v4179 = vpop.f32.mrb[0].mxu0
        %4180 = vmatprep.mubr.f32.mxu0 0.0
        %4181 = vmatmul.mubr.f32.gmra.mrb[0].mxu0 %v3926
        %v4182 = vpop.f32.mrb[0].mxu0
        %v4183 = vadd.f32 %v3985, %v4182
        %v4184 = vpop.f32.mrb[0].mxu0
        %4185 = vmatprep.mubr.f32.mxu0 0.0
        %4186 = vmatmul.mubr.f32.gmra.mrb[0].mxu0 %v3927
        %v4187 = vpop.f32.mrb[0].mxu0
        %v4188 = vadd.f32 %v3985, %v4187
        %v4189 = vpop.f32.mrb[0].mxu0
        %4190 = vmatprep.mubr.f32.mxu0 0.0
        %4191 = vmatmul.mubr.f32.gmra.mrb[0].mxu0 %v3928
        %v4192 = vpop.f32.mrb[0].mxu0
        %v4193 = vadd.f32 %v3985, %v4192
        %v4194 = vpop.f32.mrb[0].mxu0
        %4195 = vmatprep.mubr.f32.mxu0 0.0
        %4196 = vmatmul.mubr.f32.gmra.mrb[0].mxu0 %v3929
        %v4197 = vpop.f32.mrb[0].mxu0
        %v4198 = vadd.f32 %v3985, %v4197
        %v4199 = vpop.f32.mrb[0].mxu0
        %4200 = vmatprep.mubr.f32.mxu0 0.0
        %4201 = vmatmul.mubr.f32.gmra.mrb[0].mxu0 %v3930
        %v4202 = vpop.f32.mrb[0].mxu0
        %v4203 = vadd.f32 %v3985, %v4202
        %v4204 = vpop.f32.mrb[0].mxu0
        %4205 = vmatprep.mubr.f32.mxu0 0.0
        %4206 = vmatmul.mubr.f32.gmra.mrb[0].mxu0 %v3931
        %v4207 = vpop.f32.mrb[0].mxu0
        %v4208 = vadd.f32 %v3985, %v4207
        %v4209 = vpop.f32.mrb[0].mxu0
        %4210 = vmatprep.mubr.f32.mxu0 0.0
        %4211 = vmatmul.mubr.f32.gmra.mrb[0].mxu0 %v3932
        %v4212 = vpop.f32.mrb[0].mxu0
        %v4213 = vadd.f32 %v3985, %v4212
        %v4214 = vpop.f32.mrb[0].mxu0
        %4215 = vmatprep.mubr.f32.mxu0 0.0
        %4216 = vmatmul.mubr.f32.gmra.mrb[0].mxu0 %v3933
        %v4217 = vpop.f32.mrb[0].mxu0
        %v4218 = vadd.f32 %v3985, %v4217
        %v4219 = vpop.f32.mrb[0].mxu0
        %4220 = vmatprep.mubr.f32.mxu0 0.0
        %4221 = vmatmul.mubr.f32.gmra.mrb[0].mxu0 %v3934
        %v4222 = vpop.f32.mrb[0].mxu0
        %v4223 = vadd.f32 %v3985, %v4222
        %v4224 = vpop.f32.mrb[0].mxu0
        %4225 = vmatprep.mubr.f32.mxu0 0.0
        %4226 = vmatmul.mubr.f32.gmra.mrb[0].mxu0 %v3935
        %v4227 = vpop.f32.mrb[0].mxu0
        %v4228 = vadd.f32 %v3985, %v4227
        %v4229 = vpop.f32.mrb[0].mxu0
        %4230 = vmatprep.mubr.f32.mxu0 0.0
        %4231 = vmatmul.mubr.f32.gmra.mrb[0].mxu0 %v3936
        %v4232 = vpop.f32.mrb[0].mxu0
        %v4233 = vadd.f32 %v3985, %v4232
        %v4234 = vpop.f32.mrb[0].mxu0
        %4235 = vmatprep.mubr.f32.mxu0 0.0
        %4236 = vmatmul.mubr.f32.gmra.mrb[0].mxu0 %v3937
        %v4237 = vpop.f32.mrb[0].mxu0
        %v4238 = vadd.f32 %v3985, %v4237
        %v4239 = vpop.f32.mrb[0].mxu0
        %4240 = vmatprep.mubr.f32.mxu0 0.0
        %4241 = vmatmul.mubr.f32.gmra.mrb[0].mxu0 %v3938
        %v4242 = vpop.f32.mrb[0].mxu0
        %v4243 = vadd.f32 %v3985, %v4242
        %v4244 = vpop.f32.mrb[0].mxu0
        %4245 = vmatprep.mubr.f32.mxu0 0.0
        %4246 = vmatmul.mubr.f32.gmra.mrb[0].mxu0 %v3939
        %v4247 = vpop.f32.mrb[0].mxu0
        %v4248 = vadd.f32 %v3985, %v4247
        %v4249 = vpop.f32.mrb[0].mxu0
        %4250 = vmatprep.mubr.f32.mxu0 0.0
        %4251 = vmatmul.mubr.f32.gmra.mrb[0].mxu0 %v3940
        %v4252 = vpop.f32.mrb[0].mxu0
        %v4253 = vadd.f32 %v3985, %v4252
        %v4254 = vpop.f32.mrb[0].mxu0
        %4255 = vmatprep.mubr.f32.mxu0 0.0
        %4256 = vmatmul.mubr.f32.gmra.mrb[0].mxu0 %v3941
        %v4257 = vpop.f32.mrb[0].mxu0
        %v4258 = vadd.f32 %v3985, %v4257
        %v4259 = vpop.f32.mrb[0].mxu0
        %4260 = vmatprep.mubr.f32.mxu0 0.0
        %4261 = vmatmul.mubr.f32.gmra.mrb[0].mxu0 %v3942
        %v4262 = vpop.f32.mrb[0].mxu0
        %v4263 = vadd.f32 %v3985, %v4262
        %v4264 = vpop.f32.mrb[0].mxu0
        %4265 = vmatprep.mubr.f32.mxu0 0.0
        %4266 = vmatmul.mubr.f32.gmra.mrb[0].mxu0 %v3943
        %v4267 = vpop.f32.mrb[0].mxu0
        %v4268 = vadd.f32 %v3985, %v4267
        %v4269 = vpop.f32.mrb[0].mxu0
        %4270 = vmatprep.mubr.f32.mxu0 0.0
        %4271 = vmatmul.mubr.f32.gmra.mrb[0].mxu0 %v3944
        %v4272 = vpop.f32.mrb[0].mxu0
        %v4273 = vadd.f32 %v3985, %v4272
        %v4274 = vpop.f32.mrb[0].mxu0
        %4275 = vmatprep.mubr.f32.mxu0 0.0
        %4276 = vmatmul.mubr.f32.gmra.mrb[0].mxu0 %v3945
        %v4277 = vpop.f32.mrb[0].mxu0
        %v4278 = vadd.f32 %v3985, %v4277
        %v4279 = vpop.f32.mrb[0].mxu0
        %4280 = vmatprep.mubr.f32.mxu0 0.0
        %4281 = vmatmul.mubr.f32.gmra.mrb[0].mxu0 %v3946
        %v4282 = vpop.f32.mrb[0].mxu0
        %v4283 = vadd.f32 %v3985, %v4282
        %v4284 = vpop.f32.mrb[0].mxu0
        %4285 = vmatprep.mubr.f32.mxu0 0.0
        %4286 = vmatmul.mubr.f32.gmra.mrb[0].mxu0 %v3947
        %v4287 = vpop.f32.mrb[0].mxu0
        %v4288 = vadd.f32 %v3985, %v4287
        %v4289 = vpop.f32.mrb[0].mxu0
        %4290 = vmatprep.mubr.f32.mxu0 0.0
        %4291 = vmatmul.mubr.f32.gmra.mrb[0].mxu0 %v3948
        %v4292 = vpop.f32.mrb[0].mxu0
        %v4293 = vadd.f32 %v3985, %v4292
        %v4294 = vpop.f32.mrb[0].mxu0
        %4295 = vmatprep.mubr.f32.mxu0 0.0
        %4296 = vmatmul.mubr.f32.gmra.mrb[0].mxu0 %v3949
        %v4297 = vpop.f32.mrb[0].mxu0
        %v4298 = vadd.f32 %v3985, %v4297
        %v4299 = vpop.f32.mrb[0].mxu0
        %4300 = vmatprep.mubr.f32.mxu0 0.0
        %4301 = vmatmul.mubr.f32.gmra.mrb[0].mxu0 %v3950
        %v4302 = vpop.f32.mrb[0].mxu0
        %v4303 = vadd.f32 %v3985, %v4302
        %v4304 = vpop.f32.mrb[0].mxu0
        %4305 = vmatprep.mubr.f32.mxu0 0.0
        %4306 = vmatmul.mubr.f32.gmra.mrb[0].mxu0 %v3951
        %v4307 = vpop.f32.mrb[0].mxu0
        %v4308 = vadd.f32 %v3985, %v4307
        %v4309 = vpop.f32.mrb[0].mxu0
        %4310 = vmatprep.mubr.f32.mxu0 0.0
        %4311 = vmatmul.mubr.f32.gmra.mrb[0].mxu0 %v3952
        %v4312 = vpop.f32.mrb[0].mxu0
        %v4313 = vadd.f32 %v3985, %v4312
        %v4314 = vpop.f32.mrb[0].mxu0
        %4315 = vmatprep.mubr.f32.mxu0 0.0
        %4316 = vmatmul.mubr.f32.gmra.mrb[0].mxu0 %v3953
        %v4317 = vpop.f32.mrb[0].mxu0
        %v4318 = vadd.f32 %v3985, %v4317
        %v4319 = vpop.f32.mrb[0].mxu0
        %4320 = vmatprep.mubr.f32.mxu0 0.0
        %4321 = vmatmul.mubr.f32.gmra.mrb[0].mxu0 %v3954
        %v4322 = vpop.f32.mrb[0].mxu0
        %v4323 = vadd.f32 %v3985, %v4322
        %v4324 = vpop.f32.mrb[0].mxu0
        %4325 = vmatprep.mubr.f32.mxu0 0.0
        %4326 = vmatmul.mubr.f32.gmra.mrb[0].mxu0 %v3955
        %v4327 = vpop.f32.mrb[0].mxu0
        %v4328 = vadd.f32 %v3985, %v4327
        %v4329 = vpop.f32.mrb[0].mxu0
        %4330 = vmatprep.mubr.f32.mxu0 0.0
        %4331 = vmatmul.mubr.f32.gmra.mrb[0].mxu0 %v3956
        %v4332 = vpop.f32.mrb[0].mxu0
        %v4333 = vadd.f32 %v3985, %v4332
        %v4334 = vpop.f32.mrb[0].mxu0
        %4335 = vmatprep.mubr.f32.mxu0 0.0
        %4336 = vmatmul.mubr.f32.gmra.mrb[0].mxu0 %v3957
        %v4337 = vpop.f32.mrb[0].mxu0
        %v4338 = vadd.f32 %v3985, %v4337
        %v4339 = vpop.f32.mrb[0].mxu0
        %4340 = vmatprep.mubr.f32.mxu0 0.0
        %4341 = vmatmul.mubr.f32.gmra.mrb[0].mxu0 %v3958
        %v4342 = vpop.f32.mrb[0].mxu0
        %v4343 = vadd.f32 %v3985, %v4342
        %v4344 = vpop.f32.mrb[0].mxu0
        %4345 = vmatprep.mubr.f32.mxu0 0.0
        %4346 = vmatmul.mubr.f32.gmra.mrb[0].mxu0 %v3959
        %v4347 = vpop.f32.mrb[0].mxu0
        %v4348 = vadd.f32 %v3985, %v4347
        %v4349 = vpop.f32.mrb[0].mxu0
        %4350 = vmatprep.mubr.f32.mxu0 0.0
        %4351 = vmatmul.mubr.f32.gmra.mrb[0].mxu0 %v3960
        %v4352 = vpop.f32.mrb[0].mxu0
        %v4353 = vadd.f32 %v3985, %v4352
        %v4354 = vpop.f32.mrb[0].mxu0
        %4355 = vmatprep.mubr.f32.mxu0 0.0
        %4356 = vmatmul.mubr.f32.gmra.mrb[0].mxu0 %v3961
        %v4357 = vpop.f32.mrb[0].mxu0
        %v4358 = vadd.f32 %v3985, %v4357
        %v4359 = vpop.f32.mrb[0].mxu0
        %4360 = vmatprep.mubr.f32.mxu0 0.0
        %4361 = vmatmul.mubr.f32.gmra.mrb[0].mxu0 %v3962
        %v4362 = vpop.f32.mrb[0].mxu0
        %v4363 = vadd.f32 %v3985, %v4362
        %v4364 = vpop.f32.mrb[0].mxu0
        %4365 = vmatprep.mubr.f32.mxu0 0.0
        %4366 = vmatmul.mubr.f32.gmra.mrb[0].mxu0 %v3963
        %v4367 = vpop.f32.mrb[0].mxu0
        %v4368 = vadd.f32 %v3985, %v4367
        %v4369 = vpop.f32.mrb[0].mxu0
        %4370 = vdwg.mxu0
        %v4371 = vmax.f32 %v4053, 0.0
        %v4372 = vmax.f32 %v4058, 0.0
        %v4373 = vmax.f32 %v4063, 0.0
        %v4374 = vmax.f32 %v4068, 0.0
        %v4375 = vmax.f32 %v4073, 0.0
        %v4376 = vmax.f32 %v4078, 0.0
        %v4377 = vmax.f32 %v4083, 0.0
        %v4378 = vmax.f32 %v4088, 0.0
        %v4379 = vmax.f32 %v4093, 0.0
        %v4380 = vmax.f32 %v4098, 0.0
        %v4381 = vmax.f32 %v4103, 0.0
        %v4382 = vmax.f32 %v4108, 0.0
        %v4383 = vmax.f32 %v4113, 0.0
        %v4384 = vmax.f32 %v4118, 0.0
        %v4385 = vmax.f32 %v4123, 0.0
        %v4386 = vmax.f32 %v4128, 0.0
        %v4387 = vmax.f32 %v4133, 0.0
        %v4388 = vmax.f32 %v4138, 0.0
        %v4389 = vmax.f32 %v4143, 0.0
        %v4390 = vmax.f32 %v4148, 0.0
        %v4391 = vmax.f32 %v4153, 0.0
        %v4392 = vmax.f32 %v4158, 0.0
        %v4393 = vmax.f32 %v4163, 0.0
        %v4394 = vmax.f32 %v4168, 0.0
        %v4395 = vmax.f32 %v4173, 0.0
        %v4396 = vmax.f32 %v4178, 0.0
        %v4397 = vmax.f32 %v4183, 0.0
        %v4398 = vmax.f32 %v4188, 0.0
        %v4399 = vmax.f32 %v4193, 0.0
        %v4400 = vmax.f32 %v4198, 0.0
        %v4401 = vmax.f32 %v4203, 0.0
        %v4402 = vmax.f32 %v4208, 0.0
        %v4403 = vmax.f32 %v4213, 0.0
        %v4404 = vmax.f32 %v4218, 0.0
        %v4405 = vmax.f32 %v4223, 0.0
        %v4406 = vmax.f32 %v4228, 0.0
        %v4407 = vmax.f32 %v4233, 0.0
        %v4408 = vmax.f32 %v4238, 0.0
        %v4409 = vmax.f32 %v4243, 0.0
        %v4410 = vmax.f32 %v4248, 0.0
        %v4411 = vmax.f32 %v4253, 0.0
        %v4412 = vmax.f32 %v4258, 0.0
        %v4413 = vmax.f32 %v4263, 0.0
        %v4414 = vmax.f32 %v4268, 0.0
        %v4415 = vmax.f32 %v4273, 0.0
        %v4416 = vmax.f32 %v4278, 0.0
        %v4417 = vmax.f32 %v4283, 0.0
        %v4418 = vmax.f32 %v4288, 0.0
        %v4419 = vmax.f32 %v4293, 0.0
        %v4420 = vmax.f32 %v4298, 0.0
        %v4421 = vmax.f32 %v4303, 0.0
        %v4422 = vmax.f32 %v4308, 0.0
        %v4423 = vmax.f32 %v4313, 0.0
        %v4424 = vmax.f32 %v4318, 0.0
        %v4425 = vmax.f32 %v4323, 0.0
        %v4426 = vmax.f32 %v4328, 0.0
        %v4427 = vmax.f32 %v4333, 0.0
        %v4428 = vmax.f32 %v4338, 0.0
        %v4429 = vmax.f32 %v4343, 0.0
        %v4430 = vmax.f32 %v4348, 0.0
        %v4431 = vmax.f32 %v4353, 0.0
        %v4432 = vmax.f32 %v4358, 0.0
        %v4433 = vmax.f32 %v4363, 0.0
        %v4434 = vmax.f32 %v4368, 0.0
        %s4435 = scalar_lea.vmem [#allocation5], 1024
        %v4436 = vld [vmem:[%s4435] sm:$0xff]
        %v4437 = vld [vmem:[%s4435 + $0x8] sm:$0xff]
        %v4438 = vld [vmem:[%s4435 + $0x10] sm:$0xff]
        %v4439 = vld [vmem:[%s4435 + $0x18] sm:$0xff]
        %v4440 = vld [vmem:[%s4435 + $0x20] sm:$0xff]
        %v4441 = vld [vmem:[%s4435 + $0x28] sm:$0xff]
        %v4442 = vld [vmem:[%s4435 + $0x30] sm:$0xff]
        %v4443 = vld [vmem:[%s4435 + $0x38] sm:$0xff]
        %v4444 = vld [vmem:[%s4435 + $0x40] sm:$0xff]
        %v4445 = vld [vmem:[%s4435 + $0x48] sm:$0xff]
        %v4446 = vld [vmem:[%s4435 + $0x50] sm:$0xff]
        %v4447 = vld [vmem:[%s4435 + $0x58] sm:$0xff]
        %v4448 = vld [vmem:[%s4435 + $0x60] sm:$0xff]
        %v4449 = vld [vmem:[%s4435 + $0x68] sm:$0xff]
        %v4450 = vld [vmem:[%s4435 + $0x70] sm:$0xff]
        %v4451 = vld [vmem:[%s4435 + $0x78] sm:$0xff]
        %v4452 = vld [vmem:[#allocation7 + $0x8] sm:$0x1]
        %v4453 = vlaneseq
        %v4454 = vshrl.u32 %v4453, 7
        %v4455 = vsub.s32 0, %v4454
        %v4456 = vrot.slane %v4452, %v4455
        %4457 = vmatprep.subr.mxu0 0.0
        %4458 = vmatpush1.msra.mxu0 %v4436
        %4459 = vmatprep.subr.mxu0 0.0
        %4460 = vmatpush1.msra.mxu0 %v4437
        %4461 = vmatprep.subr.mxu0 0.0
        %4462 = vmatpush1.msra.mxu0 %v4438
        %4463 = vmatprep.subr.mxu0 0.0
        %4464 = vmatpush1.msra.mxu0 %v4439
        %4465 = vmatprep.subr.mxu0 0.0
        %4466 = vmatpush1.msra.mxu0 %v4440
        %4467 = vmatprep.subr.mxu0 0.0
        %4468 = vmatpush1.msra.mxu0 %v4441
        %4469 = vmatprep.subr.mxu0 0.0
        %4470 = vmatpush1.msra.mxu0 %v4442
        %4471 = vmatprep.subr.mxu0 0.0
        %4472 = vmatpush1.msra.mxu0 %v4443
        %4473 = vmatprep.subr.mxu0 0.0
        %4474 = vmatpush1.msra.mxu0 %v4444
        %4475 = vmatprep.subr.mxu0 0.0
        %4476 = vmatpush1.msra.mxu0 %v4445
        %4477 = vmatprep.subr.mxu0 0.0
        %4478 = vmatpush1.msra.mxu0 %v4446
        %4479 = vmatprep.subr.mxu0 0.0
        %4480 = vmatpush1.msra.mxu0 %v4447
        %4481 = vmatprep.subr.mxu0 0.0
        %4482 = vmatpush1.msra.mxu0 %v4448
        %4483 = vmatprep.subr.mxu0 0.0
        %4484 = vmatpush1.msra.mxu0 %v4449
        %4485 = vmatprep.subr.mxu0 0.0
        %4486 = vmatpush1.msra.mxu0 %v4450
        %4487 = vmatprep.subr.mxu0 0.0
        %4488 = vmatpush1.msra.mxu0 %v4451
        %4489 = vmatprep.subr.mxu0 0.0
        %4490 = vmatpush1.msra.mxu0 0.0
        %4491 = vmatprep.subr.mxu0 0.0
        %4492 = vmatpush1.msra.mxu0 0.0
        %4493 = vmatprep.subr.mxu0 0.0
        %4494 = vmatpush1.msra.mxu0 0.0
        %4495 = vmatprep.subr.mxu0 0.0
        %4496 = vmatpush1.msra.mxu0 0.0
        %4497 = vmatprep.subr.mxu0 0.0
        %4498 = vmatpush1.msra.mxu0 0.0
        %4499 = vmatprep.subr.mxu0 0.0
        %4500 = vmatpush1.msra.mxu0 0.0
        %4501 = vmatprep.subr.mxu0 0.0
        %4502 = vmatpush1.msra.mxu0 0.0
        %4503 = vmatprep.subr.mxu0 0.0
        %4504 = vmatpush1.msra.mxu0 0.0
        %4505 = vmatprep.subr.mxu0 0.0
        %4506 = vmatpush1.msra.mxu0 0.0
        %4507 = vmatprep.subr.mxu0 0.0
        %4508 = vmatpush1.msra.mxu0 0.0
        %4509 = vmatprep.subr.mxu0 0.0
        %4510 = vmatpush1.msra.mxu0 0.0
        %4511 = vmatprep.subr.mxu0 0.0
        %4512 = vmatpush1.msra.mxu0 0.0
        %4513 = vmatprep.subr.mxu0 0.0
        %4514 = vmatpush1.msra.mxu0 0.0
        %4515 = vmatprep.subr.mxu0 0.0
        %4516 = vmatpush1.msra.mxu0 0.0
        %4517 = vmatprep.subr.mxu0 0.0
        %4518 = vmatpush1.msra.mxu0 0.0
        %4519 = vmatprep.subr.mxu0 0.0
        %4520 = vmatpush1.msra.mxu0 0.0
        %4521 = vmatprep.mubr.f32.mxu0 0.0
        %4522 = vmatmul.mubr.f32.gmra.mrb[0].mxu0 %v4371
        %v4523 = vpop.f32.mrb[0].mxu0
        %v4524 = vadd.f32 %v4456, %v4523
        %v4525 = vpop.f32.mrb[0].mxu0
        %4526 = vmatprep.mubr.f32.mxu0 0.0
        %4527 = vmatmul.mubr.f32.gmra.mrb[0].mxu0 %v4372
        %v4528 = vpop.f32.mrb[0].mxu0
        %v4529 = vadd.f32 %v4456, %v4528
        %v4530 = vpop.f32.mrb[0].mxu0
        %4531 = vmatprep.mubr.f32.mxu0 0.0
        %4532 = vmatmul.mubr.f32.gmra.mrb[0].mxu0 %v4373
        %v4533 = vpop.f32.mrb[0].mxu0
        %v4534 = vadd.f32 %v4456, %v4533
        %v4535 = vpop.f32.mrb[0].mxu0
        %4536 = vmatprep.mubr.f32.mxu0 0.0
        %4537 = vmatmul.mubr.f32.gmra.mrb[0].mxu0 %v4374
        %v4538 = vpop.f32.mrb[0].mxu0
        %v4539 = vadd.f32 %v4456, %v4538
        %v4540 = vpop.f32.mrb[0].mxu0
        %4541 = vmatprep.mubr.f32.mxu0 0.0
        %4542 = vmatmul.mubr.f32.gmra.mrb[0].mxu0 %v4375
        %v4543 = vpop.f32.mrb[0].mxu0
        %v4544 = vadd.f32 %v4456, %v4543
        %v4545 = vpop.f32.mrb[0].mxu0
        %4546 = vmatprep.mubr.f32.mxu0 0.0
        %4547 = vmatmul.mubr.f32.gmra.mrb[0].mxu0 %v4376
        %v4548 = vpop.f32.mrb[0].mxu0
        %v4549 = vadd.f32 %v4456, %v4548
        %v4550 = vpop.f32.mrb[0].mxu0
        %4551 = vmatprep.mubr.f32.mxu0 0.0
        %4552 = vmatmul.mubr.f32.gmra.mrb[0].mxu0 %v4377
        %v4553 = vpop.f32.mrb[0].mxu0
        %v4554 = vadd.f32 %v4456, %v4553
        %v4555 = vpop.f32.mrb[0].mxu0
        %4556 = vmatprep.mubr.f32.mxu0 0.0
        %4557 = vmatmul.mubr.f32.gmra.mrb[0].mxu0 %v4378
        %v4558 = vpop.f32.mrb[0].mxu0
        %v4559 = vadd.f32 %v4456, %v4558
        %v4560 = vpop.f32.mrb[0].mxu0
        %4561 = vmatprep.mubr.f32.mxu0 0.0
        %4562 = vmatmul.mubr.f32.gmra.mrb[0].mxu0 %v4379
        %v4563 = vpop.f32.mrb[0].mxu0
        %v4564 = vadd.f32 %v4456, %v4563
        %v4565 = vpop.f32.mrb[0].mxu0
        %4566 = vmatprep.mubr.f32.mxu0 0.0
        %4567 = vmatmul.mubr.f32.gmra.mrb[0].mxu0 %v4380
        %v4568 = vpop.f32.mrb[0].mxu0
        %v4569 = vadd.f32 %v4456, %v4568
        %v4570 = vpop.f32.mrb[0].mxu0
        %4571 = vmatprep.mubr.f32.mxu0 0.0
        %4572 = vmatmul.mubr.f32.gmra.mrb[0].mxu0 %v4381
        %v4573 = vpop.f32.mrb[0].mxu0
        %v4574 = vadd.f32 %v4456, %v4573
        %v4575 = vpop.f32.mrb[0].mxu0
        %4576 = vmatprep.mubr.f32.mxu0 0.0
        %4577 = vmatmul.mubr.f32.gmra.mrb[0].mxu0 %v4382
        %v4578 = vpop.f32.mrb[0].mxu0
        %v4579 = vadd.f32 %v4456, %v4578
        %v4580 = vpop.f32.mrb[0].mxu0
        %4581 = vmatprep.mubr.f32.mxu0 0.0
        %4582 = vmatmul.mubr.f32.gmra.mrb[0].mxu0 %v4383
        %v4583 = vpop.f32.mrb[0].mxu0
        %v4584 = vadd.f32 %v4456, %v4583
        %v4585 = vpop.f32.mrb[0].mxu0
        %4586 = vmatprep.mubr.f32.mxu0 0.0
        %4587 = vmatmul.mubr.f32.gmra.mrb[0].mxu0 %v4384
        %v4588 = vpop.f32.mrb[0].mxu0
        %v4589 = vadd.f32 %v4456, %v4588
        %v4590 = vpop.f32.mrb[0].mxu0
        %4591 = vmatprep.mubr.f32.mxu0 0.0
        %4592 = vmatmul.mubr.f32.gmra.mrb[0].mxu0 %v4385
        %v4593 = vpop.f32.mrb[0].mxu0
        %v4594 = vadd.f32 %v4456, %v4593
        %v4595 = vpop.f32.mrb[0].mxu0
        %4596 = vmatprep.mubr.f32.mxu0 0.0
        %4597 = vmatmul.mubr.f32.gmra.mrb[0].mxu0 %v4386
        %v4598 = vpop.f32.mrb[0].mxu0
        %v4599 = vadd.f32 %v4456, %v4598
        %v4600 = vpop.f32.mrb[0].mxu0
        %4601 = vmatprep.mubr.f32.mxu0 0.0
        %4602 = vmatmul.mubr.f32.gmra.mrb[0].mxu0 %v4387
        %v4603 = vpop.f32.mrb[0].mxu0
        %v4604 = vadd.f32 %v4456, %v4603
        %v4605 = vpop.f32.mrb[0].mxu0
        %4606 = vmatprep.mubr.f32.mxu0 0.0
        %4607 = vmatmul.mubr.f32.gmra.mrb[0].mxu0 %v4388
        %v4608 = vpop.f32.mrb[0].mxu0
        %v4609 = vadd.f32 %v4456, %v4608
        %v4610 = vpop.f32.mrb[0].mxu0
        %4611 = vmatprep.mubr.f32.mxu0 0.0
        %4612 = vmatmul.mubr.f32.gmra.mrb[0].mxu0 %v4389
        %v4613 = vpop.f32.mrb[0].mxu0
        %v4614 = vadd.f32 %v4456, %v4613
        %v4615 = vpop.f32.mrb[0].mxu0
        %4616 = vmatprep.mubr.f32.mxu0 0.0
        %4617 = vmatmul.mubr.f32.gmra.mrb[0].mxu0 %v4390
        %v4618 = vpop.f32.mrb[0].mxu0
        %v4619 = vadd.f32 %v4456, %v4618
        %v4620 = vpop.f32.mrb[0].mxu0
        %4621 = vmatprep.mubr.f32.mxu0 0.0
        %4622 = vmatmul.mubr.f32.gmra.mrb[0].mxu0 %v4391
        %v4623 = vpop.f32.mrb[0].mxu0
        %v4624 = vadd.f32 %v4456, %v4623
        %v4625 = vpop.f32.mrb[0].mxu0
        %4626 = vmatprep.mubr.f32.mxu0 0.0
        %4627 = vmatmul.mubr.f32.gmra.mrb[0].mxu0 %v4392
        %v4628 = vpop.f32.mrb[0].mxu0
        %v4629 = vadd.f32 %v4456, %v4628
        %v4630 = vpop.f32.mrb[0].mxu0
        %4631 = vmatprep.mubr.f32.mxu0 0.0
        %4632 = vmatmul.mubr.f32.gmra.mrb[0].mxu0 %v4393
        %v4633 = vpop.f32.mrb[0].mxu0
        %v4634 = vadd.f32 %v4456, %v4633
        %v4635 = vpop.f32.mrb[0].mxu0
        %4636 = vmatprep.mubr.f32.mxu0 0.0
        %4637 = vmatmul.mubr.f32.gmra.mrb[0].mxu0 %v4394
        %v4638 = vpop.f32.mrb[0].mxu0
        %v4639 = vadd.f32 %v4456, %v4638
        %v4640 = vpop.f32.mrb[0].mxu0
        %4641 = vmatprep.mubr.f32.mxu0 0.0
        %4642 = vmatmul.mubr.f32.gmra.mrb[0].mxu0 %v4395
        %v4643 = vpop.f32.mrb[0].mxu0
        %v4644 = vadd.f32 %v4456, %v4643
        %v4645 = vpop.f32.mrb[0].mxu0
        %4646 = vmatprep.mubr.f32.mxu0 0.0
        %4647 = vmatmul.mubr.f32.gmra.mrb[0].mxu0 %v4396
        %v4648 = vpop.f32.mrb[0].mxu0
        %v4649 = vadd.f32 %v4456, %v4648
        %v4650 = vpop.f32.mrb[0].mxu0
        %4651 = vmatprep.mubr.f32.mxu0 0.0
        %4652 = vmatmul.mubr.f32.gmra.mrb[0].mxu0 %v4397
        %v4653 = vpop.f32.mrb[0].mxu0
        %v4654 = vadd.f32 %v4456, %v4653
        %v4655 = vpop.f32.mrb[0].mxu0
        %4656 = vmatprep.mubr.f32.mxu0 0.0
        %4657 = vmatmul.mubr.f32.gmra.mrb[0].mxu0 %v4398
        %v4658 = vpop.f32.mrb[0].mxu0
        %v4659 = vadd.f32 %v4456, %v4658
        %v4660 = vpop.f32.mrb[0].mxu0
        %4661 = vmatprep.mubr.f32.mxu0 0.0
        %4662 = vmatmul.mubr.f32.gmra.mrb[0].mxu0 %v4399
        %v4663 = vpop.f32.mrb[0].mxu0
        %v4664 = vadd.f32 %v4456, %v4663
        %v4665 = vpop.f32.mrb[0].mxu0
        %4666 = vmatprep.mubr.f32.mxu0 0.0
        %4667 = vmatmul.mubr.f32.gmra.mrb[0].mxu0 %v4400
        %v4668 = vpop.f32.mrb[0].mxu0
        %v4669 = vadd.f32 %v4456, %v4668
        %v4670 = vpop.f32.mrb[0].mxu0
        %4671 = vmatprep.mubr.f32.mxu0 0.0
        %4672 = vmatmul.mubr.f32.gmra.mrb[0].mxu0 %v4401
        %v4673 = vpop.f32.mrb[0].mxu0
        %v4674 = vadd.f32 %v4456, %v4673
        %v4675 = vpop.f32.mrb[0].mxu0
        %4676 = vmatprep.mubr.f32.mxu0 0.0
        %4677 = vmatmul.mubr.f32.gmra.mrb[0].mxu0 %v4402
        %v4678 = vpop.f32.mrb[0].mxu0
        %v4679 = vadd.f32 %v4456, %v4678
        %v4680 = vpop.f32.mrb[0].mxu0
        %4681 = vmatprep.mubr.f32.mxu0 0.0
        %4682 = vmatmul.mubr.f32.gmra.mrb[0].mxu0 %v4403
        %v4683 = vpop.f32.mrb[0].mxu0
        %v4684 = vadd.f32 %v4456, %v4683
        %v4685 = vpop.f32.mrb[0].mxu0
        %4686 = vmatprep.mubr.f32.mxu0 0.0
        %4687 = vmatmul.mubr.f32.gmra.mrb[0].mxu0 %v4404
        %v4688 = vpop.f32.mrb[0].mxu0
        %v4689 = vadd.f32 %v4456, %v4688
        %v4690 = vpop.f32.mrb[0].mxu0
        %4691 = vmatprep.mubr.f32.mxu0 0.0
        %4692 = vmatmul.mubr.f32.gmra.mrb[0].mxu0 %v4405
        %v4693 = vpop.f32.mrb[0].mxu0
        %v4694 = vadd.f32 %v4456, %v4693
        %v4695 = vpop.f32.mrb[0].mxu0
        %4696 = vmatprep.mubr.f32.mxu0 0.0
        %4697 = vmatmul.mubr.f32.gmra.mrb[0].mxu0 %v4406
        %v4698 = vpop.f32.mrb[0].mxu0
        %v4699 = vadd.f32 %v4456, %v4698
        %v4700 = vpop.f32.mrb[0].mxu0
        %4701 = vmatprep.mubr.f32.mxu0 0.0
        %4702 = vmatmul.mubr.f32.gmra.mrb[0].mxu0 %v4407
        %v4703 = vpop.f32.mrb[0].mxu0
        %v4704 = vadd.f32 %v4456, %v4703
        %v4705 = vpop.f32.mrb[0].mxu0
        %4706 = vmatprep.mubr.f32.mxu0 0.0
        %4707 = vmatmul.mubr.f32.gmra.mrb[0].mxu0 %v4408
        %v4708 = vpop.f32.mrb[0].mxu0
        %v4709 = vadd.f32 %v4456, %v4708
        %v4710 = vpop.f32.mrb[0].mxu0
        %4711 = vmatprep.mubr.f32.mxu0 0.0
        %4712 = vmatmul.mubr.f32.gmra.mrb[0].mxu0 %v4409
        %v4713 = vpop.f32.mrb[0].mxu0
        %v4714 = vadd.f32 %v4456, %v4713
        %v4715 = vpop.f32.mrb[0].mxu0
        %4716 = vmatprep.mubr.f32.mxu0 0.0
        %4717 = vmatmul.mubr.f32.gmra.mrb[0].mxu0 %v4410
        %v4718 = vpop.f32.mrb[0].mxu0
        %v4719 = vadd.f32 %v4456, %v4718
        %v4720 = vpop.f32.mrb[0].mxu0
        %4721 = vmatprep.mubr.f32.mxu0 0.0
        %4722 = vmatmul.mubr.f32.gmra.mrb[0].mxu0 %v4411
        %v4723 = vpop.f32.mrb[0].mxu0
        %v4724 = vadd.f32 %v4456, %v4723
        %v4725 = vpop.f32.mrb[0].mxu0
        %4726 = vmatprep.mubr.f32.mxu0 0.0
        %4727 = vmatmul.mubr.f32.gmra.mrb[0].mxu0 %v4412
        %v4728 = vpop.f32.mrb[0].mxu0
        %v4729 = vadd.f32 %v4456, %v4728
        %v4730 = vpop.f32.mrb[0].mxu0
        %4731 = vmatprep.mubr.f32.mxu0 0.0
        %4732 = vmatmul.mubr.f32.gmra.mrb[0].mxu0 %v4413
        %v4733 = vpop.f32.mrb[0].mxu0
        %v4734 = vadd.f32 %v4456, %v4733
        %v4735 = vpop.f32.mrb[0].mxu0
        %4736 = vmatprep.mubr.f32.mxu0 0.0
        %4737 = vmatmul.mubr.f32.gmra.mrb[0].mxu0 %v4414
        %v4738 = vpop.f32.mrb[0].mxu0
        %v4739 = vadd.f32 %v4456, %v4738
        %v4740 = vpop.f32.mrb[0].mxu0
        %4741 = vmatprep.mubr.f32.mxu0 0.0
        %4742 = vmatmul.mubr.f32.gmra.mrb[0].mxu0 %v4415
        %v4743 = vpop.f32.mrb[0].mxu0
        %v4744 = vadd.f32 %v4456, %v4743
        %v4745 = vpop.f32.mrb[0].mxu0
        %4746 = vmatprep.mubr.f32.mxu0 0.0
        %4747 = vmatmul.mubr.f32.gmra.mrb[0].mxu0 %v4416
        %v4748 = vpop.f32.mrb[0].mxu0
        %v4749 = vadd.f32 %v4456, %v4748
        %v4750 = vpop.f32.mrb[0].mxu0
        %4751 = vmatprep.mubr.f32.mxu0 0.0
        %4752 = vmatmul.mubr.f32.gmra.mrb[0].mxu0 %v4417
        %v4753 = vpop.f32.mrb[0].mxu0
        %v4754 = vadd.f32 %v4456, %v4753
        %v4755 = vpop.f32.mrb[0].mxu0
        %4756 = vmatprep.mubr.f32.mxu0 0.0
        %4757 = vmatmul.mubr.f32.gmra.mrb[0].mxu0 %v4418
        %v4758 = vpop.f32.mrb[0].mxu0
        %v4759 = vadd.f32 %v4456, %v4758
        %v4760 = vpop.f32.mrb[0].mxu0
        %4761 = vmatprep.mubr.f32.mxu0 0.0
        %4762 = vmatmul.mubr.f32.gmra.mrb[0].mxu0 %v4419
        %v4763 = vpop.f32.mrb[0].mxu0
        %v4764 = vadd.f32 %v4456, %v4763
        %v4765 = vpop.f32.mrb[0].mxu0
        %4766 = vmatprep.mubr.f32.mxu0 0.0
        %4767 = vmatmul.mubr.f32.gmra.mrb[0].mxu0 %v4420
        %v4768 = vpop.f32.mrb[0].mxu0
        %v4769 = vadd.f32 %v4456, %v4768
        %v4770 = vpop.f32.mrb[0].mxu0
        %4771 = vmatprep.mubr.f32.mxu0 0.0
        %4772 = vmatmul.mubr.f32.gmra.mrb[0].mxu0 %v4421
        %v4773 = vpop.f32.mrb[0].mxu0
        %v4774 = vadd.f32 %v4456, %v4773
        %v4775 = vpop.f32.mrb[0].mxu0
        %4776 = vmatprep.mubr.f32.mxu0 0.0
        %4777 = vmatmul.mubr.f32.gmra.mrb[0].mxu0 %v4422
        %v4778 = vpop.f32.mrb[0].mxu0
        %v4779 = vadd.f32 %v4456, %v4778
        %v4780 = vpop.f32.mrb[0].mxu0
        %4781 = vmatprep.mubr.f32.mxu0 0.0
        %4782 = vmatmul.mubr.f32.gmra.mrb[0].mxu0 %v4423
        %v4783 = vpop.f32.mrb[0].mxu0
        %v4784 = vadd.f32 %v4456, %v4783
        %v4785 = vpop.f32.mrb[0].mxu0
        %4786 = vmatprep.mubr.f32.mxu0 0.0
        %4787 = vmatmul.mubr.f32.gmra.mrb[0].mxu0 %v4424
        %v4788 = vpop.f32.mrb[0].mxu0
        %v4789 = vadd.f32 %v4456, %v4788
        %v4790 = vpop.f32.mrb[0].mxu0
        %4791 = vmatprep.mubr.f32.mxu0 0.0
        %4792 = vmatmul.mubr.f32.gmra.mrb[0].mxu0 %v4425
        %v4793 = vpop.f32.mrb[0].mxu0
        %v4794 = vadd.f32 %v4456, %v4793
        %v4795 = vpop.f32.mrb[0].mxu0
        %4796 = vmatprep.mubr.f32.mxu0 0.0
        %4797 = vmatmul.mubr.f32.gmra.mrb[0].mxu0 %v4426
        %v4798 = vpop.f32.mrb[0].mxu0
        %v4799 = vadd.f32 %v4456, %v4798
        %v4800 = vpop.f32.mrb[0].mxu0
        %4801 = vmatprep.mubr.f32.mxu0 0.0
        %4802 = vmatmul.mubr.f32.gmra.mrb[0].mxu0 %v4427
        %v4803 = vpop.f32.mrb[0].mxu0
        %v4804 = vadd.f32 %v4456, %v4803
        %v4805 = vpop.f32.mrb[0].mxu0
        %4806 = vmatprep.mubr.f32.mxu0 0.0
        %4807 = vmatmul.mubr.f32.gmra.mrb[0].mxu0 %v4428
        %v4808 = vpop.f32.mrb[0].mxu0
        %v4809 = vadd.f32 %v4456, %v4808
        %v4810 = vpop.f32.mrb[0].mxu0
        %4811 = vmatprep.mubr.f32.mxu0 0.0
        %4812 = vmatmul.mubr.f32.gmra.mrb[0].mxu0 %v4429
        %v4813 = vpop.f32.mrb[0].mxu0
        %v4814 = vadd.f32 %v4456, %v4813
        %v4815 = vpop.f32.mrb[0].mxu0
        %4816 = vmatprep.mubr.f32.mxu0 0.0
        %4817 = vmatmul.mubr.f32.gmra.mrb[0].mxu0 %v4430
        %v4818 = vpop.f32.mrb[0].mxu0
        %v4819 = vadd.f32 %v4456, %v4818
        %v4820 = vpop.f32.mrb[0].mxu0
        %4821 = vmatprep.mubr.f32.mxu0 0.0
        %4822 = vmatmul.mubr.f32.gmra.mrb[0].mxu0 %v4431
        %v4823 = vpop.f32.mrb[0].mxu0
        %v4824 = vadd.f32 %v4456, %v4823
        %v4825 = vpop.f32.mrb[0].mxu0
        %4826 = vmatprep.mubr.f32.mxu0 0.0
        %4827 = vmatmul.mubr.f32.gmra.mrb[0].mxu0 %v4432
        %v4828 = vpop.f32.mrb[0].mxu0
        %v4829 = vadd.f32 %v4456, %v4828
        %v4830 = vpop.f32.mrb[0].mxu0
        %4831 = vmatprep.mubr.f32.mxu0 0.0
        %4832 = vmatmul.mubr.f32.gmra.mrb[0].mxu0 %v4433
        %v4833 = vpop.f32.mrb[0].mxu0
        %v4834 = vadd.f32 %v4456, %v4833
        %v4835 = vpop.f32.mrb[0].mxu0
        %4836 = vmatprep.mubr.f32.mxu0 0.0
        %4837 = vmatmul.mubr.f32.gmra.mrb[0].mxu0 %v4434
        %v4838 = vpop.f32.mrb[0].mxu0
        %v4839 = vadd.f32 %v4456, %v4838
        %v4840 = vpop.f32.mrb[0].mxu0
        %4841 = vdwg.mxu0
        %v4842 = vxor.u32 %v4524, 2147483648
        %v4843 = vxor.u32 %v4529, 2147483648
        %v4844 = vxor.u32 %v4534, 2147483648
        %v4845 = vxor.u32 %v4539, 2147483648
        %v4846 = vxor.u32 %v4544, 2147483648
        %v4847 = vxor.u32 %v4549, 2147483648
        %v4848 = vxor.u32 %v4554, 2147483648
        %v4849 = vxor.u32 %v4559, 2147483648
        %v4850 = vxor.u32 %v4564, 2147483648
        %v4851 = vxor.u32 %v4569, 2147483648
        %v4852 = vxor.u32 %v4574, 2147483648
        %v4853 = vxor.u32 %v4579, 2147483648
        %v4854 = vxor.u32 %v4584, 2147483648
        %v4855 = vxor.u32 %v4589, 2147483648
        %v4856 = vxor.u32 %v4594, 2147483648
        %v4857 = vxor.u32 %v4599, 2147483648
        %v4858 = vxor.u32 %v4604, 2147483648
        %v4859 = vxor.u32 %v4609, 2147483648
        %v4860 = vxor.u32 %v4614, 2147483648
        %v4861 = vxor.u32 %v4619, 2147483648
        %v4862 = vxor.u32 %v4624, 2147483648
        %v4863 = vxor.u32 %v4629, 2147483648
        %v4864 = vxor.u32 %v4634, 2147483648
        %v4865 = vxor.u32 %v4639, 2147483648
        %v4866 = vxor.u32 %v4644, 2147483648
        %v4867 = vxor.u32 %v4649, 2147483648
        %v4868 = vxor.u32 %v4654, 2147483648
        %v4869 = vxor.u32 %v4659, 2147483648
        %v4870 = vxor.u32 %v4664, 2147483648
        %v4871 = vxor.u32 %v4669, 2147483648
        %v4872 = vxor.u32 %v4674, 2147483648
        %v4873 = vxor.u32 %v4679, 2147483648
        %v4874 = vxor.u32 %v4684, 2147483648
        %v4875 = vxor.u32 %v4689, 2147483648
        %v4876 = vxor.u32 %v4694, 2147483648
        %v4877 = vxor.u32 %v4699, 2147483648
        %v4878 = vxor.u32 %v4704, 2147483648
        %v4879 = vxor.u32 %v4709, 2147483648
        %v4880 = vxor.u32 %v4714, 2147483648
        %v4881 = vxor.u32 %v4719, 2147483648
        %v4882 = vxor.u32 %v4724, 2147483648
        %v4883 = vxor.u32 %v4729, 2147483648
        %v4884 = vxor.u32 %v4734, 2147483648
        %v4885 = vxor.u32 %v4739, 2147483648
        %v4886 = vxor.u32 %v4744, 2147483648
        %v4887 = vxor.u32 %v4749, 2147483648
        %v4888 = vxor.u32 %v4754, 2147483648
        %v4889 = vxor.u32 %v4759, 2147483648
        %v4890 = vxor.u32 %v4764, 2147483648
        %v4891 = vxor.u32 %v4769, 2147483648
        %v4892 = vxor.u32 %v4774, 2147483648
        %v4893 = vxor.u32 %v4779, 2147483648
        %v4894 = vxor.u32 %v4784, 2147483648
        %v4895 = vxor.u32 %v4789, 2147483648
        %v4896 = vxor.u32 %v4794, 2147483648
        %v4897 = vxor.u32 %v4799, 2147483648
        %v4898 = vxor.u32 %v4804, 2147483648
        %v4899 = vxor.u32 %v4809, 2147483648
        %v4900 = vxor.u32 %v4814, 2147483648
        %v4901 = vxor.u32 %v4819, 2147483648
        %v4902 = vxor.u32 %v4824, 2147483648
        %v4903 = vxor.u32 %v4829, 2147483648
        %v4904 = vxor.u32 %v4834, 2147483648
        %v4905 = vxor.u32 %v4839, 2147483648
        %v4906 = vmul.f32 %v4842, 1.442695
        %v4907 = vpow.pop %v4906
        %v4908 = vmul.f32 %v4843, 1.442695
        %v4909 = vpow.pop %v4908
        %v4910 = vmul.f32 %v4844, 1.442695
        %v4911 = vpow.pop %v4910
        %v4912 = vmul.f32 %v4845, 1.442695
        %v4913 = vpow.pop %v4912
        %v4914 = vmul.f32 %v4846, 1.442695
        %v4915 = vpow.pop %v4914
        %v4916 = vmul.f32 %v4847, 1.442695
        %v4917 = vpow.pop %v4916
        %v4918 = vmul.f32 %v4848, 1.442695
        %v4919 = vpow.pop %v4918
        %v4920 = vmul.f32 %v4849, 1.442695
        %v4921 = vpow.pop %v4920
        %v4922 = vmul.f32 %v4850, 1.442695
        %v4923 = vpow.pop %v4922
        %v4924 = vmul.f32 %v4851, 1.442695
        %v4925 = vpow.pop %v4924
        %v4926 = vmul.f32 %v4852, 1.442695
        %v4927 = vpow.pop %v4926
        %v4928 = vmul.f32 %v4853, 1.442695
        %v4929 = vpow.pop %v4928
        %v4930 = vmul.f32 %v4854, 1.442695
        %v4931 = vpow.pop %v4930
        %v4932 = vmul.f32 %v4855, 1.442695
        %v4933 = vpow.pop %v4932
        %v4934 = vmul.f32 %v4856, 1.442695
        %v4935 = vpow.pop %v4934
        %v4936 = vmul.f32 %v4857, 1.442695
        %v4937 = vpow.pop %v4936
        %v4938 = vmul.f32 %v4858, 1.442695
        %v4939 = vpow.pop %v4938
        %v4940 = vmul.f32 %v4859, 1.442695
        %v4941 = vpow.pop %v4940
        %v4942 = vmul.f32 %v4860, 1.442695
        %v4943 = vpow.pop %v4942
        %v4944 = vmul.f32 %v4861, 1.442695
        %v4945 = vpow.pop %v4944
        %v4946 = vmul.f32 %v4862, 1.442695
        %v4947 = vpow.pop %v4946
        %v4948 = vmul.f32 %v4863, 1.442695
        %v4949 = vpow.pop %v4948
        %v4950 = vmul.f32 %v4864, 1.442695
        %v4951 = vpow.pop %v4950
        %v4952 = vmul.f32 %v4865, 1.442695
        %v4953 = vpow.pop %v4952
        %v4954 = vmul.f32 %v4866, 1.442695
        %v4955 = vpow.pop %v4954
        %v4956 = vmul.f32 %v4867, 1.442695
        %v4957 = vpow.pop %v4956
        %v4958 = vmul.f32 %v4868, 1.442695
        %v4959 = vpow.pop %v4958
        %v4960 = vmul.f32 %v4869, 1.442695
        %v4961 = vpow.pop %v4960
        %v4962 = vmul.f32 %v4870, 1.442695
        %v4963 = vpow.pop %v4962
        %v4964 = vmul.f32 %v4871, 1.442695
        %v4965 = vpow.pop %v4964
        %v4966 = vmul.f32 %v4872, 1.442695
        %v4967 = vpow.pop %v4966
        %v4968 = vmul.f32 %v4873, 1.442695
        %v4969 = vpow.pop %v4968
        %v4970 = vmul.f32 %v4874, 1.442695
        %v4971 = vpow.pop %v4970
        %v4972 = vmul.f32 %v4875, 1.442695
        %v4973 = vpow.pop %v4972
        %v4974 = vmul.f32 %v4876, 1.442695
        %v4975 = vpow.pop %v4974
        %v4976 = vmul.f32 %v4877, 1.442695
        %v4977 = vpow.pop %v4976
        %v4978 = vmul.f32 %v4878, 1.442695
        %v4979 = vpow.pop %v4978
        %v4980 = vmul.f32 %v4879, 1.442695
        %v4981 = vpow.pop %v4980
        %v4982 = vmul.f32 %v4880, 1.442695
        %v4983 = vpow.pop %v4982
        %v4984 = vmul.f32 %v4881, 1.442695
        %v4985 = vpow.pop %v4984
        %v4986 = vmul.f32 %v4882, 1.442695
        %v4987 = vpow.pop %v4986
        %v4988 = vmul.f32 %v4883, 1.442695
        %v4989 = vpow.pop %v4988
        %v4990 = vmul.f32 %v4884, 1.442695
        %v4991 = vpow.pop %v4990
        %v4992 = vmul.f32 %v4885, 1.442695
        %v4993 = vpow.pop %v4992
        %v4994 = vmul.f32 %v4886, 1.442695
        %v4995 = vpow.pop %v4994
        %v4996 = vmul.f32 %v4887, 1.442695
        %v4997 = vpow.pop %v4996
        %v4998 = vmul.f32 %v4888, 1.442695
        %v4999 = vpow.pop %v4998
        %v5000 = vmul.f32 %v4889, 1.442695
        %v5001 = vpow.pop %v5000
        %v5002 = vmul.f32 %v4890, 1.442695
        %v5003 = vpow.pop %v5002
        %v5004 = vmul.f32 %v4891, 1.442695
        %v5005 = vpow.pop %v5004
        %v5006 = vmul.f32 %v4892, 1.442695
        %v5007 = vpow.pop %v5006
        %v5008 = vmul.f32 %v4893, 1.442695
        %v5009 = vpow.pop %v5008
        %v5010 = vmul.f32 %v4894, 1.442695
        %v5011 = vpow.pop %v5010
        %v5012 = vmul.f32 %v4895, 1.442695
        %v5013 = vpow.pop %v5012
        %v5014 = vmul.f32 %v4896, 1.442695
        %v5015 = vpow.pop %v5014
        %v5016 = vmul.f32 %v4897, 1.442695
        %v5017 = vpow.pop %v5016
        %v5018 = vmul.f32 %v4898, 1.442695
        %v5019 = vpow.pop %v5018
        %v5020 = vmul.f32 %v4899, 1.442695
        %v5021 = vpow.pop %v5020
        %v5022 = vmul.f32 %v4900, 1.442695
        %v5023 = vpow.pop %v5022
        %v5024 = vmul.f32 %v4901, 1.442695
        %v5025 = vpow.pop %v5024
        %v5026 = vmul.f32 %v4902, 1.442695
        %v5027 = vpow.pop %v5026
        %v5028 = vmul.f32 %v4903, 1.442695
        %v5029 = vpow.pop %v5028
        %v5030 = vmul.f32 %v4904, 1.442695
        %v5031 = vpow.pop %v5030
        %v5032 = vmul.f32 %v4905, 1.442695
        %v5033 = vpow.pop %v5032
        %v5034 = vadd.f32 %v4907, 1.0
        %v5035 = vadd.f32 %v4909, 1.0
        %v5036 = vadd.f32 %v4911, 1.0
        %v5037 = vadd.f32 %v4913, 1.0
        %v5038 = vadd.f32 %v4915, 1.0
        %v5039 = vadd.f32 %v4917, 1.0
        %v5040 = vadd.f32 %v4919, 1.0
        %v5041 = vadd.f32 %v4921, 1.0
        %v5042 = vadd.f32 %v4923, 1.0
        %v5043 = vadd.f32 %v4925, 1.0
        %v5044 = vadd.f32 %v4927, 1.0
        %v5045 = vadd.f32 %v4929, 1.0
        %v5046 = vadd.f32 %v4931, 1.0
        %v5047 = vadd.f32 %v4933, 1.0
        %v5048 = vadd.f32 %v4935, 1.0
        %v5049 = vadd.f32 %v4937, 1.0
        %v5050 = vadd.f32 %v4939, 1.0
        %v5051 = vadd.f32 %v4941, 1.0
        %v5052 = vadd.f32 %v4943, 1.0
        %v5053 = vadd.f32 %v4945, 1.0
        %v5054 = vadd.f32 %v4947, 1.0
        %v5055 = vadd.f32 %v4949, 1.0
        %v5056 = vadd.f32 %v4951, 1.0
        %v5057 = vadd.f32 %v4953, 1.0
        %v5058 = vadd.f32 %v4955, 1.0
        %v5059 = vadd.f32 %v4957, 1.0
        %v5060 = vadd.f32 %v4959, 1.0
        %v5061 = vadd.f32 %v4961, 1.0
        %v5062 = vadd.f32 %v4963, 1.0
        %v5063 = vadd.f32 %v4965, 1.0
        %v5064 = vadd.f32 %v4967, 1.0
        %v5065 = vadd.f32 %v4969, 1.0
        %v5066 = vadd.f32 %v4971, 1.0
        %v5067 = vadd.f32 %v4973, 1.0
        %v5068 = vadd.f32 %v4975, 1.0
        %v5069 = vadd.f32 %v4977, 1.0
        %v5070 = vadd.f32 %v4979, 1.0
        %v5071 = vadd.f32 %v4981, 1.0
        %v5072 = vadd.f32 %v4983, 1.0
        %v5073 = vadd.f32 %v4985, 1.0
        %v5074 = vadd.f32 %v4987, 1.0
        %v5075 = vadd.f32 %v4989, 1.0
        %v5076 = vadd.f32 %v4991, 1.0
        %v5077 = vadd.f32 %v4993, 1.0
        %v5078 = vadd.f32 %v4995, 1.0
        %v5079 = vadd.f32 %v4997, 1.0
        %v5080 = vadd.f32 %v4999, 1.0
        %v5081 = vadd.f32 %v5001, 1.0
        %v5082 = vadd.f32 %v5003, 1.0
        %v5083 = vadd.f32 %v5005, 1.0
        %v5084 = vadd.f32 %v5007, 1.0
        %v5085 = vadd.f32 %v5009, 1.0
        %v5086 = vadd.f32 %v5011, 1.0
        %v5087 = vadd.f32 %v5013, 1.0
        %v5088 = vadd.f32 %v5015, 1.0
        %v5089 = vadd.f32 %v5017, 1.0
        %v5090 = vadd.f32 %v5019, 1.0
        %v5091 = vadd.f32 %v5021, 1.0
        %v5092 = vadd.f32 %v5023, 1.0
        %v5093 = vadd.f32 %v5025, 1.0
        %v5094 = vadd.f32 %v5027, 1.0
        %v5095 = vadd.f32 %v5029, 1.0
        %v5096 = vadd.f32 %v5031, 1.0
        %v5097 = vadd.f32 %v5033, 1.0
        %v5098 = vrcp.pop %v5034
        %v5099 = vmul.f32 1.0, %v5098
        %v5100 = vrcp.pop %v5035
        %v5101 = vmul.f32 1.0, %v5100
        %v5102 = vrcp.pop %v5036
        %v5103 = vmul.f32 1.0, %v5102
        %v5104 = vrcp.pop %v5037
        %v5105 = vmul.f32 1.0, %v5104
        %v5106 = vrcp.pop %v5038
        %v5107 = vmul.f32 1.0, %v5106
        %v5108 = vrcp.pop %v5039
        %v5109 = vmul.f32 1.0, %v5108
        %v5110 = vrcp.pop %v5040
        %v5111 = vmul.f32 1.0, %v5110
        %v5112 = vrcp.pop %v5041
        %v5113 = vmul.f32 1.0, %v5112
        %v5114 = vrcp.pop %v5042
        %v5115 = vmul.f32 1.0, %v5114
        %v5116 = vrcp.pop %v5043
        %v5117 = vmul.f32 1.0, %v5116
        %v5118 = vrcp.pop %v5044
        %v5119 = vmul.f32 1.0, %v5118
        %v5120 = vrcp.pop %v5045
        %v5121 = vmul.f32 1.0, %v5120
        %v5122 = vrcp.pop %v5046
        %v5123 = vmul.f32 1.0, %v5122
        %v5124 = vrcp.pop %v5047
        %v5125 = vmul.f32 1.0, %v5124
        %v5126 = vrcp.pop %v5048
        %v5127 = vmul.f32 1.0, %v5126
        %v5128 = vrcp.pop %v5049
        %v5129 = vmul.f32 1.0, %v5128
        %v5130 = vrcp.pop %v5050
        %v5131 = vmul.f32 1.0, %v5130
        %v5132 = vrcp.pop %v5051
        %v5133 = vmul.f32 1.0, %v5132
        %v5134 = vrcp.pop %v5052
        %v5135 = vmul.f32 1.0, %v5134
        %v5136 = vrcp.pop %v5053
        %v5137 = vmul.f32 1.0, %v5136
        %v5138 = vrcp.pop %v5054
        %v5139 = vmul.f32 1.0, %v5138
        %v5140 = vrcp.pop %v5055
        %v5141 = vmul.f32 1.0, %v5140
        %v5142 = vrcp.pop %v5056
        %v5143 = vmul.f32 1.0, %v5142
        %v5144 = vrcp.pop %v5057
        %v5145 = vmul.f32 1.0, %v5144
        %v5146 = vrcp.pop %v5058
        %v5147 = vmul.f32 1.0, %v5146
        %v5148 = vrcp.pop %v5059
        %v5149 = vmul.f32 1.0, %v5148
        %v5150 = vrcp.pop %v5060
        %v5151 = vmul.f32 1.0, %v5150
        %v5152 = vrcp.pop %v5061
        %v5153 = vmul.f32 1.0, %v5152
        %v5154 = vrcp.pop %v5062
        %v5155 = vmul.f32 1.0, %v5154
        %v5156 = vrcp.pop %v5063
        %v5157 = vmul.f32 1.0, %v5156
        %v5158 = vrcp.pop %v5064
        %v5159 = vmul.f32 1.0, %v5158
        %v5160 = vrcp.pop %v5065
        %v5161 = vmul.f32 1.0, %v5160
        %v5162 = vrcp.pop %v5066
        %v5163 = vmul.f32 1.0, %v5162
        %v5164 = vrcp.pop %v5067
        %v5165 = vmul.f32 1.0, %v5164
        %v5166 = vrcp.pop %v5068
        %v5167 = vmul.f32 1.0, %v5166
        %v5168 = vrcp.pop %v5069
        %v5169 = vmul.f32 1.0, %v5168
        %v5170 = vrcp.pop %v5070
        %v5171 = vmul.f32 1.0, %v5170
        %v5172 = vrcp.pop %v5071
        %v5173 = vmul.f32 1.0, %v5172
        %v5174 = vrcp.pop %v5072
        %v5175 = vmul.f32 1.0, %v5174
        %v5176 = vrcp.pop %v5073
        %v5177 = vmul.f32 1.0, %v5176
        %v5178 = vrcp.pop %v5074
        %v5179 = vmul.f32 1.0, %v5178
        %v5180 = vrcp.pop %v5075
        %v5181 = vmul.f32 1.0, %v5180
        %v5182 = vrcp.pop %v5076
        %v5183 = vmul.f32 1.0, %v5182
        %v5184 = vrcp.pop %v5077
        %v5185 = vmul.f32 1.0, %v5184
        %v5186 = vrcp.pop %v5078
        %v5187 = vmul.f32 1.0, %v5186
        %v5188 = vrcp.pop %v5079
        %v5189 = vmul.f32 1.0, %v5188
        %v5190 = vrcp.pop %v5080
        %v5191 = vmul.f32 1.0, %v5190
        %v5192 = vrcp.pop %v5081
        %v5193 = vmul.f32 1.0, %v5192
        %v5194 = vrcp.pop %v5082
        %v5195 = vmul.f32 1.0, %v5194
        %v5196 = vrcp.pop %v5083
        %v5197 = vmul.f32 1.0, %v5196
        %v5198 = vrcp.pop %v5084
        %v5199 = vmul.f32 1.0, %v5198
        %v5200 = vrcp.pop %v5085
        %v5201 = vmul.f32 1.0, %v5200
        %v5202 = vrcp.pop %v5086
        %v5203 = vmul.f32 1.0, %v5202
        %v5204 = vrcp.pop %v5087
        %v5205 = vmul.f32 1.0, %v5204
        %v5206 = vrcp.pop %v5088
        %v5207 = vmul.f32 1.0, %v5206
        %v5208 = vrcp.pop %v5089
        %v5209 = vmul.f32 1.0, %v5208
        %v5210 = vrcp.pop %v5090
        %v5211 = vmul.f32 1.0, %v5210
        %v5212 = vrcp.pop %v5091
        %v5213 = vmul.f32 1.0, %v5212
        %v5214 = vrcp.pop %v5092
        %v5215 = vmul.f32 1.0, %v5214
        %v5216 = vrcp.pop %v5093
        %v5217 = vmul.f32 1.0, %v5216
        %v5218 = vrcp.pop %v5094
        %v5219 = vmul.f32 1.0, %v5218
        %v5220 = vrcp.pop %v5095
        %v5221 = vmul.f32 1.0, %v5220
        %v5222 = vrcp.pop %v5096
        %v5223 = vmul.f32 1.0, %v5222
        %v5224 = vrcp.pop %v5097
        %v5225 = vmul.f32 1.0, %v5224
        %5226 = vst [vmem:[%s217 + $0x8] sm:$0xff] %v5099
        %5227 = vst [vmem:[%s217 + $0x20] sm:$0xff] %v5101
        %5228 = vst [vmem:[%s217 + $0x38] sm:$0xff] %v5103
        %5229 = vst [vmem:[%s217 + $0x50] sm:$0xff] %v5105
        %5230 = vst [vmem:[%s217 + $0x68] sm:$0xff] %v5107
        %5231 = vst [vmem:[%s217 + $0x80] sm:$0xff] %v5109
        %5232 = vst [vmem:[%s217 + $0x98] sm:$0xff] %v5111
        %5233 = vst [vmem:[%s217 + $0xb0] sm:$0xff] %v5113
        %5234 = vst [vmem:[%s217 + $0xc8] sm:$0xff] %v5115
        %5235 = vst [vmem:[%s217 + $0xe0] sm:$0xff] %v5117
        %5236 = vst [vmem:[%s217 + $0xf8] sm:$0xff] %v5119
        %5237 = vst [vmem:[%s217 + $0x110] sm:$0xff] %v5121
        %5238 = vst [vmem:[%s217 + $0x128] sm:$0xff] %v5123
        %5239 = vst [vmem:[%s217 + $0x140] sm:$0xff] %v5125
        %5240 = vst [vmem:[%s217 + $0x158] sm:$0xff] %v5127
        %5241 = vst [vmem:[%s217 + $0x170] sm:$0xff] %v5129
        %5242 = vst [vmem:[%s217 + $0x188] sm:$0xff] %v5131
        %5243 = vst [vmem:[%s217 + $0x1a0] sm:$0xff] %v5133
        %5244 = vst [vmem:[%s217 + $0x1b8] sm:$0xff] %v5135
        %5245 = vst [vmem:[%s217 + $0x1d0] sm:$0xff] %v5137
        %5246 = vst [vmem:[%s217 + $0x1e8] sm:$0xff] %v5139
        %5247 = vst [vmem:[%s217 + $0x200] sm:$0xff] %v5141
        %5248 = vst [vmem:[%s217 + $0x218] sm:$0xff] %v5143
        %5249 = vst [vmem:[%s217 + $0x230] sm:$0xff] %v5145
        %5250 = vst [vmem:[%s217 + $0x248] sm:$0xff] %v5147
        %5251 = vst [vmem:[%s217 + $0x260] sm:$0xff] %v5149
        %5252 = vst [vmem:[%s217 + $0x278] sm:$0xff] %v5151
        %5253 = vst [vmem:[%s217 + $0x290] sm:$0xff] %v5153
        %5254 = vst [vmem:[%s217 + $0x2a8] sm:$0xff] %v5155
        %5255 = vst [vmem:[%s217 + $0x2c0] sm:$0xff] %v5157
        %5256 = vst [vmem:[%s217 + $0x2d8] sm:$0xff] %v5159
        %5257 = vst [vmem:[%s217 + $0x2f0] sm:$0xff] %v5161
        %5258 = vst [vmem:[%s217 + $0x308] sm:$0xff] %v5163
        %5259 = vst [vmem:[%s217 + $0x320] sm:$0xff] %v5165
        %5260 = vst [vmem:[%s217 + $0x338] sm:$0xff] %v5167
        %5261 = vst [vmem:[%s217 + $0x350] sm:$0xff] %v5169
        %5262 = vst [vmem:[%s217 + $0x368] sm:$0xff] %v5171
        %5263 = vst [vmem:[%s217 + $0x380] sm:$0xff] %v5173
        %5264 = vst [vmem:[%s217 + $0x398] sm:$0xff] %v5175
        %5265 = vst [vmem:[%s217 + $0x3b0] sm:$0xff] %v5177
        %5266 = vst [vmem:[%s217 + $0x3c8] sm:$0xff] %v5179
        %5267 = vst [vmem:[%s217 + $0x3e0] sm:$0xff] %v5181
        %5268 = vst [vmem:[%s217 + $0x3f8] sm:$0xff] %v5183
        %5269 = vst [vmem:[%s217 + $0x410] sm:$0xff] %v5185
        %5270 = vst [vmem:[%s217 + $0x428] sm:$0xff] %v5187
        %5271 = vst [vmem:[%s217 + $0x440] sm:$0xff] %v5189
        %5272 = vst [vmem:[%s217 + $0x458] sm:$0xff] %v5191
        %5273 = vst [vmem:[%s217 + $0x470] sm:$0xff] %v5193
        %5274 = vst [vmem:[%s217 + $0x488] sm:$0xff] %v5195
        %5275 = vst [vmem:[%s217 + $0x4a0] sm:$0xff] %v5197
        %5276 = vst [vmem:[%s217 + $0x4b8] sm:$0xff] %v5199
        %5277 = vst [vmem:[%s217 + $0x4d0] sm:$0xff] %v5201
        %5278 = vst [vmem:[%s217 + $0x4e8] sm:$0xff] %v5203
        %5279 = vst [vmem:[%s217 + $0x500] sm:$0xff] %v5205
        %5280 = vst [vmem:[%s217 + $0x518] sm:$0xff] %v5207
        %5281 = vst [vmem:[%s217 + $0x530] sm:$0xff] %v5209
        %5282 = vst [vmem:[%s217 + $0x548] sm:$0xff] %v5211
        %5283 = vst [vmem:[%s217 + $0x560] sm:$0xff] %v5213
        %5284 = vst [vmem:[%s217 + $0x578] sm:$0xff] %v5215
        %5285 = vst [vmem:[%s217 + $0x590] sm:$0xff] %v5217
        %5286 = vst [vmem:[%s217 + $0x5a8] sm:$0xff] %v5219
        %5287 = vst [vmem:[%s217 + $0x5c0] sm:$0xff] %v5221
        %5288 = vst [vmem:[%s217 + $0x5d8] sm:$0xff] %v5223
        %5289 = vst [vmem:[%s217 + $0x5f0] sm:$0xff] %v5225
        %v5290 = vld [vmem:[#allocation5] sm:$0xff]
        %v5291 = vld [vmem:[#allocation5 + $0x8] sm:$0xff]
        %v5292 = vld [vmem:[#allocation5 + $0x10] sm:$0xff]
        %v5293 = vld [vmem:[#allocation5 + $0x18] sm:$0xff]
        %v5294 = vld [vmem:[#allocation5 + $0x20] sm:$0xff]
        %v5295 = vld [vmem:[#allocation5 + $0x28] sm:$0xff]
        %v5296 = vld [vmem:[#allocation5 + $0x30] sm:$0xff]
        %v5297 = vld [vmem:[#allocation5 + $0x38] sm:$0xff]
        %v5298 = vld [vmem:[#allocation5 + $0x40] sm:$0xff]
        %v5299 = vld [vmem:[#allocation5 + $0x48] sm:$0xff]
        %v5300 = vld [vmem:[#allocation5 + $0x50] sm:$0xff]
        %v5301 = vld [vmem:[#allocation5 + $0x58] sm:$0xff]
        %v5302 = vld [vmem:[#allocation5 + $0x60] sm:$0xff]
        %v5303 = vld [vmem:[#allocation5 + $0x68] sm:$0xff]
        %v5304 = vld [vmem:[#allocation5 + $0x70] sm:$0xff]
        %v5305 = vld [vmem:[#allocation5 + $0x78] sm:$0xff]
        %v5306 = vld [vmem:[#allocation7] sm:$0x1]
        %v5307 = vlaneseq
        %v5308 = vshrl.u32 %v5307, 7
        %v5309 = vsub.s32 0, %v5308
        %v5310 = vrot.slane %v5306, %v5309
        %5311 = vmatprep.subr.mxu0 0.0
        %5312 = vmatpush1.msra.mxu0 %v5290
        %5313 = vmatprep.subr.mxu0 0.0
        %5314 = vmatpush1.msra.mxu0 %v5291
        %5315 = vmatprep.subr.mxu0 0.0
        %5316 = vmatpush1.msra.mxu0 %v5292
        %5317 = vmatprep.subr.mxu0 0.0
        %5318 = vmatpush1.msra.mxu0 %v5293
        %5319 = vmatprep.subr.mxu0 0.0
        %5320 = vmatpush1.msra.mxu0 %v5294
        %5321 = vmatprep.subr.mxu0 0.0
        %5322 = vmatpush1.msra.mxu0 %v5295
        %5323 = vmatprep.subr.mxu0 0.0
        %5324 = vmatpush1.msra.mxu0 %v5296
        %5325 = vmatprep.subr.mxu0 0.0
        %5326 = vmatpush1.msra.mxu0 %v5297
        %5327 = vmatprep.subr.mxu0 0.0
        %5328 = vmatpush1.msra.mxu0 %v5298
        %5329 = vmatprep.subr.mxu0 0.0
        %5330 = vmatpush1.msra.mxu0 %v5299
        %5331 = vmatprep.subr.mxu0 0.0
        %5332 = vmatpush1.msra.mxu0 %v5300
        %5333 = vmatprep.subr.mxu0 0.0
        %5334 = vmatpush1.msra.mxu0 %v5301
        %5335 = vmatprep.subr.mxu0 0.0
        %5336 = vmatpush1.msra.mxu0 %v5302
        %5337 = vmatprep.subr.mxu0 0.0
        %5338 = vmatpush1.msra.mxu0 %v5303
        %5339 = vmatprep.subr.mxu0 0.0
        %5340 = vmatpush1.msra.mxu0 %v5304
        %5341 = vmatprep.subr.mxu0 0.0
        %5342 = vmatpush1.msra.mxu0 %v5305
        %5343 = vmatprep.subr.mxu0 0.0
        %5344 = vmatpush1.msra.mxu0 0.0
        %5345 = vmatprep.subr.mxu0 0.0
        %5346 = vmatpush1.msra.mxu0 0.0
        %5347 = vmatprep.subr.mxu0 0.0
        %5348 = vmatpush1.msra.mxu0 0.0
        %5349 = vmatprep.subr.mxu0 0.0
        %5350 = vmatpush1.msra.mxu0 0.0
        %5351 = vmatprep.subr.mxu0 0.0
        %5352 = vmatpush1.msra.mxu0 0.0
        %5353 = vmatprep.subr.mxu0 0.0
        %5354 = vmatpush1.msra.mxu0 0.0
        %5355 = vmatprep.subr.mxu0 0.0
        %5356 = vmatpush1.msra.mxu0 0.0
        %5357 = vmatprep.subr.mxu0 0.0
        %5358 = vmatpush1.msra.mxu0 0.0
        %5359 = vmatprep.subr.mxu0 0.0
        %5360 = vmatpush1.msra.mxu0 0.0
        %5361 = vmatprep.subr.mxu0 0.0
        %5362 = vmatpush1.msra.mxu0 0.0
        %5363 = vmatprep.subr.mxu0 0.0
        %5364 = vmatpush1.msra.mxu0 0.0
        %5365 = vmatprep.subr.mxu0 0.0
        %5366 = vmatpush1.msra.mxu0 0.0
        %5367 = vmatprep.subr.mxu0 0.0
        %5368 = vmatpush1.msra.mxu0 0.0
        %5369 = vmatprep.subr.mxu0 0.0
        %5370 = vmatpush1.msra.mxu0 0.0
        %5371 = vmatprep.subr.mxu0 0.0
        %5372 = vmatpush1.msra.mxu0 0.0
        %5373 = vmatprep.subr.mxu0 0.0
        %5374 = vmatpush1.msra.mxu0 0.0
        %5375 = vmatprep.mubr.f32.mxu0 0.0
        %5376 = vmatmul.mubr.f32.gmra.mrb[0].mxu0 %v3302
        %v5377 = vpop.f32.mrb[0].mxu0
        %v5378 = vadd.f32 %v5310, %v5377
        %v5379 = vpop.f32.mrb[0].mxu0
        %5380 = vmatprep.mubr.f32.mxu0 0.0
        %5381 = vmatmul.mubr.f32.gmra.mrb[0].mxu0 %v3304
        %v5382 = vpop.f32.mrb[0].mxu0
        %v5383 = vadd.f32 %v5310, %v5382
        %v5384 = vpop.f32.mrb[0].mxu0
        %5385 = vmatprep.mubr.f32.mxu0 0.0
        %5386 = vmatmul.mubr.f32.gmra.mrb[0].mxu0 %v3306
        %v5387 = vpop.f32.mrb[0].mxu0
        %v5388 = vadd.f32 %v5310, %v5387
        %v5389 = vpop.f32.mrb[0].mxu0
        %5390 = vmatprep.mubr.f32.mxu0 0.0
        %5391 = vmatmul.mubr.f32.gmra.mrb[0].mxu0 %v3308
        %v5392 = vpop.f32.mrb[0].mxu0
        %v5393 = vadd.f32 %v5310, %v5392
        %v5394 = vpop.f32.mrb[0].mxu0
        %5395 = vmatprep.mubr.f32.mxu0 0.0
        %5396 = vmatmul.mubr.f32.gmra.mrb[0].mxu0 %v3310
        %v5397 = vpop.f32.mrb[0].mxu0
        %v5398 = vadd.f32 %v5310, %v5397
        %v5399 = vpop.f32.mrb[0].mxu0
        %5400 = vmatprep.mubr.f32.mxu0 0.0
        %5401 = vmatmul.mubr.f32.gmra.mrb[0].mxu0 %v3312
        %v5402 = vpop.f32.mrb[0].mxu0
        %v5403 = vadd.f32 %v5310, %v5402
        %v5404 = vpop.f32.mrb[0].mxu0
        %5405 = vmatprep.mubr.f32.mxu0 0.0
        %5406 = vmatmul.mubr.f32.gmra.mrb[0].mxu0 %v3314
        %v5407 = vpop.f32.mrb[0].mxu0
        %v5408 = vadd.f32 %v5310, %v5407
        %v5409 = vpop.f32.mrb[0].mxu0
        %5410 = vmatprep.mubr.f32.mxu0 0.0
        %5411 = vmatmul.mubr.f32.gmra.mrb[0].mxu0 %v3316
        %v5412 = vpop.f32.mrb[0].mxu0
        %v5413 = vadd.f32 %v5310, %v5412
        %v5414 = vpop.f32.mrb[0].mxu0
        %5415 = vmatprep.mubr.f32.mxu0 0.0
        %5416 = vmatmul.mubr.f32.gmra.mrb[0].mxu0 %v3318
        %v5417 = vpop.f32.mrb[0].mxu0
        %v5418 = vadd.f32 %v5310, %v5417
        %v5419 = vpop.f32.mrb[0].mxu0
        %5420 = vmatprep.mubr.f32.mxu0 0.0
        %5421 = vmatmul.mubr.f32.gmra.mrb[0].mxu0 %v3320
        %v5422 = vpop.f32.mrb[0].mxu0
        %v5423 = vadd.f32 %v5310, %v5422
        %v5424 = vpop.f32.mrb[0].mxu0
        %5425 = vmatprep.mubr.f32.mxu0 0.0
        %5426 = vmatmul.mubr.f32.gmra.mrb[0].mxu0 %v3322
        %v5427 = vpop.f32.mrb[0].mxu0
        %v5428 = vadd.f32 %v5310, %v5427
        %v5429 = vpop.f32.mrb[0].mxu0
        %5430 = vmatprep.mubr.f32.mxu0 0.0
        %5431 = vmatmul.mubr.f32.gmra.mrb[0].mxu0 %v3324
        %v5432 = vpop.f32.mrb[0].mxu0
        %v5433 = vadd.f32 %v5310, %v5432
        %v5434 = vpop.f32.mrb[0].mxu0
        %5435 = vmatprep.mubr.f32.mxu0 0.0
        %5436 = vmatmul.mubr.f32.gmra.mrb[0].mxu0 %v3326
        %v5437 = vpop.f32.mrb[0].mxu0
        %v5438 = vadd.f32 %v5310, %v5437
        %v5439 = vpop.f32.mrb[0].mxu0
        %5440 = vmatprep.mubr.f32.mxu0 0.0
        %5441 = vmatmul.mubr.f32.gmra.mrb[0].mxu0 %v3328
        %v5442 = vpop.f32.mrb[0].mxu0
        %v5443 = vadd.f32 %v5310, %v5442
        %v5444 = vpop.f32.mrb[0].mxu0
        %5445 = vmatprep.mubr.f32.mxu0 0.0
        %5446 = vmatmul.mubr.f32.gmra.mrb[0].mxu0 %v3330
        %v5447 = vpop.f32.mrb[0].mxu0
        %v5448 = vadd.f32 %v5310, %v5447
        %v5449 = vpop.f32.mrb[0].mxu0
        %5450 = vmatprep.mubr.f32.mxu0 0.0
        %5451 = vmatmul.mubr.f32.gmra.mrb[0].mxu0 %v3332
        %v5452 = vpop.f32.mrb[0].mxu0
        %v5453 = vadd.f32 %v5310, %v5452
        %v5454 = vpop.f32.mrb[0].mxu0
        %5455 = vmatprep.mubr.f32.mxu0 0.0
        %5456 = vmatmul.mubr.f32.gmra.mrb[0].mxu0 %v3334
        %v5457 = vpop.f32.mrb[0].mxu0
        %v5458 = vadd.f32 %v5310, %v5457
        %v5459 = vpop.f32.mrb[0].mxu0
        %5460 = vmatprep.mubr.f32.mxu0 0.0
        %5461 = vmatmul.mubr.f32.gmra.mrb[0].mxu0 %v3336
        %v5462 = vpop.f32.mrb[0].mxu0
        %v5463 = vadd.f32 %v5310, %v5462
        %v5464 = vpop.f32.mrb[0].mxu0
        %5465 = vmatprep.mubr.f32.mxu0 0.0
        %5466 = vmatmul.mubr.f32.gmra.mrb[0].mxu0 %v3338
        %v5467 = vpop.f32.mrb[0].mxu0
        %v5468 = vadd.f32 %v5310, %v5467
        %v5469 = vpop.f32.mrb[0].mxu0
        %5470 = vmatprep.mubr.f32.mxu0 0.0
        %5471 = vmatmul.mubr.f32.gmra.mrb[0].mxu0 %v3340
        %v5472 = vpop.f32.mrb[0].mxu0
        %v5473 = vadd.f32 %v5310, %v5472
        %v5474 = vpop.f32.mrb[0].mxu0
        %5475 = vmatprep.mubr.f32.mxu0 0.0
        %5476 = vmatmul.mubr.f32.gmra.mrb[0].mxu0 %v3342
        %v5477 = vpop.f32.mrb[0].mxu0
        %v5478 = vadd.f32 %v5310, %v5477
        %v5479 = vpop.f32.mrb[0].mxu0
        %5480 = vmatprep.mubr.f32.mxu0 0.0
        %5481 = vmatmul.mubr.f32.gmra.mrb[0].mxu0 %v3344
        %v5482 = vpop.f32.mrb[0].mxu0
        %v5483 = vadd.f32 %v5310, %v5482
        %v5484 = vpop.f32.mrb[0].mxu0
        %5485 = vmatprep.mubr.f32.mxu0 0.0
        %5486 = vmatmul.mubr.f32.gmra.mrb[0].mxu0 %v3346
        %v5487 = vpop.f32.mrb[0].mxu0
        %v5488 = vadd.f32 %v5310, %v5487
        %v5489 = vpop.f32.mrb[0].mxu0
        %5490 = vmatprep.mubr.f32.mxu0 0.0
        %5491 = vmatmul.mubr.f32.gmra.mrb[0].mxu0 %v3348
        %v5492 = vpop.f32.mrb[0].mxu0
        %v5493 = vadd.f32 %v5310, %v5492
        %v5494 = vpop.f32.mrb[0].mxu0
        %5495 = vmatprep.mubr.f32.mxu0 0.0
        %5496 = vmatmul.mubr.f32.gmra.mrb[0].mxu0 %v3350
        %v5497 = vpop.f32.mrb[0].mxu0
        %v5498 = vadd.f32 %v5310, %v5497
        %v5499 = vpop.f32.mrb[0].mxu0
        %5500 = vmatprep.mubr.f32.mxu0 0.0
        %5501 = vmatmul.mubr.f32.gmra.mrb[0].mxu0 %v3352
        %v5502 = vpop.f32.mrb[0].mxu0
        %v5503 = vadd.f32 %v5310, %v5502
        %v5504 = vpop.f32.mrb[0].mxu0
        %5505 = vmatprep.mubr.f32.mxu0 0.0
        %5506 = vmatmul.mubr.f32.gmra.mrb[0].mxu0 %v3354
        %v5507 = vpop.f32.mrb[0].mxu0
        %v5508 = vadd.f32 %v5310, %v5507
        %v5509 = vpop.f32.mrb[0].mxu0
        %5510 = vmatprep.mubr.f32.mxu0 0.0
        %5511 = vmatmul.mubr.f32.gmra.mrb[0].mxu0 %v3356
        %v5512 = vpop.f32.mrb[0].mxu0
        %v5513 = vadd.f32 %v5310, %v5512
        %v5514 = vpop.f32.mrb[0].mxu0
        %5515 = vmatprep.mubr.f32.mxu0 0.0
        %5516 = vmatmul.mubr.f32.gmra.mrb[0].mxu0 %v3358
        %v5517 = vpop.f32.mrb[0].mxu0
        %v5518 = vadd.f32 %v5310, %v5517
        %v5519 = vpop.f32.mrb[0].mxu0
        %5520 = vmatprep.mubr.f32.mxu0 0.0
        %5521 = vmatmul.mubr.f32.gmra.mrb[0].mxu0 %v3360
        %v5522 = vpop.f32.mrb[0].mxu0
        %v5523 = vadd.f32 %v5310, %v5522
        %v5524 = vpop.f32.mrb[0].mxu0
        %5525 = vmatprep.mubr.f32.mxu0 0.0
        %5526 = vmatmul.mubr.f32.gmra.mrb[0].mxu0 %v3362
        %v5527 = vpop.f32.mrb[0].mxu0
        %v5528 = vadd.f32 %v5310, %v5527
        %v5529 = vpop.f32.mrb[0].mxu0
        %5530 = vmatprep.mubr.f32.mxu0 0.0
        %5531 = vmatmul.mubr.f32.gmra.mrb[0].mxu0 %v3364
        %v5532 = vpop.f32.mrb[0].mxu0
        %v5533 = vadd.f32 %v5310, %v5532
        %v5534 = vpop.f32.mrb[0].mxu0
        %5535 = vmatprep.mubr.f32.mxu0 0.0
        %5536 = vmatmul.mubr.f32.gmra.mrb[0].mxu0 %v3366
        %v5537 = vpop.f32.mrb[0].mxu0
        %v5538 = vadd.f32 %v5310, %v5537
        %v5539 = vpop.f32.mrb[0].mxu0
        %5540 = vmatprep.mubr.f32.mxu0 0.0
        %5541 = vmatmul.mubr.f32.gmra.mrb[0].mxu0 %v3368
        %v5542 = vpop.f32.mrb[0].mxu0
        %v5543 = vadd.f32 %v5310, %v5542
        %v5544 = vpop.f32.mrb[0].mxu0
        %5545 = vmatprep.mubr.f32.mxu0 0.0
        %5546 = vmatmul.mubr.f32.gmra.mrb[0].mxu0 %v3370
        %v5547 = vpop.f32.mrb[0].mxu0
        %v5548 = vadd.f32 %v5310, %v5547
        %v5549 = vpop.f32.mrb[0].mxu0
        %5550 = vmatprep.mubr.f32.mxu0 0.0
        %5551 = vmatmul.mubr.f32.gmra.mrb[0].mxu0 %v3372
        %v5552 = vpop.f32.mrb[0].mxu0
        %v5553 = vadd.f32 %v5310, %v5552
        %v5554 = vpop.f32.mrb[0].mxu0
        %5555 = vmatprep.mubr.f32.mxu0 0.0
        %5556 = vmatmul.mubr.f32.gmra.mrb[0].mxu0 %v3374
        %v5557 = vpop.f32.mrb[0].mxu0
        %v5558 = vadd.f32 %v5310, %v5557
        %v5559 = vpop.f32.mrb[0].mxu0
        %5560 = vmatprep.mubr.f32.mxu0 0.0
        %5561 = vmatmul.mubr.f32.gmra.mrb[0].mxu0 %v3376
        %v5562 = vpop.f32.mrb[0].mxu0
        %v5563 = vadd.f32 %v5310, %v5562
        %v5564 = vpop.f32.mrb[0].mxu0
        %5565 = vmatprep.mubr.f32.mxu0 0.0
        %5566 = vmatmul.mubr.f32.gmra.mrb[0].mxu0 %v3378
        %v5567 = vpop.f32.mrb[0].mxu0
        %v5568 = vadd.f32 %v5310, %v5567
        %v5569 = vpop.f32.mrb[0].mxu0
        %5570 = vmatprep.mubr.f32.mxu0 0.0
        %5571 = vmatmul.mubr.f32.gmra.mrb[0].mxu0 %v3380
        %v5572 = vpop.f32.mrb[0].mxu0
        %v5573 = vadd.f32 %v5310, %v5572
        %v5574 = vpop.f32.mrb[0].mxu0
        %5575 = vmatprep.mubr.f32.mxu0 0.0
        %5576 = vmatmul.mubr.f32.gmra.mrb[0].mxu0 %v3382
        %v5577 = vpop.f32.mrb[0].mxu0
        %v5578 = vadd.f32 %v5310, %v5577
        %v5579 = vpop.f32.mrb[0].mxu0
        %5580 = vmatprep.mubr.f32.mxu0 0.0
        %5581 = vmatmul.mubr.f32.gmra.mrb[0].mxu0 %v3384
        %v5582 = vpop.f32.mrb[0].mxu0
        %v5583 = vadd.f32 %v5310, %v5582
        %v5584 = vpop.f32.mrb[0].mxu0
        %5585 = vmatprep.mubr.f32.mxu0 0.0
        %5586 = vmatmul.mubr.f32.gmra.mrb[0].mxu0 %v3386
        %v5587 = vpop.f32.mrb[0].mxu0
        %v5588 = vadd.f32 %v5310, %v5587
        %v5589 = vpop.f32.mrb[0].mxu0
        %5590 = vmatprep.mubr.f32.mxu0 0.0
        %5591 = vmatmul.mubr.f32.gmra.mrb[0].mxu0 %v3388
        %v5592 = vpop.f32.mrb[0].mxu0
        %v5593 = vadd.f32 %v5310, %v5592
        %v5594 = vpop.f32.mrb[0].mxu0
        %5595 = vmatprep.mubr.f32.mxu0 0.0
        %5596 = vmatmul.mubr.f32.gmra.mrb[0].mxu0 %v3390
        %v5597 = vpop.f32.mrb[0].mxu0
        %v5598 = vadd.f32 %v5310, %v5597
        %v5599 = vpop.f32.mrb[0].mxu0
        %5600 = vmatprep.mubr.f32.mxu0 0.0
        %5601 = vmatmul.mubr.f32.gmra.mrb[0].mxu0 %v3392
        %v5602 = vpop.f32.mrb[0].mxu0
        %v5603 = vadd.f32 %v5310, %v5602
        %v5604 = vpop.f32.mrb[0].mxu0
        %5605 = vmatprep.mubr.f32.mxu0 0.0
        %5606 = vmatmul.mubr.f32.gmra.mrb[0].mxu0 %v3394
        %v5607 = vpop.f32.mrb[0].mxu0
        %v5608 = vadd.f32 %v5310, %v5607
        %v5609 = vpop.f32.mrb[0].mxu0
        %5610 = vmatprep.mubr.f32.mxu0 0.0
        %5611 = vmatmul.mubr.f32.gmra.mrb[0].mxu0 %v3396
        %v5612 = vpop.f32.mrb[0].mxu0
        %v5613 = vadd.f32 %v5310, %v5612
        %v5614 = vpop.f32.mrb[0].mxu0
        %5615 = vmatprep.mubr.f32.mxu0 0.0
        %5616 = vmatmul.mubr.f32.gmra.mrb[0].mxu0 %v3398
        %v5617 = vpop.f32.mrb[0].mxu0
        %v5618 = vadd.f32 %v5310, %v5617
        %v5619 = vpop.f32.mrb[0].mxu0
        %5620 = vmatprep.mubr.f32.mxu0 0.0
        %5621 = vmatmul.mubr.f32.gmra.mrb[0].mxu0 %v3400
        %v5622 = vpop.f32.mrb[0].mxu0
        %v5623 = vadd.f32 %v5310, %v5622
        %v5624 = vpop.f32.mrb[0].mxu0
        %5625 = vmatprep.mubr.f32.mxu0 0.0
        %5626 = vmatmul.mubr.f32.gmra.mrb[0].mxu0 %v3402
        %v5627 = vpop.f32.mrb[0].mxu0
        %v5628 = vadd.f32 %v5310, %v5627
        %v5629 = vpop.f32.mrb[0].mxu0
        %5630 = vmatprep.mubr.f32.mxu0 0.0
        %5631 = vmatmul.mubr.f32.gmra.mrb[0].mxu0 %v3404
        %v5632 = vpop.f32.mrb[0].mxu0
        %v5633 = vadd.f32 %v5310, %v5632
        %v5634 = vpop.f32.mrb[0].mxu0
        %5635 = vmatprep.mubr.f32.mxu0 0.0
        %5636 = vmatmul.mubr.f32.gmra.mrb[0].mxu0 %v3406
        %v5637 = vpop.f32.mrb[0].mxu0
        %v5638 = vadd.f32 %v5310, %v5637
        %v5639 = vpop.f32.mrb[0].mxu0
        %5640 = vmatprep.mubr.f32.mxu0 0.0
        %5641 = vmatmul.mubr.f32.gmra.mrb[0].mxu0 %v3408
        %v5642 = vpop.f32.mrb[0].mxu0
        %v5643 = vadd.f32 %v5310, %v5642
        %v5644 = vpop.f32.mrb[0].mxu0
        %5645 = vmatprep.mubr.f32.mxu0 0.0
        %5646 = vmatmul.mubr.f32.gmra.mrb[0].mxu0 %v3410
        %v5647 = vpop.f32.mrb[0].mxu0
        %v5648 = vadd.f32 %v5310, %v5647
        %v5649 = vpop.f32.mrb[0].mxu0
        %5650 = vmatprep.mubr.f32.mxu0 0.0
        %5651 = vmatmul.mubr.f32.gmra.mrb[0].mxu0 %v3412
        %v5652 = vpop.f32.mrb[0].mxu0
        %v5653 = vadd.f32 %v5310, %v5652
        %v5654 = vpop.f32.mrb[0].mxu0
        %5655 = vmatprep.mubr.f32.mxu0 0.0
        %5656 = vmatmul.mubr.f32.gmra.mrb[0].mxu0 %v3414
        %v5657 = vpop.f32.mrb[0].mxu0
        %v5658 = vadd.f32 %v5310, %v5657
        %v5659 = vpop.f32.mrb[0].mxu0
        %5660 = vmatprep.mubr.f32.mxu0 0.0
        %5661 = vmatmul.mubr.f32.gmra.mrb[0].mxu0 %v3416
        %v5662 = vpop.f32.mrb[0].mxu0
        %v5663 = vadd.f32 %v5310, %v5662
        %v5664 = vpop.f32.mrb[0].mxu0
        %5665 = vmatprep.mubr.f32.mxu0 0.0
        %5666 = vmatmul.mubr.f32.gmra.mrb[0].mxu0 %v3418
        %v5667 = vpop.f32.mrb[0].mxu0
        %v5668 = vadd.f32 %v5310, %v5667
        %v5669 = vpop.f32.mrb[0].mxu0
        %5670 = vmatprep.mubr.f32.mxu0 0.0
        %5671 = vmatmul.mubr.f32.gmra.mrb[0].mxu0 %v3420
        %v5672 = vpop.f32.mrb[0].mxu0
        %v5673 = vadd.f32 %v5310, %v5672
        %v5674 = vpop.f32.mrb[0].mxu0
        %5675 = vmatprep.mubr.f32.mxu0 0.0
        %5676 = vmatmul.mubr.f32.gmra.mrb[0].mxu0 %v3422
        %v5677 = vpop.f32.mrb[0].mxu0
        %v5678 = vadd.f32 %v5310, %v5677
        %v5679 = vpop.f32.mrb[0].mxu0
        %5680 = vmatprep.mubr.f32.mxu0 0.0
        %5681 = vmatmul.mubr.f32.gmra.mrb[0].mxu0 %v3424
        %v5682 = vpop.f32.mrb[0].mxu0
        %v5683 = vadd.f32 %v5310, %v5682
        %v5684 = vpop.f32.mrb[0].mxu0
        %5685 = vmatprep.mubr.f32.mxu0 0.0
        %5686 = vmatmul.mubr.f32.gmra.mrb[0].mxu0 %v3426
        %v5687 = vpop.f32.mrb[0].mxu0
        %v5688 = vadd.f32 %v5310, %v5687
        %v5689 = vpop.f32.mrb[0].mxu0
        %5690 = vmatprep.mubr.f32.mxu0 0.0
        %5691 = vmatmul.mubr.f32.gmra.mrb[0].mxu0 %v3428
        %v5692 = vpop.f32.mrb[0].mxu0
        %v5693 = vadd.f32 %v5310, %v5692
        %v5694 = vpop.f32.mrb[0].mxu0
        %5695 = vdwg.mxu0
        %v5696 = vmax.f32 %v5378, 0.0
        %v5697 = vmax.f32 %v5383, 0.0
        %v5698 = vmax.f32 %v5388, 0.0
        %v5699 = vmax.f32 %v5393, 0.0
        %v5700 = vmax.f32 %v5398, 0.0
        %v5701 = vmax.f32 %v5403, 0.0
        %v5702 = vmax.f32 %v5408, 0.0
        %v5703 = vmax.f32 %v5413, 0.0
        %v5704 = vmax.f32 %v5418, 0.0
        %v5705 = vmax.f32 %v5423, 0.0
        %v5706 = vmax.f32 %v5428, 0.0
        %v5707 = vmax.f32 %v5433, 0.0
        %v5708 = vmax.f32 %v5438, 0.0
        %v5709 = vmax.f32 %v5443, 0.0
        %v5710 = vmax.f32 %v5448, 0.0
        %v5711 = vmax.f32 %v5453, 0.0
        %v5712 = vmax.f32 %v5458, 0.0
        %v5713 = vmax.f32 %v5463, 0.0
        %v5714 = vmax.f32 %v5468, 0.0
        %v5715 = vmax.f32 %v5473, 0.0
        %v5716 = vmax.f32 %v5478, 0.0
        %v5717 = vmax.f32 %v5483, 0.0
        %v5718 = vmax.f32 %v5488, 0.0
        %v5719 = vmax.f32 %v5493, 0.0
        %v5720 = vmax.f32 %v5498, 0.0
        %v5721 = vmax.f32 %v5503, 0.0
        %v5722 = vmax.f32 %v5508, 0.0
        %v5723 = vmax.f32 %v5513, 0.0
        %v5724 = vmax.f32 %v5518, 0.0
        %v5725 = vmax.f32 %v5523, 0.0
        %v5726 = vmax.f32 %v5528, 0.0
        %v5727 = vmax.f32 %v5533, 0.0
        %v5728 = vmax.f32 %v5538, 0.0
        %v5729 = vmax.f32 %v5543, 0.0
        %v5730 = vmax.f32 %v5548, 0.0
        %v5731 = vmax.f32 %v5553, 0.0
        %v5732 = vmax.f32 %v5558, 0.0
        %v5733 = vmax.f32 %v5563, 0.0
        %v5734 = vmax.f32 %v5568, 0.0
        %v5735 = vmax.f32 %v5573, 0.0
        %v5736 = vmax.f32 %v5578, 0.0
        %v5737 = vmax.f32 %v5583, 0.0
        %v5738 = vmax.f32 %v5588, 0.0
        %v5739 = vmax.f32 %v5593, 0.0
        %v5740 = vmax.f32 %v5598, 0.0
        %v5741 = vmax.f32 %v5603, 0.0
        %v5742 = vmax.f32 %v5608, 0.0
        %v5743 = vmax.f32 %v5613, 0.0
        %v5744 = vmax.f32 %v5618, 0.0
        %v5745 = vmax.f32 %v5623, 0.0
        %v5746 = vmax.f32 %v5628, 0.0
        %v5747 = vmax.f32 %v5633, 0.0
        %v5748 = vmax.f32 %v5638, 0.0
        %v5749 = vmax.f32 %v5643, 0.0
        %v5750 = vmax.f32 %v5648, 0.0
        %v5751 = vmax.f32 %v5653, 0.0
        %v5752 = vmax.f32 %v5658, 0.0
        %v5753 = vmax.f32 %v5663, 0.0
        %v5754 = vmax.f32 %v5668, 0.0
        %v5755 = vmax.f32 %v5673, 0.0
        %v5756 = vmax.f32 %v5678, 0.0
        %v5757 = vmax.f32 %v5683, 0.0
        %v5758 = vmax.f32 %v5688, 0.0
        %v5759 = vmax.f32 %v5693, 0.0
        %v5760 = vld [vmem:[%s754] sm:$0xff]
        %v5761 = vld [vmem:[%s754 + $0x8] sm:$0xff]
        %v5762 = vld [vmem:[%s754 + $0x10] sm:$0xff]
        %v5763 = vld [vmem:[%s754 + $0x18] sm:$0xff]
        %v5764 = vld [vmem:[%s754 + $0x20] sm:$0xff]
        %v5765 = vld [vmem:[%s754 + $0x28] sm:$0xff]
        %v5766 = vld [vmem:[%s754 + $0x30] sm:$0xff]
        %v5767 = vld [vmem:[%s754 + $0x38] sm:$0xff]
        %v5768 = vld [vmem:[%s754 + $0x40] sm:$0xff]
        %v5769 = vld [vmem:[%s754 + $0x48] sm:$0xff]
        %v5770 = vld [vmem:[%s754 + $0x50] sm:$0xff]
        %v5771 = vld [vmem:[%s754 + $0x58] sm:$0xff]
        %v5772 = vld [vmem:[%s754 + $0x60] sm:$0xff]
        %v5773 = vld [vmem:[%s754 + $0x68] sm:$0xff]
        %v5774 = vld [vmem:[%s754 + $0x70] sm:$0xff]
        %v5775 = vld [vmem:[%s754 + $0x78] sm:$0xff]
        %v5776 = vld [vmem:[#allocation7 + $0x1] sm:$0x1]
        %v5777 = vlaneseq
        %v5778 = vshrl.u32 %v5777, 7
        %v5779 = vsub.s32 0, %v5778
        %v5780 = vrot.slane %v5776, %v5779
        %5781 = vmatprep.subr.mxu0 0.0
        %5782 = vmatpush1.msra.mxu0 %v5760
        %5783 = vmatprep.subr.mxu0 0.0
        %5784 = vmatpush1.msra.mxu0 %v5761
        %5785 = vmatprep.subr.mxu0 0.0
        %5786 = vmatpush1.msra.mxu0 %v5762
        %5787 = vmatprep.subr.mxu0 0.0
        %5788 = vmatpush1.msra.mxu0 %v5763
        %5789 = vmatprep.subr.mxu0 0.0
        %5790 = vmatpush1.msra.mxu0 %v5764
        %5791 = vmatprep.subr.mxu0 0.0
        %5792 = vmatpush1.msra.mxu0 %v5765
        %5793 = vmatprep.subr.mxu0 0.0
        %5794 = vmatpush1.msra.mxu0 %v5766
        %5795 = vmatprep.subr.mxu0 0.0
        %5796 = vmatpush1.msra.mxu0 %v5767
        %5797 = vmatprep.subr.mxu0 0.0
        %5798 = vmatpush1.msra.mxu0 %v5768
        %5799 = vmatprep.subr.mxu0 0.0
        %5800 = vmatpush1.msra.mxu0 %v5769
        %5801 = vmatprep.subr.mxu0 0.0
        %5802 = vmatpush1.msra.mxu0 %v5770
        %5803 = vmatprep.subr.mxu0 0.0
        %5804 = vmatpush1.msra.mxu0 %v5771
        %5805 = vmatprep.subr.mxu0 0.0
        %5806 = vmatpush1.msra.mxu0 %v5772
        %5807 = vmatprep.subr.mxu0 0.0
        %5808 = vmatpush1.msra.mxu0 %v5773
        %5809 = vmatprep.subr.mxu0 0.0
        %5810 = vmatpush1.msra.mxu0 %v5774
        %5811 = vmatprep.subr.mxu0 0.0
        %5812 = vmatpush1.msra.mxu0 %v5775
        %5813 = vmatprep.subr.mxu0 0.0
        %5814 = vmatpush1.msra.mxu0 0.0
        %5815 = vmatprep.subr.mxu0 0.0
        %5816 = vmatpush1.msra.mxu0 0.0
        %5817 = vmatprep.subr.mxu0 0.0
        %5818 = vmatpush1.msra.mxu0 0.0
        %5819 = vmatprep.subr.mxu0 0.0
        %5820 = vmatpush1.msra.mxu0 0.0
        %5821 = vmatprep.subr.mxu0 0.0
        %5822 = vmatpush1.msra.mxu0 0.0
        %5823 = vmatprep.subr.mxu0 0.0
        %5824 = vmatpush1.msra.mxu0 0.0
        %5825 = vmatprep.subr.mxu0 0.0
        %5826 = vmatpush1.msra.mxu0 0.0
        %5827 = vmatprep.subr.mxu0 0.0
        %5828 = vmatpush1.msra.mxu0 0.0
        %5829 = vmatprep.subr.mxu0 0.0
        %5830 = vmatpush1.msra.mxu0 0.0
        %5831 = vmatprep.subr.mxu0 0.0
        %5832 = vmatpush1.msra.mxu0 0.0
        %5833 = vmatprep.subr.mxu0 0.0
        %5834 = vmatpush1.msra.mxu0 0.0
        %5835 = vmatprep.subr.mxu0 0.0
        %5836 = vmatpush1.msra.mxu0 0.0
        %5837 = vmatprep.subr.mxu0 0.0
        %5838 = vmatpush1.msra.mxu0 0.0
        %5839 = vmatprep.subr.mxu0 0.0
        %5840 = vmatpush1.msra.mxu0 0.0
        %5841 = vmatprep.subr.mxu0 0.0
        %5842 = vmatpush1.msra.mxu0 0.0
        %5843 = vmatprep.subr.mxu0 0.0
        %5844 = vmatpush1.msra.mxu0 0.0
        %5845 = vmatprep.mubr.f32.mxu0 0.0
        %5846 = vmatmul.mubr.f32.gmra.mrb[0].mxu0 %v5696
        %v5847 = vpop.f32.mrb[0].mxu0
        %v5848 = vadd.f32 %v5780, %v5847
        %v5849 = vpop.f32.mrb[0].mxu0
        %5850 = vmatprep.mubr.f32.mxu0 0.0
        %5851 = vmatmul.mubr.f32.gmra.mrb[0].mxu0 %v5697
        %v5852 = vpop.f32.mrb[0].mxu0
        %v5853 = vadd.f32 %v5780, %v5852
        %v5854 = vpop.f32.mrb[0].mxu0
        %5855 = vmatprep.mubr.f32.mxu0 0.0
        %5856 = vmatmul.mubr.f32.gmra.mrb[0].mxu0 %v5698
        %v5857 = vpop.f32.mrb[0].mxu0
        %v5858 = vadd.f32 %v5780, %v5857
        %v5859 = vpop.f32.mrb[0].mxu0
        %5860 = vmatprep.mubr.f32.mxu0 0.0
        %5861 = vmatmul.mubr.f32.gmra.mrb[0].mxu0 %v5699
        %v5862 = vpop.f32.mrb[0].mxu0
        %v5863 = vadd.f32 %v5780, %v5862
        %v5864 = vpop.f32.mrb[0].mxu0
        %5865 = vmatprep.mubr.f32.mxu0 0.0
        %5866 = vmatmul.mubr.f32.gmra.mrb[0].mxu0 %v5700
        %v5867 = vpop.f32.mrb[0].mxu0
        %v5868 = vadd.f32 %v5780, %v5867
        %v5869 = vpop.f32.mrb[0].mxu0
        %5870 = vmatprep.mubr.f32.mxu0 0.0
        %5871 = vmatmul.mubr.f32.gmra.mrb[0].mxu0 %v5701
        %v5872 = vpop.f32.mrb[0].mxu0
        %v5873 = vadd.f32 %v5780, %v5872
        %v5874 = vpop.f32.mrb[0].mxu0
        %5875 = vmatprep.mubr.f32.mxu0 0.0
        %5876 = vmatmul.mubr.f32.gmra.mrb[0].mxu0 %v5702
        %v5877 = vpop.f32.mrb[0].mxu0
        %v5878 = vadd.f32 %v5780, %v5877
        %v5879 = vpop.f32.mrb[0].mxu0
        %5880 = vmatprep.mubr.f32.mxu0 0.0
        %5881 = vmatmul.mubr.f32.gmra.mrb[0].mxu0 %v5703
        %v5882 = vpop.f32.mrb[0].mxu0
        %v5883 = vadd.f32 %v5780, %v5882
        %v5884 = vpop.f32.mrb[0].mxu0
        %5885 = vmatprep.mubr.f32.mxu0 0.0
        %5886 = vmatmul.mubr.f32.gmra.mrb[0].mxu0 %v5704
        %v5887 = vpop.f32.mrb[0].mxu0
        %v5888 = vadd.f32 %v5780, %v5887
        %v5889 = vpop.f32.mrb[0].mxu0
        %5890 = vmatprep.mubr.f32.mxu0 0.0
        %5891 = vmatmul.mubr.f32.gmra.mrb[0].mxu0 %v5705
        %v5892 = vpop.f32.mrb[0].mxu0
        %v5893 = vadd.f32 %v5780, %v5892
        %v5894 = vpop.f32.mrb[0].mxu0
        %5895 = vmatprep.mubr.f32.mxu0 0.0
        %5896 = vmatmul.mubr.f32.gmra.mrb[0].mxu0 %v5706
        %v5897 = vpop.f32.mrb[0].mxu0
        %v5898 = vadd.f32 %v5780, %v5897
        %v5899 = vpop.f32.mrb[0].mxu0
        %5900 = vmatprep.mubr.f32.mxu0 0.0
        %5901 = vmatmul.mubr.f32.gmra.mrb[0].mxu0 %v5707
        %v5902 = vpop.f32.mrb[0].mxu0
        %v5903 = vadd.f32 %v5780, %v5902
        %v5904 = vpop.f32.mrb[0].mxu0
        %5905 = vmatprep.mubr.f32.mxu0 0.0
        %5906 = vmatmul.mubr.f32.gmra.mrb[0].mxu0 %v5708
        %v5907 = vpop.f32.mrb[0].mxu0
        %v5908 = vadd.f32 %v5780, %v5907
        %v5909 = vpop.f32.mrb[0].mxu0
        %5910 = vmatprep.mubr.f32.mxu0 0.0
        %5911 = vmatmul.mubr.f32.gmra.mrb[0].mxu0 %v5709
        %v5912 = vpop.f32.mrb[0].mxu0
        %v5913 = vadd.f32 %v5780, %v5912
        %v5914 = vpop.f32.mrb[0].mxu0
        %5915 = vmatprep.mubr.f32.mxu0 0.0
        %5916 = vmatmul.mubr.f32.gmra.mrb[0].mxu0 %v5710
        %v5917 = vpop.f32.mrb[0].mxu0
        %v5918 = vadd.f32 %v5780, %v5917
        %v5919 = vpop.f32.mrb[0].mxu0
        %5920 = vmatprep.mubr.f32.mxu0 0.0
        %5921 = vmatmul.mubr.f32.gmra.mrb[0].mxu0 %v5711
        %v5922 = vpop.f32.mrb[0].mxu0
        %v5923 = vadd.f32 %v5780, %v5922
        %v5924 = vpop.f32.mrb[0].mxu0
        %5925 = vmatprep.mubr.f32.mxu0 0.0
        %5926 = vmatmul.mubr.f32.gmra.mrb[0].mxu0 %v5712
        %v5927 = vpop.f32.mrb[0].mxu0
        %v5928 = vadd.f32 %v5780, %v5927
        %v5929 = vpop.f32.mrb[0].mxu0
        %5930 = vmatprep.mubr.f32.mxu0 0.0
        %5931 = vmatmul.mubr.f32.gmra.mrb[0].mxu0 %v5713
        %v5932 = vpop.f32.mrb[0].mxu0
        %v5933 = vadd.f32 %v5780, %v5932
        %v5934 = vpop.f32.mrb[0].mxu0
        %5935 = vmatprep.mubr.f32.mxu0 0.0
        %5936 = vmatmul.mubr.f32.gmra.mrb[0].mxu0 %v5714
        %v5937 = vpop.f32.mrb[0].mxu0
        %v5938 = vadd.f32 %v5780, %v5937
        %v5939 = vpop.f32.mrb[0].mxu0
        %5940 = vmatprep.mubr.f32.mxu0 0.0
        %5941 = vmatmul.mubr.f32.gmra.mrb[0].mxu0 %v5715
        %v5942 = vpop.f32.mrb[0].mxu0
        %v5943 = vadd.f32 %v5780, %v5942
        %v5944 = vpop.f32.mrb[0].mxu0
        %5945 = vmatprep.mubr.f32.mxu0 0.0
        %5946 = vmatmul.mubr.f32.gmra.mrb[0].mxu0 %v5716
        %v5947 = vpop.f32.mrb[0].mxu0
        %v5948 = vadd.f32 %v5780, %v5947
        %v5949 = vpop.f32.mrb[0].mxu0
        %5950 = vmatprep.mubr.f32.mxu0 0.0
        %5951 = vmatmul.mubr.f32.gmra.mrb[0].mxu0 %v5717
        %v5952 = vpop.f32.mrb[0].mxu0
        %v5953 = vadd.f32 %v5780, %v5952
        %v5954 = vpop.f32.mrb[0].mxu0
        %5955 = vmatprep.mubr.f32.mxu0 0.0
        %5956 = vmatmul.mubr.f32.gmra.mrb[0].mxu0 %v5718
        %v5957 = vpop.f32.mrb[0].mxu0
        %v5958 = vadd.f32 %v5780, %v5957
        %v5959 = vpop.f32.mrb[0].mxu0
        %5960 = vmatprep.mubr.f32.mxu0 0.0
        %5961 = vmatmul.mubr.f32.gmra.mrb[0].mxu0 %v5719
        %v5962 = vpop.f32.mrb[0].mxu0
        %v5963 = vadd.f32 %v5780, %v5962
        %v5964 = vpop.f32.mrb[0].mxu0
        %5965 = vmatprep.mubr.f32.mxu0 0.0
        %5966 = vmatmul.mubr.f32.gmra.mrb[0].mxu0 %v5720
        %v5967 = vpop.f32.mrb[0].mxu0
        %v5968 = vadd.f32 %v5780, %v5967
        %v5969 = vpop.f32.mrb[0].mxu0
        %5970 = vmatprep.mubr.f32.mxu0 0.0
        %5971 = vmatmul.mubr.f32.gmra.mrb[0].mxu0 %v5721
        %v5972 = vpop.f32.mrb[0].mxu0
        %v5973 = vadd.f32 %v5780, %v5972
        %v5974 = vpop.f32.mrb[0].mxu0
        %5975 = vmatprep.mubr.f32.mxu0 0.0
        %5976 = vmatmul.mubr.f32.gmra.mrb[0].mxu0 %v5722
        %v5977 = vpop.f32.mrb[0].mxu0
        %v5978 = vadd.f32 %v5780, %v5977
        %v5979 = vpop.f32.mrb[0].mxu0
        %5980 = vmatprep.mubr.f32.mxu0 0.0
        %5981 = vmatmul.mubr.f32.gmra.mrb[0].mxu0 %v5723
        %v5982 = vpop.f32.mrb[0].mxu0
        %v5983 = vadd.f32 %v5780, %v5982
        %v5984 = vpop.f32.mrb[0].mxu0
        %5985 = vmatprep.mubr.f32.mxu0 0.0
        %5986 = vmatmul.mubr.f32.gmra.mrb[0].mxu0 %v5724
        %v5987 = vpop.f32.mrb[0].mxu0
        %v5988 = vadd.f32 %v5780, %v5987
        %v5989 = vpop.f32.mrb[0].mxu0
        %5990 = vmatprep.mubr.f32.mxu0 0.0
        %5991 = vmatmul.mubr.f32.gmra.mrb[0].mxu0 %v5725
        %v5992 = vpop.f32.mrb[0].mxu0
        %v5993 = vadd.f32 %v5780, %v5992
        %v5994 = vpop.f32.mrb[0].mxu0
        %5995 = vmatprep.mubr.f32.mxu0 0.0
        %5996 = vmatmul.mubr.f32.gmra.mrb[0].mxu0 %v5726
        %v5997 = vpop.f32.mrb[0].mxu0
        %v5998 = vadd.f32 %v5780, %v5997
        %v5999 = vpop.f32.mrb[0].mxu0
        %6000 = vmatprep.mubr.f32.mxu0 0.0
        %6001 = vmatmul.mubr.f32.gmra.mrb[0].mxu0 %v5727
        %v6002 = vpop.f32.mrb[0].mxu0
        %v6003 = vadd.f32 %v5780, %v6002
        %v6004 = vpop.f32.mrb[0].mxu0
        %6005 = vmatprep.mubr.f32.mxu0 0.0
        %6006 = vmatmul.mubr.f32.gmra.mrb[0].mxu0 %v5728
        %v6007 = vpop.f32.mrb[0].mxu0
        %v6008 = vadd.f32 %v5780, %v6007
        %v6009 = vpop.f32.mrb[0].mxu0
        %6010 = vmatprep.mubr.f32.mxu0 0.0
        %6011 = vmatmul.mubr.f32.gmra.mrb[0].mxu0 %v5729
        %v6012 = vpop.f32.mrb[0].mxu0
        %v6013 = vadd.f32 %v5780, %v6012
        %v6014 = vpop.f32.mrb[0].mxu0
        %6015 = vmatprep.mubr.f32.mxu0 0.0
        %6016 = vmatmul.mubr.f32.gmra.mrb[0].mxu0 %v5730
        %v6017 = vpop.f32.mrb[0].mxu0
        %v6018 = vadd.f32 %v5780, %v6017
        %v6019 = vpop.f32.mrb[0].mxu0
        %6020 = vmatprep.mubr.f32.mxu0 0.0
        %6021 = vmatmul.mubr.f32.gmra.mrb[0].mxu0 %v5731
        %v6022 = vpop.f32.mrb[0].mxu0
        %v6023 = vadd.f32 %v5780, %v6022
        %v6024 = vpop.f32.mrb[0].mxu0
        %6025 = vmatprep.mubr.f32.mxu0 0.0
        %6026 = vmatmul.mubr.f32.gmra.mrb[0].mxu0 %v5732
        %v6027 = vpop.f32.mrb[0].mxu0
        %v6028 = vadd.f32 %v5780, %v6027
        %v6029 = vpop.f32.mrb[0].mxu0
        %6030 = vmatprep.mubr.f32.mxu0 0.0
        %6031 = vmatmul.mubr.f32.gmra.mrb[0].mxu0 %v5733
        %v6032 = vpop.f32.mrb[0].mxu0
        %v6033 = vadd.f32 %v5780, %v6032
        %v6034 = vpop.f32.mrb[0].mxu0
        %6035 = vmatprep.mubr.f32.mxu0 0.0
        %6036 = vmatmul.mubr.f32.gmra.mrb[0].mxu0 %v5734
        %v6037 = vpop.f32.mrb[0].mxu0
        %v6038 = vadd.f32 %v5780, %v6037
        %v6039 = vpop.f32.mrb[0].mxu0
        %6040 = vmatprep.mubr.f32.mxu0 0.0
        %6041 = vmatmul.mubr.f32.gmra.mrb[0].mxu0 %v5735
        %v6042 = vpop.f32.mrb[0].mxu0
        %v6043 = vadd.f32 %v5780, %v6042
        %v6044 = vpop.f32.mrb[0].mxu0
        %6045 = vmatprep.mubr.f32.mxu0 0.0
        %6046 = vmatmul.mubr.f32.gmra.mrb[0].mxu0 %v5736
        %v6047 = vpop.f32.mrb[0].mxu0
        %v6048 = vadd.f32 %v5780, %v6047
        %v6049 = vpop.f32.mrb[0].mxu0
        %6050 = vmatprep.mubr.f32.mxu0 0.0
        %6051 = vmatmul.mubr.f32.gmra.mrb[0].mxu0 %v5737
        %v6052 = vpop.f32.mrb[0].mxu0
        %v6053 = vadd.f32 %v5780, %v6052
        %v6054 = vpop.f32.mrb[0].mxu0
        %6055 = vmatprep.mubr.f32.mxu0 0.0
        %6056 = vmatmul.mubr.f32.gmra.mrb[0].mxu0 %v5738
        %v6057 = vpop.f32.mrb[0].mxu0
        %v6058 = vadd.f32 %v5780, %v6057
        %v6059 = vpop.f32.mrb[0].mxu0
        %6060 = vmatprep.mubr.f32.mxu0 0.0
        %6061 = vmatmul.mubr.f32.gmra.mrb[0].mxu0 %v5739
        %v6062 = vpop.f32.mrb[0].mxu0
        %v6063 = vadd.f32 %v5780, %v6062
        %v6064 = vpop.f32.mrb[0].mxu0
        %6065 = vmatprep.mubr.f32.mxu0 0.0
        %6066 = vmatmul.mubr.f32.gmra.mrb[0].mxu0 %v5740
        %v6067 = vpop.f32.mrb[0].mxu0
        %v6068 = vadd.f32 %v5780, %v6067
        %v6069 = vpop.f32.mrb[0].mxu0
        %6070 = vmatprep.mubr.f32.mxu0 0.0
        %6071 = vmatmul.mubr.f32.gmra.mrb[0].mxu0 %v5741
        %v6072 = vpop.f32.mrb[0].mxu0
        %v6073 = vadd.f32 %v5780, %v6072
        %v6074 = vpop.f32.mrb[0].mxu0
        %6075 = vmatprep.mubr.f32.mxu0 0.0
        %6076 = vmatmul.mubr.f32.gmra.mrb[0].mxu0 %v5742
        %v6077 = vpop.f32.mrb[0].mxu0
        %v6078 = vadd.f32 %v5780, %v6077
        %v6079 = vpop.f32.mrb[0].mxu0
        %6080 = vmatprep.mubr.f32.mxu0 0.0
        %6081 = vmatmul.mubr.f32.gmra.mrb[0].mxu0 %v5743
        %v6082 = vpop.f32.mrb[0].mxu0
        %v6083 = vadd.f32 %v5780, %v6082
        %v6084 = vpop.f32.mrb[0].mxu0
        %6085 = vmatprep.mubr.f32.mxu0 0.0
        %6086 = vmatmul.mubr.f32.gmra.mrb[0].mxu0 %v5744
        %v6087 = vpop.f32.mrb[0].mxu0
        %v6088 = vadd.f32 %v5780, %v6087
        %v6089 = vpop.f32.mrb[0].mxu0
        %6090 = vmatprep.mubr.f32.mxu0 0.0
        %6091 = vmatmul.mubr.f32.gmra.mrb[0].mxu0 %v5745
        %v6092 = vpop.f32.mrb[0].mxu0
        %v6093 = vadd.f32 %v5780, %v6092
        %v6094 = vpop.f32.mrb[0].mxu0
        %6095 = vmatprep.mubr.f32.mxu0 0.0
        %6096 = vmatmul.mubr.f32.gmra.mrb[0].mxu0 %v5746
        %v6097 = vpop.f32.mrb[0].mxu0
        %v6098 = vadd.f32 %v5780, %v6097
        %v6099 = vpop.f32.mrb[0].mxu0
        %6100 = vmatprep.mubr.f32.mxu0 0.0
        %6101 = vmatmul.mubr.f32.gmra.mrb[0].mxu0 %v5747
        %v6102 = vpop.f32.mrb[0].mxu0
        %v6103 = vadd.f32 %v5780, %v6102
        %v6104 = vpop.f32.mrb[0].mxu0
        %6105 = vmatprep.mubr.f32.mxu0 0.0
        %6106 = vmatmul.mubr.f32.gmra.mrb[0].mxu0 %v5748
        %v6107 = vpop.f32.mrb[0].mxu0
        %v6108 = vadd.f32 %v5780, %v6107
        %v6109 = vpop.f32.mrb[0].mxu0
        %6110 = vmatprep.mubr.f32.mxu0 0.0
        %6111 = vmatmul.mubr.f32.gmra.mrb[0].mxu0 %v5749
        %v6112 = vpop.f32.mrb[0].mxu0
        %v6113 = vadd.f32 %v5780, %v6112
        %v6114 = vpop.f32.mrb[0].mxu0
        %6115 = vmatprep.mubr.f32.mxu0 0.0
        %6116 = vmatmul.mubr.f32.gmra.mrb[0].mxu0 %v5750
        %v6117 = vpop.f32.mrb[0].mxu0
        %v6118 = vadd.f32 %v5780, %v6117
        %v6119 = vpop.f32.mrb[0].mxu0
        %6120 = vmatprep.mubr.f32.mxu0 0.0
        %6121 = vmatmul.mubr.f32.gmra.mrb[0].mxu0 %v5751
        %v6122 = vpop.f32.mrb[0].mxu0
        %v6123 = vadd.f32 %v5780, %v6122
        %v6124 = vpop.f32.mrb[0].mxu0
        %6125 = vmatprep.mubr.f32.mxu0 0.0
        %6126 = vmatmul.mubr.f32.gmra.mrb[0].mxu0 %v5752
        %v6127 = vpop.f32.mrb[0].mxu0
        %v6128 = vadd.f32 %v5780, %v6127
        %v6129 = vpop.f32.mrb[0].mxu0
        %6130 = vmatprep.mubr.f32.mxu0 0.0
        %6131 = vmatmul.mubr.f32.gmra.mrb[0].mxu0 %v5753
        %v6132 = vpop.f32.mrb[0].mxu0
        %v6133 = vadd.f32 %v5780, %v6132
        %v6134 = vpop.f32.mrb[0].mxu0
        %6135 = vmatprep.mubr.f32.mxu0 0.0
        %6136 = vmatmul.mubr.f32.gmra.mrb[0].mxu0 %v5754
        %v6137 = vpop.f32.mrb[0].mxu0
        %v6138 = vadd.f32 %v5780, %v6137
        %v6139 = vpop.f32.mrb[0].mxu0
        %6140 = vmatprep.mubr.f32.mxu0 0.0
        %6141 = vmatmul.mubr.f32.gmra.mrb[0].mxu0 %v5755
        %v6142 = vpop.f32.mrb[0].mxu0
        %v6143 = vadd.f32 %v5780, %v6142
        %v6144 = vpop.f32.mrb[0].mxu0
        %6145 = vmatprep.mubr.f32.mxu0 0.0
        %6146 = vmatmul.mubr.f32.gmra.mrb[0].mxu0 %v5756
        %v6147 = vpop.f32.mrb[0].mxu0
        %v6148 = vadd.f32 %v5780, %v6147
        %v6149 = vpop.f32.mrb[0].mxu0
        %6150 = vmatprep.mubr.f32.mxu0 0.0
        %6151 = vmatmul.mubr.f32.gmra.mrb[0].mxu0 %v5757
        %v6152 = vpop.f32.mrb[0].mxu0
        %v6153 = vadd.f32 %v5780, %v6152
        %v6154 = vpop.f32.mrb[0].mxu0
        %6155 = vmatprep.mubr.f32.mxu0 0.0
        %6156 = vmatmul.mubr.f32.gmra.mrb[0].mxu0 %v5758
        %v6157 = vpop.f32.mrb[0].mxu0
        %v6158 = vadd.f32 %v5780, %v6157
        %v6159 = vpop.f32.mrb[0].mxu0
        %6160 = vmatprep.mubr.f32.mxu0 0.0
        %6161 = vmatmul.mubr.f32.gmra.mrb[0].mxu0 %v5759
        %v6162 = vpop.f32.mrb[0].mxu0
        %v6163 = vadd.f32 %v5780, %v6162
        %v6164 = vpop.f32.mrb[0].mxu0
        %6165 = vdwg.mxu0
        %v6166 = vmax.f32 %v5848, 0.0
        %v6167 = vmax.f32 %v5853, 0.0
        %v6168 = vmax.f32 %v5858, 0.0
        %v6169 = vmax.f32 %v5863, 0.0
        %v6170 = vmax.f32 %v5868, 0.0
        %v6171 = vmax.f32 %v5873, 0.0
        %v6172 = vmax.f32 %v5878, 0.0
        %v6173 = vmax.f32 %v5883, 0.0
        %v6174 = vmax.f32 %v5888, 0.0
        %v6175 = vmax.f32 %v5893, 0.0
        %v6176 = vmax.f32 %v5898, 0.0
        %v6177 = vmax.f32 %v5903, 0.0
        %v6178 = vmax.f32 %v5908, 0.0
        %v6179 = vmax.f32 %v5913, 0.0
        %v6180 = vmax.f32 %v5918, 0.0
        %v6181 = vmax.f32 %v5923, 0.0
        %v6182 = vmax.f32 %v5928, 0.0
        %v6183 = vmax.f32 %v5933, 0.0
        %v6184 = vmax.f32 %v5938, 0.0
        %v6185 = vmax.f32 %v5943, 0.0
        %v6186 = vmax.f32 %v5948, 0.0
        %v6187 = vmax.f32 %v5953, 0.0
        %v6188 = vmax.f32 %v5958, 0.0
        %v6189 = vmax.f32 %v5963, 0.0
        %v6190 = vmax.f32 %v5968, 0.0
        %v6191 = vmax.f32 %v5973, 0.0
        %v6192 = vmax.f32 %v5978, 0.0
        %v6193 = vmax.f32 %v5983, 0.0
        %v6194 = vmax.f32 %v5988, 0.0
        %v6195 = vmax.f32 %v5993, 0.0
        %v6196 = vmax.f32 %v5998, 0.0
        %v6197 = vmax.f32 %v6003, 0.0
        %v6198 = vmax.f32 %v6008, 0.0
        %v6199 = vmax.f32 %v6013, 0.0
        %v6200 = vmax.f32 %v6018, 0.0
        %v6201 = vmax.f32 %v6023, 0.0
        %v6202 = vmax.f32 %v6028, 0.0
        %v6203 = vmax.f32 %v6033, 0.0
        %v6204 = vmax.f32 %v6038, 0.0
        %v6205 = vmax.f32 %v6043, 0.0
        %v6206 = vmax.f32 %v6048, 0.0
        %v6207 = vmax.f32 %v6053, 0.0
        %v6208 = vmax.f32 %v6058, 0.0
        %v6209 = vmax.f32 %v6063, 0.0
        %v6210 = vmax.f32 %v6068, 0.0
        %v6211 = vmax.f32 %v6073, 0.0
        %v6212 = vmax.f32 %v6078, 0.0
        %v6213 = vmax.f32 %v6083, 0.0
        %v6214 = vmax.f32 %v6088, 0.0
        %v6215 = vmax.f32 %v6093, 0.0
        %v6216 = vmax.f32 %v6098, 0.0
        %v6217 = vmax.f32 %v6103, 0.0
        %v6218 = vmax.f32 %v6108, 0.0
        %v6219 = vmax.f32 %v6113, 0.0
        %v6220 = vmax.f32 %v6118, 0.0
        %v6221 = vmax.f32 %v6123, 0.0
        %v6222 = vmax.f32 %v6128, 0.0
        %v6223 = vmax.f32 %v6133, 0.0
        %v6224 = vmax.f32 %v6138, 0.0
        %v6225 = vmax.f32 %v6143, 0.0
        %v6226 = vmax.f32 %v6148, 0.0
        %v6227 = vmax.f32 %v6153, 0.0
        %v6228 = vmax.f32 %v6158, 0.0
        %v6229 = vmax.f32 %v6163, 0.0
        %v6230 = vld [vmem:[%s1225] sm:$0xff]
        %v6231 = vld [vmem:[%s1225 + $0x8] sm:$0xff]
        %v6232 = vld [vmem:[%s1225 + $0x10] sm:$0xff]
        %v6233 = vld [vmem:[%s1225 + $0x18] sm:$0xff]
        %v6234 = vld [vmem:[%s1225 + $0x20] sm:$0xff]
        %v6235 = vld [vmem:[%s1225 + $0x28] sm:$0xff]
        %v6236 = vld [vmem:[%s1225 + $0x30] sm:$0xff]
        %v6237 = vld [vmem:[%s1225 + $0x38] sm:$0xff]
        %v6238 = vld [vmem:[%s1225 + $0x40] sm:$0xff]
        %v6239 = vld [vmem:[%s1225 + $0x48] sm:$0xff]
        %v6240 = vld [vmem:[%s1225 + $0x50] sm:$0xff]
        %v6241 = vld [vmem:[%s1225 + $0x58] sm:$0xff]
        %v6242 = vld [vmem:[%s1225 + $0x60] sm:$0xff]
        %v6243 = vld [vmem:[%s1225 + $0x68] sm:$0xff]
        %v6244 = vld [vmem:[%s1225 + $0x70] sm:$0xff]
        %v6245 = vld [vmem:[%s1225 + $0x78] sm:$0xff]
        %v6246 = vld [vmem:[#allocation7 + $0x2] sm:$0x1]
        %v6247 = vlaneseq
        %v6248 = vshrl.u32 %v6247, 7
        %v6249 = vsub.s32 0, %v6248
        %v6250 = vrot.slane %v6246, %v6249
        %6251 = vmatprep.subr.mxu0 0.0
        %6252 = vmatpush1.msra.mxu0 %v6230
        %6253 = vmatprep.subr.mxu0 0.0
        %6254 = vmatpush1.msra.mxu0 %v6231
        %6255 = vmatprep.subr.mxu0 0.0
        %6256 = vmatpush1.msra.mxu0 %v6232
        %6257 = vmatprep.subr.mxu0 0.0
        %6258 = vmatpush1.msra.mxu0 %v6233
        %6259 = vmatprep.subr.mxu0 0.0
        %6260 = vmatpush1.msra.mxu0 %v6234
        %6261 = vmatprep.subr.mxu0 0.0
        %6262 = vmatpush1.msra.mxu0 %v6235
        %6263 = vmatprep.subr.mxu0 0.0
        %6264 = vmatpush1.msra.mxu0 %v6236
        %6265 = vmatprep.subr.mxu0 0.0
        %6266 = vmatpush1.msra.mxu0 %v6237
        %6267 = vmatprep.subr.mxu0 0.0
        %6268 = vmatpush1.msra.mxu0 %v6238
        %6269 = vmatprep.subr.mxu0 0.0
        %6270 = vmatpush1.msra.mxu0 %v6239
        %6271 = vmatprep.subr.mxu0 0.0
        %6272 = vmatpush1.msra.mxu0 %v6240
        %6273 = vmatprep.subr.mxu0 0.0
        %6274 = vmatpush1.msra.mxu0 %v6241
        %6275 = vmatprep.subr.mxu0 0.0
        %6276 = vmatpush1.msra.mxu0 %v6242
        %6277 = vmatprep.subr.mxu0 0.0
        %6278 = vmatpush1.msra.mxu0 %v6243
        %6279 = vmatprep.subr.mxu0 0.0
        %6280 = vmatpush1.msra.mxu0 %v6244
        %6281 = vmatprep.subr.mxu0 0.0
        %6282 = vmatpush1.msra.mxu0 %v6245
        %6283 = vmatprep.subr.mxu0 0.0
        %6284 = vmatpush1.msra.mxu0 0.0
        %6285 = vmatprep.subr.mxu0 0.0
        %6286 = vmatpush1.msra.mxu0 0.0
        %6287 = vmatprep.subr.mxu0 0.0
        %6288 = vmatpush1.msra.mxu0 0.0
        %6289 = vmatprep.subr.mxu0 0.0
        %6290 = vmatpush1.msra.mxu0 0.0
        %6291 = vmatprep.subr.mxu0 0.0
        %6292 = vmatpush1.msra.mxu0 0.0
        %6293 = vmatprep.subr.mxu0 0.0
        %6294 = vmatpush1.msra.mxu0 0.0
        %6295 = vmatprep.subr.mxu0 0.0
        %6296 = vmatpush1.msra.mxu0 0.0
        %6297 = vmatprep.subr.mxu0 0.0
        %6298 = vmatpush1.msra.mxu0 0.0
        %6299 = vmatprep.subr.mxu0 0.0
        %6300 = vmatpush1.msra.mxu0 0.0
        %6301 = vmatprep.subr.mxu0 0.0
        %6302 = vmatpush1.msra.mxu0 0.0
        %6303 = vmatprep.subr.mxu0 0.0
        %6304 = vmatpush1.msra.mxu0 0.0
        %6305 = vmatprep.subr.mxu0 0.0
        %6306 = vmatpush1.msra.mxu0 0.0
        %6307 = vmatprep.subr.mxu0 0.0
        %6308 = vmatpush1.msra.mxu0 0.0
        %6309 = vmatprep.subr.mxu0 0.0
        %6310 = vmatpush1.msra.mxu0 0.0
        %6311 = vmatprep.subr.mxu0 0.0
        %6312 = vmatpush1.msra.mxu0 0.0
        %6313 = vmatprep.subr.mxu0 0.0
        %6314 = vmatpush1.msra.mxu0 0.0
        %6315 = vmatprep.mubr.f32.mxu0 0.0
        %6316 = vmatmul.mubr.f32.gmra.mrb[0].mxu0 %v6166
        %v6317 = vpop.f32.mrb[0].mxu0
        %v6318 = vadd.f32 %v6250, %v6317
        %v6319 = vpop.f32.mrb[0].mxu0
        %6320 = vmatprep.mubr.f32.mxu0 0.0
        %6321 = vmatmul.mubr.f32.gmra.mrb[0].mxu0 %v6167
        %v6322 = vpop.f32.mrb[0].mxu0
        %v6323 = vadd.f32 %v6250, %v6322
        %v6324 = vpop.f32.mrb[0].mxu0
        %6325 = vmatprep.mubr.f32.mxu0 0.0
        %6326 = vmatmul.mubr.f32.gmra.mrb[0].mxu0 %v6168
        %v6327 = vpop.f32.mrb[0].mxu0
        %v6328 = vadd.f32 %v6250, %v6327
        %v6329 = vpop.f32.mrb[0].mxu0
        %6330 = vmatprep.mubr.f32.mxu0 0.0
        %6331 = vmatmul.mubr.f32.gmra.mrb[0].mxu0 %v6169
        %v6332 = vpop.f32.mrb[0].mxu0
        %v6333 = vadd.f32 %v6250, %v6332
        %v6334 = vpop.f32.mrb[0].mxu0
        %6335 = vmatprep.mubr.f32.mxu0 0.0
        %6336 = vmatmul.mubr.f32.gmra.mrb[0].mxu0 %v6170
        %v6337 = vpop.f32.mrb[0].mxu0
        %v6338 = vadd.f32 %v6250, %v6337
        %v6339 = vpop.f32.mrb[0].mxu0
        %6340 = vmatprep.mubr.f32.mxu0 0.0
        %6341 = vmatmul.mubr.f32.gmra.mrb[0].mxu0 %v6171
        %v6342 = vpop.f32.mrb[0].mxu0
        %v6343 = vadd.f32 %v6250, %v6342
        %v6344 = vpop.f32.mrb[0].mxu0
        %6345 = vmatprep.mubr.f32.mxu0 0.0
        %6346 = vmatmul.mubr.f32.gmra.mrb[0].mxu0 %v6172
        %v6347 = vpop.f32.mrb[0].mxu0
        %v6348 = vadd.f32 %v6250, %v6347
        %v6349 = vpop.f32.mrb[0].mxu0
        %6350 = vmatprep.mubr.f32.mxu0 0.0
        %6351 = vmatmul.mubr.f32.gmra.mrb[0].mxu0 %v6173
        %v6352 = vpop.f32.mrb[0].mxu0
        %v6353 = vadd.f32 %v6250, %v6352
        %v6354 = vpop.f32.mrb[0].mxu0
        %6355 = vmatprep.mubr.f32.mxu0 0.0
        %6356 = vmatmul.mubr.f32.gmra.mrb[0].mxu0 %v6174
        %v6357 = vpop.f32.mrb[0].mxu0
        %v6358 = vadd.f32 %v6250, %v6357
        %v6359 = vpop.f32.mrb[0].mxu0
        %6360 = vmatprep.mubr.f32.mxu0 0.0
        %6361 = vmatmul.mubr.f32.gmra.mrb[0].mxu0 %v6175
        %v6362 = vpop.f32.mrb[0].mxu0
        %v6363 = vadd.f32 %v6250, %v6362
        %v6364 = vpop.f32.mrb[0].mxu0
        %6365 = vmatprep.mubr.f32.mxu0 0.0
        %6366 = vmatmul.mubr.f32.gmra.mrb[0].mxu0 %v6176
        %v6367 = vpop.f32.mrb[0].mxu0
        %v6368 = vadd.f32 %v6250, %v6367
        %v6369 = vpop.f32.mrb[0].mxu0
        %6370 = vmatprep.mubr.f32.mxu0 0.0
        %6371 = vmatmul.mubr.f32.gmra.mrb[0].mxu0 %v6177
        %v6372 = vpop.f32.mrb[0].mxu0
        %v6373 = vadd.f32 %v6250, %v6372
        %v6374 = vpop.f32.mrb[0].mxu0
        %6375 = vmatprep.mubr.f32.mxu0 0.0
        %6376 = vmatmul.mubr.f32.gmra.mrb[0].mxu0 %v6178
        %v6377 = vpop.f32.mrb[0].mxu0
        %v6378 = vadd.f32 %v6250, %v6377
        %v6379 = vpop.f32.mrb[0].mxu0
        %6380 = vmatprep.mubr.f32.mxu0 0.0
        %6381 = vmatmul.mubr.f32.gmra.mrb[0].mxu0 %v6179
        %v6382 = vpop.f32.mrb[0].mxu0
        %v6383 = vadd.f32 %v6250, %v6382
        %v6384 = vpop.f32.mrb[0].mxu0
        %6385 = vmatprep.mubr.f32.mxu0 0.0
        %6386 = vmatmul.mubr.f32.gmra.mrb[0].mxu0 %v6180
        %v6387 = vpop.f32.mrb[0].mxu0
        %v6388 = vadd.f32 %v6250, %v6387
        %v6389 = vpop.f32.mrb[0].mxu0
        %6390 = vmatprep.mubr.f32.mxu0 0.0
        %6391 = vmatmul.mubr.f32.gmra.mrb[0].mxu0 %v6181
        %v6392 = vpop.f32.mrb[0].mxu0
        %v6393 = vadd.f32 %v6250, %v6392
        %v6394 = vpop.f32.mrb[0].mxu0
        %6395 = vmatprep.mubr.f32.mxu0 0.0
        %6396 = vmatmul.mubr.f32.gmra.mrb[0].mxu0 %v6182
        %v6397 = vpop.f32.mrb[0].mxu0
        %v6398 = vadd.f32 %v6250, %v6397
        %v6399 = vpop.f32.mrb[0].mxu0
        %6400 = vmatprep.mubr.f32.mxu0 0.0
        %6401 = vmatmul.mubr.f32.gmra.mrb[0].mxu0 %v6183
        %v6402 = vpop.f32.mrb[0].mxu0
        %v6403 = vadd.f32 %v6250, %v6402
        %v6404 = vpop.f32.mrb[0].mxu0
        %6405 = vmatprep.mubr.f32.mxu0 0.0
        %6406 = vmatmul.mubr.f32.gmra.mrb[0].mxu0 %v6184
        %v6407 = vpop.f32.mrb[0].mxu0
        %v6408 = vadd.f32 %v6250, %v6407
        %v6409 = vpop.f32.mrb[0].mxu0
        %6410 = vmatprep.mubr.f32.mxu0 0.0
        %6411 = vmatmul.mubr.f32.gmra.mrb[0].mxu0 %v6185
        %v6412 = vpop.f32.mrb[0].mxu0
        %v6413 = vadd.f32 %v6250, %v6412
        %v6414 = vpop.f32.mrb[0].mxu0
        %6415 = vmatprep.mubr.f32.mxu0 0.0
        %6416 = vmatmul.mubr.f32.gmra.mrb[0].mxu0 %v6186
        %v6417 = vpop.f32.mrb[0].mxu0
        %v6418 = vadd.f32 %v6250, %v6417
        %v6419 = vpop.f32.mrb[0].mxu0
        %6420 = vmatprep.mubr.f32.mxu0 0.0
        %6421 = vmatmul.mubr.f32.gmra.mrb[0].mxu0 %v6187
        %v6422 = vpop.f32.mrb[0].mxu0
        %v6423 = vadd.f32 %v6250, %v6422
        %v6424 = vpop.f32.mrb[0].mxu0
        %6425 = vmatprep.mubr.f32.mxu0 0.0
        %6426 = vmatmul.mubr.f32.gmra.mrb[0].mxu0 %v6188
        %v6427 = vpop.f32.mrb[0].mxu0
        %v6428 = vadd.f32 %v6250, %v6427
        %v6429 = vpop.f32.mrb[0].mxu0
        %6430 = vmatprep.mubr.f32.mxu0 0.0
        %6431 = vmatmul.mubr.f32.gmra.mrb[0].mxu0 %v6189
        %v6432 = vpop.f32.mrb[0].mxu0
        %v6433 = vadd.f32 %v6250, %v6432
        %v6434 = vpop.f32.mrb[0].mxu0
        %6435 = vmatprep.mubr.f32.mxu0 0.0
        %6436 = vmatmul.mubr.f32.gmra.mrb[0].mxu0 %v6190
        %v6437 = vpop.f32.mrb[0].mxu0
        %v6438 = vadd.f32 %v6250, %v6437
        %v6439 = vpop.f32.mrb[0].mxu0
        %6440 = vmatprep.mubr.f32.mxu0 0.0
        %6441 = vmatmul.mubr.f32.gmra.mrb[0].mxu0 %v6191
        %v6442 = vpop.f32.mrb[0].mxu0
        %v6443 = vadd.f32 %v6250, %v6442
        %v6444 = vpop.f32.mrb[0].mxu0
        %6445 = vmatprep.mubr.f32.mxu0 0.0
        %6446 = vmatmul.mubr.f32.gmra.mrb[0].mxu0 %v6192
        %v6447 = vpop.f32.mrb[0].mxu0
        %v6448 = vadd.f32 %v6250, %v6447
        %v6449 = vpop.f32.mrb[0].mxu0
        %6450 = vmatprep.mubr.f32.mxu0 0.0
        %6451 = vmatmul.mubr.f32.gmra.mrb[0].mxu0 %v6193
        %v6452 = vpop.f32.mrb[0].mxu0
        %v6453 = vadd.f32 %v6250, %v6452
        %v6454 = vpop.f32.mrb[0].mxu0
        %6455 = vmatprep.mubr.f32.mxu0 0.0
        %6456 = vmatmul.mubr.f32.gmra.mrb[0].mxu0 %v6194
        %v6457 = vpop.f32.mrb[0].mxu0
        %v6458 = vadd.f32 %v6250, %v6457
        %v6459 = vpop.f32.mrb[0].mxu0
        %6460 = vmatprep.mubr.f32.mxu0 0.0
        %6461 = vmatmul.mubr.f32.gmra.mrb[0].mxu0 %v6195
        %v6462 = vpop.f32.mrb[0].mxu0
        %v6463 = vadd.f32 %v6250, %v6462
        %v6464 = vpop.f32.mrb[0].mxu0
        %6465 = vmatprep.mubr.f32.mxu0 0.0
        %6466 = vmatmul.mubr.f32.gmra.mrb[0].mxu0 %v6196
        %v6467 = vpop.f32.mrb[0].mxu0
        %v6468 = vadd.f32 %v6250, %v6467
        %v6469 = vpop.f32.mrb[0].mxu0
        %6470 = vmatprep.mubr.f32.mxu0 0.0
        %6471 = vmatmul.mubr.f32.gmra.mrb[0].mxu0 %v6197
        %v6472 = vpop.f32.mrb[0].mxu0
        %v6473 = vadd.f32 %v6250, %v6472
        %v6474 = vpop.f32.mrb[0].mxu0
        %6475 = vmatprep.mubr.f32.mxu0 0.0
        %6476 = vmatmul.mubr.f32.gmra.mrb[0].mxu0 %v6198
        %v6477 = vpop.f32.mrb[0].mxu0
        %v6478 = vadd.f32 %v6250, %v6477
        %v6479 = vpop.f32.mrb[0].mxu0
        %6480 = vmatprep.mubr.f32.mxu0 0.0
        %6481 = vmatmul.mubr.f32.gmra.mrb[0].mxu0 %v6199
        %v6482 = vpop.f32.mrb[0].mxu0
        %v6483 = vadd.f32 %v6250, %v6482
        %v6484 = vpop.f32.mrb[0].mxu0
        %6485 = vmatprep.mubr.f32.mxu0 0.0
        %6486 = vmatmul.mubr.f32.gmra.mrb[0].mxu0 %v6200
        %v6487 = vpop.f32.mrb[0].mxu0
        %v6488 = vadd.f32 %v6250, %v6487
        %v6489 = vpop.f32.mrb[0].mxu0
        %6490 = vmatprep.mubr.f32.mxu0 0.0
        %6491 = vmatmul.mubr.f32.gmra.mrb[0].mxu0 %v6201
        %v6492 = vpop.f32.mrb[0].mxu0
        %v6493 = vadd.f32 %v6250, %v6492
        %v6494 = vpop.f32.mrb[0].mxu0
        %6495 = vmatprep.mubr.f32.mxu0 0.0
        %6496 = vmatmul.mubr.f32.gmra.mrb[0].mxu0 %v6202
        %v6497 = vpop.f32.mrb[0].mxu0
        %v6498 = vadd.f32 %v6250, %v6497
        %v6499 = vpop.f32.mrb[0].mxu0
        %6500 = vmatprep.mubr.f32.mxu0 0.0
        %6501 = vmatmul.mubr.f32.gmra.mrb[0].mxu0 %v6203
        %v6502 = vpop.f32.mrb[0].mxu0
        %v6503 = vadd.f32 %v6250, %v6502
        %v6504 = vpop.f32.mrb[0].mxu0
        %6505 = vmatprep.mubr.f32.mxu0 0.0
        %6506 = vmatmul.mubr.f32.gmra.mrb[0].mxu0 %v6204
        %v6507 = vpop.f32.mrb[0].mxu0
        %v6508 = vadd.f32 %v6250, %v6507
        %v6509 = vpop.f32.mrb[0].mxu0
        %6510 = vmatprep.mubr.f32.mxu0 0.0
        %6511 = vmatmul.mubr.f32.gmra.mrb[0].mxu0 %v6205
        %v6512 = vpop.f32.mrb[0].mxu0
        %v6513 = vadd.f32 %v6250, %v6512
        %v6514 = vpop.f32.mrb[0].mxu0
        %6515 = vmatprep.mubr.f32.mxu0 0.0
        %6516 = vmatmul.mubr.f32.gmra.mrb[0].mxu0 %v6206
        %v6517 = vpop.f32.mrb[0].mxu0
        %v6518 = vadd.f32 %v6250, %v6517
        %v6519 = vpop.f32.mrb[0].mxu0
        %6520 = vmatprep.mubr.f32.mxu0 0.0
        %6521 = vmatmul.mubr.f32.gmra.mrb[0].mxu0 %v6207
        %v6522 = vpop.f32.mrb[0].mxu0
        %v6523 = vadd.f32 %v6250, %v6522
        %v6524 = vpop.f32.mrb[0].mxu0
        %6525 = vmatprep.mubr.f32.mxu0 0.0
        %6526 = vmatmul.mubr.f32.gmra.mrb[0].mxu0 %v6208
        %v6527 = vpop.f32.mrb[0].mxu0
        %v6528 = vadd.f32 %v6250, %v6527
        %v6529 = vpop.f32.mrb[0].mxu0
        %6530 = vmatprep.mubr.f32.mxu0 0.0
        %6531 = vmatmul.mubr.f32.gmra.mrb[0].mxu0 %v6209
        %v6532 = vpop.f32.mrb[0].mxu0
        %v6533 = vadd.f32 %v6250, %v6532
        %v6534 = vpop.f32.mrb[0].mxu0
        %6535 = vmatprep.mubr.f32.mxu0 0.0
        %6536 = vmatmul.mubr.f32.gmra.mrb[0].mxu0 %v6210
        %v6537 = vpop.f32.mrb[0].mxu0
        %v6538 = vadd.f32 %v6250, %v6537
        %v6539 = vpop.f32.mrb[0].mxu0
        %6540 = vmatprep.mubr.f32.mxu0 0.0
        %6541 = vmatmul.mubr.f32.gmra.mrb[0].mxu0 %v6211
        %v6542 = vpop.f32.mrb[0].mxu0
        %v6543 = vadd.f32 %v6250, %v6542
        %v6544 = vpop.f32.mrb[0].mxu0
        %6545 = vmatprep.mubr.f32.mxu0 0.0
        %6546 = vmatmul.mubr.f32.gmra.mrb[0].mxu0 %v6212
        %v6547 = vpop.f32.mrb[0].mxu0
        %v6548 = vadd.f32 %v6250, %v6547
        %v6549 = vpop.f32.mrb[0].mxu0
        %6550 = vmatprep.mubr.f32.mxu0 0.0
        %6551 = vmatmul.mubr.f32.gmra.mrb[0].mxu0 %v6213
        %v6552 = vpop.f32.mrb[0].mxu0
        %v6553 = vadd.f32 %v6250, %v6552
        %v6554 = vpop.f32.mrb[0].mxu0
        %6555 = vmatprep.mubr.f32.mxu0 0.0
        %6556 = vmatmul.mubr.f32.gmra.mrb[0].mxu0 %v6214
        %v6557 = vpop.f32.mrb[0].mxu0
        %v6558 = vadd.f32 %v6250, %v6557
        %v6559 = vpop.f32.mrb[0].mxu0
        %6560 = vmatprep.mubr.f32.mxu0 0.0
        %6561 = vmatmul.mubr.f32.gmra.mrb[0].mxu0 %v6215
        %v6562 = vpop.f32.mrb[0].mxu0
        %v6563 = vadd.f32 %v6250, %v6562
        %v6564 = vpop.f32.mrb[0].mxu0
        %6565 = vmatprep.mubr.f32.mxu0 0.0
        %6566 = vmatmul.mubr.f32.gmra.mrb[0].mxu0 %v6216
        %v6567 = vpop.f32.mrb[0].mxu0
        %v6568 = vadd.f32 %v6250, %v6567
        %v6569 = vpop.f32.mrb[0].mxu0
        %6570 = vmatprep.mubr.f32.mxu0 0.0
        %6571 = vmatmul.mubr.f32.gmra.mrb[0].mxu0 %v6217
        %v6572 = vpop.f32.mrb[0].mxu0
        %v6573 = vadd.f32 %v6250, %v6572
        %v6574 = vpop.f32.mrb[0].mxu0
        %6575 = vmatprep.mubr.f32.mxu0 0.0
        %6576 = vmatmul.mubr.f32.gmra.mrb[0].mxu0 %v6218
        %v6577 = vpop.f32.mrb[0].mxu0
        %v6578 = vadd.f32 %v6250, %v6577
        %v6579 = vpop.f32.mrb[0].mxu0
        %6580 = vmatprep.mubr.f32.mxu0 0.0
        %6581 = vmatmul.mubr.f32.gmra.mrb[0].mxu0 %v6219
        %v6582 = vpop.f32.mrb[0].mxu0
        %v6583 = vadd.f32 %v6250, %v6582
        %v6584 = vpop.f32.mrb[0].mxu0
        %6585 = vmatprep.mubr.f32.mxu0 0.0
        %6586 = vmatmul.mubr.f32.gmra.mrb[0].mxu0 %v6220
        %v6587 = vpop.f32.mrb[0].mxu0
        %v6588 = vadd.f32 %v6250, %v6587
        %v6589 = vpop.f32.mrb[0].mxu0
        %6590 = vmatprep.mubr.f32.mxu0 0.0
        %6591 = vmatmul.mubr.f32.gmra.mrb[0].mxu0 %v6221
        %v6592 = vpop.f32.mrb[0].mxu0
        %v6593 = vadd.f32 %v6250, %v6592
        %v6594 = vpop.f32.mrb[0].mxu0
        %6595 = vmatprep.mubr.f32.mxu0 0.0
        %6596 = vmatmul.mubr.f32.gmra.mrb[0].mxu0 %v6222
        %v6597 = vpop.f32.mrb[0].mxu0
        %v6598 = vadd.f32 %v6250, %v6597
        %v6599 = vpop.f32.mrb[0].mxu0
        %6600 = vmatprep.mubr.f32.mxu0 0.0
        %6601 = vmatmul.mubr.f32.gmra.mrb[0].mxu0 %v6223
        %v6602 = vpop.f32.mrb[0].mxu0
        %v6603 = vadd.f32 %v6250, %v6602
        %v6604 = vpop.f32.mrb[0].mxu0
        %6605 = vmatprep.mubr.f32.mxu0 0.0
        %6606 = vmatmul.mubr.f32.gmra.mrb[0].mxu0 %v6224
        %v6607 = vpop.f32.mrb[0].mxu0
        %v6608 = vadd.f32 %v6250, %v6607
        %v6609 = vpop.f32.mrb[0].mxu0
        %6610 = vmatprep.mubr.f32.mxu0 0.0
        %6611 = vmatmul.mubr.f32.gmra.mrb[0].mxu0 %v6225
        %v6612 = vpop.f32.mrb[0].mxu0
        %v6613 = vadd.f32 %v6250, %v6612
        %v6614 = vpop.f32.mrb[0].mxu0
        %6615 = vmatprep.mubr.f32.mxu0 0.0
        %6616 = vmatmul.mubr.f32.gmra.mrb[0].mxu0 %v6226
        %v6617 = vpop.f32.mrb[0].mxu0
        %v6618 = vadd.f32 %v6250, %v6617
        %v6619 = vpop.f32.mrb[0].mxu0
        %6620 = vmatprep.mubr.f32.mxu0 0.0
        %6621 = vmatmul.mubr.f32.gmra.mrb[0].mxu0 %v6227
        %v6622 = vpop.f32.mrb[0].mxu0
        %v6623 = vadd.f32 %v6250, %v6622
        %v6624 = vpop.f32.mrb[0].mxu0
        %6625 = vmatprep.mubr.f32.mxu0 0.0
        %6626 = vmatmul.mubr.f32.gmra.mrb[0].mxu0 %v6228
        %v6627 = vpop.f32.mrb[0].mxu0
        %v6628 = vadd.f32 %v6250, %v6627
        %v6629 = vpop.f32.mrb[0].mxu0
        %6630 = vmatprep.mubr.f32.mxu0 0.0
        %6631 = vmatmul.mubr.f32.gmra.mrb[0].mxu0 %v6229
        %v6632 = vpop.f32.mrb[0].mxu0
        %v6633 = vadd.f32 %v6250, %v6632
        %v6634 = vpop.f32.mrb[0].mxu0
        %6635 = vdwg.mxu0
        %v6636 = vmax.f32 %v6318, 0.0
        %v6637 = vmax.f32 %v6323, 0.0
        %v6638 = vmax.f32 %v6328, 0.0
        %v6639 = vmax.f32 %v6333, 0.0
        %v6640 = vmax.f32 %v6338, 0.0
        %v6641 = vmax.f32 %v6343, 0.0
        %v6642 = vmax.f32 %v6348, 0.0
        %v6643 = vmax.f32 %v6353, 0.0
        %v6644 = vmax.f32 %v6358, 0.0
        %v6645 = vmax.f32 %v6363, 0.0
        %v6646 = vmax.f32 %v6368, 0.0
        %v6647 = vmax.f32 %v6373, 0.0
        %v6648 = vmax.f32 %v6378, 0.0
        %v6649 = vmax.f32 %v6383, 0.0
        %v6650 = vmax.f32 %v6388, 0.0
        %v6651 = vmax.f32 %v6393, 0.0
        %v6652 = vmax.f32 %v6398, 0.0
        %v6653 = vmax.f32 %v6403, 0.0
        %v6654 = vmax.f32 %v6408, 0.0
        %v6655 = vmax.f32 %v6413, 0.0
        %v6656 = vmax.f32 %v6418, 0.0
        %v6657 = vmax.f32 %v6423, 0.0
        %v6658 = vmax.f32 %v6428, 0.0
        %v6659 = vmax.f32 %v6433, 0.0
        %v6660 = vmax.f32 %v6438, 0.0
        %v6661 = vmax.f32 %v6443, 0.0
        %v6662 = vmax.f32 %v6448, 0.0
        %v6663 = vmax.f32 %v6453, 0.0
        %v6664 = vmax.f32 %v6458, 0.0
        %v6665 = vmax.f32 %v6463, 0.0
        %v6666 = vmax.f32 %v6468, 0.0
        %v6667 = vmax.f32 %v6473, 0.0
        %v6668 = vmax.f32 %v6478, 0.0
        %v6669 = vmax.f32 %v6483, 0.0
        %v6670 = vmax.f32 %v6488, 0.0
        %v6671 = vmax.f32 %v6493, 0.0
        %v6672 = vmax.f32 %v6498, 0.0
        %v6673 = vmax.f32 %v6503, 0.0
        %v6674 = vmax.f32 %v6508, 0.0
        %v6675 = vmax.f32 %v6513, 0.0
        %v6676 = vmax.f32 %v6518, 0.0
        %v6677 = vmax.f32 %v6523, 0.0
        %v6678 = vmax.f32 %v6528, 0.0
        %v6679 = vmax.f32 %v6533, 0.0
        %v6680 = vmax.f32 %v6538, 0.0
        %v6681 = vmax.f32 %v6543, 0.0
        %v6682 = vmax.f32 %v6548, 0.0
        %v6683 = vmax.f32 %v6553, 0.0
        %v6684 = vmax.f32 %v6558, 0.0
        %v6685 = vmax.f32 %v6563, 0.0
        %v6686 = vmax.f32 %v6568, 0.0
        %v6687 = vmax.f32 %v6573, 0.0
        %v6688 = vmax.f32 %v6578, 0.0
        %v6689 = vmax.f32 %v6583, 0.0
        %v6690 = vmax.f32 %v6588, 0.0
        %v6691 = vmax.f32 %v6593, 0.0
        %v6692 = vmax.f32 %v6598, 0.0
        %v6693 = vmax.f32 %v6603, 0.0
        %v6694 = vmax.f32 %v6608, 0.0
        %v6695 = vmax.f32 %v6613, 0.0
        %v6696 = vmax.f32 %v6618, 0.0
        %v6697 = vmax.f32 %v6623, 0.0
        %v6698 = vmax.f32 %v6628, 0.0
        %v6699 = vmax.f32 %v6633, 0.0
        %v6700 = vld [vmem:[%s3493] sm:$0xff]
        %v6701 = vld [vmem:[%s3493 + $0x8] sm:$0xff]
        %v6702 = vld [vmem:[%s3493 + $0x10] sm:$0xff]
        %v6703 = vld [vmem:[%s3493 + $0x18] sm:$0xff]
        %v6704 = vld [vmem:[%s3493 + $0x20] sm:$0xff]
        %v6705 = vld [vmem:[%s3493 + $0x28] sm:$0xff]
        %v6706 = vld [vmem:[%s3493 + $0x30] sm:$0xff]
        %v6707 = vld [vmem:[%s3493 + $0x38] sm:$0xff]
        %v6708 = vld [vmem:[%s3493 + $0x40] sm:$0xff]
        %v6709 = vld [vmem:[%s3493 + $0x48] sm:$0xff]
        %v6710 = vld [vmem:[%s3493 + $0x50] sm:$0xff]
        %v6711 = vld [vmem:[%s3493 + $0x58] sm:$0xff]
        %v6712 = vld [vmem:[%s3493 + $0x60] sm:$0xff]
        %v6713 = vld [vmem:[%s3493 + $0x68] sm:$0xff]
        %v6714 = vld [vmem:[%s3493 + $0x70] sm:$0xff]
        %v6715 = vld [vmem:[%s3493 + $0x78] sm:$0xff]
        %v6716 = vld [vmem:[#allocation7 + $0x6] sm:$0x1]
        %v6717 = vlaneseq
        %v6718 = vshrl.u32 %v6717, 7
        %v6719 = vsub.s32 0, %v6718
        %v6720 = vrot.slane %v6716, %v6719
        %6721 = vmatprep.subr.mxu0 0.0
        %6722 = vmatpush1.msra.mxu0 %v6700
        %6723 = vmatprep.subr.mxu0 0.0
        %6724 = vmatpush1.msra.mxu0 %v6701
        %6725 = vmatprep.subr.mxu0 0.0
        %6726 = vmatpush1.msra.mxu0 %v6702
        %6727 = vmatprep.subr.mxu0 0.0
        %6728 = vmatpush1.msra.mxu0 %v6703
        %6729 = vmatprep.subr.mxu0 0.0
        %6730 = vmatpush1.msra.mxu0 %v6704
        %6731 = vmatprep.subr.mxu0 0.0
        %6732 = vmatpush1.msra.mxu0 %v6705
        %6733 = vmatprep.subr.mxu0 0.0
        %6734 = vmatpush1.msra.mxu0 %v6706
        %6735 = vmatprep.subr.mxu0 0.0
        %6736 = vmatpush1.msra.mxu0 %v6707
        %6737 = vmatprep.subr.mxu0 0.0
        %6738 = vmatpush1.msra.mxu0 %v6708
        %6739 = vmatprep.subr.mxu0 0.0
        %6740 = vmatpush1.msra.mxu0 %v6709
        %6741 = vmatprep.subr.mxu0 0.0
        %6742 = vmatpush1.msra.mxu0 %v6710
        %6743 = vmatprep.subr.mxu0 0.0
        %6744 = vmatpush1.msra.mxu0 %v6711
        %6745 = vmatprep.subr.mxu0 0.0
        %6746 = vmatpush1.msra.mxu0 %v6712
        %6747 = vmatprep.subr.mxu0 0.0
        %6748 = vmatpush1.msra.mxu0 %v6713
        %6749 = vmatprep.subr.mxu0 0.0
        %6750 = vmatpush1.msra.mxu0 %v6714
        %6751 = vmatprep.subr.mxu0 0.0
        %6752 = vmatpush1.msra.mxu0 %v6715
        %6753 = vmatprep.subr.mxu0 0.0
        %6754 = vmatpush1.msra.mxu0 0.0
        %6755 = vmatprep.subr.mxu0 0.0
        %6756 = vmatpush1.msra.mxu0 0.0
        %6757 = vmatprep.subr.mxu0 0.0
        %6758 = vmatpush1.msra.mxu0 0.0
        %6759 = vmatprep.subr.mxu0 0.0
        %6760 = vmatpush1.msra.mxu0 0.0
        %6761 = vmatprep.subr.mxu0 0.0
        %6762 = vmatpush1.msra.mxu0 0.0
        %6763 = vmatprep.subr.mxu0 0.0
        %6764 = vmatpush1.msra.mxu0 0.0
        %6765 = vmatprep.subr.mxu0 0.0
        %6766 = vmatpush1.msra.mxu0 0.0
        %6767 = vmatprep.subr.mxu0 0.0
        %6768 = vmatpush1.msra.mxu0 0.0
        %6769 = vmatprep.subr.mxu0 0.0
        %6770 = vmatpush1.msra.mxu0 0.0
        %6771 = vmatprep.subr.mxu0 0.0
        %6772 = vmatpush1.msra.mxu0 0.0
        %6773 = vmatprep.subr.mxu0 0.0
        %6774 = vmatpush1.msra.mxu0 0.0
        %6775 = vmatprep.subr.mxu0 0.0
        %6776 = vmatpush1.msra.mxu0 0.0
        %6777 = vmatprep.subr.mxu0 0.0
        %6778 = vmatpush1.msra.mxu0 0.0
        %6779 = vmatprep.subr.mxu0 0.0
        %6780 = vmatpush1.msra.mxu0 0.0
        %6781 = vmatprep.subr.mxu0 0.0
        %6782 = vmatpush1.msra.mxu0 0.0
        %6783 = vmatprep.subr.mxu0 0.0
        %6784 = vmatpush1.msra.mxu0 0.0
        %6785 = vmatprep.mubr.f32.mxu0 0.0
        %6786 = vmatmul.mubr.f32.gmra.mrb[0].mxu0 %v6636
        %v6787 = vpop.f32.mrb[0].mxu0
        %v6788 = vadd.f32 %v6720, %v6787
        %v6789 = vpop.f32.mrb[0].mxu0
        %6790 = vmatprep.mubr.f32.mxu0 0.0
        %6791 = vmatmul.mubr.f32.gmra.mrb[0].mxu0 %v6637
        %v6792 = vpop.f32.mrb[0].mxu0
        %v6793 = vadd.f32 %v6720, %v6792
        %v6794 = vpop.f32.mrb[0].mxu0
        %6795 = vmatprep.mubr.f32.mxu0 0.0
        %6796 = vmatmul.mubr.f32.gmra.mrb[0].mxu0 %v6638
        %v6797 = vpop.f32.mrb[0].mxu0
        %v6798 = vadd.f32 %v6720, %v6797
        %v6799 = vpop.f32.mrb[0].mxu0
        %6800 = vmatprep.mubr.f32.mxu0 0.0
        %6801 = vmatmul.mubr.f32.gmra.mrb[0].mxu0 %v6639
        %v6802 = vpop.f32.mrb[0].mxu0
        %v6803 = vadd.f32 %v6720, %v6802
        %v6804 = vpop.f32.mrb[0].mxu0
        %6805 = vmatprep.mubr.f32.mxu0 0.0
        %6806 = vmatmul.mubr.f32.gmra.mrb[0].mxu0 %v6640
        %v6807 = vpop.f32.mrb[0].mxu0
        %v6808 = vadd.f32 %v6720, %v6807
        %v6809 = vpop.f32.mrb[0].mxu0
        %6810 = vmatprep.mubr.f32.mxu0 0.0
        %6811 = vmatmul.mubr.f32.gmra.mrb[0].mxu0 %v6641
        %v6812 = vpop.f32.mrb[0].mxu0
        %v6813 = vadd.f32 %v6720, %v6812
        %v6814 = vpop.f32.mrb[0].mxu0
        %6815 = vmatprep.mubr.f32.mxu0 0.0
        %6816 = vmatmul.mubr.f32.gmra.mrb[0].mxu0 %v6642
        %v6817 = vpop.f32.mrb[0].mxu0
        %v6818 = vadd.f32 %v6720, %v6817
        %v6819 = vpop.f32.mrb[0].mxu0
        %6820 = vmatprep.mubr.f32.mxu0 0.0
        %6821 = vmatmul.mubr.f32.gmra.mrb[0].mxu0 %v6643
        %v6822 = vpop.f32.mrb[0].mxu0
        %v6823 = vadd.f32 %v6720, %v6822
        %v6824 = vpop.f32.mrb[0].mxu0
        %6825 = vmatprep.mubr.f32.mxu0 0.0
        %6826 = vmatmul.mubr.f32.gmra.mrb[0].mxu0 %v6644
        %v6827 = vpop.f32.mrb[0].mxu0
        %v6828 = vadd.f32 %v6720, %v6827
        %v6829 = vpop.f32.mrb[0].mxu0
        %6830 = vmatprep.mubr.f32.mxu0 0.0
        %6831 = vmatmul.mubr.f32.gmra.mrb[0].mxu0 %v6645
        %v6832 = vpop.f32.mrb[0].mxu0
        %v6833 = vadd.f32 %v6720, %v6832
        %v6834 = vpop.f32.mrb[0].mxu0
        %6835 = vmatprep.mubr.f32.mxu0 0.0
        %6836 = vmatmul.mubr.f32.gmra.mrb[0].mxu0 %v6646
        %v6837 = vpop.f32.mrb[0].mxu0
        %v6838 = vadd.f32 %v6720, %v6837
        %v6839 = vpop.f32.mrb[0].mxu0
        %6840 = vmatprep.mubr.f32.mxu0 0.0
        %6841 = vmatmul.mubr.f32.gmra.mrb[0].mxu0 %v6647
        %v6842 = vpop.f32.mrb[0].mxu0
        %v6843 = vadd.f32 %v6720, %v6842
        %v6844 = vpop.f32.mrb[0].mxu0
        %6845 = vmatprep.mubr.f32.mxu0 0.0
        %6846 = vmatmul.mubr.f32.gmra.mrb[0].mxu0 %v6648
        %v6847 = vpop.f32.mrb[0].mxu0
        %v6848 = vadd.f32 %v6720, %v6847
        %v6849 = vpop.f32.mrb[0].mxu0
        %6850 = vmatprep.mubr.f32.mxu0 0.0
        %6851 = vmatmul.mubr.f32.gmra.mrb[0].mxu0 %v6649
        %v6852 = vpop.f32.mrb[0].mxu0
        %v6853 = vadd.f32 %v6720, %v6852
        %v6854 = vpop.f32.mrb[0].mxu0
        %6855 = vmatprep.mubr.f32.mxu0 0.0
        %6856 = vmatmul.mubr.f32.gmra.mrb[0].mxu0 %v6650
        %v6857 = vpop.f32.mrb[0].mxu0
        %v6858 = vadd.f32 %v6720, %v6857
        %v6859 = vpop.f32.mrb[0].mxu0
        %6860 = vmatprep.mubr.f32.mxu0 0.0
        %6861 = vmatmul.mubr.f32.gmra.mrb[0].mxu0 %v6651
        %v6862 = vpop.f32.mrb[0].mxu0
        %v6863 = vadd.f32 %v6720, %v6862
        %v6864 = vpop.f32.mrb[0].mxu0
        %6865 = vmatprep.mubr.f32.mxu0 0.0
        %6866 = vmatmul.mubr.f32.gmra.mrb[0].mxu0 %v6652
        %v6867 = vpop.f32.mrb[0].mxu0
        %v6868 = vadd.f32 %v6720, %v6867
        %v6869 = vpop.f32.mrb[0].mxu0
        %6870 = vmatprep.mubr.f32.mxu0 0.0
        %6871 = vmatmul.mubr.f32.gmra.mrb[0].mxu0 %v6653
        %v6872 = vpop.f32.mrb[0].mxu0
        %v6873 = vadd.f32 %v6720, %v6872
        %v6874 = vpop.f32.mrb[0].mxu0
        %6875 = vmatprep.mubr.f32.mxu0 0.0
        %6876 = vmatmul.mubr.f32.gmra.mrb[0].mxu0 %v6654
        %v6877 = vpop.f32.mrb[0].mxu0
        %v6878 = vadd.f32 %v6720, %v6877
        %v6879 = vpop.f32.mrb[0].mxu0
        %6880 = vmatprep.mubr.f32.mxu0 0.0
        %6881 = vmatmul.mubr.f32.gmra.mrb[0].mxu0 %v6655
        %v6882 = vpop.f32.mrb[0].mxu0
        %v6883 = vadd.f32 %v6720, %v6882
        %v6884 = vpop.f32.mrb[0].mxu0
        %6885 = vmatprep.mubr.f32.mxu0 0.0
        %6886 = vmatmul.mubr.f32.gmra.mrb[0].mxu0 %v6656
        %v6887 = vpop.f32.mrb[0].mxu0
        %v6888 = vadd.f32 %v6720, %v6887
        %v6889 = vpop.f32.mrb[0].mxu0
        %6890 = vmatprep.mubr.f32.mxu0 0.0
        %6891 = vmatmul.mubr.f32.gmra.mrb[0].mxu0 %v6657
        %v6892 = vpop.f32.mrb[0].mxu0
        %v6893 = vadd.f32 %v6720, %v6892
        %v6894 = vpop.f32.mrb[0].mxu0
        %6895 = vmatprep.mubr.f32.mxu0 0.0
        %6896 = vmatmul.mubr.f32.gmra.mrb[0].mxu0 %v6658
        %v6897 = vpop.f32.mrb[0].mxu0
        %v6898 = vadd.f32 %v6720, %v6897
        %v6899 = vpop.f32.mrb[0].mxu0
        %6900 = vmatprep.mubr.f32.mxu0 0.0
        %6901 = vmatmul.mubr.f32.gmra.mrb[0].mxu0 %v6659
        %v6902 = vpop.f32.mrb[0].mxu0
        %v6903 = vadd.f32 %v6720, %v6902
        %v6904 = vpop.f32.mrb[0].mxu0
        %6905 = vmatprep.mubr.f32.mxu0 0.0
        %6906 = vmatmul.mubr.f32.gmra.mrb[0].mxu0 %v6660
        %v6907 = vpop.f32.mrb[0].mxu0
        %v6908 = vadd.f32 %v6720, %v6907
        %v6909 = vpop.f32.mrb[0].mxu0
        %6910 = vmatprep.mubr.f32.mxu0 0.0
        %6911 = vmatmul.mubr.f32.gmra.mrb[0].mxu0 %v6661
        %v6912 = vpop.f32.mrb[0].mxu0
        %v6913 = vadd.f32 %v6720, %v6912
        %v6914 = vpop.f32.mrb[0].mxu0
        %6915 = vmatprep.mubr.f32.mxu0 0.0
        %6916 = vmatmul.mubr.f32.gmra.mrb[0].mxu0 %v6662
        %v6917 = vpop.f32.mrb[0].mxu0
        %v6918 = vadd.f32 %v6720, %v6917
        %v6919 = vpop.f32.mrb[0].mxu0
        %6920 = vmatprep.mubr.f32.mxu0 0.0
        %6921 = vmatmul.mubr.f32.gmra.mrb[0].mxu0 %v6663
        %v6922 = vpop.f32.mrb[0].mxu0
        %v6923 = vadd.f32 %v6720, %v6922
        %v6924 = vpop.f32.mrb[0].mxu0
        %6925 = vmatprep.mubr.f32.mxu0 0.0
        %6926 = vmatmul.mubr.f32.gmra.mrb[0].mxu0 %v6664
        %v6927 = vpop.f32.mrb[0].mxu0
        %v6928 = vadd.f32 %v6720, %v6927
        %v6929 = vpop.f32.mrb[0].mxu0
        %6930 = vmatprep.mubr.f32.mxu0 0.0
        %6931 = vmatmul.mubr.f32.gmra.mrb[0].mxu0 %v6665
        %v6932 = vpop.f32.mrb[0].mxu0
        %v6933 = vadd.f32 %v6720, %v6932
        %v6934 = vpop.f32.mrb[0].mxu0
        %6935 = vmatprep.mubr.f32.mxu0 0.0
        %6936 = vmatmul.mubr.f32.gmra.mrb[0].mxu0 %v6666
        %v6937 = vpop.f32.mrb[0].mxu0
        %v6938 = vadd.f32 %v6720, %v6937
        %v6939 = vpop.f32.mrb[0].mxu0
        %6940 = vmatprep.mubr.f32.mxu0 0.0
        %6941 = vmatmul.mubr.f32.gmra.mrb[0].mxu0 %v6667
        %v6942 = vpop.f32.mrb[0].mxu0
        %v6943 = vadd.f32 %v6720, %v6942
        %v6944 = vpop.f32.mrb[0].mxu0
        %6945 = vmatprep.mubr.f32.mxu0 0.0
        %6946 = vmatmul.mubr.f32.gmra.mrb[0].mxu0 %v6668
        %v6947 = vpop.f32.mrb[0].mxu0
        %v6948 = vadd.f32 %v6720, %v6947
        %v6949 = vpop.f32.mrb[0].mxu0
        %6950 = vmatprep.mubr.f32.mxu0 0.0
        %6951 = vmatmul.mubr.f32.gmra.mrb[0].mxu0 %v6669
        %v6952 = vpop.f32.mrb[0].mxu0
        %v6953 = vadd.f32 %v6720, %v6952
        %v6954 = vpop.f32.mrb[0].mxu0
        %6955 = vmatprep.mubr.f32.mxu0 0.0
        %6956 = vmatmul.mubr.f32.gmra.mrb[0].mxu0 %v6670
        %v6957 = vpop.f32.mrb[0].mxu0
        %v6958 = vadd.f32 %v6720, %v6957
        %v6959 = vpop.f32.mrb[0].mxu0
        %6960 = vmatprep.mubr.f32.mxu0 0.0
        %6961 = vmatmul.mubr.f32.gmra.mrb[0].mxu0 %v6671
        %v6962 = vpop.f32.mrb[0].mxu0
        %v6963 = vadd.f32 %v6720, %v6962
        %v6964 = vpop.f32.mrb[0].mxu0
        %6965 = vmatprep.mubr.f32.mxu0 0.0
        %6966 = vmatmul.mubr.f32.gmra.mrb[0].mxu0 %v6672
        %v6967 = vpop.f32.mrb[0].mxu0
        %v6968 = vadd.f32 %v6720, %v6967
        %v6969 = vpop.f32.mrb[0].mxu0
        %6970 = vmatprep.mubr.f32.mxu0 0.0
        %6971 = vmatmul.mubr.f32.gmra.mrb[0].mxu0 %v6673
        %v6972 = vpop.f32.mrb[0].mxu0
        %v6973 = vadd.f32 %v6720, %v6972
        %v6974 = vpop.f32.mrb[0].mxu0
        %6975 = vmatprep.mubr.f32.mxu0 0.0
        %6976 = vmatmul.mubr.f32.gmra.mrb[0].mxu0 %v6674
        %v6977 = vpop.f32.mrb[0].mxu0
        %v6978 = vadd.f32 %v6720, %v6977
        %v6979 = vpop.f32.mrb[0].mxu0
        %6980 = vmatprep.mubr.f32.mxu0 0.0
        %6981 = vmatmul.mubr.f32.gmra.mrb[0].mxu0 %v6675
        %v6982 = vpop.f32.mrb[0].mxu0
        %v6983 = vadd.f32 %v6720, %v6982
        %v6984 = vpop.f32.mrb[0].mxu0
        %6985 = vmatprep.mubr.f32.mxu0 0.0
        %6986 = vmatmul.mubr.f32.gmra.mrb[0].mxu0 %v6676
        %v6987 = vpop.f32.mrb[0].mxu0
        %v6988 = vadd.f32 %v6720, %v6987
        %v6989 = vpop.f32.mrb[0].mxu0
        %6990 = vmatprep.mubr.f32.mxu0 0.0
        %6991 = vmatmul.mubr.f32.gmra.mrb[0].mxu0 %v6677
        %v6992 = vpop.f32.mrb[0].mxu0
        %v6993 = vadd.f32 %v6720, %v6992
        %v6994 = vpop.f32.mrb[0].mxu0
        %6995 = vmatprep.mubr.f32.mxu0 0.0
        %6996 = vmatmul.mubr.f32.gmra.mrb[0].mxu0 %v6678
        %v6997 = vpop.f32.mrb[0].mxu0
        %v6998 = vadd.f32 %v6720, %v6997
        %v6999 = vpop.f32.mrb[0].mxu0
        %7000 = vmatprep.mubr.f32.mxu0 0.0
        %7001 = vmatmul.mubr.f32.gmra.mrb[0].mxu0 %v6679
        %v7002 = vpop.f32.mrb[0].mxu0
        %v7003 = vadd.f32 %v6720, %v7002
        %v7004 = vpop.f32.mrb[0].mxu0
        %7005 = vmatprep.mubr.f32.mxu0 0.0
        %7006 = vmatmul.mubr.f32.gmra.mrb[0].mxu0 %v6680
        %v7007 = vpop.f32.mrb[0].mxu0
        %v7008 = vadd.f32 %v6720, %v7007
        %v7009 = vpop.f32.mrb[0].mxu0
        %7010 = vmatprep.mubr.f32.mxu0 0.0
        %7011 = vmatmul.mubr.f32.gmra.mrb[0].mxu0 %v6681
        %v7012 = vpop.f32.mrb[0].mxu0
        %v7013 = vadd.f32 %v6720, %v7012
        %v7014 = vpop.f32.mrb[0].mxu0
        %7015 = vmatprep.mubr.f32.mxu0 0.0
        %7016 = vmatmul.mubr.f32.gmra.mrb[0].mxu0 %v6682
        %v7017 = vpop.f32.mrb[0].mxu0
        %v7018 = vadd.f32 %v6720, %v7017
        %v7019 = vpop.f32.mrb[0].mxu0
        %7020 = vmatprep.mubr.f32.mxu0 0.0
        %7021 = vmatmul.mubr.f32.gmra.mrb[0].mxu0 %v6683
        %v7022 = vpop.f32.mrb[0].mxu0
        %v7023 = vadd.f32 %v6720, %v7022
        %v7024 = vpop.f32.mrb[0].mxu0
        %7025 = vmatprep.mubr.f32.mxu0 0.0
        %7026 = vmatmul.mubr.f32.gmra.mrb[0].mxu0 %v6684
        %v7027 = vpop.f32.mrb[0].mxu0
        %v7028 = vadd.f32 %v6720, %v7027
        %v7029 = vpop.f32.mrb[0].mxu0
        %7030 = vmatprep.mubr.f32.mxu0 0.0
        %7031 = vmatmul.mubr.f32.gmra.mrb[0].mxu0 %v6685
        %v7032 = vpop.f32.mrb[0].mxu0
        %v7033 = vadd.f32 %v6720, %v7032
        %v7034 = vpop.f32.mrb[0].mxu0
        %7035 = vmatprep.mubr.f32.mxu0 0.0
        %7036 = vmatmul.mubr.f32.gmra.mrb[0].mxu0 %v6686
        %v7037 = vpop.f32.mrb[0].mxu0
        %v7038 = vadd.f32 %v6720, %v7037
        %v7039 = vpop.f32.mrb[0].mxu0
        %7040 = vmatprep.mubr.f32.mxu0 0.0
        %7041 = vmatmul.mubr.f32.gmra.mrb[0].mxu0 %v6687
        %v7042 = vpop.f32.mrb[0].mxu0
        %v7043 = vadd.f32 %v6720, %v7042
        %v7044 = vpop.f32.mrb[0].mxu0
        %7045 = vmatprep.mubr.f32.mxu0 0.0
        %7046 = vmatmul.mubr.f32.gmra.mrb[0].mxu0 %v6688
        %v7047 = vpop.f32.mrb[0].mxu0
        %v7048 = vadd.f32 %v6720, %v7047
        %v7049 = vpop.f32.mrb[0].mxu0
        %7050 = vmatprep.mubr.f32.mxu0 0.0
        %7051 = vmatmul.mubr.f32.gmra.mrb[0].mxu0 %v6689
        %v7052 = vpop.f32.mrb[0].mxu0
        %v7053 = vadd.f32 %v6720, %v7052
        %v7054 = vpop.f32.mrb[0].mxu0
        %7055 = vmatprep.mubr.f32.mxu0 0.0
        %7056 = vmatmul.mubr.f32.gmra.mrb[0].mxu0 %v6690
        %v7057 = vpop.f32.mrb[0].mxu0
        %v7058 = vadd.f32 %v6720, %v7057
        %v7059 = vpop.f32.mrb[0].mxu0
        %7060 = vmatprep.mubr.f32.mxu0 0.0
        %7061 = vmatmul.mubr.f32.gmra.mrb[0].mxu0 %v6691
        %v7062 = vpop.f32.mrb[0].mxu0
        %v7063 = vadd.f32 %v6720, %v7062
        %v7064 = vpop.f32.mrb[0].mxu0
        %7065 = vmatprep.mubr.f32.mxu0 0.0
        %7066 = vmatmul.mubr.f32.gmra.mrb[0].mxu0 %v6692
        %v7067 = vpop.f32.mrb[0].mxu0
        %v7068 = vadd.f32 %v6720, %v7067
        %v7069 = vpop.f32.mrb[0].mxu0
        %7070 = vmatprep.mubr.f32.mxu0 0.0
        %7071 = vmatmul.mubr.f32.gmra.mrb[0].mxu0 %v6693
        %v7072 = vpop.f32.mrb[0].mxu0
        %v7073 = vadd.f32 %v6720, %v7072
        %v7074 = vpop.f32.mrb[0].mxu0
        %7075 = vmatprep.mubr.f32.mxu0 0.0
        %7076 = vmatmul.mubr.f32.gmra.mrb[0].mxu0 %v6694
        %v7077 = vpop.f32.mrb[0].mxu0
        %v7078 = vadd.f32 %v6720, %v7077
        %v7079 = vpop.f32.mrb[0].mxu0
        %7080 = vmatprep.mubr.f32.mxu0 0.0
        %7081 = vmatmul.mubr.f32.gmra.mrb[0].mxu0 %v6695
        %v7082 = vpop.f32.mrb[0].mxu0
        %v7083 = vadd.f32 %v6720, %v7082
        %v7084 = vpop.f32.mrb[0].mxu0
        %7085 = vmatprep.mubr.f32.mxu0 0.0
        %7086 = vmatmul.mubr.f32.gmra.mrb[0].mxu0 %v6696
        %v7087 = vpop.f32.mrb[0].mxu0
        %v7088 = vadd.f32 %v6720, %v7087
        %v7089 = vpop.f32.mrb[0].mxu0
        %7090 = vmatprep.mubr.f32.mxu0 0.0
        %7091 = vmatmul.mubr.f32.gmra.mrb[0].mxu0 %v6697
        %v7092 = vpop.f32.mrb[0].mxu0
        %v7093 = vadd.f32 %v6720, %v7092
        %v7094 = vpop.f32.mrb[0].mxu0
        %7095 = vmatprep.mubr.f32.mxu0 0.0
        %7096 = vmatmul.mubr.f32.gmra.mrb[0].mxu0 %v6698
        %v7097 = vpop.f32.mrb[0].mxu0
        %v7098 = vadd.f32 %v6720, %v7097
        %v7099 = vpop.f32.mrb[0].mxu0
        %7100 = vmatprep.mubr.f32.mxu0 0.0
        %7101 = vmatmul.mubr.f32.gmra.mrb[0].mxu0 %v6699
        %v7102 = vpop.f32.mrb[0].mxu0
        %v7103 = vadd.f32 %v6720, %v7102
        %v7104 = vpop.f32.mrb[0].mxu0
        %7105 = vdwg.mxu0
        %v7106 = vmax.f32 %v6788, 0.0
        %v7107 = vmax.f32 %v6793, 0.0
        %v7108 = vmax.f32 %v6798, 0.0
        %v7109 = vmax.f32 %v6803, 0.0
        %v7110 = vmax.f32 %v6808, 0.0
        %v7111 = vmax.f32 %v6813, 0.0
        %v7112 = vmax.f32 %v6818, 0.0
        %v7113 = vmax.f32 %v6823, 0.0
        %v7114 = vmax.f32 %v6828, 0.0
        %v7115 = vmax.f32 %v6833, 0.0
        %v7116 = vmax.f32 %v6838, 0.0
        %v7117 = vmax.f32 %v6843, 0.0
        %v7118 = vmax.f32 %v6848, 0.0
        %v7119 = vmax.f32 %v6853, 0.0
        %v7120 = vmax.f32 %v6858, 0.0
        %v7121 = vmax.f32 %v6863, 0.0
        %v7122 = vmax.f32 %v6868, 0.0
        %v7123 = vmax.f32 %v6873, 0.0
        %v7124 = vmax.f32 %v6878, 0.0
        %v7125 = vmax.f32 %v6883, 0.0
        %v7126 = vmax.f32 %v6888, 0.0
        %v7127 = vmax.f32 %v6893, 0.0
        %v7128 = vmax.f32 %v6898, 0.0
        %v7129 = vmax.f32 %v6903, 0.0
        %v7130 = vmax.f32 %v6908, 0.0
        %v7131 = vmax.f32 %v6913, 0.0
        %v7132 = vmax.f32 %v6918, 0.0
        %v7133 = vmax.f32 %v6923, 0.0
        %v7134 = vmax.f32 %v6928, 0.0
        %v7135 = vmax.f32 %v6933, 0.0
        %v7136 = vmax.f32 %v6938, 0.0
        %v7137 = vmax.f32 %v6943, 0.0
        %v7138 = vmax.f32 %v6948, 0.0
        %v7139 = vmax.f32 %v6953, 0.0
        %v7140 = vmax.f32 %v6958, 0.0
        %v7141 = vmax.f32 %v6963, 0.0
        %v7142 = vmax.f32 %v6968, 0.0
        %v7143 = vmax.f32 %v6973, 0.0
        %v7144 = vmax.f32 %v6978, 0.0
        %v7145 = vmax.f32 %v6983, 0.0
        %v7146 = vmax.f32 %v6988, 0.0
        %v7147 = vmax.f32 %v6993, 0.0
        %v7148 = vmax.f32 %v6998, 0.0
        %v7149 = vmax.f32 %v7003, 0.0
        %v7150 = vmax.f32 %v7008, 0.0
        %v7151 = vmax.f32 %v7013, 0.0
        %v7152 = vmax.f32 %v7018, 0.0
        %v7153 = vmax.f32 %v7023, 0.0
        %v7154 = vmax.f32 %v7028, 0.0
        %v7155 = vmax.f32 %v7033, 0.0
        %v7156 = vmax.f32 %v7038, 0.0
        %v7157 = vmax.f32 %v7043, 0.0
        %v7158 = vmax.f32 %v7048, 0.0
        %v7159 = vmax.f32 %v7053, 0.0
        %v7160 = vmax.f32 %v7058, 0.0
        %v7161 = vmax.f32 %v7063, 0.0
        %v7162 = vmax.f32 %v7068, 0.0
        %v7163 = vmax.f32 %v7073, 0.0
        %v7164 = vmax.f32 %v7078, 0.0
        %v7165 = vmax.f32 %v7083, 0.0
        %v7166 = vmax.f32 %v7088, 0.0
        %v7167 = vmax.f32 %v7093, 0.0
        %v7168 = vmax.f32 %v7098, 0.0
        %v7169 = vmax.f32 %v7103, 0.0
        %v7170 = vld [vmem:[%s3964] sm:$0xff]
        %v7171 = vld [vmem:[%s3964 + $0x8] sm:$0xff]
        %v7172 = vld [vmem:[%s3964 + $0x10] sm:$0xff]
        %v7173 = vld [vmem:[%s3964 + $0x18] sm:$0xff]
        %v7174 = vld [vmem:[%s3964 + $0x20] sm:$0xff]
        %v7175 = vld [vmem:[%s3964 + $0x28] sm:$0xff]
        %v7176 = vld [vmem:[%s3964 + $0x30] sm:$0xff]
        %v7177 = vld [vmem:[%s3964 + $0x38] sm:$0xff]
        %v7178 = vld [vmem:[%s3964 + $0x40] sm:$0xff]
        %v7179 = vld [vmem:[%s3964 + $0x48] sm:$0xff]
        %v7180 = vld [vmem:[%s3964 + $0x50] sm:$0xff]
        %v7181 = vld [vmem:[%s3964 + $0x58] sm:$0xff]
        %v7182 = vld [vmem:[%s3964 + $0x60] sm:$0xff]
        %v7183 = vld [vmem:[%s3964 + $0x68] sm:$0xff]
        %v7184 = vld [vmem:[%s3964 + $0x70] sm:$0xff]
        %v7185 = vld [vmem:[%s3964 + $0x78] sm:$0xff]
        %v7186 = vld [vmem:[#allocation7 + $0x7] sm:$0x1]
        %v7187 = vlaneseq
        %v7188 = vshrl.u32 %v7187, 7
        %v7189 = vsub.s32 0, %v7188
        %v7190 = vrot.slane %v7186, %v7189
        %7191 = vmatprep.subr.mxu0 0.0
        %7192 = vmatpush1.msra.mxu0 %v7170
        %7193 = vmatprep.subr.mxu0 0.0
        %7194 = vmatpush1.msra.mxu0 %v7171
        %7195 = vmatprep.subr.mxu0 0.0
        %7196 = vmatpush1.msra.mxu0 %v7172
        %7197 = vmatprep.subr.mxu0 0.0
        %7198 = vmatpush1.msra.mxu0 %v7173
        %7199 = vmatprep.subr.mxu0 0.0
        %7200 = vmatpush1.msra.mxu0 %v7174
        %7201 = vmatprep.subr.mxu0 0.0
        %7202 = vmatpush1.msra.mxu0 %v7175
        %7203 = vmatprep.subr.mxu0 0.0
        %7204 = vmatpush1.msra.mxu0 %v7176
        %7205 = vmatprep.subr.mxu0 0.0
        %7206 = vmatpush1.msra.mxu0 %v7177
        %7207 = vmatprep.subr.mxu0 0.0
        %7208 = vmatpush1.msra.mxu0 %v7178
        %7209 = vmatprep.subr.mxu0 0.0
        %7210 = vmatpush1.msra.mxu0 %v7179
        %7211 = vmatprep.subr.mxu0 0.0
        %7212 = vmatpush1.msra.mxu0 %v7180
        %7213 = vmatprep.subr.mxu0 0.0
        %7214 = vmatpush1.msra.mxu0 %v7181
        %7215 = vmatprep.subr.mxu0 0.0
        %7216 = vmatpush1.msra.mxu0 %v7182
        %7217 = vmatprep.subr.mxu0 0.0
        %7218 = vmatpush1.msra.mxu0 %v7183
        %7219 = vmatprep.subr.mxu0 0.0
        %7220 = vmatpush1.msra.mxu0 %v7184
        %7221 = vmatprep.subr.mxu0 0.0
        %7222 = vmatpush1.msra.mxu0 %v7185
        %7223 = vmatprep.subr.mxu0 0.0
        %7224 = vmatpush1.msra.mxu0 0.0
        %7225 = vmatprep.subr.mxu0 0.0
        %7226 = vmatpush1.msra.mxu0 0.0
        %7227 = vmatprep.subr.mxu0 0.0
        %7228 = vmatpush1.msra.mxu0 0.0
        %7229 = vmatprep.subr.mxu0 0.0
        %7230 = vmatpush1.msra.mxu0 0.0
        %7231 = vmatprep.subr.mxu0 0.0
        %7232 = vmatpush1.msra.mxu0 0.0
        %7233 = vmatprep.subr.mxu0 0.0
        %7234 = vmatpush1.msra.mxu0 0.0
        %7235 = vmatprep.subr.mxu0 0.0
        %7236 = vmatpush1.msra.mxu0 0.0
        %7237 = vmatprep.subr.mxu0 0.0
        %7238 = vmatpush1.msra.mxu0 0.0
        %7239 = vmatprep.subr.mxu0 0.0
        %7240 = vmatpush1.msra.mxu0 0.0
        %7241 = vmatprep.subr.mxu0 0.0
        %7242 = vmatpush1.msra.mxu0 0.0
        %7243 = vmatprep.subr.mxu0 0.0
        %7244 = vmatpush1.msra.mxu0 0.0
        %7245 = vmatprep.subr.mxu0 0.0
        %7246 = vmatpush1.msra.mxu0 0.0
        %7247 = vmatprep.subr.mxu0 0.0
        %7248 = vmatpush1.msra.mxu0 0.0
        %7249 = vmatprep.subr.mxu0 0.0
        %7250 = vmatpush1.msra.mxu0 0.0
        %7251 = vmatprep.subr.mxu0 0.0
        %7252 = vmatpush1.msra.mxu0 0.0
        %7253 = vmatprep.subr.mxu0 0.0
        %7254 = vmatpush1.msra.mxu0 0.0
        %7255 = vmatprep.mubr.f32.mxu0 0.0
        %7256 = vmatmul.mubr.f32.gmra.mrb[0].mxu0 %v7106
        %v7257 = vpop.f32.mrb[0].mxu0
        %v7258 = vadd.f32 %v7190, %v7257
        %v7259 = vpop.f32.mrb[0].mxu0
        %7260 = vmatprep.mubr.f32.mxu0 0.0
        %7261 = vmatmul.mubr.f32.gmra.mrb[0].mxu0 %v7107
        %v7262 = vpop.f32.mrb[0].mxu0
        %v7263 = vadd.f32 %v7190, %v7262
        %v7264 = vpop.f32.mrb[0].mxu0
        %7265 = vmatprep.mubr.f32.mxu0 0.0
        %7266 = vmatmul.mubr.f32.gmra.mrb[0].mxu0 %v7108
        %v7267 = vpop.f32.mrb[0].mxu0
        %v7268 = vadd.f32 %v7190, %v7267
        %v7269 = vpop.f32.mrb[0].mxu0
        %7270 = vmatprep.mubr.f32.mxu0 0.0
        %7271 = vmatmul.mubr.f32.gmra.mrb[0].mxu0 %v7109
        %v7272 = vpop.f32.mrb[0].mxu0
        %v7273 = vadd.f32 %v7190, %v7272
        %v7274 = vpop.f32.mrb[0].mxu0
        %7275 = vmatprep.mubr.f32.mxu0 0.0
        %7276 = vmatmul.mubr.f32.gmra.mrb[0].mxu0 %v7110
        %v7277 = vpop.f32.mrb[0].mxu0
        %v7278 = vadd.f32 %v7190, %v7277
        %v7279 = vpop.f32.mrb[0].mxu0
        %7280 = vmatprep.mubr.f32.mxu0 0.0
        %7281 = vmatmul.mubr.f32.gmra.mrb[0].mxu0 %v7111
        %v7282 = vpop.f32.mrb[0].mxu0
        %v7283 = vadd.f32 %v7190, %v7282
        %v7284 = vpop.f32.mrb[0].mxu0
        %7285 = vmatprep.mubr.f32.mxu0 0.0
        %7286 = vmatmul.mubr.f32.gmra.mrb[0].mxu0 %v7112
        %v7287 = vpop.f32.mrb[0].mxu0
        %v7288 = vadd.f32 %v7190, %v7287
        %v7289 = vpop.f32.mrb[0].mxu0
        %7290 = vmatprep.mubr.f32.mxu0 0.0
        %7291 = vmatmul.mubr.f32.gmra.mrb[0].mxu0 %v7113
        %v7292 = vpop.f32.mrb[0].mxu0
        %v7293 = vadd.f32 %v7190, %v7292
        %v7294 = vpop.f32.mrb[0].mxu0
        %7295 = vmatprep.mubr.f32.mxu0 0.0
        %7296 = vmatmul.mubr.f32.gmra.mrb[0].mxu0 %v7114
        %v7297 = vpop.f32.mrb[0].mxu0
        %v7298 = vadd.f32 %v7190, %v7297
        %v7299 = vpop.f32.mrb[0].mxu0
        %7300 = vmatprep.mubr.f32.mxu0 0.0
        %7301 = vmatmul.mubr.f32.gmra.mrb[0].mxu0 %v7115
        %v7302 = vpop.f32.mrb[0].mxu0
        %v7303 = vadd.f32 %v7190, %v7302
        %v7304 = vpop.f32.mrb[0].mxu0
        %7305 = vmatprep.mubr.f32.mxu0 0.0
        %7306 = vmatmul.mubr.f32.gmra.mrb[0].mxu0 %v7116
        %v7307 = vpop.f32.mrb[0].mxu0
        %v7308 = vadd.f32 %v7190, %v7307
        %v7309 = vpop.f32.mrb[0].mxu0
        %7310 = vmatprep.mubr.f32.mxu0 0.0
        %7311 = vmatmul.mubr.f32.gmra.mrb[0].mxu0 %v7117
        %v7312 = vpop.f32.mrb[0].mxu0
        %v7313 = vadd.f32 %v7190, %v7312
        %v7314 = vpop.f32.mrb[0].mxu0
        %7315 = vmatprep.mubr.f32.mxu0 0.0
        %7316 = vmatmul.mubr.f32.gmra.mrb[0].mxu0 %v7118
        %v7317 = vpop.f32.mrb[0].mxu0
        %v7318 = vadd.f32 %v7190, %v7317
        %v7319 = vpop.f32.mrb[0].mxu0
        %7320 = vmatprep.mubr.f32.mxu0 0.0
        %7321 = vmatmul.mubr.f32.gmra.mrb[0].mxu0 %v7119
        %v7322 = vpop.f32.mrb[0].mxu0
        %v7323 = vadd.f32 %v7190, %v7322
        %v7324 = vpop.f32.mrb[0].mxu0
        %7325 = vmatprep.mubr.f32.mxu0 0.0
        %7326 = vmatmul.mubr.f32.gmra.mrb[0].mxu0 %v7120
        %v7327 = vpop.f32.mrb[0].mxu0
        %v7328 = vadd.f32 %v7190, %v7327
        %v7329 = vpop.f32.mrb[0].mxu0
        %7330 = vmatprep.mubr.f32.mxu0 0.0
        %7331 = vmatmul.mubr.f32.gmra.mrb[0].mxu0 %v7121
        %v7332 = vpop.f32.mrb[0].mxu0
        %v7333 = vadd.f32 %v7190, %v7332
        %v7334 = vpop.f32.mrb[0].mxu0
        %7335 = vmatprep.mubr.f32.mxu0 0.0
        %7336 = vmatmul.mubr.f32.gmra.mrb[0].mxu0 %v7122
        %v7337 = vpop.f32.mrb[0].mxu0
        %v7338 = vadd.f32 %v7190, %v7337
        %v7339 = vpop.f32.mrb[0].mxu0
        %7340 = vmatprep.mubr.f32.mxu0 0.0
        %7341 = vmatmul.mubr.f32.gmra.mrb[0].mxu0 %v7123
        %v7342 = vpop.f32.mrb[0].mxu0
        %v7343 = vadd.f32 %v7190, %v7342
        %v7344 = vpop.f32.mrb[0].mxu0
        %7345 = vmatprep.mubr.f32.mxu0 0.0
        %7346 = vmatmul.mubr.f32.gmra.mrb[0].mxu0 %v7124
        %v7347 = vpop.f32.mrb[0].mxu0
        %v7348 = vadd.f32 %v7190, %v7347
        %v7349 = vpop.f32.mrb[0].mxu0
        %7350 = vmatprep.mubr.f32.mxu0 0.0
        %7351 = vmatmul.mubr.f32.gmra.mrb[0].mxu0 %v7125
        %v7352 = vpop.f32.mrb[0].mxu0
        %v7353 = vadd.f32 %v7190, %v7352
        %v7354 = vpop.f32.mrb[0].mxu0
        %7355 = vmatprep.mubr.f32.mxu0 0.0
        %7356 = vmatmul.mubr.f32.gmra.mrb[0].mxu0 %v7126
        %v7357 = vpop.f32.mrb[0].mxu0
        %v7358 = vadd.f32 %v7190, %v7357
        %v7359 = vpop.f32.mrb[0].mxu0
        %7360 = vmatprep.mubr.f32.mxu0 0.0
        %7361 = vmatmul.mubr.f32.gmra.mrb[0].mxu0 %v7127
        %v7362 = vpop.f32.mrb[0].mxu0
        %v7363 = vadd.f32 %v7190, %v7362
        %v7364 = vpop.f32.mrb[0].mxu0
        %7365 = vmatprep.mubr.f32.mxu0 0.0
        %7366 = vmatmul.mubr.f32.gmra.mrb[0].mxu0 %v7128
        %v7367 = vpop.f32.mrb[0].mxu0
        %v7368 = vadd.f32 %v7190, %v7367
        %v7369 = vpop.f32.mrb[0].mxu0
        %7370 = vmatprep.mubr.f32.mxu0 0.0
        %7371 = vmatmul.mubr.f32.gmra.mrb[0].mxu0 %v7129
        %v7372 = vpop.f32.mrb[0].mxu0
        %v7373 = vadd.f32 %v7190, %v7372
        %v7374 = vpop.f32.mrb[0].mxu0
        %7375 = vmatprep.mubr.f32.mxu0 0.0
        %7376 = vmatmul.mubr.f32.gmra.mrb[0].mxu0 %v7130
        %v7377 = vpop.f32.mrb[0].mxu0
        %v7378 = vadd.f32 %v7190, %v7377
        %v7379 = vpop.f32.mrb[0].mxu0
        %7380 = vmatprep.mubr.f32.mxu0 0.0
        %7381 = vmatmul.mubr.f32.gmra.mrb[0].mxu0 %v7131
        %v7382 = vpop.f32.mrb[0].mxu0
        %v7383 = vadd.f32 %v7190, %v7382
        %v7384 = vpop.f32.mrb[0].mxu0
        %7385 = vmatprep.mubr.f32.mxu0 0.0
        %7386 = vmatmul.mubr.f32.gmra.mrb[0].mxu0 %v7132
        %v7387 = vpop.f32.mrb[0].mxu0
        %v7388 = vadd.f32 %v7190, %v7387
        %v7389 = vpop.f32.mrb[0].mxu0
        %7390 = vmatprep.mubr.f32.mxu0 0.0
        %7391 = vmatmul.mubr.f32.gmra.mrb[0].mxu0 %v7133
        %v7392 = vpop.f32.mrb[0].mxu0
        %v7393 = vadd.f32 %v7190, %v7392
        %v7394 = vpop.f32.mrb[0].mxu0
        %7395 = vmatprep.mubr.f32.mxu0 0.0
        %7396 = vmatmul.mubr.f32.gmra.mrb[0].mxu0 %v7134
        %v7397 = vpop.f32.mrb[0].mxu0
        %v7398 = vadd.f32 %v7190, %v7397
        %v7399 = vpop.f32.mrb[0].mxu0
        %7400 = vmatprep.mubr.f32.mxu0 0.0
        %7401 = vmatmul.mubr.f32.gmra.mrb[0].mxu0 %v7135
        %v7402 = vpop.f32.mrb[0].mxu0
        %v7403 = vadd.f32 %v7190, %v7402
        %v7404 = vpop.f32.mrb[0].mxu0
        %7405 = vmatprep.mubr.f32.mxu0 0.0
        %7406 = vmatmul.mubr.f32.gmra.mrb[0].mxu0 %v7136
        %v7407 = vpop.f32.mrb[0].mxu0
        %v7408 = vadd.f32 %v7190, %v7407
        %v7409 = vpop.f32.mrb[0].mxu0
        %7410 = vmatprep.mubr.f32.mxu0 0.0
        %7411 = vmatmul.mubr.f32.gmra.mrb[0].mxu0 %v7137
        %v7412 = vpop.f32.mrb[0].mxu0
        %v7413 = vadd.f32 %v7190, %v7412
        %v7414 = vpop.f32.mrb[0].mxu0
        %7415 = vmatprep.mubr.f32.mxu0 0.0
        %7416 = vmatmul.mubr.f32.gmra.mrb[0].mxu0 %v7138
        %v7417 = vpop.f32.mrb[0].mxu0
        %v7418 = vadd.f32 %v7190, %v7417
        %v7419 = vpop.f32.mrb[0].mxu0
        %7420 = vmatprep.mubr.f32.mxu0 0.0
        %7421 = vmatmul.mubr.f32.gmra.mrb[0].mxu0 %v7139
        %v7422 = vpop.f32.mrb[0].mxu0
        %v7423 = vadd.f32 %v7190, %v7422
        %v7424 = vpop.f32.mrb[0].mxu0
        %7425 = vmatprep.mubr.f32.mxu0 0.0
        %7426 = vmatmul.mubr.f32.gmra.mrb[0].mxu0 %v7140
        %v7427 = vpop.f32.mrb[0].mxu0
        %v7428 = vadd.f32 %v7190, %v7427
        %v7429 = vpop.f32.mrb[0].mxu0
        %7430 = vmatprep.mubr.f32.mxu0 0.0
        %7431 = vmatmul.mubr.f32.gmra.mrb[0].mxu0 %v7141
        %v7432 = vpop.f32.mrb[0].mxu0
        %v7433 = vadd.f32 %v7190, %v7432
        %v7434 = vpop.f32.mrb[0].mxu0
        %7435 = vmatprep.mubr.f32.mxu0 0.0
        %7436 = vmatmul.mubr.f32.gmra.mrb[0].mxu0 %v7142
        %v7437 = vpop.f32.mrb[0].mxu0
        %v7438 = vadd.f32 %v7190, %v7437
        %v7439 = vpop.f32.mrb[0].mxu0
        %7440 = vmatprep.mubr.f32.mxu0 0.0
        %7441 = vmatmul.mubr.f32.gmra.mrb[0].mxu0 %v7143
        %v7442 = vpop.f32.mrb[0].mxu0
        %v7443 = vadd.f32 %v7190, %v7442
        %v7444 = vpop.f32.mrb[0].mxu0
        %7445 = vmatprep.mubr.f32.mxu0 0.0
        %7446 = vmatmul.mubr.f32.gmra.mrb[0].mxu0 %v7144
        %v7447 = vpop.f32.mrb[0].mxu0
        %v7448 = vadd.f32 %v7190, %v7447
        %v7449 = vpop.f32.mrb[0].mxu0
        %7450 = vmatprep.mubr.f32.mxu0 0.0
        %7451 = vmatmul.mubr.f32.gmra.mrb[0].mxu0 %v7145
        %v7452 = vpop.f32.mrb[0].mxu0
        %v7453 = vadd.f32 %v7190, %v7452
        %v7454 = vpop.f32.mrb[0].mxu0
        %7455 = vmatprep.mubr.f32.mxu0 0.0
        %7456 = vmatmul.mubr.f32.gmra.mrb[0].mxu0 %v7146
        %v7457 = vpop.f32.mrb[0].mxu0
        %v7458 = vadd.f32 %v7190, %v7457
        %v7459 = vpop.f32.mrb[0].mxu0
        %7460 = vmatprep.mubr.f32.mxu0 0.0
        %7461 = vmatmul.mubr.f32.gmra.mrb[0].mxu0 %v7147
        %v7462 = vpop.f32.mrb[0].mxu0
        %v7463 = vadd.f32 %v7190, %v7462
        %v7464 = vpop.f32.mrb[0].mxu0
        %7465 = vmatprep.mubr.f32.mxu0 0.0
        %7466 = vmatmul.mubr.f32.gmra.mrb[0].mxu0 %v7148
        %v7467 = vpop.f32.mrb[0].mxu0
        %v7468 = vadd.f32 %v7190, %v7467
        %v7469 = vpop.f32.mrb[0].mxu0
        %7470 = vmatprep.mubr.f32.mxu0 0.0
        %7471 = vmatmul.mubr.f32.gmra.mrb[0].mxu0 %v7149
        %v7472 = vpop.f32.mrb[0].mxu0
        %v7473 = vadd.f32 %v7190, %v7472
        %v7474 = vpop.f32.mrb[0].mxu0
        %7475 = vmatprep.mubr.f32.mxu0 0.0
        %7476 = vmatmul.mubr.f32.gmra.mrb[0].mxu0 %v7150
        %v7477 = vpop.f32.mrb[0].mxu0
        %v7478 = vadd.f32 %v7190, %v7477
        %v7479 = vpop.f32.mrb[0].mxu0
        %7480 = vmatprep.mubr.f32.mxu0 0.0
        %7481 = vmatmul.mubr.f32.gmra.mrb[0].mxu0 %v7151
        %v7482 = vpop.f32.mrb[0].mxu0
        %v7483 = vadd.f32 %v7190, %v7482
        %v7484 = vpop.f32.mrb[0].mxu0
        %7485 = vmatprep.mubr.f32.mxu0 0.0
        %7486 = vmatmul.mubr.f32.gmra.mrb[0].mxu0 %v7152
        %v7487 = vpop.f32.mrb[0].mxu0
        %v7488 = vadd.f32 %v7190, %v7487
        %v7489 = vpop.f32.mrb[0].mxu0
        %7490 = vmatprep.mubr.f32.mxu0 0.0
        %7491 = vmatmul.mubr.f32.gmra.mrb[0].mxu0 %v7153
        %v7492 = vpop.f32.mrb[0].mxu0
        %v7493 = vadd.f32 %v7190, %v7492
        %v7494 = vpop.f32.mrb[0].mxu0
        %7495 = vmatprep.mubr.f32.mxu0 0.0
        %7496 = vmatmul.mubr.f32.gmra.mrb[0].mxu0 %v7154
        %v7497 = vpop.f32.mrb[0].mxu0
        %v7498 = vadd.f32 %v7190, %v7497
        %v7499 = vpop.f32.mrb[0].mxu0
        %7500 = vmatprep.mubr.f32.mxu0 0.0
        %7501 = vmatmul.mubr.f32.gmra.mrb[0].mxu0 %v7155
        %v7502 = vpop.f32.mrb[0].mxu0
        %v7503 = vadd.f32 %v7190, %v7502
        %v7504 = vpop.f32.mrb[0].mxu0
        %7505 = vmatprep.mubr.f32.mxu0 0.0
        %7506 = vmatmul.mubr.f32.gmra.mrb[0].mxu0 %v7156
        %v7507 = vpop.f32.mrb[0].mxu0
        %v7508 = vadd.f32 %v7190, %v7507
        %v7509 = vpop.f32.mrb[0].mxu0
        %7510 = vmatprep.mubr.f32.mxu0 0.0
        %7511 = vmatmul.mubr.f32.gmra.mrb[0].mxu0 %v7157
        %v7512 = vpop.f32.mrb[0].mxu0
        %v7513 = vadd.f32 %v7190, %v7512
        %v7514 = vpop.f32.mrb[0].mxu0
        %7515 = vmatprep.mubr.f32.mxu0 0.0
        %7516 = vmatmul.mubr.f32.gmra.mrb[0].mxu0 %v7158
        %v7517 = vpop.f32.mrb[0].mxu0
        %v7518 = vadd.f32 %v7190, %v7517
        %v7519 = vpop.f32.mrb[0].mxu0
        %7520 = vmatprep.mubr.f32.mxu0 0.0
        %7521 = vmatmul.mubr.f32.gmra.mrb[0].mxu0 %v7159
        %v7522 = vpop.f32.mrb[0].mxu0
        %v7523 = vadd.f32 %v7190, %v7522
        %v7524 = vpop.f32.mrb[0].mxu0
        %7525 = vmatprep.mubr.f32.mxu0 0.0
        %7526 = vmatmul.mubr.f32.gmra.mrb[0].mxu0 %v7160
        %v7527 = vpop.f32.mrb[0].mxu0
        %v7528 = vadd.f32 %v7190, %v7527
        %v7529 = vpop.f32.mrb[0].mxu0
        %7530 = vmatprep.mubr.f32.mxu0 0.0
        %7531 = vmatmul.mubr.f32.gmra.mrb[0].mxu0 %v7161
        %v7532 = vpop.f32.mrb[0].mxu0
        %v7533 = vadd.f32 %v7190, %v7532
        %v7534 = vpop.f32.mrb[0].mxu0
        %7535 = vmatprep.mubr.f32.mxu0 0.0
        %7536 = vmatmul.mubr.f32.gmra.mrb[0].mxu0 %v7162
        %v7537 = vpop.f32.mrb[0].mxu0
        %v7538 = vadd.f32 %v7190, %v7537
        %v7539 = vpop.f32.mrb[0].mxu0
        %7540 = vmatprep.mubr.f32.mxu0 0.0
        %7541 = vmatmul.mubr.f32.gmra.mrb[0].mxu0 %v7163
        %v7542 = vpop.f32.mrb[0].mxu0
        %v7543 = vadd.f32 %v7190, %v7542
        %v7544 = vpop.f32.mrb[0].mxu0
        %7545 = vmatprep.mubr.f32.mxu0 0.0
        %7546 = vmatmul.mubr.f32.gmra.mrb[0].mxu0 %v7164
        %v7547 = vpop.f32.mrb[0].mxu0
        %v7548 = vadd.f32 %v7190, %v7547
        %v7549 = vpop.f32.mrb[0].mxu0
        %7550 = vmatprep.mubr.f32.mxu0 0.0
        %7551 = vmatmul.mubr.f32.gmra.mrb[0].mxu0 %v7165
        %v7552 = vpop.f32.mrb[0].mxu0
        %v7553 = vadd.f32 %v7190, %v7552
        %v7554 = vpop.f32.mrb[0].mxu0
        %7555 = vmatprep.mubr.f32.mxu0 0.0
        %7556 = vmatmul.mubr.f32.gmra.mrb[0].mxu0 %v7166
        %v7557 = vpop.f32.mrb[0].mxu0
        %v7558 = vadd.f32 %v7190, %v7557
        %v7559 = vpop.f32.mrb[0].mxu0
        %7560 = vmatprep.mubr.f32.mxu0 0.0
        %7561 = vmatmul.mubr.f32.gmra.mrb[0].mxu0 %v7167
        %v7562 = vpop.f32.mrb[0].mxu0
        %v7563 = vadd.f32 %v7190, %v7562
        %v7564 = vpop.f32.mrb[0].mxu0
        %7565 = vmatprep.mubr.f32.mxu0 0.0
        %7566 = vmatmul.mubr.f32.gmra.mrb[0].mxu0 %v7168
        %v7567 = vpop.f32.mrb[0].mxu0
        %v7568 = vadd.f32 %v7190, %v7567
        %v7569 = vpop.f32.mrb[0].mxu0
        %7570 = vmatprep.mubr.f32.mxu0 0.0
        %7571 = vmatmul.mubr.f32.gmra.mrb[0].mxu0 %v7169
        %v7572 = vpop.f32.mrb[0].mxu0
        %v7573 = vadd.f32 %v7190, %v7572
        %v7574 = vpop.f32.mrb[0].mxu0
        %7575 = vdwg.mxu0
        %v7576 = vmax.f32 %v7258, 0.0
        %v7577 = vmax.f32 %v7263, 0.0
        %v7578 = vmax.f32 %v7268, 0.0
        %v7579 = vmax.f32 %v7273, 0.0
        %v7580 = vmax.f32 %v7278, 0.0
        %v7581 = vmax.f32 %v7283, 0.0
        %v7582 = vmax.f32 %v7288, 0.0
        %v7583 = vmax.f32 %v7293, 0.0
        %v7584 = vmax.f32 %v7298, 0.0
        %v7585 = vmax.f32 %v7303, 0.0
        %v7586 = vmax.f32 %v7308, 0.0
        %v7587 = vmax.f32 %v7313, 0.0
        %v7588 = vmax.f32 %v7318, 0.0
        %v7589 = vmax.f32 %v7323, 0.0
        %v7590 = vmax.f32 %v7328, 0.0
        %v7591 = vmax.f32 %v7333, 0.0
        %v7592 = vmax.f32 %v7338, 0.0
        %v7593 = vmax.f32 %v7343, 0.0
        %v7594 = vmax.f32 %v7348, 0.0
        %v7595 = vmax.f32 %v7353, 0.0
        %v7596 = vmax.f32 %v7358, 0.0
        %v7597 = vmax.f32 %v7363, 0.0
        %v7598 = vmax.f32 %v7368, 0.0
        %v7599 = vmax.f32 %v7373, 0.0
        %v7600 = vmax.f32 %v7378, 0.0
        %v7601 = vmax.f32 %v7383, 0.0
        %v7602 = vmax.f32 %v7388, 0.0
        %v7603 = vmax.f32 %v7393, 0.0
        %v7604 = vmax.f32 %v7398, 0.0
        %v7605 = vmax.f32 %v7403, 0.0
        %v7606 = vmax.f32 %v7408, 0.0
        %v7607 = vmax.f32 %v7413, 0.0
        %v7608 = vmax.f32 %v7418, 0.0
        %v7609 = vmax.f32 %v7423, 0.0
        %v7610 = vmax.f32 %v7428, 0.0
        %v7611 = vmax.f32 %v7433, 0.0
        %v7612 = vmax.f32 %v7438, 0.0
        %v7613 = vmax.f32 %v7443, 0.0
        %v7614 = vmax.f32 %v7448, 0.0
        %v7615 = vmax.f32 %v7453, 0.0
        %v7616 = vmax.f32 %v7458, 0.0
        %v7617 = vmax.f32 %v7463, 0.0
        %v7618 = vmax.f32 %v7468, 0.0
        %v7619 = vmax.f32 %v7473, 0.0
        %v7620 = vmax.f32 %v7478, 0.0
        %v7621 = vmax.f32 %v7483, 0.0
        %v7622 = vmax.f32 %v7488, 0.0
        %v7623 = vmax.f32 %v7493, 0.0
        %v7624 = vmax.f32 %v7498, 0.0
        %v7625 = vmax.f32 %v7503, 0.0
        %v7626 = vmax.f32 %v7508, 0.0
        %v7627 = vmax.f32 %v7513, 0.0
        %v7628 = vmax.f32 %v7518, 0.0
        %v7629 = vmax.f32 %v7523, 0.0
        %v7630 = vmax.f32 %v7528, 0.0
        %v7631 = vmax.f32 %v7533, 0.0
        %v7632 = vmax.f32 %v7538, 0.0
        %v7633 = vmax.f32 %v7543, 0.0
        %v7634 = vmax.f32 %v7548, 0.0
        %v7635 = vmax.f32 %v7553, 0.0
        %v7636 = vmax.f32 %v7558, 0.0
        %v7637 = vmax.f32 %v7563, 0.0
        %v7638 = vmax.f32 %v7568, 0.0
        %v7639 = vmax.f32 %v7573, 0.0
        %v7640 = vld [vmem:[%s4435] sm:$0xff]
        %v7641 = vld [vmem:[%s4435 + $0x8] sm:$0xff]
        %v7642 = vld [vmem:[%s4435 + $0x10] sm:$0xff]
        %v7643 = vld [vmem:[%s4435 + $0x18] sm:$0xff]
        %v7644 = vld [vmem:[%s4435 + $0x20] sm:$0xff]
        %v7645 = vld [vmem:[%s4435 + $0x28] sm:$0xff]
        %v7646 = vld [vmem:[%s4435 + $0x30] sm:$0xff]
        %v7647 = vld [vmem:[%s4435 + $0x38] sm:$0xff]
        %v7648 = vld [vmem:[%s4435 + $0x40] sm:$0xff]
        %v7649 = vld [vmem:[%s4435 + $0x48] sm:$0xff]
        %v7650 = vld [vmem:[%s4435 + $0x50] sm:$0xff]
        %v7651 = vld [vmem:[%s4435 + $0x58] sm:$0xff]
        %v7652 = vld [vmem:[%s4435 + $0x60] sm:$0xff]
        %v7653 = vld [vmem:[%s4435 + $0x68] sm:$0xff]
        %v7654 = vld [vmem:[%s4435 + $0x70] sm:$0xff]
        %v7655 = vld [vmem:[%s4435 + $0x78] sm:$0xff]
        %v7656 = vld [vmem:[#allocation7 + $0x8] sm:$0x1]
        %v7657 = vlaneseq
        %v7658 = vshrl.u32 %v7657, 7
        %v7659 = vsub.s32 0, %v7658
        %v7660 = vrot.slane %v7656, %v7659
        %7661 = vmatprep.subr.mxu0 0.0
        %7662 = vmatpush1.msra.mxu0 %v7640
        %7663 = vmatprep.subr.mxu0 0.0
        %7664 = vmatpush1.msra.mxu0 %v7641
        %7665 = vmatprep.subr.mxu0 0.0
        %7666 = vmatpush1.msra.mxu0 %v7642
        %7667 = vmatprep.subr.mxu0 0.0
        %7668 = vmatpush1.msra.mxu0 %v7643
        %7669 = vmatprep.subr.mxu0 0.0
        %7670 = vmatpush1.msra.mxu0 %v7644
        %7671 = vmatprep.subr.mxu0 0.0
        %7672 = vmatpush1.msra.mxu0 %v7645
        %7673 = vmatprep.subr.mxu0 0.0
        %7674 = vmatpush1.msra.mxu0 %v7646
        %7675 = vmatprep.subr.mxu0 0.0
        %7676 = vmatpush1.msra.mxu0 %v7647
        %7677 = vmatprep.subr.mxu0 0.0
        %7678 = vmatpush1.msra.mxu0 %v7648
        %7679 = vmatprep.subr.mxu0 0.0
        %7680 = vmatpush1.msra.mxu0 %v7649
        %7681 = vmatprep.subr.mxu0 0.0
        %7682 = vmatpush1.msra.mxu0 %v7650
        %7683 = vmatprep.subr.mxu0 0.0
        %7684 = vmatpush1.msra.mxu0 %v7651
        %7685 = vmatprep.subr.mxu0 0.0
        %7686 = vmatpush1.msra.mxu0 %v7652
        %7687 = vmatprep.subr.mxu0 0.0
        %7688 = vmatpush1.msra.mxu0 %v7653
        %7689 = vmatprep.subr.mxu0 0.0
        %7690 = vmatpush1.msra.mxu0 %v7654
        %7691 = vmatprep.subr.mxu0 0.0
        %7692 = vmatpush1.msra.mxu0 %v7655
        %7693 = vmatprep.subr.mxu0 0.0
        %7694 = vmatpush1.msra.mxu0 0.0
        %7695 = vmatprep.subr.mxu0 0.0
        %7696 = vmatpush1.msra.mxu0 0.0
        %7697 = vmatprep.subr.mxu0 0.0
        %7698 = vmatpush1.msra.mxu0 0.0
        %7699 = vmatprep.subr.mxu0 0.0
        %7700 = vmatpush1.msra.mxu0 0.0
        %7701 = vmatprep.subr.mxu0 0.0
        %7702 = vmatpush1.msra.mxu0 0.0
        %7703 = vmatprep.subr.mxu0 0.0
        %7704 = vmatpush1.msra.mxu0 0.0
        %7705 = vmatprep.subr.mxu0 0.0
        %7706 = vmatpush1.msra.mxu0 0.0
        %7707 = vmatprep.subr.mxu0 0.0
        %7708 = vmatpush1.msra.mxu0 0.0
        %7709 = vmatprep.subr.mxu0 0.0
        %7710 = vmatpush1.msra.mxu0 0.0
        %7711 = vmatprep.subr.mxu0 0.0
        %7712 = vmatpush1.msra.mxu0 0.0
        %7713 = vmatprep.subr.mxu0 0.0
        %7714 = vmatpush1.msra.mxu0 0.0
        %7715 = vmatprep.subr.mxu0 0.0
        %7716 = vmatpush1.msra.mxu0 0.0
        %7717 = vmatprep.subr.mxu0 0.0
        %7718 = vmatpush1.msra.mxu0 0.0
        %7719 = vmatprep.subr.mxu0 0.0
        %7720 = vmatpush1.msra.mxu0 0.0
        %7721 = vmatprep.subr.mxu0 0.0
        %7722 = vmatpush1.msra.mxu0 0.0
        %7723 = vmatprep.subr.mxu0 0.0
        %7724 = vmatpush1.msra.mxu0 0.0
        %7725 = vmatprep.mubr.f32.mxu0 0.0
        %7726 = vmatmul.mubr.f32.gmra.mrb[0].mxu0 %v7576
        %v7727 = vpop.f32.mrb[0].mxu0
        %v7728 = vadd.f32 %v7660, %v7727
        %v7729 = vpop.f32.mrb[0].mxu0
        %7730 = vmatprep.mubr.f32.mxu0 0.0
        %7731 = vmatmul.mubr.f32.gmra.mrb[0].mxu0 %v7577
        %v7732 = vpop.f32.mrb[0].mxu0
        %v7733 = vadd.f32 %v7660, %v7732
        %v7734 = vpop.f32.mrb[0].mxu0
        %7735 = vmatprep.mubr.f32.mxu0 0.0
        %7736 = vmatmul.mubr.f32.gmra.mrb[0].mxu0 %v7578
        %v7737 = vpop.f32.mrb[0].mxu0
        %v7738 = vadd.f32 %v7660, %v7737
        %v7739 = vpop.f32.mrb[0].mxu0
        %7740 = vmatprep.mubr.f32.mxu0 0.0
        %7741 = vmatmul.mubr.f32.gmra.mrb[0].mxu0 %v7579
        %v7742 = vpop.f32.mrb[0].mxu0
        %v7743 = vadd.f32 %v7660, %v7742
        %v7744 = vpop.f32.mrb[0].mxu0
        %7745 = vmatprep.mubr.f32.mxu0 0.0
        %7746 = vmatmul.mubr.f32.gmra.mrb[0].mxu0 %v7580
        %v7747 = vpop.f32.mrb[0].mxu0
        %v7748 = vadd.f32 %v7660, %v7747
        %v7749 = vpop.f32.mrb[0].mxu0
        %7750 = vmatprep.mubr.f32.mxu0 0.0
        %7751 = vmatmul.mubr.f32.gmra.mrb[0].mxu0 %v7581
        %v7752 = vpop.f32.mrb[0].mxu0
        %v7753 = vadd.f32 %v7660, %v7752
        %v7754 = vpop.f32.mrb[0].mxu0
        %7755 = vmatprep.mubr.f32.mxu0 0.0
        %7756 = vmatmul.mubr.f32.gmra.mrb[0].mxu0 %v7582
        %v7757 = vpop.f32.mrb[0].mxu0
        %v7758 = vadd.f32 %v7660, %v7757
        %v7759 = vpop.f32.mrb[0].mxu0
        %7760 = vmatprep.mubr.f32.mxu0 0.0
        %7761 = vmatmul.mubr.f32.gmra.mrb[0].mxu0 %v7583
        %v7762 = vpop.f32.mrb[0].mxu0
        %v7763 = vadd.f32 %v7660, %v7762
        %v7764 = vpop.f32.mrb[0].mxu0
        %7765 = vmatprep.mubr.f32.mxu0 0.0
        %7766 = vmatmul.mubr.f32.gmra.mrb[0].mxu0 %v7584
        %v7767 = vpop.f32.mrb[0].mxu0
        %v7768 = vadd.f32 %v7660, %v7767
        %v7769 = vpop.f32.mrb[0].mxu0
        %7770 = vmatprep.mubr.f32.mxu0 0.0
        %7771 = vmatmul.mubr.f32.gmra.mrb[0].mxu0 %v7585
        %v7772 = vpop.f32.mrb[0].mxu0
        %v7773 = vadd.f32 %v7660, %v7772
        %v7774 = vpop.f32.mrb[0].mxu0
        %7775 = vmatprep.mubr.f32.mxu0 0.0
        %7776 = vmatmul.mubr.f32.gmra.mrb[0].mxu0 %v7586
        %v7777 = vpop.f32.mrb[0].mxu0
        %v7778 = vadd.f32 %v7660, %v7777
        %v7779 = vpop.f32.mrb[0].mxu0
        %7780 = vmatprep.mubr.f32.mxu0 0.0
        %7781 = vmatmul.mubr.f32.gmra.mrb[0].mxu0 %v7587
        %v7782 = vpop.f32.mrb[0].mxu0
        %v7783 = vadd.f32 %v7660, %v7782
        %v7784 = vpop.f32.mrb[0].mxu0
        %7785 = vmatprep.mubr.f32.mxu0 0.0
        %7786 = vmatmul.mubr.f32.gmra.mrb[0].mxu0 %v7588
        %v7787 = vpop.f32.mrb[0].mxu0
        %v7788 = vadd.f32 %v7660, %v7787
        %v7789 = vpop.f32.mrb[0].mxu0
        %7790 = vmatprep.mubr.f32.mxu0 0.0
        %7791 = vmatmul.mubr.f32.gmra.mrb[0].mxu0 %v7589
        %v7792 = vpop.f32.mrb[0].mxu0
        %v7793 = vadd.f32 %v7660, %v7792
        %v7794 = vpop.f32.mrb[0].mxu0
        %7795 = vmatprep.mubr.f32.mxu0 0.0
        %7796 = vmatmul.mubr.f32.gmra.mrb[0].mxu0 %v7590
        %v7797 = vpop.f32.mrb[0].mxu0
        %v7798 = vadd.f32 %v7660, %v7797
        %v7799 = vpop.f32.mrb[0].mxu0
        %7800 = vmatprep.mubr.f32.mxu0 0.0
        %7801 = vmatmul.mubr.f32.gmra.mrb[0].mxu0 %v7591
        %v7802 = vpop.f32.mrb[0].mxu0
        %v7803 = vadd.f32 %v7660, %v7802
        %v7804 = vpop.f32.mrb[0].mxu0
        %7805 = vmatprep.mubr.f32.mxu0 0.0
        %7806 = vmatmul.mubr.f32.gmra.mrb[0].mxu0 %v7592
        %v7807 = vpop.f32.mrb[0].mxu0
        %v7808 = vadd.f32 %v7660, %v7807
        %v7809 = vpop.f32.mrb[0].mxu0
        %7810 = vmatprep.mubr.f32.mxu0 0.0
        %7811 = vmatmul.mubr.f32.gmra.mrb[0].mxu0 %v7593
        %v7812 = vpop.f32.mrb[0].mxu0
        %v7813 = vadd.f32 %v7660, %v7812
        %v7814 = vpop.f32.mrb[0].mxu0
        %7815 = vmatprep.mubr.f32.mxu0 0.0
        %7816 = vmatmul.mubr.f32.gmra.mrb[0].mxu0 %v7594
        %v7817 = vpop.f32.mrb[0].mxu0
        %v7818 = vadd.f32 %v7660, %v7817
        %v7819 = vpop.f32.mrb[0].mxu0
        %7820 = vmatprep.mubr.f32.mxu0 0.0
        %7821 = vmatmul.mubr.f32.gmra.mrb[0].mxu0 %v7595
        %v7822 = vpop.f32.mrb[0].mxu0
        %v7823 = vadd.f32 %v7660, %v7822
        %v7824 = vpop.f32.mrb[0].mxu0
        %7825 = vmatprep.mubr.f32.mxu0 0.0
        %7826 = vmatmul.mubr.f32.gmra.mrb[0].mxu0 %v7596
        %v7827 = vpop.f32.mrb[0].mxu0
        %v7828 = vadd.f32 %v7660, %v7827
        %v7829 = vpop.f32.mrb[0].mxu0
        %7830 = vmatprep.mubr.f32.mxu0 0.0
        %7831 = vmatmul.mubr.f32.gmra.mrb[0].mxu0 %v7597
        %v7832 = vpop.f32.mrb[0].mxu0
        %v7833 = vadd.f32 %v7660, %v7832
        %v7834 = vpop.f32.mrb[0].mxu0
        %7835 = vmatprep.mubr.f32.mxu0 0.0
        %7836 = vmatmul.mubr.f32.gmra.mrb[0].mxu0 %v7598
        %v7837 = vpop.f32.mrb[0].mxu0
        %v7838 = vadd.f32 %v7660, %v7837
        %v7839 = vpop.f32.mrb[0].mxu0
        %7840 = vmatprep.mubr.f32.mxu0 0.0
        %7841 = vmatmul.mubr.f32.gmra.mrb[0].mxu0 %v7599
        %v7842 = vpop.f32.mrb[0].mxu0
        %v7843 = vadd.f32 %v7660, %v7842
        %v7844 = vpop.f32.mrb[0].mxu0
        %7845 = vmatprep.mubr.f32.mxu0 0.0
        %7846 = vmatmul.mubr.f32.gmra.mrb[0].mxu0 %v7600
        %v7847 = vpop.f32.mrb[0].mxu0
        %v7848 = vadd.f32 %v7660, %v7847
        %v7849 = vpop.f32.mrb[0].mxu0
        %7850 = vmatprep.mubr.f32.mxu0 0.0
        %7851 = vmatmul.mubr.f32.gmra.mrb[0].mxu0 %v7601
        %v7852 = vpop.f32.mrb[0].mxu0
        %v7853 = vadd.f32 %v7660, %v7852
        %v7854 = vpop.f32.mrb[0].mxu0
        %7855 = vmatprep.mubr.f32.mxu0 0.0
        %7856 = vmatmul.mubr.f32.gmra.mrb[0].mxu0 %v7602
        %v7857 = vpop.f32.mrb[0].mxu0
        %v7858 = vadd.f32 %v7660, %v7857
        %v7859 = vpop.f32.mrb[0].mxu0
        %7860 = vmatprep.mubr.f32.mxu0 0.0
        %7861 = vmatmul.mubr.f32.gmra.mrb[0].mxu0 %v7603
        %v7862 = vpop.f32.mrb[0].mxu0
        %v7863 = vadd.f32 %v7660, %v7862
        %v7864 = vpop.f32.mrb[0].mxu0
        %7865 = vmatprep.mubr.f32.mxu0 0.0
        %7866 = vmatmul.mubr.f32.gmra.mrb[0].mxu0 %v7604
        %v7867 = vpop.f32.mrb[0].mxu0
        %v7868 = vadd.f32 %v7660, %v7867
        %v7869 = vpop.f32.mrb[0].mxu0
        %7870 = vmatprep.mubr.f32.mxu0 0.0
        %7871 = vmatmul.mubr.f32.gmra.mrb[0].mxu0 %v7605
        %v7872 = vpop.f32.mrb[0].mxu0
        %v7873 = vadd.f32 %v7660, %v7872
        %v7874 = vpop.f32.mrb[0].mxu0
        %7875 = vmatprep.mubr.f32.mxu0 0.0
        %7876 = vmatmul.mubr.f32.gmra.mrb[0].mxu0 %v7606
        %v7877 = vpop.f32.mrb[0].mxu0
        %v7878 = vadd.f32 %v7660, %v7877
        %v7879 = vpop.f32.mrb[0].mxu0
        %7880 = vmatprep.mubr.f32.mxu0 0.0
        %7881 = vmatmul.mubr.f32.gmra.mrb[0].mxu0 %v7607
        %v7882 = vpop.f32.mrb[0].mxu0
        %v7883 = vadd.f32 %v7660, %v7882
        %v7884 = vpop.f32.mrb[0].mxu0
        %7885 = vmatprep.mubr.f32.mxu0 0.0
        %7886 = vmatmul.mubr.f32.gmra.mrb[0].mxu0 %v7608
        %v7887 = vpop.f32.mrb[0].mxu0
        %v7888 = vadd.f32 %v7660, %v7887
        %v7889 = vpop.f32.mrb[0].mxu0
        %7890 = vmatprep.mubr.f32.mxu0 0.0
        %7891 = vmatmul.mubr.f32.gmra.mrb[0].mxu0 %v7609
        %v7892 = vpop.f32.mrb[0].mxu0
        %v7893 = vadd.f32 %v7660, %v7892
        %v7894 = vpop.f32.mrb[0].mxu0
        %7895 = vmatprep.mubr.f32.mxu0 0.0
        %7896 = vmatmul.mubr.f32.gmra.mrb[0].mxu0 %v7610
        %v7897 = vpop.f32.mrb[0].mxu0
        %v7898 = vadd.f32 %v7660, %v7897
        %v7899 = vpop.f32.mrb[0].mxu0
        %7900 = vmatprep.mubr.f32.mxu0 0.0
        %7901 = vmatmul.mubr.f32.gmra.mrb[0].mxu0 %v7611
        %v7902 = vpop.f32.mrb[0].mxu0
        %v7903 = vadd.f32 %v7660, %v7902
        %v7904 = vpop.f32.mrb[0].mxu0
        %7905 = vmatprep.mubr.f32.mxu0 0.0
        %7906 = vmatmul.mubr.f32.gmra.mrb[0].mxu0 %v7612
        %v7907 = vpop.f32.mrb[0].mxu0
        %v7908 = vadd.f32 %v7660, %v7907
        %v7909 = vpop.f32.mrb[0].mxu0
        %7910 = vmatprep.mubr.f32.mxu0 0.0
        %7911 = vmatmul.mubr.f32.gmra.mrb[0].mxu0 %v7613
        %v7912 = vpop.f32.mrb[0].mxu0
        %v7913 = vadd.f32 %v7660, %v7912
        %v7914 = vpop.f32.mrb[0].mxu0
        %7915 = vmatprep.mubr.f32.mxu0 0.0
        %7916 = vmatmul.mubr.f32.gmra.mrb[0].mxu0 %v7614
        %v7917 = vpop.f32.mrb[0].mxu0
        %v7918 = vadd.f32 %v7660, %v7917
        %v7919 = vpop.f32.mrb[0].mxu0
        %7920 = vmatprep.mubr.f32.mxu0 0.0
        %7921 = vmatmul.mubr.f32.gmra.mrb[0].mxu0 %v7615
        %v7922 = vpop.f32.mrb[0].mxu0
        %v7923 = vadd.f32 %v7660, %v7922
        %v7924 = vpop.f32.mrb[0].mxu0
        %7925 = vmatprep.mubr.f32.mxu0 0.0
        %7926 = vmatmul.mubr.f32.gmra.mrb[0].mxu0 %v7616
        %v7927 = vpop.f32.mrb[0].mxu0
        %v7928 = vadd.f32 %v7660, %v7927
        %v7929 = vpop.f32.mrb[0].mxu0
        %7930 = vmatprep.mubr.f32.mxu0 0.0
        %7931 = vmatmul.mubr.f32.gmra.mrb[0].mxu0 %v7617
        %v7932 = vpop.f32.mrb[0].mxu0
        %v7933 = vadd.f32 %v7660, %v7932
        %v7934 = vpop.f32.mrb[0].mxu0
        %7935 = vmatprep.mubr.f32.mxu0 0.0
        %7936 = vmatmul.mubr.f32.gmra.mrb[0].mxu0 %v7618
        %v7937 = vpop.f32.mrb[0].mxu0
        %v7938 = vadd.f32 %v7660, %v7937
        %v7939 = vpop.f32.mrb[0].mxu0
        %7940 = vmatprep.mubr.f32.mxu0 0.0
        %7941 = vmatmul.mubr.f32.gmra.mrb[0].mxu0 %v7619
        %v7942 = vpop.f32.mrb[0].mxu0
        %v7943 = vadd.f32 %v7660, %v7942
        %v7944 = vpop.f32.mrb[0].mxu0
        %7945 = vmatprep.mubr.f32.mxu0 0.0
        %7946 = vmatmul.mubr.f32.gmra.mrb[0].mxu0 %v7620
        %v7947 = vpop.f32.mrb[0].mxu0
        %v7948 = vadd.f32 %v7660, %v7947
        %v7949 = vpop.f32.mrb[0].mxu0
        %7950 = vmatprep.mubr.f32.mxu0 0.0
        %7951 = vmatmul.mubr.f32.gmra.mrb[0].mxu0 %v7621
        %v7952 = vpop.f32.mrb[0].mxu0
        %v7953 = vadd.f32 %v7660, %v7952
        %v7954 = vpop.f32.mrb[0].mxu0
        %7955 = vmatprep.mubr.f32.mxu0 0.0
        %7956 = vmatmul.mubr.f32.gmra.mrb[0].mxu0 %v7622
        %v7957 = vpop.f32.mrb[0].mxu0
        %v7958 = vadd.f32 %v7660, %v7957
        %v7959 = vpop.f32.mrb[0].mxu0
        %7960 = vmatprep.mubr.f32.mxu0 0.0
        %7961 = vmatmul.mubr.f32.gmra.mrb[0].mxu0 %v7623
        %v7962 = vpop.f32.mrb[0].mxu0
        %v7963 = vadd.f32 %v7660, %v7962
        %v7964 = vpop.f32.mrb[0].mxu0
        %7965 = vmatprep.mubr.f32.mxu0 0.0
        %7966 = vmatmul.mubr.f32.gmra.mrb[0].mxu0 %v7624
        %v7967 = vpop.f32.mrb[0].mxu0
        %v7968 = vadd.f32 %v7660, %v7967
        %v7969 = vpop.f32.mrb[0].mxu0
        %7970 = vmatprep.mubr.f32.mxu0 0.0
        %7971 = vmatmul.mubr.f32.gmra.mrb[0].mxu0 %v7625
        %v7972 = vpop.f32.mrb[0].mxu0
        %v7973 = vadd.f32 %v7660, %v7972
        %v7974 = vpop.f32.mrb[0].mxu0
        %7975 = vmatprep.mubr.f32.mxu0 0.0
        %7976 = vmatmul.mubr.f32.gmra.mrb[0].mxu0 %v7626
        %v7977 = vpop.f32.mrb[0].mxu0
        %v7978 = vadd.f32 %v7660, %v7977
        %v7979 = vpop.f32.mrb[0].mxu0
        %7980 = vmatprep.mubr.f32.mxu0 0.0
        %7981 = vmatmul.mubr.f32.gmra.mrb[0].mxu0 %v7627
        %v7982 = vpop.f32.mrb[0].mxu0
        %v7983 = vadd.f32 %v7660, %v7982
        %v7984 = vpop.f32.mrb[0].mxu0
        %7985 = vmatprep.mubr.f32.mxu0 0.0
        %7986 = vmatmul.mubr.f32.gmra.mrb[0].mxu0 %v7628
        %v7987 = vpop.f32.mrb[0].mxu0
        %v7988 = vadd.f32 %v7660, %v7987
        %v7989 = vpop.f32.mrb[0].mxu0
        %7990 = vmatprep.mubr.f32.mxu0 0.0
        %7991 = vmatmul.mubr.f32.gmra.mrb[0].mxu0 %v7629
        %v7992 = vpop.f32.mrb[0].mxu0
        %v7993 = vadd.f32 %v7660, %v7992
        %v7994 = vpop.f32.mrb[0].mxu0
        %7995 = vmatprep.mubr.f32.mxu0 0.0
        %7996 = vmatmul.mubr.f32.gmra.mrb[0].mxu0 %v7630
        %v7997 = vpop.f32.mrb[0].mxu0
        %v7998 = vadd.f32 %v7660, %v7997
        %v7999 = vpop.f32.mrb[0].mxu0
        %8000 = vmatprep.mubr.f32.mxu0 0.0
        %8001 = vmatmul.mubr.f32.gmra.mrb[0].mxu0 %v7631
        %v8002 = vpop.f32.mrb[0].mxu0
        %v8003 = vadd.f32 %v7660, %v8002
        %v8004 = vpop.f32.mrb[0].mxu0
        %8005 = vmatprep.mubr.f32.mxu0 0.0
        %8006 = vmatmul.mubr.f32.gmra.mrb[0].mxu0 %v7632
        %v8007 = vpop.f32.mrb[0].mxu0
        %v8008 = vadd.f32 %v7660, %v8007
        %v8009 = vpop.f32.mrb[0].mxu0
        %8010 = vmatprep.mubr.f32.mxu0 0.0
        %8011 = vmatmul.mubr.f32.gmra.mrb[0].mxu0 %v7633
        %v8012 = vpop.f32.mrb[0].mxu0
        %v8013 = vadd.f32 %v7660, %v8012
        %v8014 = vpop.f32.mrb[0].mxu0
        %8015 = vmatprep.mubr.f32.mxu0 0.0
        %8016 = vmatmul.mubr.f32.gmra.mrb[0].mxu0 %v7634
        %v8017 = vpop.f32.mrb[0].mxu0
        %v8018 = vadd.f32 %v7660, %v8017
        %v8019 = vpop.f32.mrb[0].mxu0
        %8020 = vmatprep.mubr.f32.mxu0 0.0
        %8021 = vmatmul.mubr.f32.gmra.mrb[0].mxu0 %v7635
        %v8022 = vpop.f32.mrb[0].mxu0
        %v8023 = vadd.f32 %v7660, %v8022
        %v8024 = vpop.f32.mrb[0].mxu0
        %8025 = vmatprep.mubr.f32.mxu0 0.0
        %8026 = vmatmul.mubr.f32.gmra.mrb[0].mxu0 %v7636
        %v8027 = vpop.f32.mrb[0].mxu0
        %v8028 = vadd.f32 %v7660, %v8027
        %v8029 = vpop.f32.mrb[0].mxu0
        %8030 = vmatprep.mubr.f32.mxu0 0.0
        %8031 = vmatmul.mubr.f32.gmra.mrb[0].mxu0 %v7637
        %v8032 = vpop.f32.mrb[0].mxu0
        %v8033 = vadd.f32 %v7660, %v8032
        %v8034 = vpop.f32.mrb[0].mxu0
        %8035 = vmatprep.mubr.f32.mxu0 0.0
        %8036 = vmatmul.mubr.f32.gmra.mrb[0].mxu0 %v7638
        %v8037 = vpop.f32.mrb[0].mxu0
        %v8038 = vadd.f32 %v7660, %v8037
        %v8039 = vpop.f32.mrb[0].mxu0
        %8040 = vmatprep.mubr.f32.mxu0 0.0
        %8041 = vmatmul.mubr.f32.gmra.mrb[0].mxu0 %v7639
        %v8042 = vpop.f32.mrb[0].mxu0
        %v8043 = vadd.f32 %v7660, %v8042
        %v8044 = vpop.f32.mrb[0].mxu0
        %8045 = vdwg.mxu0
        %v8046 = vxor.u32 %v7728, 2147483648
        %v8047 = vxor.u32 %v7733, 2147483648
        %v8048 = vxor.u32 %v7738, 2147483648
        %v8049 = vxor.u32 %v7743, 2147483648
        %v8050 = vxor.u32 %v7748, 2147483648
        %v8051 = vxor.u32 %v7753, 2147483648
        %v8052 = vxor.u32 %v7758, 2147483648
        %v8053 = vxor.u32 %v7763, 2147483648
        %v8054 = vxor.u32 %v7768, 2147483648
        %v8055 = vxor.u32 %v7773, 2147483648
        %v8056 = vxor.u32 %v7778, 2147483648
        %v8057 = vxor.u32 %v7783, 2147483648
        %v8058 = vxor.u32 %v7788, 2147483648
        %v8059 = vxor.u32 %v7793, 2147483648
        %v8060 = vxor.u32 %v7798, 2147483648
        %v8061 = vxor.u32 %v7803, 2147483648
        %v8062 = vxor.u32 %v7808, 2147483648
        %v8063 = vxor.u32 %v7813, 2147483648
        %v8064 = vxor.u32 %v7818, 2147483648
        %v8065 = vxor.u32 %v7823, 2147483648
        %v8066 = vxor.u32 %v7828, 2147483648
        %v8067 = vxor.u32 %v7833, 2147483648
        %v8068 = vxor.u32 %v7838, 2147483648
        %v8069 = vxor.u32 %v7843, 2147483648
        %v8070 = vxor.u32 %v7848, 2147483648
        %v8071 = vxor.u32 %v7853, 2147483648
        %v8072 = vxor.u32 %v7858, 2147483648
        %v8073 = vxor.u32 %v7863, 2147483648
        %v8074 = vxor.u32 %v7868, 2147483648
        %v8075 = vxor.u32 %v7873, 2147483648
        %v8076 = vxor.u32 %v7878, 2147483648
        %v8077 = vxor.u32 %v7883, 2147483648
        %v8078 = vxor.u32 %v7888, 2147483648
        %v8079 = vxor.u32 %v7893, 2147483648
        %v8080 = vxor.u32 %v7898, 2147483648
        %v8081 = vxor.u32 %v7903, 2147483648
        %v8082 = vxor.u32 %v7908, 2147483648
        %v8083 = vxor.u32 %v7913, 2147483648
        %v8084 = vxor.u32 %v7918, 2147483648
        %v8085 = vxor.u32 %v7923, 2147483648
        %v8086 = vxor.u32 %v7928, 2147483648
        %v8087 = vxor.u32 %v7933, 2147483648
        %v8088 = vxor.u32 %v7938, 2147483648
        %v8089 = vxor.u32 %v7943, 2147483648
        %v8090 = vxor.u32 %v7948, 2147483648
        %v8091 = vxor.u32 %v7953, 2147483648
        %v8092 = vxor.u32 %v7958, 2147483648
        %v8093 = vxor.u32 %v7963, 2147483648
        %v8094 = vxor.u32 %v7968, 2147483648
        %v8095 = vxor.u32 %v7973, 2147483648
        %v8096 = vxor.u32 %v7978, 2147483648
        %v8097 = vxor.u32 %v7983, 2147483648
        %v8098 = vxor.u32 %v7988, 2147483648
        %v8099 = vxor.u32 %v7993, 2147483648
        %v8100 = vxor.u32 %v7998, 2147483648
        %v8101 = vxor.u32 %v8003, 2147483648
        %v8102 = vxor.u32 %v8008, 2147483648
        %v8103 = vxor.u32 %v8013, 2147483648
        %v8104 = vxor.u32 %v8018, 2147483648
        %v8105 = vxor.u32 %v8023, 2147483648
        %v8106 = vxor.u32 %v8028, 2147483648
        %v8107 = vxor.u32 %v8033, 2147483648
        %v8108 = vxor.u32 %v8038, 2147483648
        %v8109 = vxor.u32 %v8043, 2147483648
        %v8110 = vmul.f32 %v8046, 1.442695
        %v8111 = vpow.pop %v8110
        %v8112 = vmul.f32 %v8047, 1.442695
        %v8113 = vpow.pop %v8112
        %v8114 = vmul.f32 %v8048, 1.442695
        %v8115 = vpow.pop %v8114
        %v8116 = vmul.f32 %v8049, 1.442695
        %v8117 = vpow.pop %v8116
        %v8118 = vmul.f32 %v8050, 1.442695
        %v8119 = vpow.pop %v8118
        %v8120 = vmul.f32 %v8051, 1.442695
        %v8121 = vpow.pop %v8120
        %v8122 = vmul.f32 %v8052, 1.442695
        %v8123 = vpow.pop %v8122
        %v8124 = vmul.f32 %v8053, 1.442695
        %v8125 = vpow.pop %v8124
        %v8126 = vmul.f32 %v8054, 1.442695
        %v8127 = vpow.pop %v8126
        %v8128 = vmul.f32 %v8055, 1.442695
        %v8129 = vpow.pop %v8128
        %v8130 = vmul.f32 %v8056, 1.442695
        %v8131 = vpow.pop %v8130
        %v8132 = vmul.f32 %v8057, 1.442695
        %v8133 = vpow.pop %v8132
        %v8134 = vmul.f32 %v8058, 1.442695
        %v8135 = vpow.pop %v8134
        %v8136 = vmul.f32 %v8059, 1.442695
        %v8137 = vpow.pop %v8136
        %v8138 = vmul.f32 %v8060, 1.442695
        %v8139 = vpow.pop %v8138
        %v8140 = vmul.f32 %v8061, 1.442695
        %v8141 = vpow.pop %v8140
        %v8142 = vmul.f32 %v8062, 1.442695
        %v8143 = vpow.pop %v8142
        %v8144 = vmul.f32 %v8063, 1.442695
        %v8145 = vpow.pop %v8144
        %v8146 = vmul.f32 %v8064, 1.442695
        %v8147 = vpow.pop %v8146
        %v8148 = vmul.f32 %v8065, 1.442695
        %v8149 = vpow.pop %v8148
        %v8150 = vmul.f32 %v8066, 1.442695
        %v8151 = vpow.pop %v8150
        %v8152 = vmul.f32 %v8067, 1.442695
        %v8153 = vpow.pop %v8152
        %v8154 = vmul.f32 %v8068, 1.442695
        %v8155 = vpow.pop %v8154
        %v8156 = vmul.f32 %v8069, 1.442695
        %v8157 = vpow.pop %v8156
        %v8158 = vmul.f32 %v8070, 1.442695
        %v8159 = vpow.pop %v8158
        %v8160 = vmul.f32 %v8071, 1.442695
        %v8161 = vpow.pop %v8160
        %v8162 = vmul.f32 %v8072, 1.442695
        %v8163 = vpow.pop %v8162
        %v8164 = vmul.f32 %v8073, 1.442695
        %v8165 = vpow.pop %v8164
        %v8166 = vmul.f32 %v8074, 1.442695
        %v8167 = vpow.pop %v8166
        %v8168 = vmul.f32 %v8075, 1.442695
        %v8169 = vpow.pop %v8168
        %v8170 = vmul.f32 %v8076, 1.442695
        %v8171 = vpow.pop %v8170
        %v8172 = vmul.f32 %v8077, 1.442695
        %v8173 = vpow.pop %v8172
        %v8174 = vmul.f32 %v8078, 1.442695
        %v8175 = vpow.pop %v8174
        %v8176 = vmul.f32 %v8079, 1.442695
        %v8177 = vpow.pop %v8176
        %v8178 = vmul.f32 %v8080, 1.442695
        %v8179 = vpow.pop %v8178
        %v8180 = vmul.f32 %v8081, 1.442695
        %v8181 = vpow.pop %v8180
        %v8182 = vmul.f32 %v8082, 1.442695
        %v8183 = vpow.pop %v8182
        %v8184 = vmul.f32 %v8083, 1.442695
        %v8185 = vpow.pop %v8184
        %v8186 = vmul.f32 %v8084, 1.442695
        %v8187 = vpow.pop %v8186
        %v8188 = vmul.f32 %v8085, 1.442695
        %v8189 = vpow.pop %v8188
        %v8190 = vmul.f32 %v8086, 1.442695
        %v8191 = vpow.pop %v8190
        %v8192 = vmul.f32 %v8087, 1.442695
        %v8193 = vpow.pop %v8192
        %v8194 = vmul.f32 %v8088, 1.442695
        %v8195 = vpow.pop %v8194
        %v8196 = vmul.f32 %v8089, 1.442695
        %v8197 = vpow.pop %v8196
        %v8198 = vmul.f32 %v8090, 1.442695
        %v8199 = vpow.pop %v8198
        %v8200 = vmul.f32 %v8091, 1.442695
        %v8201 = vpow.pop %v8200
        %v8202 = vmul.f32 %v8092, 1.442695
        %v8203 = vpow.pop %v8202
        %v8204 = vmul.f32 %v8093, 1.442695
        %v8205 = vpow.pop %v8204
        %v8206 = vmul.f32 %v8094, 1.442695
        %v8207 = vpow.pop %v8206
        %v8208 = vmul.f32 %v8095, 1.442695
        %v8209 = vpow.pop %v8208
        %v8210 = vmul.f32 %v8096, 1.442695
        %v8211 = vpow.pop %v8210
        %v8212 = vmul.f32 %v8097, 1.442695
        %v8213 = vpow.pop %v8212
        %v8214 = vmul.f32 %v8098, 1.442695
        %v8215 = vpow.pop %v8214
        %v8216 = vmul.f32 %v8099, 1.442695
        %v8217 = vpow.pop %v8216
        %v8218 = vmul.f32 %v8100, 1.442695
        %v8219 = vpow.pop %v8218
        %v8220 = vmul.f32 %v8101, 1.442695
        %v8221 = vpow.pop %v8220
        %v8222 = vmul.f32 %v8102, 1.442695
        %v8223 = vpow.pop %v8222
        %v8224 = vmul.f32 %v8103, 1.442695
        %v8225 = vpow.pop %v8224
        %v8226 = vmul.f32 %v8104, 1.442695
        %v8227 = vpow.pop %v8226
        %v8228 = vmul.f32 %v8105, 1.442695
        %v8229 = vpow.pop %v8228
        %v8230 = vmul.f32 %v8106, 1.442695
        %v8231 = vpow.pop %v8230
        %v8232 = vmul.f32 %v8107, 1.442695
        %v8233 = vpow.pop %v8232
        %v8234 = vmul.f32 %v8108, 1.442695
        %v8235 = vpow.pop %v8234
        %v8236 = vmul.f32 %v8109, 1.442695
        %v8237 = vpow.pop %v8236
        %v8238 = vadd.f32 %v8111, 1.0
        %v8239 = vadd.f32 %v8113, 1.0
        %v8240 = vadd.f32 %v8115, 1.0
        %v8241 = vadd.f32 %v8117, 1.0
        %v8242 = vadd.f32 %v8119, 1.0
        %v8243 = vadd.f32 %v8121, 1.0
        %v8244 = vadd.f32 %v8123, 1.0
        %v8245 = vadd.f32 %v8125, 1.0
        %v8246 = vadd.f32 %v8127, 1.0
        %v8247 = vadd.f32 %v8129, 1.0
        %v8248 = vadd.f32 %v8131, 1.0
        %v8249 = vadd.f32 %v8133, 1.0
        %v8250 = vadd.f32 %v8135, 1.0
        %v8251 = vadd.f32 %v8137, 1.0
        %v8252 = vadd.f32 %v8139, 1.0
        %v8253 = vadd.f32 %v8141, 1.0
        %v8254 = vadd.f32 %v8143, 1.0
        %v8255 = vadd.f32 %v8145, 1.0
        %v8256 = vadd.f32 %v8147, 1.0
        %v8257 = vadd.f32 %v8149, 1.0
        %v8258 = vadd.f32 %v8151, 1.0
        %v8259 = vadd.f32 %v8153, 1.0
        %v8260 = vadd.f32 %v8155, 1.0
        %v8261 = vadd.f32 %v8157, 1.0
        %v8262 = vadd.f32 %v8159, 1.0
        %v8263 = vadd.f32 %v8161, 1.0
        %v8264 = vadd.f32 %v8163, 1.0
        %v8265 = vadd.f32 %v8165, 1.0
        %v8266 = vadd.f32 %v8167, 1.0
        %v8267 = vadd.f32 %v8169, 1.0
        %v8268 = vadd.f32 %v8171, 1.0
        %v8269 = vadd.f32 %v8173, 1.0
        %v8270 = vadd.f32 %v8175, 1.0
        %v8271 = vadd.f32 %v8177, 1.0
        %v8272 = vadd.f32 %v8179, 1.0
        %v8273 = vadd.f32 %v8181, 1.0
        %v8274 = vadd.f32 %v8183, 1.0
        %v8275 = vadd.f32 %v8185, 1.0
        %v8276 = vadd.f32 %v8187, 1.0
        %v8277 = vadd.f32 %v8189, 1.0
        %v8278 = vadd.f32 %v8191, 1.0
        %v8279 = vadd.f32 %v8193, 1.0
        %v8280 = vadd.f32 %v8195, 1.0
        %v8281 = vadd.f32 %v8197, 1.0
        %v8282 = vadd.f32 %v8199, 1.0
        %v8283 = vadd.f32 %v8201, 1.0
        %v8284 = vadd.f32 %v8203, 1.0
        %v8285 = vadd.f32 %v8205, 1.0
        %v8286 = vadd.f32 %v8207, 1.0
        %v8287 = vadd.f32 %v8209, 1.0
        %v8288 = vadd.f32 %v8211, 1.0
        %v8289 = vadd.f32 %v8213, 1.0
        %v8290 = vadd.f32 %v8215, 1.0
        %v8291 = vadd.f32 %v8217, 1.0
        %v8292 = vadd.f32 %v8219, 1.0
        %v8293 = vadd.f32 %v8221, 1.0
        %v8294 = vadd.f32 %v8223, 1.0
        %v8295 = vadd.f32 %v8225, 1.0
        %v8296 = vadd.f32 %v8227, 1.0
        %v8297 = vadd.f32 %v8229, 1.0
        %v8298 = vadd.f32 %v8231, 1.0
        %v8299 = vadd.f32 %v8233, 1.0
        %v8300 = vadd.f32 %v8235, 1.0
        %v8301 = vadd.f32 %v8237, 1.0
        %v8302 = vrcp.pop %v8238
        %v8303 = vmul.f32 1.0, %v8302
        %v8304 = vrcp.pop %v8239
        %v8305 = vmul.f32 1.0, %v8304
        %v8306 = vrcp.pop %v8240
        %v8307 = vmul.f32 1.0, %v8306
        %v8308 = vrcp.pop %v8241
        %v8309 = vmul.f32 1.0, %v8308
        %v8310 = vrcp.pop %v8242
        %v8311 = vmul.f32 1.0, %v8310
        %v8312 = vrcp.pop %v8243
        %v8313 = vmul.f32 1.0, %v8312
        %v8314 = vrcp.pop %v8244
        %v8315 = vmul.f32 1.0, %v8314
        %v8316 = vrcp.pop %v8245
        %v8317 = vmul.f32 1.0, %v8316
        %v8318 = vrcp.pop %v8246
        %v8319 = vmul.f32 1.0, %v8318
        %v8320 = vrcp.pop %v8247
        %v8321 = vmul.f32 1.0, %v8320
        %v8322 = vrcp.pop %v8248
        %v8323 = vmul.f32 1.0, %v8322
        %v8324 = vrcp.pop %v8249
        %v8325 = vmul.f32 1.0, %v8324
        %v8326 = vrcp.pop %v8250
        %v8327 = vmul.f32 1.0, %v8326
        %v8328 = vrcp.pop %v8251
        %v8329 = vmul.f32 1.0, %v8328
        %v8330 = vrcp.pop %v8252
        %v8331 = vmul.f32 1.0, %v8330
        %v8332 = vrcp.pop %v8253
        %v8333 = vmul.f32 1.0, %v8332
        %v8334 = vrcp.pop %v8254
        %v8335 = vmul.f32 1.0, %v8334
        %v8336 = vrcp.pop %v8255
        %v8337 = vmul.f32 1.0, %v8336
        %v8338 = vrcp.pop %v8256
        %v8339 = vmul.f32 1.0, %v8338
        %v8340 = vrcp.pop %v8257
        %v8341 = vmul.f32 1.0, %v8340
        %v8342 = vrcp.pop %v8258
        %v8343 = vmul.f32 1.0, %v8342
        %v8344 = vrcp.pop %v8259
        %v8345 = vmul.f32 1.0, %v8344
        %v8346 = vrcp.pop %v8260
        %v8347 = vmul.f32 1.0, %v8346
        %v8348 = vrcp.pop %v8261
        %v8349 = vmul.f32 1.0, %v8348
        %v8350 = vrcp.pop %v8262
        %v8351 = vmul.f32 1.0, %v8350
        %v8352 = vrcp.pop %v8263
        %v8353 = vmul.f32 1.0, %v8352
        %v8354 = vrcp.pop %v8264
        %v8355 = vmul.f32 1.0, %v8354
        %v8356 = vrcp.pop %v8265
        %v8357 = vmul.f32 1.0, %v8356
        %v8358 = vrcp.pop %v8266
        %v8359 = vmul.f32 1.0, %v8358
        %v8360 = vrcp.pop %v8267
        %v8361 = vmul.f32 1.0, %v8360
        %v8362 = vrcp.pop %v8268
        %v8363 = vmul.f32 1.0, %v8362
        %v8364 = vrcp.pop %v8269
        %v8365 = vmul.f32 1.0, %v8364
        %v8366 = vrcp.pop %v8270
        %v8367 = vmul.f32 1.0, %v8366
        %v8368 = vrcp.pop %v8271
        %v8369 = vmul.f32 1.0, %v8368
        %v8370 = vrcp.pop %v8272
        %v8371 = vmul.f32 1.0, %v8370
        %v8372 = vrcp.pop %v8273
        %v8373 = vmul.f32 1.0, %v8372
        %v8374 = vrcp.pop %v8274
        %v8375 = vmul.f32 1.0, %v8374
        %v8376 = vrcp.pop %v8275
        %v8377 = vmul.f32 1.0, %v8376
        %v8378 = vrcp.pop %v8276
        %v8379 = vmul.f32 1.0, %v8378
        %v8380 = vrcp.pop %v8277
        %v8381 = vmul.f32 1.0, %v8380
        %v8382 = vrcp.pop %v8278
        %v8383 = vmul.f32 1.0, %v8382
        %v8384 = vrcp.pop %v8279
        %v8385 = vmul.f32 1.0, %v8384
        %v8386 = vrcp.pop %v8280
        %v8387 = vmul.f32 1.0, %v8386
        %v8388 = vrcp.pop %v8281
        %v8389 = vmul.f32 1.0, %v8388
        %v8390 = vrcp.pop %v8282
        %v8391 = vmul.f32 1.0, %v8390
        %v8392 = vrcp.pop %v8283
        %v8393 = vmul.f32 1.0, %v8392
        %v8394 = vrcp.pop %v8284
        %v8395 = vmul.f32 1.0, %v8394
        %v8396 = vrcp.pop %v8285
        %v8397 = vmul.f32 1.0, %v8396
        %v8398 = vrcp.pop %v8286
        %v8399 = vmul.f32 1.0, %v8398
        %v8400 = vrcp.pop %v8287
        %v8401 = vmul.f32 1.0, %v8400
        %v8402 = vrcp.pop %v8288
        %v8403 = vmul.f32 1.0, %v8402
        %v8404 = vrcp.pop %v8289
        %v8405 = vmul.f32 1.0, %v8404
        %v8406 = vrcp.pop %v8290
        %v8407 = vmul.f32 1.0, %v8406
        %v8408 = vrcp.pop %v8291
        %v8409 = vmul.f32 1.0, %v8408
        %v8410 = vrcp.pop %v8292
        %v8411 = vmul.f32 1.0, %v8410
        %v8412 = vrcp.pop %v8293
        %v8413 = vmul.f32 1.0, %v8412
        %v8414 = vrcp.pop %v8294
        %v8415 = vmul.f32 1.0, %v8414
        %v8416 = vrcp.pop %v8295
        %v8417 = vmul.f32 1.0, %v8416
        %v8418 = vrcp.pop %v8296
        %v8419 = vmul.f32 1.0, %v8418
        %v8420 = vrcp.pop %v8297
        %v8421 = vmul.f32 1.0, %v8420
        %v8422 = vrcp.pop %v8298
        %v8423 = vmul.f32 1.0, %v8422
        %v8424 = vrcp.pop %v8299
        %v8425 = vmul.f32 1.0, %v8424
        %v8426 = vrcp.pop %v8300
        %v8427 = vmul.f32 1.0, %v8426
        %v8428 = vrcp.pop %v8301
        %v8429 = vmul.f32 1.0, %v8428
        %8430 = vst [vmem:[%s217 + $0x10] sm:$0xff] %v8303
        %8431 = vst [vmem:[%s217 + $0x28] sm:$0xff] %v8305
        %8432 = vst [vmem:[%s217 + $0x40] sm:$0xff] %v8307
        %8433 = vst [vmem:[%s217 + $0x58] sm:$0xff] %v8309
        %8434 = vst [vmem:[%s217 + $0x70] sm:$0xff] %v8311
        %8435 = vst [vmem:[%s217 + $0x88] sm:$0xff] %v8313
        %8436 = vst [vmem:[%s217 + $0xa0] sm:$0xff] %v8315
        %8437 = vst [vmem:[%s217 + $0xb8] sm:$0xff] %v8317
        %8438 = vst [vmem:[%s217 + $0xd0] sm:$0xff] %v8319
        %8439 = vst [vmem:[%s217 + $0xe8] sm:$0xff] %v8321
        %8440 = vst [vmem:[%s217 + $0x100] sm:$0xff] %v8323
        %8441 = vst [vmem:[%s217 + $0x118] sm:$0xff] %v8325
        %8442 = vst [vmem:[%s217 + $0x130] sm:$0xff] %v8327
        %8443 = vst [vmem:[%s217 + $0x148] sm:$0xff] %v8329
        %8444 = vst [vmem:[%s217 + $0x160] sm:$0xff] %v8331
        %8445 = vst [vmem:[%s217 + $0x178] sm:$0xff] %v8333
        %8446 = vst [vmem:[%s217 + $0x190] sm:$0xff] %v8335
        %8447 = vst [vmem:[%s217 + $0x1a8] sm:$0xff] %v8337
        %8448 = vst [vmem:[%s217 + $0x1c0] sm:$0xff] %v8339
        %8449 = vst [vmem:[%s217 + $0x1d8] sm:$0xff] %v8341
        %8450 = vst [vmem:[%s217 + $0x1f0] sm:$0xff] %v8343
        %8451 = vst [vmem:[%s217 + $0x208] sm:$0xff] %v8345
        %8452 = vst [vmem:[%s217 + $0x220] sm:$0xff] %v8347
        %8453 = vst [vmem:[%s217 + $0x238] sm:$0xff] %v8349
        %8454 = vst [vmem:[%s217 + $0x250] sm:$0xff] %v8351
        %8455 = vst [vmem:[%s217 + $0x268] sm:$0xff] %v8353
        %8456 = vst [vmem:[%s217 + $0x280] sm:$0xff] %v8355
        %8457 = vst [vmem:[%s217 + $0x298] sm:$0xff] %v8357
        %8458 = vst [vmem:[%s217 + $0x2b0] sm:$0xff] %v8359
        %8459 = vst [vmem:[%s217 + $0x2c8] sm:$0xff] %v8361
        %8460 = vst [vmem:[%s217 + $0x2e0] sm:$0xff] %v8363
        %8461 = vst [vmem:[%s217 + $0x2f8] sm:$0xff] %v8365
        %8462 = vst [vmem:[%s217 + $0x310] sm:$0xff] %v8367
        %8463 = vst [vmem:[%s217 + $0x328] sm:$0xff] %v8369
        %8464 = vst [vmem:[%s217 + $0x340] sm:$0xff] %v8371
        %8465 = vst [vmem:[%s217 + $0x358] sm:$0xff] %v8373
        %8466 = vst [vmem:[%s217 + $0x370] sm:$0xff] %v8375
        %8467 = vst [vmem:[%s217 + $0x388] sm:$0xff] %v8377
        %8468 = vst [vmem:[%s217 + $0x3a0] sm:$0xff] %v8379
        %8469 = vst [vmem:[%s217 + $0x3b8] sm:$0xff] %v8381
        %8470 = vst [vmem:[%s217 + $0x3d0] sm:$0xff] %v8383
        %8471 = vst [vmem:[%s217 + $0x3e8] sm:$0xff] %v8385
        %8472 = vst [vmem:[%s217 + $0x400] sm:$0xff] %v8387
        %8473 = vst [vmem:[%s217 + $0x418] sm:$0xff] %v8389
        %8474 = vst [vmem:[%s217 + $0x430] sm:$0xff] %v8391
        %8475 = vst [vmem:[%s217 + $0x448] sm:$0xff] %v8393
        %8476 = vst [vmem:[%s217 + $0x460] sm:$0xff] %v8395
        %8477 = vst [vmem:[%s217 + $0x478] sm:$0xff] %v8397
        %8478 = vst [vmem:[%s217 + $0x490] sm:$0xff] %v8399
        %8479 = vst [vmem:[%s217 + $0x4a8] sm:$0xff] %v8401
        %8480 = vst [vmem:[%s217 + $0x4c0] sm:$0xff] %v8403
        %8481 = vst [vmem:[%s217 + $0x4d8] sm:$0xff] %v8405
        %8482 = vst [vmem:[%s217 + $0x4f0] sm:$0xff] %v8407
        %8483 = vst [vmem:[%s217 + $0x508] sm:$0xff] %v8409
        %8484 = vst [vmem:[%s217 + $0x520] sm:$0xff] %v8411
        %8485 = vst [vmem:[%s217 + $0x538] sm:$0xff] %v8413
        %8486 = vst [vmem:[%s217 + $0x550] sm:$0xff] %v8415
        %8487 = vst [vmem:[%s217 + $0x568] sm:$0xff] %v8417
        %8488 = vst [vmem:[%s217 + $0x580] sm:$0xff] %v8419
        %8489 = vst [vmem:[%s217 + $0x598] sm:$0xff] %v8421
        %8490 = vst [vmem:[%s217 + $0x5b0] sm:$0xff] %v8423
        %8491 = vst [vmem:[%s217 + $0x5c8] sm:$0xff] %v8425
        %8492 = vst [vmem:[%s217 + $0x5e0] sm:$0xff] %v8427
        %8493 = vst [vmem:[%s217 + $0x5f8] sm:$0xff] %v8429
        %s8494 = sand.u32 %s97, 1
        %s8495 = scalar_lea.sflag [#allocation4], %s8494
        %s8496 = sand.u32 %s97, 1
        %s8497 = smul.addr %s8496, 1536
        %s8498 = scalar_lea.vmem [#allocation8], %s8497
        // Predicated region
        $region45: #{tpu_custom_call.1} parent=31 // pred_check
          %p8499 = pneg %p107
        $region46: #{tpu_custom_call.1} parent=31 // pred_check_branch
          %8501 = sbr.rel (%p8499) target = $region48
        $region47: #{tpu_custom_call.1} parent=31 // pred_region
          %s8502 = smul.u32 64, %s21
          %s8504 = ssub.s32 24576, 24576
          %8505 = vsyncadd %s8495, %s8504
          %s8506 = smul.addr %s8502, 3
          %s8507 = smul.addr %s8506, 128
          %s8508 = scalar_lea.hbm %s3, %s8507
          %s8509 = sshll.u32 %s8498, 4
          %s8510 = int_to_ptr.vmem [resolvable:$true] %s8509
          %8515 = dma.vmem_to_hbm [thread:$0]  %s8510, 24576, %s8508, %s8495, 384, 384, 24
        $region48: #{tpu_custom_call.1} parent=31 // pred_fallthru
          _
      $region32: #{tpu_custom_call.1} parent=5 // pred_fallthru
        _
      %p8516 = scmp.le.s32.totalorder 2, %s16
      // Predicated region
      $region49: #{tpu_custom_call.1} parent=5 // pred_check
        %p8517 = pneg %p8516
      $region50: #{tpu_custom_call.1} parent=5 // pred_check_branch
        %8519 = sbr.rel (%p8517) target = $region52
      $region51: #{tpu_custom_call.1} parent=5 // pred_region
        %s8520 = ssub.s32 %s16, 2
        // Predicated region
        $region53: #{tpu_custom_call.1} parent=51 // pred_check
          %p8521 = pneg %p113
        $region54: #{tpu_custom_call.1} parent=51 // pred_check_branch
          %8523 = sbr.rel (%p8521) target = $region56
        $region55: #{tpu_custom_call.1} parent=51 // pred_region
          %s8524 = sand.u32 %s98, 1
          %s8525 = scalar_lea.sflag [#allocation4], %s8524
          %s8526 = sand.u32 %s98, 1
          %s8527 = smul.addr %s8526, 1536
          %s8528 = scalar_lea.vmem [#allocation8], %s8527
          %8529 = dma.done %s8525, 24576
        $region56: #{tpu_custom_call.1} parent=51 // pred_fallthru
          _
      $region52: #{tpu_custom_call.1} parent=5 // pred_fallthru
        _
    $region6: #{tpu_custom_call.1} parent=1 // loop_footer
      %s20 = sadd.s32 1, %s16
    $region7: #{tpu_custom_call.1} parent=1 // loop_footer_branch
      %15 = sbr.rel target = $region3
    $region8: #{tpu_custom_call.1} parent=1 // loop_exit
      _
    %8530 = vsyncpa [#allocation3], 1
    %s8531 = scalar_lea.sflag [#allocation3], 1
    %8532 = vsyncpa %s8531, 1
    %8533 = vsyncpa [#allocation6], 1
    %8534 = vsyncpa [#allocation4], 1
    %s8535 = scalar_lea.sflag [#allocation4], 1
    %8536 = vsyncpa %s8535, 1

</llo_original>
